<compile_context>
chip_gen: v7x
topology: tpu7x:2x2x1
jax: 0.10.0
libtpu: 0.0.40
codegen_flags: <defaults>
</compile_context>

<pallas_src>
import jax
import jax.numpy as jnp
import numpy as np
from jax.experimental import pallas as pl
from jax.experimental.pallas import tpu as pltpu

BN_EPS = 1e-5


def double_conv_kernel(x_ref, w1_ref, s1_ref, b1_ref, w2_ref, s2_ref, b2_ref,
                       out_ref, pad1_ref, pad2_ref, col1_ref, col2_ref):
    """Fused (conv3x3 + eval-BN + ReLU) x 2 for a block of `Nb` samples.

    x_ref    : (Nb, H, W, Cin)    bf16 input block
    w1_ref   : (9*Cin,  Cout)     bf16 im2col-packed conv1 weights
    w2_ref   : (9*Cout, Cout)     bf16 im2col-packed conv2 weights
    s*/b*    : (1, Cout)          f32 folded BN scale / bias (conv bias folded in)
    out_ref  : (Nb, Cout, H*W)    f32 lane-dense NCHW-flat output block
    pad*_ref : (Nb, H+2, W+2, C)  bf16 zero-padded conv-input scratch
    col*_ref : (Nb, H, W, 9*C)    bf16 im2col scratch
    """
    Nb, H, W, Cin = x_ref.shape
    Cout = out_ref.shape[1]
    HW = H * W

    def write_padded(pad_ref, interior):
        # Megacore note: each core has its own scratch and only one core runs step 0,
        # so the zero fill must happen every step (a pl.when(step==0) init is unsafe).
        # One dense zero store + one interior store.
        pad_ref[...] = jnp.zeros_like(pad_ref)
        pad_ref[:, 1:H + 1, 1:W + 1, :] = interior

    def conv3x3_bn_relu(pad_ref, col_ref, w_ref, s_ref, b_ref, c_in):
        # im2col straight from the padded *ref* (padded tile never materialized in
        # vregs): 9 shifted taps -> one K-packed MXU matmul with K = 9*c_in.
        for dh in range(3):
            for dw in range(3):
                t = dh * 3 + dw
                col_ref[:, :, :, t * c_in:(t + 1) * c_in] = (
                    pad_ref[:, dh:dh + H, dw:dw + W, :])
        lhs = col_ref[...].reshape(Nb * HW, 9 * c_in)            # bf16, lane dim kept
        acc = jnp.dot(lhs, w_ref[...],
                      preferred_element_type=jnp.float32)        # (Nb*HW, Cout) f32
        # folded eval-mode BN (+ conv bias), then ReLU -- pure f32 epilogue.
        return jnp.maximum(acc * s_ref[...] + b_ref[...], 0.0)

    # conv1: stage the bf16 input in the padded scratch.
    write_padded(pad1_ref, x_ref[...])
    h1 = conv3x3_bn_relu(pad1_ref, col1_ref, w1_ref, s1_ref, b1_ref, Cin)

    # conv2: conv1's activation goes straight into conv2's padded scratch (bf16).
    write_padded(pad2_ref, h1.astype(jnp.bfloat16).reshape(Nb, H, W, Cout))
    h2 = conv3x3_bn_relu(pad2_ref, col2_ref, w2_ref, s2_ref, b2_ref, Cout)

    # Lane-dense output: (HW, Cout) -> (Cout, HW) per sample so H*W sits on the lane
    # dim (full-width unmasked stores); the small transpose rides the idle XLU slot.
    for i in range(Nb):
        out_ref[i] = h2[i * HW:(i + 1) * HW, :].T.astype(out_ref.dtype)


def double_conv_forward(x_nchw, params, block_n=None):
    """Pallas implementation of DoubleConv.forward. Input/output in NCHW like PyTorch."""
    N, Cin, H, W = x_nchw.shape
    Cout = params["w1"].shape[0]

    # glue: NCHW -> NHWC, bf16 on the wire (halves HBM traffic into the kernel).
    x_nhwc = jnp.transpose(x_nchw, (0, 2, 3, 1)).astype(jnp.bfloat16)

    # glue: fold conv bias + eval-mode BN into per-channel scale/bias; pack weights
    # OIHW -> (kh, kw, cin, cout) -> (9*cin, cout) to match the im2col column order
    # (column index = (kh*3 + kw)*cin + cin_idx).
    def fold(w_oihw, b, gamma, beta, mean, var):
        c_out, c_in = w_oihw.shape[0], w_oihw.shape[1]
        scale = gamma / jnp.sqrt(var + BN_EPS)
        bias = (b - mean) * scale + beta
        w_mat = jnp.transpose(w_oihw, (2, 3, 1, 0)).reshape(9 * c_in, c_out)
        return (w_mat.astype(jnp.bfloat16),
                scale.reshape(1, -1).astype(jnp.float32),
                bias.reshape(1, -1).astype(jnp.float32))

    w1, s1, b1 = fold(params["w1"], params["b1"], params["gamma1"], params["beta1"],
                      params["mean1"], params["var1"])
    w2, s2, b2 = fold(params["w2"], params["b2"], params["gamma2"], params["beta2"],
                      params["mean2"], params["var2"])

    if block_n is None:
        # Fatter grid steps amortize per-step overhead, but keep >= 2 steps so both
        # v7x TensorCores get work under dimension_semantics=("parallel",).
        block_n = max(1, N // 2)
        while N % block_n:
            block_n -= 1
    grid = (N // block_n,)

    grid_spec = pltpu.PrefetchScalarGridSpec(
        num_scalar_prefetch=0,
        grid=grid,
        in_specs=[
            pl.BlockSpec((block_n, H, W, Cin), lambda n: (n, 0, 0, 0)),
            pl.BlockSpec((9 * Cin, Cout), lambda n: (0, 0)),
            pl.BlockSpec((1, Cout), lambda n: (0, 0)),
            pl.BlockSpec((1, Cout), lambda n: (0, 0)),
            pl.BlockSpec((9 * Cout, Cout), lambda n: (0, 0)),
            pl.BlockSpec((1, Cout), lambda n: (0, 0)),
            pl.BlockSpec((1, Cout), lambda n: (0, 0)),
        ],
        out_specs=pl.BlockSpec((block_n, Cout, H * W), lambda n: (n, 0, 0)),
        scratch_shapes=[
            pltpu.VMEM((block_n, H + 2, W + 2, Cin), jnp.bfloat16),   # conv1 padded in
            pltpu.VMEM((block_n, H + 2, W + 2, Cout), jnp.bfloat16),  # conv2 padded in
            pltpu.VMEM((block_n, H, W, 9 * Cin), jnp.bfloat16),       # conv1 im2col
            pltpu.VMEM((block_n, H, W, 9 * Cout), jnp.bfloat16),      # conv2 im2col
        ],
    )

    out_flat = pl.pallas_call(
        double_conv_kernel,
        out_shape=jax.ShapeDtypeStruct((N, Cout, H * W), jnp.float32),
        grid_spec=grid_spec,
        compiler_params=pltpu.CompilerParams(
            dimension_semantics=("parallel",),
            # explicit + safe at these toy shapes; re-derive per chip for real sizes.
            vmem_limit_bytes=32 * 1024 * 1024,
        ),
    )(x_nhwc, w1, s1, b1, w2, s2, b2)

    # NCHW-flat -> NCHW: contiguous metadata reshape, no HBM layout pass.
    return out_flat.reshape(N, Cout, H, W)


# ---------------- pure-JAX reference (PyTorch eval-mode semantics) ----------------
def _conv_bn_relu_ref(x, w, b, gamma, beta, mean, var):
    y = jax.lax.conv_general_dilated(
        x, w, window_strides=(1, 1), padding="SAME",
        dimension_numbers=("NCHW", "OIHW", "NCHW"),
        precision=jax.lax.Precision.HIGHEST)
    y = y + b[None, :, None, None]
    y = (y - mean[None, :, None, None]) / jnp.sqrt(var[None, :, None, None] + BN_EPS)
    y = y * gamma[None, :, None, None] + beta[None, :, None, None]
    return jnp.maximum(y, 0.0)


def reference_forward(x, p, quantize_like_kernel=False):
    """DoubleConv reference. With quantize_like_kernel=True the conv operands are
    rounded to bf16 exactly like the Pallas kernel (f32 accumulation), isolating
    implementation error from the intentional bf16 MXU quantization."""
    if quantize_like_kernel:
        q = lambda a: a.astype(jnp.bfloat16).astype(jnp.float32)
    else:
        q = lambda a: a
    h = _conv_bn_relu_ref(q(x), q(p["w1"]), p["b1"], p["gamma1"], p["beta1"],
                          p["mean1"], p["var1"])
    return _conv_bn_relu_ref(q(h), q(p["w2"]), p["b2"], p["gamma2"], p["beta2"],
                             p["mean2"], p["var2"])


def init_params(key, cin, cout):
    ks = jax.random.split(key, 12)
    f32 = jnp.float32
    return {
        "w1": 0.2 * jax.random.normal(ks[0], (cout, cin, 3, 3), f32),
        "b1": 0.1 * jax.random.normal(ks[1], (cout,), f32),
        "gamma1": 1.0 + 0.1 * jax.random.normal(ks[2], (cout,), f32),
        "beta1": 0.1 * jax.random.normal(ks[3], (cout,), f32),
        "mean1": 0.1 * jax.random.normal(ks[4], (cout,), f32),
        "var1": jax.random.uniform(ks[5], (cout,), f32, 0.5, 1.5),
        "w2": 0.2 * jax.random.normal(ks[6], (cout, cout, 3, 3), f32),
        "b2": 0.1 * jax.random.normal(ks[7], (cout,), f32),
        "gamma2": 1.0 + 0.1 * jax.random.normal(ks[8], (cout,), f32),
        "beta2": 0.1 * jax.random.normal(ks[9], (cout,), f32),
        "mean2": 0.1 * jax.random.normal(ks[10], (cout,), f32),
        "var2": jax.random.uniform(ks[11], (cout,), f32, 0.5, 1.5),
    }


if __name__ == "__main__":
    N, Cin, H, W = 2, 4, 16, 16
    Cout = 8

    key = jax.random.PRNGKey(0)
    kx, kp = jax.random.split(key)
    x = jax.random.normal(kx, (N, Cin, H, W), jnp.float32)
    params = init_params(kp, Cin, Cout)

    y = jax.block_until_ready(double_conv_forward(x, params))
    assert y.shape == (N, Cout, H, W), y.shape

    # 1) implementation correctness: reference with the same bf16 operand rounding.
    y_ref_q = jax.block_until_ready(reference_forward(x, params, quantize_like_kernel=True))
    np.testing.assert_allclose(np.asarray(y), np.asarray(y_ref_q), rtol=5e-3, atol=5e-3)

    # 2) module semantics: full-f32 PyTorch eval forward (gap = bf16 MXU quantization).
    y_ref = jax.block_until_ready(reference_forward(x, params))
    np.testing.assert_allclose(np.asarray(y), np.asarray(y_ref), rtol=1e-1, atol=1e-1)

    print("KERNEL_OK")
</pallas_src>

<mosaic_0001>
module attributes {stable_mosaic.version = 11 : i64} {
  func.func @double_conv_kernel(%arg0: i32, %arg1: memref<1x16x16x4xbf16, #tpu.memory_space<vmem>>, %arg2: memref<36x8xbf16, #tpu.memory_space<vmem>>, %arg3: memref<1x8xf32, #tpu.memory_space<vmem>>, %arg4: memref<1x8xf32, #tpu.memory_space<vmem>>, %arg5: memref<72x8xbf16, #tpu.memory_space<vmem>>, %arg6: memref<1x8xf32, #tpu.memory_space<vmem>>, %arg7: memref<1x8xf32, #tpu.memory_space<vmem>>, %arg8: memref<1x8x256xf32, #tpu.memory_space<vmem>>, %arg9: memref<1x18x18x4xbf16, #tpu.memory_space<vmem>>, %arg10: memref<1x18x18x8xbf16, #tpu.memory_space<vmem>>, %arg11: memref<1x16x16x36xbf16, #tpu.memory_space<vmem>>, %arg12: memref<1x16x16x72xbf16, #tpu.memory_space<vmem>>) attributes {dimension_semantics = [#tpu.dimension_semantics<parallel>], iteration_bounds = array<i64: 2>, scalar_prefetch = 0 : i64, scratch_operands = 4 : i64, tpu.core_type = #tpu.core_type<tc>, window_params = [{transform_indices = @transform_0, window_bounds = array<i64: 1, 16, 16, 4>}, {pipeline_mode = #tpu.pipeline_mode<synchronous>, transform_indices = @transform_1, window_bounds = array<i64: 36, 8>}, {pipeline_mode = #tpu.pipeline_mode<synchronous>, transform_indices = @transform_2, window_bounds = array<i64: 1, 8>}, {pipeline_mode = #tpu.pipeline_mode<synchronous>, transform_indices = @transform_3, window_bounds = array<i64: 1, 8>}, {pipeline_mode = #tpu.pipeline_mode<synchronous>, transform_indices = @transform_4, window_bounds = array<i64: 72, 8>}, {pipeline_mode = #tpu.pipeline_mode<synchronous>, transform_indices = @transform_5, window_bounds = array<i64: 1, 8>}, {pipeline_mode = #tpu.pipeline_mode<synchronous>, transform_indices = @transform_6, window_bounds = array<i64: 1, 8>}, {transform_indices = @transform_7, window_bounds = array<i64: 1, 8, 256>}]} {
    %c0 = arith.constant 0 : index
    %c0_0 = arith.constant 0 : index
    %c0_1 = arith.constant 0 : index
    %c0_2 = arith.constant 0 : index
    %0 = vector.load %arg1[%c0, %c0_0, %c0_1, %c0_2] : memref<1x16x16x4xbf16, #tpu.memory_space<vmem>>, vector<1x16x16x4xbf16>
    %cst = arith.constant 0.000000e+00 : bf16
    %1 = vector.broadcast %cst : bf16 to vector<1x18x18x4xbf16>
    %c0_3 = arith.constant 0 : index
    %c0_4 = arith.constant 0 : index
    %c0_5 = arith.constant 0 : index
    %c0_6 = arith.constant 0 : index
    %2 = vector.load %arg9[%c0_3, %c0_4, %c0_5, %c0_6] : memref<1x18x18x4xbf16, #tpu.memory_space<vmem>>, vector<1x18x18x4xbf16>
    tpu.vector_store %arg9[%c0_3, %c0_4, %c0_5, %c0_6], %1 {strides = array<i32>} : memref<1x18x18x4xbf16, #tpu.memory_space<vmem>>, vector<1x18x18x4xbf16>,
    %c0_7 = arith.constant 0 : index
    %c1 = arith.constant 1 : index
    %c1_8 = arith.constant 1 : index
    %c0_9 = arith.constant 0 : index
    %3 = vector.load %arg9[%c0_7, %c1, %c1_8, %c0_9] : memref<1x18x18x4xbf16, #tpu.memory_space<vmem>>, vector<1x16x16x4xbf16>
    tpu.vector_store %arg9[%c0_7, %c1, %c1_8, %c0_9], %0 {strides = array<i32>} : memref<1x18x18x4xbf16, #tpu.memory_space<vmem>>, vector<1x16x16x4xbf16>,
    %c0_10 = arith.constant 0 : index
    %c0_11 = arith.constant 0 : index
    %c0_12 = arith.constant 0 : index
    %c0_13 = arith.constant 0 : index
    %4 = vector.load %arg9[%c0_10, %c0_11, %c0_12, %c0_13] : memref<1x18x18x4xbf16, #tpu.memory_space<vmem>>, vector<1x16x16x4xbf16>
    %c0_14 = arith.constant 0 : index
    %c0_15 = arith.constant 0 : index
    %c0_16 = arith.constant 0 : index
    %c0_17 = arith.constant 0 : index
    %5 = vector.load %arg11[%c0_14, %c0_15, %c0_16, %c0_17] : memref<1x16x16x36xbf16, #tpu.memory_space<vmem>>, vector<1x16x16x4xbf16>
    tpu.vector_store %arg11[%c0_14, %c0_15, %c0_16, %c0_17], %4 {strides = array<i32>} : memref<1x16x16x36xbf16, #tpu.memory_space<vmem>>, vector<1x16x16x4xbf16>,
    %c0_18 = arith.constant 0 : index
    %c0_19 = arith.constant 0 : index
    %c1_20 = arith.constant 1 : index
    %c0_21 = arith.constant 0 : index
    %6 = vector.load %arg9[%c0_18, %c0_19, %c1_20, %c0_21] : memref<1x18x18x4xbf16, #tpu.memory_space<vmem>>, vector<1x16x16x4xbf16>
    %c0_22 = arith.constant 0 : index
    %c0_23 = arith.constant 0 : index
    %c0_24 = arith.constant 0 : index
    %c4 = arith.constant 4 : index
    %7 = vector.load %arg11[%c0_22, %c0_23, %c0_24, %c4] : memref<1x16x16x36xbf16, #tpu.memory_space<vmem>>, vector<1x16x16x4xbf16>
    tpu.vector_store %arg11[%c0_22, %c0_23, %c0_24, %c4], %6 {strides = array<i32>} : memref<1x16x16x36xbf16, #tpu.memory_space<vmem>>, vector<1x16x16x4xbf16>,
    %c0_25 = arith.constant 0 : index
    %c0_26 = arith.constant 0 : index
    %c2 = arith.constant 2 : index
    %c0_27 = arith.constant 0 : index
    %8 = vector.load %arg9[%c0_25, %c0_26, %c2, %c0_27] : memref<1x18x18x4xbf16, #tpu.memory_space<vmem>>, vector<1x16x16x4xbf16>
    %c0_28 = arith.constant 0 : index
    %c0_29 = arith.constant 0 : index
    %c0_30 = arith.constant 0 : index
    %c8 = arith.constant 8 : index
    %9 = vector.load %arg11[%c0_28, %c0_29, %c0_30, %c8] : memref<1x16x16x36xbf16, #tpu.memory_space<vmem>>, vector<1x16x16x4xbf16>
    tpu.vector_store %arg11[%c0_28, %c0_29, %c0_30, %c8], %8 {strides = array<i32>} : memref<1x16x16x36xbf16, #tpu.memory_space<vmem>>, vector<1x16x16x4xbf16>,
    %c0_31 = arith.constant 0 : index
    %c1_32 = arith.constant 1 : index
    %c0_33 = arith.constant 0 : index
    %c0_34 = arith.constant 0 : index
    %10 = vector.load %arg9[%c0_31, %c1_32, %c0_33, %c0_34] : memref<1x18x18x4xbf16, #tpu.memory_space<vmem>>, vector<1x16x16x4xbf16>
    %c0_35 = arith.constant 0 : index
    %c0_36 = arith.constant 0 : index
    %c0_37 = arith.constant 0 : index
    %c12 = arith.constant 12 : index
    %11 = vector.load %arg11[%c0_35, %c0_36, %c0_37, %c12] : memref<1x16x16x36xbf16, #tpu.memory_space<vmem>>, vector<1x16x16x4xbf16>
    tpu.vector_store %arg11[%c0_35, %c0_36, %c0_37, %c12], %10 {strides = array<i32>} : memref<1x16x16x36xbf16, #tpu.memory_space<vmem>>, vector<1x16x16x4xbf16>,
    %c0_38 = arith.constant 0 : index
    %c1_39 = arith.constant 1 : index
    %c1_40 = arith.constant 1 : index
    %c0_41 = arith.constant 0 : index
    %12 = vector.load %arg9[%c0_38, %c1_39, %c1_40, %c0_41] : memref<1x18x18x4xbf16, #tpu.memory_space<vmem>>, vector<1x16x16x4xbf16>
    %c0_42 = arith.constant 0 : index
    %c0_43 = arith.constant 0 : index
    %c0_44 = arith.constant 0 : index
    %c16 = arith.constant 16 : index
    %13 = vector.load %arg11[%c0_42, %c0_43, %c0_44, %c16] : memref<1x16x16x36xbf16, #tpu.memory_space<vmem>>, vector<1x16x16x4xbf16>
    tpu.vector_store %arg11[%c0_42, %c0_43, %c0_44, %c16], %12 {strides = array<i32>} : memref<1x16x16x36xbf16, #tpu.memory_space<vmem>>, vector<1x16x16x4xbf16>,
    %c0_45 = arith.constant 0 : index
    %c1_46 = arith.constant 1 : index
    %c2_47 = arith.constant 2 : index
    %c0_48 = arith.constant 0 : index
    %14 = vector.load %arg9[%c0_45, %c1_46, %c2_47, %c0_48] : memref<1x18x18x4xbf16, #tpu.memory_space<vmem>>, vector<1x16x16x4xbf16>
    %c0_49 = arith.constant 0 : index
    %c0_50 = arith.constant 0 : index
    %c0_51 = arith.constant 0 : index
    %c20 = arith.constant 20 : index
    %15 = vector.load %arg11[%c0_49, %c0_50, %c0_51, %c20] : memref<1x16x16x36xbf16, #tpu.memory_space<vmem>>, vector<1x16x16x4xbf16>
    tpu.vector_store %arg11[%c0_49, %c0_50, %c0_51, %c20], %14 {strides = array<i32>} : memref<1x16x16x36xbf16, #tpu.memory_space<vmem>>, vector<1x16x16x4xbf16>,
    %c0_52 = arith.constant 0 : index
    %c2_53 = arith.constant 2 : index
    %c0_54 = arith.constant 0 : index
    %c0_55 = arith.constant 0 : index
    %16 = vector.load %arg9[%c0_52, %c2_53, %c0_54, %c0_55] : memref<1x18x18x4xbf16, #tpu.memory_space<vmem>>, vector<1x16x16x4xbf16>
    %c0_56 = arith.constant 0 : index
    %c0_57 = arith.constant 0 : index
    %c0_58 = arith.constant 0 : index
    %c24 = arith.constant 24 : index
    %17 = vector.load %arg11[%c0_56, %c0_57, %c0_58, %c24] : memref<1x16x16x36xbf16, #tpu.memory_space<vmem>>, vector<1x16x16x4xbf16>
    tpu.vector_store %arg11[%c0_56, %c0_57, %c0_58, %c24], %16 {strides = array<i32>} : memref<1x16x16x36xbf16, #tpu.memory_space<vmem>>, vector<1x16x16x4xbf16>,
    %c0_59 = arith.constant 0 : index
    %c2_60 = arith.constant 2 : index
    %c1_61 = arith.constant 1 : index
    %c0_62 = arith.constant 0 : index
    %18 = vector.load %arg9[%c0_59, %c2_60, %c1_61, %c0_62] : memref<1x18x18x4xbf16, #tpu.memory_space<vmem>>, vector<1x16x16x4xbf16>
    %c0_63 = arith.constant 0 : index
    %c0_64 = arith.constant 0 : index
    %c0_65 = arith.constant 0 : index
    %c28 = arith.constant 28 : index
    %19 = vector.load %arg11[%c0_63, %c0_64, %c0_65, %c28] : memref<1x16x16x36xbf16, #tpu.memory_space<vmem>>, vector<1x16x16x4xbf16>
    tpu.vector_store %arg11[%c0_63, %c0_64, %c0_65, %c28], %18 {strides = array<i32>} : memref<1x16x16x36xbf16, #tpu.memory_space<vmem>>, vector<1x16x16x4xbf16>,
    %c0_66 = arith.constant 0 : index
    %c2_67 = arith.constant 2 : index
    %c2_68 = arith.constant 2 : index
    %c0_69 = arith.constant 0 : index
    %20 = vector.load %arg9[%c0_66, %c2_67, %c2_68, %c0_69] : memref<1x18x18x4xbf16, #tpu.memory_space<vmem>>, vector<1x16x16x4xbf16>
    %c0_70 = arith.constant 0 : index
    %c0_71 = arith.constant 0 : index
    %c0_72 = arith.constant 0 : index
    %c32 = arith.constant 32 : index
    %21 = vector.load %arg11[%c0_70, %c0_71, %c0_72, %c32] : memref<1x16x16x36xbf16, #tpu.memory_space<vmem>>, vector<1x16x16x4xbf16>
    tpu.vector_store %arg11[%c0_70, %c0_71, %c0_72, %c32], %20 {strides = array<i32>} : memref<1x16x16x36xbf16, #tpu.memory_space<vmem>>, vector<1x16x16x4xbf16>,
    %c0_73 = arith.constant 0 : index
    %c0_74 = arith.constant 0 : index
    %c0_75 = arith.constant 0 : index
    %c0_76 = arith.constant 0 : index
    %22 = vector.load %arg11[%c0_73, %c0_74, %c0_75, %c0_76] : memref<1x16x16x36xbf16, #tpu.memory_space<vmem>>, vector<1x16x16x36xbf16>
    %23 = vector.shape_cast %22 : vector<1x16x16x36xbf16> to vector<256x36xbf16>
    %c0_77 = arith.constant 0 : index
    %c0_78 = arith.constant 0 : index
    %24 = vector.load %arg2[%c0_77, %c0_78] : memref<36x8xbf16, #tpu.memory_space<vmem>>, vector<36x8xbf16>
    %cst_79 = arith.constant dense<0.000000e+00> : vector<256x8xf32>
    %25 = tpu.matmul %23, %24, %cst_79 {dimension_numbers = #tpu.dot_dimension_numbers<[1], [0], [0], [1], [0, 0, 1, 1], [], []>} : vector<256x36xbf16>, vector<36x8xbf16>, vector<256x8xf32> -> vector<256x8xf32>
    %c0_80 = arith.constant 0 : index
    %c0_81 = arith.constant 0 : index
    %26 = vector.load %arg3[%c0_80, %c0_81] : memref<1x8xf32, #tpu.memory_space<vmem>>, vector<1x8xf32>
    %27 = vector.broadcast %26 : vector<1x8xf32> to vector<256x8xf32>
    %28 = arith.mulf %25, %27 : vector<256x8xf32>
    %c0_82 = arith.constant 0 : index
    %c0_83 = arith.constant 0 : index
    %29 = vector.load %arg4[%c0_82, %c0_83] : memref<1x8xf32, #tpu.memory_space<vmem>>, vector<1x8xf32>
    %30 = vector.broadcast %29 : vector<1x8xf32> to vector<256x8xf32>
    %31 = arith.addf %28, %30 : vector<256x8xf32>
    %cst_84 = arith.constant 0.000000e+00 : f32
    %32 = vector.broadcast %cst_84 : f32 to vector<256x8xf32>
    %33 = arith.maximumf %31, %32 : vector<256x8xf32>
    %34 = arith.truncf %33 : vector<256x8xf32> to vector<256x8xbf16>
    %35 = vector.shape_cast %34 : vector<256x8xbf16> to vector<1x16x16x8xbf16>
    %cst_85 = arith.constant 0.000000e+00 : bf16
    %36 = vector.broadcast %cst_85 : bf16 to vector<1x18x18x8xbf16>
    %c0_86 = arith.constant 0 : index
    %c0_87 = arith.constant 0 : index
    %c0_88 = arith.constant 0 : index
    %c0_89 = arith.constant 0 : index
    %37 = vector.load %arg10[%c0_86, %c0_87, %c0_88, %c0_89] : memref<1x18x18x8xbf16, #tpu.memory_space<vmem>>, vector<1x18x18x8xbf16>
    tpu.vector_store %arg10[%c0_86, %c0_87, %c0_88, %c0_89], %36 {strides = array<i32>} : memref<1x18x18x8xbf16, #tpu.memory_space<vmem>>, vector<1x18x18x8xbf16>,
    %c0_90 = arith.constant 0 : index
    %c1_91 = arith.constant 1 : index
    %c1_92 = arith.constant 1 : index
    %c0_93 = arith.constant 0 : index
    %38 = vector.load %arg10[%c0_90, %c1_91, %c1_92, %c0_93] : memref<1x18x18x8xbf16, #tpu.memory_space<vmem>>, vector<1x16x16x8xbf16>
    tpu.vector_store %arg10[%c0_90, %c1_91, %c1_92, %c0_93], %35 {strides = array<i32>} : memref<1x18x18x8xbf16, #tpu.memory_space<vmem>>, vector<1x16x16x8xbf16>,
    %c0_94 = arith.constant 0 : index
    %c0_95 = arith.constant 0 : index
    %c0_96 = arith.constant 0 : index
    %c0_97 = arith.constant 0 : index
    %39 = vector.load %arg10[%c0_94, %c0_95, %c0_96, %c0_97] : memref<1x18x18x8xbf16, #tpu.memory_space<vmem>>, vector<1x16x16x8xbf16>
    %c0_98 = arith.constant 0 : index
    %c0_99 = arith.constant 0 : index
    %c0_100 = arith.constant 0 : index
    %c0_101 = arith.constant 0 : index
    %40 = vector.load %arg12[%c0_98, %c0_99, %c0_100, %c0_101] : memref<1x16x16x72xbf16, #tpu.memory_space<vmem>>, vector<1x16x16x8xbf16>
    tpu.vector_store %arg12[%c0_98, %c0_99, %c0_100, %c0_101], %39 {strides = array<i32>} : memref<1x16x16x72xbf16, #tpu.memory_space<vmem>>, vector<1x16x16x8xbf16>,
    %c0_102 = arith.constant 0 : index
    %c0_103 = arith.constant 0 : index
    %c1_104 = arith.constant 1 : index
    %c0_105 = arith.constant 0 : index
    %41 = vector.load %arg10[%c0_102, %c0_103, %c1_104, %c0_105] : memref<1x18x18x8xbf16, #tpu.memory_space<vmem>>, vector<1x16x16x8xbf16>
    %c0_106 = arith.constant 0 : index
    %c0_107 = arith.constant 0 : index
    %c0_108 = arith.constant 0 : index
    %c8_109 = arith.constant 8 : index
    %42 = vector.load %arg12[%c0_106, %c0_107, %c0_108, %c8_109] : memref<1x16x16x72xbf16, #tpu.memory_space<vmem>>, vector<1x16x16x8xbf16>
    tpu.vector_store %arg12[%c0_106, %c0_107, %c0_108, %c8_109], %41 {strides = array<i32>} : memref<1x16x16x72xbf16, #tpu.memory_space<vmem>>, vector<1x16x16x8xbf16>,
    %c0_110 = arith.constant 0 : index
    %c0_111 = arith.constant 0 : index
    %c2_112 = arith.constant 2 : index
    %c0_113 = arith.constant 0 : index
    %43 = vector.load %arg10[%c0_110, %c0_111, %c2_112, %c0_113] : memref<1x18x18x8xbf16, #tpu.memory_space<vmem>>, vector<1x16x16x8xbf16>
    %c0_114 = arith.constant 0 : index
    %c0_115 = arith.constant 0 : index
    %c0_116 = arith.constant 0 : index
    %c16_117 = arith.constant 16 : index
    %44 = vector.load %arg12[%c0_114, %c0_115, %c0_116, %c16_117] : memref<1x16x16x72xbf16, #tpu.memory_space<vmem>>, vector<1x16x16x8xbf16>
    tpu.vector_store %arg12[%c0_114, %c0_115, %c0_116, %c16_117], %43 {strides = array<i32>} : memref<1x16x16x72xbf16, #tpu.memory_space<vmem>>, vector<1x16x16x8xbf16>,
    %c0_118 = arith.constant 0 : index
    %c1_119 = arith.constant 1 : index
    %c0_120 = arith.constant 0 : index
    %c0_121 = arith.constant 0 : index
    %45 = vector.load %arg10[%c0_118, %c1_119, %c0_120, %c0_121] : memref<1x18x18x8xbf16, #tpu.memory_space<vmem>>, vector<1x16x16x8xbf16>
    %c0_122 = arith.constant 0 : index
    %c0_123 = arith.constant 0 : index
    %c0_124 = arith.constant 0 : index
    %c24_125 = arith.constant 24 : index
    %46 = vector.load %arg12[%c0_122, %c0_123, %c0_124, %c24_125] : memref<1x16x16x72xbf16, #tpu.memory_space<vmem>>, vector<1x16x16x8xbf16>
    tpu.vector_store %arg12[%c0_122, %c0_123, %c0_124, %c24_125], %45 {strides = array<i32>} : memref<1x16x16x72xbf16, #tpu.memory_space<vmem>>, vector<1x16x16x8xbf16>,
    %c0_126 = arith.constant 0 : index
    %c1_127 = arith.constant 1 : index
    %c1_128 = arith.constant 1 : index
    %c0_129 = arith.constant 0 : index
    %47 = vector.load %arg10[%c0_126, %c1_127, %c1_128, %c0_129] : memref<1x18x18x8xbf16, #tpu.memory_space<vmem>>, vector<1x16x16x8xbf16>
    %c0_130 = arith.constant 0 : index
    %c0_131 = arith.constant 0 : index
    %c0_132 = arith.constant 0 : index
    %c32_133 = arith.constant 32 : index
    %48 = vector.load %arg12[%c0_130, %c0_131, %c0_132, %c32_133] : memref<1x16x16x72xbf16, #tpu.memory_space<vmem>>, vector<1x16x16x8xbf16>
    tpu.vector_store %arg12[%c0_130, %c0_131, %c0_132, %c32_133], %47 {strides = array<i32>} : memref<1x16x16x72xbf16, #tpu.memory_space<vmem>>, vector<1x16x16x8xbf16>,
    %c0_134 = arith.constant 0 : index
    %c1_135 = arith.constant 1 : index
    %c2_136 = arith.constant 2 : index
    %c0_137 = arith.constant 0 : index
    %49 = vector.load %arg10[%c0_134, %c1_135, %c2_136, %c0_137] : memref<1x18x18x8xbf16, #tpu.memory_space<vmem>>, vector<1x16x16x8xbf16>
    %c0_138 = arith.constant 0 : index
    %c0_139 = arith.constant 0 : index
    %c0_140 = arith.constant 0 : index
    %c40 = arith.constant 40 : index
    %50 = vector.load %arg12[%c0_138, %c0_139, %c0_140, %c40] : memref<1x16x16x72xbf16, #tpu.memory_space<vmem>>, vector<1x16x16x8xbf16>
    tpu.vector_store %arg12[%c0_138, %c0_139, %c0_140, %c40], %49 {strides = array<i32>} : memref<1x16x16x72xbf16, #tpu.memory_space<vmem>>, vector<1x16x16x8xbf16>,
    %c0_141 = arith.constant 0 : index
    %c2_142 = arith.constant 2 : index
    %c0_143 = arith.constant 0 : index
    %c0_144 = arith.constant 0 : index
    %51 = vector.load %arg10[%c0_141, %c2_142, %c0_143, %c0_144] : memref<1x18x18x8xbf16, #tpu.memory_space<vmem>>, vector<1x16x16x8xbf16>
    %c0_145 = arith.constant 0 : index
    %c0_146 = arith.constant 0 : index
    %c0_147 = arith.constant 0 : index
    %c48 = arith.constant 48 : index
    %52 = vector.load %arg12[%c0_145, %c0_146, %c0_147, %c48] : memref<1x16x16x72xbf16, #tpu.memory_space<vmem>>, vector<1x16x16x8xbf16>
    tpu.vector_store %arg12[%c0_145, %c0_146, %c0_147, %c48], %51 {strides = array<i32>} : memref<1x16x16x72xbf16, #tpu.memory_space<vmem>>, vector<1x16x16x8xbf16>,
    %c0_148 = arith.constant 0 : index
    %c2_149 = arith.constant 2 : index
    %c1_150 = arith.constant 1 : index
    %c0_151 = arith.constant 0 : index
    %53 = vector.load %arg10[%c0_148, %c2_149, %c1_150, %c0_151] : memref<1x18x18x8xbf16, #tpu.memory_space<vmem>>, vector<1x16x16x8xbf16>
    %c0_152 = arith.constant 0 : index
    %c0_153 = arith.constant 0 : index
    %c0_154 = arith.constant 0 : index
    %c56 = arith.constant 56 : index
    %54 = vector.load %arg12[%c0_152, %c0_153, %c0_154, %c56] : memref<1x16x16x72xbf16, #tpu.memory_space<vmem>>, vector<1x16x16x8xbf16>
    tpu.vector_store %arg12[%c0_152, %c0_153, %c0_154, %c56], %53 {strides = array<i32>} : memref<1x16x16x72xbf16, #tpu.memory_space<vmem>>, vector<1x16x16x8xbf16>,
    %c0_155 = arith.constant 0 : index
    %c2_156 = arith.constant 2 : index
    %c2_157 = arith.constant 2 : index
    %c0_158 = arith.constant 0 : index
    %55 = vector.load %arg10[%c0_155, %c2_156, %c2_157, %c0_158] : memref<1x18x18x8xbf16, #tpu.memory_space<vmem>>, vector<1x16x16x8xbf16>
    %c0_159 = arith.constant 0 : index
    %c0_160 = arith.constant 0 : index
    %c0_161 = arith.constant 0 : index
    %c64 = arith.constant 64 : index
    %56 = vector.load %arg12[%c0_159, %c0_160, %c0_161, %c64] : memref<1x16x16x72xbf16, #tpu.memory_space<vmem>>, vector<1x16x16x8xbf16>
    tpu.vector_store %arg12[%c0_159, %c0_160, %c0_161, %c64], %55 {strides = array<i32>} : memref<1x16x16x72xbf16, #tpu.memory_space<vmem>>, vector<1x16x16x8xbf16>,
    %c0_162 = arith.constant 0 : index
    %c0_163 = arith.constant 0 : index
    %c0_164 = arith.constant 0 : index
    %c0_165 = arith.constant 0 : index
    %57 = vector.load %arg12[%c0_162, %c0_163, %c0_164, %c0_165] : memref<1x16x16x72xbf16, #tpu.memory_space<vmem>>, vector<1x16x16x72xbf16>
    %58 = vector.shape_cast %57 : vector<1x16x16x72xbf16> to vector<256x72xbf16>
    %c0_166 = arith.constant 0 : index
    %c0_167 = arith.constant 0 : index
    %59 = vector.load %arg5[%c0_166, %c0_167] : memref<72x8xbf16, #tpu.memory_space<vmem>>, vector<72x8xbf16>
    %cst_168 = arith.constant dense<0.000000e+00> : vector<256x8xf32>
    %60 = tpu.matmul %58, %59, %cst_168 {dimension_numbers = #tpu.dot_dimension_numbers<[1], [0], [0], [1], [0, 0, 1, 1], [], []>} : vector<256x72xbf16>, vector<72x8xbf16>, vector<256x8xf32> -> vector<256x8xf32>
    %c0_169 = arith.constant 0 : index
    %c0_170 = arith.constant 0 : index
    %61 = vector.load %arg6[%c0_169, %c0_170] : memref<1x8xf32, #tpu.memory_space<vmem>>, vector<1x8xf32>
    %62 = vector.broadcast %61 : vector<1x8xf32> to vector<256x8xf32>
    %63 = arith.mulf %60, %62 : vector<256x8xf32>
    %c0_171 = arith.constant 0 : index
    %c0_172 = arith.constant 0 : index
    %64 = vector.load %arg7[%c0_171, %c0_172] : memref<1x8xf32, #tpu.memory_space<vmem>>, vector<1x8xf32>
    %65 = vector.broadcast %64 : vector<1x8xf32> to vector<256x8xf32>
    %66 = arith.addf %63, %65 : vector<256x8xf32>
    %cst_173 = arith.constant 0.000000e+00 : f32
    %67 = vector.broadcast %cst_173 : f32 to vector<256x8xf32>
    %68 = arith.maximumf %66, %67 : vector<256x8xf32>
    %69 = tpu.transpose %68, [1, 0] : vector<256x8xf32> -> vector<8x256xf32>
    %c0_174 = arith.constant 0 : index
    %c0_175 = arith.constant 0 : index
    %c0_176 = arith.constant 0 : index
    %70 = vector.load %arg8[%c0_174, %c0_175, %c0_176] : memref<1x8x256xf32, #tpu.memory_space<vmem>>, vector<1x8x256xf32>
    %71 = vector.shape_cast %70 : vector<1x8x256xf32> to vector<8x256xf32>
    %72 = vector.shape_cast %69 : vector<8x256xf32> to vector<1x8x256xf32>
    tpu.vector_store %arg8[%c0_174, %c0_175, %c0_176], %72 {strides = array<i32>} : memref<1x8x256xf32, #tpu.memory_space<vmem>>, vector<1x8x256xf32>,
    return
  }
  func.func @transform_0(%arg0: i32) -> (i32, i32, i32, i32) {
    %c0_i32 = arith.constant 0 : i32
    %c0_i32_0 = arith.constant 0 : i32
    %c0_i32_1 = arith.constant 0 : i32
    %c0_i32_2 = arith.constant 0 : i32
    return %arg0, %c0_i32, %c0_i32_0, %c0_i32_1 : i32, i32, i32, i32
  }
  func.func @transform_1(%arg0: i32) -> (i32, i32) {
    %c0_i32 = arith.constant 0 : i32
    %c0_i32_0 = arith.constant 0 : i32
    %c0_i32_1 = arith.constant 0 : i32
    return %c0_i32, %c0_i32_0 : i32, i32
  }
  func.func @transform_2(%arg0: i32) -> (i32, i32) {
    %c0_i32 = arith.constant 0 : i32
    %c0_i32_0 = arith.constant 0 : i32
    %c0_i32_1 = arith.constant 0 : i32
    return %c0_i32, %c0_i32_0 : i32, i32
  }
  func.func @transform_3(%arg0: i32) -> (i32, i32) {
    %c0_i32 = arith.constant 0 : i32
    %c0_i32_0 = arith.constant 0 : i32
    %c0_i32_1 = arith.constant 0 : i32
    return %c0_i32, %c0_i32_0 : i32, i32
  }
  func.func @transform_4(%arg0: i32) -> (i32, i32) {
    %c0_i32 = arith.constant 0 : i32
    %c0_i32_0 = arith.constant 0 : i32
    %c0_i32_1 = arith.constant 0 : i32
    return %c0_i32, %c0_i32_0 : i32, i32
  }
  func.func @transform_5(%arg0: i32) -> (i32, i32) {
    %c0_i32 = arith.constant 0 : i32
    %c0_i32_0 = arith.constant 0 : i32
    %c0_i32_1 = arith.constant 0 : i32
    return %c0_i32, %c0_i32_0 : i32, i32
  }
  func.func @transform_6(%arg0: i32) -> (i32, i32) {
    %c0_i32 = arith.constant 0 : i32
    %c0_i32_0 = arith.constant 0 : i32
    %c0_i32_1 = arith.constant 0 : i32
    return %c0_i32, %c0_i32_0 : i32, i32
  }
  func.func @transform_7(%arg0: i32) -> (i32, i32, i32) {
    %c0_i32 = arith.constant 0 : i32
    %c0_i32_0 = arith.constant 0 : i32
    %c0_i32_1 = arith.constant 0 : i32
    return %arg0, %c0_i32, %c0_i32_0 : i32, i32, i32
  }
}

</mosaic_0001>

<llo_original>
// kernel: tpu_custom_call.1
$region0: #{tpu_custom_call.1}
  #allocation0 [shape = 'u32[]', space=smem, size = 0x4, offset = 0x4, fixed_abs, tag = 'smem constant byte address 0x4 - core index']
  #allocation1 [shape = 'u32[144,128]{1,0:T(1,128)}', space=vmem, size = 0x12000, scoped, tag = 'internal scratch']
  #allocation2 [shape = 'bf16[1,18,18,4]{3,2,1,0:T(8,128)(2,1)}', space=vmem, size = 0x1b000, scoped, tag = 'scratch operand']
  #allocation3 [shape = 'bf16[1,18,18,8]{3,2,1,0:T(8,128)(2,1)}', space=vmem, size = 0x1b000, scoped, tag = 'scratch operand']
  #allocation4 [shape = 'bf16[1,16,16,36]{3,2,1,0:T(16,128)(2,1)}', space=vmem, size = 0x10000, scoped, tag = 'scratch operand']
  #allocation5 [shape = 'bf16[1,16,16,72]{3,2,1,0:T(16,128)(2,1)}', space=vmem, size = 0x10000, scoped, tag = 'scratch operand']
  %s0 = inlined_call_operand.vmem [shape: bf16[2,16,16,4], index: 0, kind: input, shape index: {}]
  %s1 = inlined_call_operand.vmem [shape: bf16[36,8], index: 1, kind: input, shape index: {}]
  %s2 = inlined_call_operand.vmem [shape: f32[1,8], index: 2, kind: input, shape index: {}]
  %s3 = inlined_call_operand.vmem [shape: f32[1,8], index: 3, kind: input, shape index: {}]
  %s4 = inlined_call_operand.vmem [shape: bf16[72,8], index: 4, kind: input, shape index: {}]
  %s5 = inlined_call_operand.vmem [shape: f32[1,8], index: 5, kind: input, shape index: {}]
  %s6 = inlined_call_operand.vmem [shape: f32[1,8], index: 6, kind: input, shape index: {}]
  %s7 = inlined_call_operand.hbm [shape: f32[2,8,256], index: 7, kind: output, shape index: {}]
  %s8 = sld [smem:[#allocation0]]
  $region61: #{tpu_custom_call.1} parent=0
    _
  %s10 = ssub.s32 1, %s8
  %s11 = scalar_select 0, %s10, %s8
  $region1: #{tpu_custom_call.1} parent=0
    #allocation6 [shape = 'u8[16384]{0}', space=vmem, size = 0x4000, scoped, tag = 'output window, operand 0']
    #allocation7 [shape = 's32[2]{0}', space=sflag, size = 0x8, scoped, tag = 'scoped memory for tpu_custom_call.1']
    %12 = vsyncpa [#allocation7], 0
    %s13 = scalar_lea.sflag [#allocation7], 1
    %14 = vsyncpa %s13, 0
    loop: start=0, step=1, limit=4
    $region2: #{tpu_custom_call.1} parent=1 // loop_pre_header
      _
    $region3: #{tpu_custom_call.1} parent=1 // loop_header
      %s16 = sphi 0, %s20
      %p17 = scmp.ge.s32.totalorder %s16, 4
      %s26 = sphi 0, %s28
      %s29 = sphi 0, %s26
      %s30 = sphi 0, %s29
      %s46 = sphi 0, %s30
      %s50 = sphi 0, %s50
      %s52 = sphi 0, %s50
      %s53 = sphi 0, %s52
      %s67 = sphi 0, %s53
      %s71 = sphi 0, %s71
      %s73 = sphi 0, %s71
      %s74 = sphi 0, %s73
      %s88 = sphi 0, %s74
      %s92 = sphi 0, %s92
      %s94 = sphi 0, %s92
      %s95 = sphi 0, %s94
      %s109 = sphi 0, %s95
      %s113 = sphi 0, %s113
      %s115 = sphi 0, %s113
      %s116 = sphi 0, %s115
      %s130 = sphi 0, %s116
      %s134 = sphi 0, %s134
      %s136 = sphi 0, %s134
      %s137 = sphi 0, %s136
      %s151 = sphi 0, %s137
      %s155 = sphi 0, %s155
      %s157 = sphi 0, %s155
      %s158 = sphi 0, %s157
      %s172 = sphi 0, %s158
      %s178 = sphi 0, %s180
      %s181 = sphi 0, %s178
      %s182 = sphi 0, %s181
      %s198 = sphi 0, %s182
    $region4: #{tpu_custom_call.1} parent=1 // loop_header_branch
      %19 = sbr.rel (%p17) target = $region8
    $region5: #{tpu_custom_call.1} parent=1 // loop_body
      %s21 = ssub.s32 %s16, 1
      %s22 = ssub.s32 %s16, 2
      %s23 = sadd.s32 %s16, 1
      %s24 = ssub.s32 %s16, %s23
      %p25 = scmp.eq.s32.totalorder %s24, 0
      %s27 = sadd.s32 %s26, 1
      %s28 = scalar_select %p25, %s26, %s27
      %p31 = pneg %p25
      %p32 = scmp.eq.s32.totalorder %s16, 1
      %p33 = por %p31, %p32
      %p34 = scmp.ne.s32.totalorder %s26, %s29
      %p35 = scmp.eq.s32.totalorder %s16, 0
      %p36 = por %p34, %p35
      %p37 = scmp.ne.s32.totalorder %s26, %s29
      %p38 = scmp.eq.s32.totalorder %s21, 1
      %p39 = por %p37, %p38
      %p40 = scmp.ne.s32.totalorder %s29, %s30
      %p41 = scmp.eq.s32.totalorder %s21, 0
      %p42 = por %p40, %p41
      %p43 = scmp.ne.s32.totalorder %s29, %s30
      %p44 = scmp.eq.s32.totalorder %s22, 1
      %p45 = por %p43, %p44
      %p47 = scmp.ne.s32.totalorder %s30, %s46
      %p48 = scmp.eq.s32.totalorder %s22, 0
      %p49 = por %p47, %p48
      %s51 = sadd.s32 %s50, 1
      %p54 = scmp.eq.s32.totalorder %s16, 1
      %p55 = scmp.ne.s32.totalorder %s50, %s52
      %p56 = scmp.eq.s32.totalorder %s16, 0
      %p57 = por %p55, %p56
      %p58 = scmp.ne.s32.totalorder %s50, %s52
      %p59 = scmp.eq.s32.totalorder %s21, 1
      %p60 = por %p58, %p59
      %p61 = scmp.ne.s32.totalorder %s52, %s53
      %p62 = scmp.eq.s32.totalorder %s21, 0
      %p63 = por %p61, %p62
      %p64 = scmp.ne.s32.totalorder %s52, %s53
      %p65 = scmp.eq.s32.totalorder %s22, 1
      %p66 = por %p64, %p65
      %p68 = scmp.ne.s32.totalorder %s53, %s67
      %p69 = scmp.eq.s32.totalorder %s22, 0
      %p70 = por %p68, %p69
      %s72 = sadd.s32 %s71, 1
      %p75 = scmp.eq.s32.totalorder %s16, 1
      %p76 = scmp.ne.s32.totalorder %s71, %s73
      %p77 = scmp.eq.s32.totalorder %s16, 0
      %p78 = por %p76, %p77
      %p79 = scmp.ne.s32.totalorder %s71, %s73
      %p80 = scmp.eq.s32.totalorder %s21, 1
      %p81 = por %p79, %p80
      %p82 = scmp.ne.s32.totalorder %s73, %s74
      %p83 = scmp.eq.s32.totalorder %s21, 0
      %p84 = por %p82, %p83
      %p85 = scmp.ne.s32.totalorder %s73, %s74
      %p86 = scmp.eq.s32.totalorder %s22, 1
      %p87 = por %p85, %p86
      %p89 = scmp.ne.s32.totalorder %s74, %s88
      %p90 = scmp.eq.s32.totalorder %s22, 0
      %p91 = por %p89, %p90
      %s93 = sadd.s32 %s92, 1
      %p96 = scmp.eq.s32.totalorder %s16, 1
      %p97 = scmp.ne.s32.totalorder %s92, %s94
      %p98 = scmp.eq.s32.totalorder %s16, 0
      %p99 = por %p97, %p98
      %p100 = scmp.ne.s32.totalorder %s92, %s94
      %p101 = scmp.eq.s32.totalorder %s21, 1
      %p102 = por %p100, %p101
      %p103 = scmp.ne.s32.totalorder %s94, %s95
      %p104 = scmp.eq.s32.totalorder %s21, 0
      %p105 = por %p103, %p104
      %p106 = scmp.ne.s32.totalorder %s94, %s95
      %p107 = scmp.eq.s32.totalorder %s22, 1
      %p108 = por %p106, %p107
      %p110 = scmp.ne.s32.totalorder %s95, %s109
      %p111 = scmp.eq.s32.totalorder %s22, 0
      %p112 = por %p110, %p111
      %s114 = sadd.s32 %s113, 1
      %p117 = scmp.eq.s32.totalorder %s16, 1
      %p118 = scmp.ne.s32.totalorder %s113, %s115
      %p119 = scmp.eq.s32.totalorder %s16, 0
      %p120 = por %p118, %p119
      %p121 = scmp.ne.s32.totalorder %s113, %s115
      %p122 = scmp.eq.s32.totalorder %s21, 1
      %p123 = por %p121, %p122
      %p124 = scmp.ne.s32.totalorder %s115, %s116
      %p125 = scmp.eq.s32.totalorder %s21, 0
      %p126 = por %p124, %p125
      %p127 = scmp.ne.s32.totalorder %s115, %s116
      %p128 = scmp.eq.s32.totalorder %s22, 1
      %p129 = por %p127, %p128
      %p131 = scmp.ne.s32.totalorder %s116, %s130
      %p132 = scmp.eq.s32.totalorder %s22, 0
      %p133 = por %p131, %p132
      %s135 = sadd.s32 %s134, 1
      %p138 = scmp.eq.s32.totalorder %s16, 1
      %p139 = scmp.ne.s32.totalorder %s134, %s136
      %p140 = scmp.eq.s32.totalorder %s16, 0
      %p141 = por %p139, %p140
      %p142 = scmp.ne.s32.totalorder %s134, %s136
      %p143 = scmp.eq.s32.totalorder %s21, 1
      %p144 = por %p142, %p143
      %p145 = scmp.ne.s32.totalorder %s136, %s137
      %p146 = scmp.eq.s32.totalorder %s21, 0
      %p147 = por %p145, %p146
      %p148 = scmp.ne.s32.totalorder %s136, %s137
      %p149 = scmp.eq.s32.totalorder %s22, 1
      %p150 = por %p148, %p149
      %p152 = scmp.ne.s32.totalorder %s137, %s151
      %p153 = scmp.eq.s32.totalorder %s22, 0
      %p154 = por %p152, %p153
      %s156 = sadd.s32 %s155, 1
      %p159 = scmp.eq.s32.totalorder %s16, 1
      %p160 = scmp.ne.s32.totalorder %s155, %s157
      %p161 = scmp.eq.s32.totalorder %s16, 0
      %p162 = por %p160, %p161
      %p163 = scmp.ne.s32.totalorder %s155, %s157
      %p164 = scmp.eq.s32.totalorder %s21, 1
      %p165 = por %p163, %p164
      %p166 = scmp.ne.s32.totalorder %s157, %s158
      %p167 = scmp.eq.s32.totalorder %s21, 0
      %p168 = por %p166, %p167
      %p169 = scmp.ne.s32.totalorder %s157, %s158
      %p170 = scmp.eq.s32.totalorder %s22, 1
      %p171 = por %p169, %p170
      %p173 = scmp.ne.s32.totalorder %s158, %s172
      %p174 = scmp.eq.s32.totalorder %s22, 0
      %p175 = por %p173, %p174
      %s176 = ssub.s32 %s16, %s23
      %p177 = scmp.eq.s32.totalorder %s176, 0
      %s179 = sadd.s32 %s178, 1
      %s180 = scalar_select %p177, %s178, %s179
      %p183 = pneg %p177
      %p184 = scmp.eq.s32.totalorder %s16, 1
      %p185 = por %p183, %p184
      %p186 = scmp.ne.s32.totalorder %s178, %s181
      %p187 = scmp.eq.s32.totalorder %s16, 0
      %p188 = por %p186, %p187
      %p189 = scmp.ne.s32.totalorder %s178, %s181
      %p190 = scmp.eq.s32.totalorder %s21, 1
      %p191 = por %p189, %p190
      %p192 = scmp.ne.s32.totalorder %s181, %s182
      %p193 = scmp.eq.s32.totalorder %s21, 0
      %p194 = por %p192, %p193
      %p195 = scmp.ne.s32.totalorder %s181, %s182
      %p196 = scmp.eq.s32.totalorder %s22, 1
      %p197 = por %p195, %p196
      %p199 = scmp.ne.s32.totalorder %s182, %s198
      %p200 = scmp.eq.s32.totalorder %s22, 0
      %p201 = por %p199, %p200
      %p202 = scmp.le.s32.totalorder 1, %s16
      %p203 = scmp.lt.s32.totalorder %s16, 3
      %p204 = pnand %p202, %p203
      %p205 = pneg %p204
      // Predicated region
      $region9: #{tpu_custom_call.1} parent=5 // pred_check
        _
      $region10: #{tpu_custom_call.1} parent=5 // pred_check_branch
        %207 = sbr.rel (%p204) target = $region12
      $region11: #{tpu_custom_call.1} parent=5 // pred_region
        %s208 = ssub.s32 %s16, 1
        // Predicated region
        $region13: #{tpu_custom_call.1} parent=11 // pred_check
          %p209 = pneg %p63
        $region14: #{tpu_custom_call.1} parent=11 // pred_check_branch
          %211 = sbr.rel (%p209) target = $region16
        $region15: #{tpu_custom_call.1} parent=11 // pred_region
          _
        $region16: #{tpu_custom_call.1} parent=11 // pred_fallthru
          _
        // Predicated region
        $region17: #{tpu_custom_call.1} parent=11 // pred_check
          %p212 = pneg %p84
        $region18: #{tpu_custom_call.1} parent=11 // pred_check_branch
          %214 = sbr.rel (%p212) target = $region20
        $region19: #{tpu_custom_call.1} parent=11 // pred_region
          _
        $region20: #{tpu_custom_call.1} parent=11 // pred_fallthru
          _
        // Predicated region
        $region21: #{tpu_custom_call.1} parent=11 // pred_check
          %p215 = pneg %p105
        $region22: #{tpu_custom_call.1} parent=11 // pred_check_branch
          %217 = sbr.rel (%p215) target = $region24
        $region23: #{tpu_custom_call.1} parent=11 // pred_region
          _
        $region24: #{tpu_custom_call.1} parent=11 // pred_fallthru
          _
        // Predicated region
        $region25: #{tpu_custom_call.1} parent=11 // pred_check
          %p218 = pneg %p126
        $region26: #{tpu_custom_call.1} parent=11 // pred_check_branch
          %220 = sbr.rel (%p218) target = $region28
        $region27: #{tpu_custom_call.1} parent=11 // pred_region
          _
        $region28: #{tpu_custom_call.1} parent=11 // pred_fallthru
          _
        // Predicated region
        $region29: #{tpu_custom_call.1} parent=11 // pred_check
          %p221 = pneg %p147
        $region30: #{tpu_custom_call.1} parent=11 // pred_check_branch
          %223 = sbr.rel (%p221) target = $region32
        $region31: #{tpu_custom_call.1} parent=11 // pred_region
          _
        $region32: #{tpu_custom_call.1} parent=11 // pred_fallthru
          _
        // Predicated region
        $region33: #{tpu_custom_call.1} parent=11 // pred_check
          %p224 = pneg %p168
        $region34: #{tpu_custom_call.1} parent=11 // pred_check_branch
          %226 = sbr.rel (%p224) target = $region36
        $region35: #{tpu_custom_call.1} parent=11 // pred_region
          _
        $region36: #{tpu_custom_call.1} parent=11 // pred_fallthru
          _
      $region12: #{tpu_custom_call.1} parent=5 // pred_fallthru
        _
      %p227 = scmp.lt.s32.totalorder %s16, 2
      // Predicated region
      $region37: #{tpu_custom_call.1} parent=5 // pred_check
        %p228 = pneg %p227
      $region38: #{tpu_custom_call.1} parent=5 // pred_check_branch
        %230 = sbr.rel (%p228) target = $region40
      $region39: #{tpu_custom_call.1} parent=5 // pred_region
        // Predicated region
        $region41: #{tpu_custom_call.1} parent=39 // pred_check
          %p231 = pneg %p36
        $region42: #{tpu_custom_call.1} parent=39 // pred_check_branch
          %233 = sbr.rel (%p231) target = $region44
        $region43: #{tpu_custom_call.1} parent=39 // pred_region
          %p234 = scmp.lt.s32.totalorder %s16, 1
          %s235 = scalar_select %p234, %s16, 1
          %s236 = smul.addr %s235, 32
          %s237 = smul.addr %s236, 4
          %s238 = scalar_lea.vmem %s0, %s237
        $region44: #{tpu_custom_call.1} parent=39 // pred_fallthru
          _
      $region40: #{tpu_custom_call.1} parent=5 // pred_fallthru
        _
      %p239 = scmp.le.s32.totalorder 1, %s16
      %p240 = scmp.lt.s32.totalorder %s16, 3
      %p241 = pnand %p239, %p240
      %p242 = pneg %p241
      // Predicated region
      $region45: #{tpu_custom_call.1} parent=5 // pred_check
        _
      $region46: #{tpu_custom_call.1} parent=5 // pred_check_branch
        %244 = sbr.rel (%p241) target = $region48
      $region47: #{tpu_custom_call.1} parent=5 // pred_region
        %s245 = ssub.s32 %s16, 1
        %p246 = scmp.lt.s32.totalorder %s21, 1
        %s247 = scalar_select %p246, %s21, 1
        %s248 = smul.addr %s247, 32
        %s249 = smul.addr %s248, 4
        %s250 = scalar_lea.vmem %s0, %s249
        %p251 = pneg %p42
        %p252 = pneg %p39
        %p253 = pneg %p63
        %p254 = pneg %p60
        %p255 = pneg %p84
        %p256 = pneg %p81
        %p257 = pneg %p105
        %p258 = pneg %p102
        %p259 = pneg %p126
        %p260 = pneg %p123
        %p261 = pneg %p147
        %p262 = pneg %p144
        %p263 = pneg %p168
        %p264 = pneg %p165
        %p265 = pneg %p194
        %p266 = pneg %p191
        %s267 = sand.u32 %s181, 1
        %s268 = scalar_lea.sflag [#allocation7], %s267
        %s269 = sand.u32 %s181, 1
        %s270 = smul.addr %s269, 16
        %s271 = scalar_lea.vmem [#allocation6], %s270
        %p272 = scmp.lt.s32.totalorder %s21, 1
        %s273 = scalar_select %p272, %s21, 1
        %s274 = smul.addr %s273, 32
        %s275 = smul.addr %s274, 4
        %s276 = scalar_lea.vmem %s0, %s275
        %v278 = vld [vmem:[%s276] sm:$0xf]
        %v279 = vld [vmem:[%s276 + $0x4] sm:$0xf]
        %v280 = vld [vmem:[%s276 + $0x8] sm:$0xf]
        %v281 = vld [vmem:[%s276 + $0xc] sm:$0xf]
        %v282 = vld [vmem:[%s276 + $0x10] sm:$0xf]
        %v283 = vld [vmem:[%s276 + $0x14] sm:$0xf]
        %v284 = vld [vmem:[%s276 + $0x18] sm:$0xf]
        %v285 = vld [vmem:[%s276 + $0x1c] sm:$0xf]
        %v286 = vld [vmem:[%s276 + $0x20] sm:$0xf]
        %v287 = vld [vmem:[%s276 + $0x24] sm:$0xf]
        %v288 = vld [vmem:[%s276 + $0x28] sm:$0xf]
        %v289 = vld [vmem:[%s276 + $0x2c] sm:$0xf]
        %v290 = vld [vmem:[%s276 + $0x30] sm:$0xf]
        %v291 = vld [vmem:[%s276 + $0x34] sm:$0xf]
        %v292 = vld [vmem:[%s276 + $0x38] sm:$0xf]
        %v293 = vld [vmem:[%s276 + $0x3c] sm:$0xf]
        %v294 = vld [vmem:[%s276 + $0x40] sm:$0xf]
        %v295 = vld [vmem:[%s276 + $0x44] sm:$0xf]
        %v296 = vld [vmem:[%s276 + $0x48] sm:$0xf]
        %v297 = vld [vmem:[%s276 + $0x4c] sm:$0xf]
        %v298 = vld [vmem:[%s276 + $0x50] sm:$0xf]
        %v299 = vld [vmem:[%s276 + $0x54] sm:$0xf]
        %v300 = vld [vmem:[%s276 + $0x58] sm:$0xf]
        %v301 = vld [vmem:[%s276 + $0x5c] sm:$0xf]
        %v302 = vld [vmem:[%s276 + $0x60] sm:$0xf]
        %v303 = vld [vmem:[%s276 + $0x64] sm:$0xf]
        %v304 = vld [vmem:[%s276 + $0x68] sm:$0xf]
        %v305 = vld [vmem:[%s276 + $0x6c] sm:$0xf]
        %v306 = vld [vmem:[%s276 + $0x70] sm:$0xf]
        %v307 = vld [vmem:[%s276 + $0x74] sm:$0xf]
        %v308 = vld [vmem:[%s276 + $0x78] sm:$0xf]
        %v309 = vld [vmem:[%s276 + $0x7c] sm:$0xf]
        %vm310 = vcmask 27648
        %311 = vst.msk [vmem:[#allocation2] sm:$0xf] %vm310, 0
        %312 = vst.msk [vmem:[#allocation2 + $0x4] sm:$0xf] %vm310, 0
        %vm313 = vcmask 24576
        %314 = vst.msk [vmem:[#allocation2 + $0x8] sm:$0x1] %vm313, 0
        %315 = vst.msk [vmem:[#allocation2 + $0xc] sm:$0xf] %vm310, 0
        %316 = vst.msk [vmem:[#allocation2 + $0x10] sm:$0xf] %vm310, 0
        %317 = vst.msk [vmem:[#allocation2 + $0x14] sm:$0x1] %vm313, 0
        %318 = vst.msk [vmem:[#allocation2 + $0x18] sm:$0xf] %vm310, 0
        %319 = vst.msk [vmem:[#allocation2 + $0x1c] sm:$0xf] %vm310, 0
        %320 = vst.msk [vmem:[#allocation2 + $0x20] sm:$0x1] %vm313, 0
        %321 = vst.msk [vmem:[#allocation2 + $0x24] sm:$0xf] %vm310, 0
        %322 = vst.msk [vmem:[#allocation2 + $0x28] sm:$0xf] %vm310, 0
        %323 = vst.msk [vmem:[#allocation2 + $0x2c] sm:$0x1] %vm313, 0
        %324 = vst.msk [vmem:[#allocation2 + $0x30] sm:$0xf] %vm310, 0
        %325 = vst.msk [vmem:[#allocation2 + $0x34] sm:$0xf] %vm310, 0
        %326 = vst.msk [vmem:[#allocation2 + $0x38] sm:$0x1] %vm313, 0
        %327 = vst.msk [vmem:[#allocation2 + $0x3c] sm:$0xf] %vm310, 0
        %328 = vst.msk [vmem:[#allocation2 + $0x40] sm:$0xf] %vm310, 0
        %329 = vst.msk [vmem:[#allocation2 + $0x44] sm:$0x1] %vm313, 0
        %330 = vst.msk [vmem:[#allocation2 + $0x48] sm:$0xf] %vm310, 0
        %331 = vst.msk [vmem:[#allocation2 + $0x4c] sm:$0xf] %vm310, 0
        %332 = vst.msk [vmem:[#allocation2 + $0x50] sm:$0x1] %vm313, 0
        %333 = vst.msk [vmem:[#allocation2 + $0x54] sm:$0xf] %vm310, 0
        %334 = vst.msk [vmem:[#allocation2 + $0x58] sm:$0xf] %vm310, 0
        %335 = vst.msk [vmem:[#allocation2 + $0x5c] sm:$0x1] %vm313, 0
        %336 = vst.msk [vmem:[#allocation2 + $0x60] sm:$0xf] %vm310, 0
        %337 = vst.msk [vmem:[#allocation2 + $0x64] sm:$0xf] %vm310, 0
        %338 = vst.msk [vmem:[#allocation2 + $0x68] sm:$0x1] %vm313, 0
        %339 = vst.msk [vmem:[#allocation2 + $0x6c] sm:$0xf] %vm310, 0
        %340 = vst.msk [vmem:[#allocation2 + $0x70] sm:$0xf] %vm310, 0
        %341 = vst.msk [vmem:[#allocation2 + $0x74] sm:$0x1] %vm313, 0
        %342 = vst.msk [vmem:[#allocation2 + $0x78] sm:$0xf] %vm310, 0
        %343 = vst.msk [vmem:[#allocation2 + $0x7c] sm:$0xf] %vm310, 0
        %344 = vst.msk [vmem:[#allocation2 + $0x80] sm:$0x1] %vm313, 0
        %345 = vst.msk [vmem:[#allocation2 + $0x84] sm:$0xf] %vm310, 0
        %346 = vst.msk [vmem:[#allocation2 + $0x88] sm:$0xf] %vm310, 0
        %347 = vst.msk [vmem:[#allocation2 + $0x8c] sm:$0x1] %vm313, 0
        %348 = vst.msk [vmem:[#allocation2 + $0x90] sm:$0xf] %vm310, 0
        %349 = vst.msk [vmem:[#allocation2 + $0x94] sm:$0xf] %vm310, 0
        %350 = vst.msk [vmem:[#allocation2 + $0x98] sm:$0x1] %vm313, 0
        %351 = vst.msk [vmem:[#allocation2 + $0x9c] sm:$0xf] %vm310, 0
        %352 = vst.msk [vmem:[#allocation2 + $0xa0] sm:$0xf] %vm310, 0
        %353 = vst.msk [vmem:[#allocation2 + $0xa4] sm:$0x1] %vm313, 0
        %354 = vst.msk [vmem:[#allocation2 + $0xa8] sm:$0xf] %vm310, 0
        %355 = vst.msk [vmem:[#allocation2 + $0xac] sm:$0xf] %vm310, 0
        %356 = vst.msk [vmem:[#allocation2 + $0xb0] sm:$0x1] %vm313, 0
        %357 = vst.msk [vmem:[#allocation2 + $0xb4] sm:$0xf] %vm310, 0
        %358 = vst.msk [vmem:[#allocation2 + $0xb8] sm:$0xf] %vm310, 0
        %359 = vst.msk [vmem:[#allocation2 + $0xbc] sm:$0x1] %vm313, 0
        %360 = vst.msk [vmem:[#allocation2 + $0xc0] sm:$0xf] %vm310, 0
        %361 = vst.msk [vmem:[#allocation2 + $0xc4] sm:$0xf] %vm310, 0
        %362 = vst.msk [vmem:[#allocation2 + $0xc8] sm:$0x1] %vm313, 0
        %363 = vst.msk [vmem:[#allocation2 + $0xcc] sm:$0xf] %vm310, 0
        %364 = vst.msk [vmem:[#allocation2 + $0xd0] sm:$0xf] %vm310, 0
        %365 = vst.msk [vmem:[#allocation2 + $0xd4] sm:$0x1] %vm313, 0
        %vm366 = vsmask.f32 256
        %vm367 = vsmask.f32 4368
        %vm368 = vmor %vm366, %vm367
        %v370 = vshrl.u32 %v278, 16
        %v372 = vrot.slane %v370, 7
        %v373 = vshll.u32 %v278, 16
        %v375 = vor.u32 %v372, %v373
        %v376 = vrot.slane %v372, 4
        %v378 = vshrl.u32 %v279, 16
        %v380 = vrot.slane %v378, 7
        %v381 = vshll.u32 %v279, 16
        %v383 = vor.u32 %v380, %v381
        %v384 = vsel %vm368, %v376, %v383
        %v385 = vrot.slane %v380, 4
        %v387 = vshrl.u32 %v280, 16
        %v389 = vrot.slane %v387, 7
        %v390 = vshll.u32 %v280, 16
        %v392 = vor.u32 %v389, %v390
        %v393 = vrot.slane %v389, 4
        %v395 = vshrl.u32 %v281, 16
        %v397 = vrot.slane %v395, 7
        %v398 = vshll.u32 %v281, 16
        %v400 = vor.u32 %v397, %v398
        %v401 = vsel %vm368, %v393, %v400
        %v402 = vrot.slane %v397, 4
        %v404 = vshrl.u32 %v282, 16
        %v406 = vrot.slane %v404, 7
        %v407 = vshll.u32 %v282, 16
        %v409 = vor.u32 %v406, %v407
        %v410 = vrot.slane %v406, 4
        %v412 = vshrl.u32 %v283, 16
        %v414 = vrot.slane %v412, 7
        %v415 = vshll.u32 %v283, 16
        %v417 = vor.u32 %v414, %v415
        %v418 = vsel %vm368, %v410, %v417
        %v419 = vrot.slane %v414, 4
        %v421 = vshrl.u32 %v284, 16
        %v423 = vrot.slane %v421, 7
        %v424 = vshll.u32 %v284, 16
        %v426 = vor.u32 %v423, %v424
        %v427 = vrot.slane %v423, 4
        %v429 = vshrl.u32 %v285, 16
        %v431 = vrot.slane %v429, 7
        %v432 = vshll.u32 %v285, 16
        %v434 = vor.u32 %v431, %v432
        %v435 = vsel %vm368, %v427, %v434
        %v436 = vrot.slane %v431, 4
        %v438 = vshrl.u32 %v286, 16
        %v440 = vrot.slane %v438, 7
        %v441 = vshll.u32 %v286, 16
        %v443 = vor.u32 %v440, %v441
        %v444 = vrot.slane %v440, 4
        %v446 = vshrl.u32 %v287, 16
        %v448 = vrot.slane %v446, 7
        %v449 = vshll.u32 %v287, 16
        %v451 = vor.u32 %v448, %v449
        %v452 = vsel %vm368, %v444, %v451
        %v453 = vrot.slane %v448, 4
        %v455 = vshrl.u32 %v288, 16
        %v457 = vrot.slane %v455, 7
        %v458 = vshll.u32 %v288, 16
        %v460 = vor.u32 %v457, %v458
        %v461 = vrot.slane %v457, 4
        %v463 = vshrl.u32 %v289, 16
        %v465 = vrot.slane %v463, 7
        %v466 = vshll.u32 %v289, 16
        %v468 = vor.u32 %v465, %v466
        %v469 = vsel %vm368, %v461, %v468
        %v470 = vrot.slane %v465, 4
        %v472 = vshrl.u32 %v290, 16
        %v474 = vrot.slane %v472, 7
        %v475 = vshll.u32 %v290, 16
        %v477 = vor.u32 %v474, %v475
        %v478 = vrot.slane %v474, 4
        %v480 = vshrl.u32 %v291, 16
        %v482 = vrot.slane %v480, 7
        %v483 = vshll.u32 %v291, 16
        %v485 = vor.u32 %v482, %v483
        %v486 = vsel %vm368, %v478, %v485
        %v487 = vrot.slane %v482, 4
        %v489 = vshrl.u32 %v292, 16
        %v491 = vrot.slane %v489, 7
        %v492 = vshll.u32 %v292, 16
        %v494 = vor.u32 %v491, %v492
        %v495 = vrot.slane %v491, 4
        %v497 = vshrl.u32 %v293, 16
        %v499 = vrot.slane %v497, 7
        %v500 = vshll.u32 %v293, 16
        %v502 = vor.u32 %v499, %v500
        %v503 = vsel %vm368, %v495, %v502
        %v504 = vrot.slane %v499, 4
        %v506 = vshrl.u32 %v294, 16
        %v508 = vrot.slane %v506, 7
        %v509 = vshll.u32 %v294, 16
        %v511 = vor.u32 %v508, %v509
        %v512 = vrot.slane %v508, 4
        %v514 = vshrl.u32 %v295, 16
        %v516 = vrot.slane %v514, 7
        %v517 = vshll.u32 %v295, 16
        %v519 = vor.u32 %v516, %v517
        %v520 = vsel %vm368, %v512, %v519
        %v521 = vrot.slane %v516, 4
        %v523 = vshrl.u32 %v296, 16
        %v525 = vrot.slane %v523, 7
        %v526 = vshll.u32 %v296, 16
        %v528 = vor.u32 %v525, %v526
        %v529 = vrot.slane %v525, 4
        %v531 = vshrl.u32 %v297, 16
        %v533 = vrot.slane %v531, 7
        %v534 = vshll.u32 %v297, 16
        %v536 = vor.u32 %v533, %v534
        %v537 = vsel %vm368, %v529, %v536
        %v538 = vrot.slane %v533, 4
        %v540 = vshrl.u32 %v298, 16
        %v542 = vrot.slane %v540, 7
        %v543 = vshll.u32 %v298, 16
        %v545 = vor.u32 %v542, %v543
        %v546 = vrot.slane %v542, 4
        %v548 = vshrl.u32 %v299, 16
        %v550 = vrot.slane %v548, 7
        %v551 = vshll.u32 %v299, 16
        %v553 = vor.u32 %v550, %v551
        %v554 = vsel %vm368, %v546, %v553
        %v555 = vrot.slane %v550, 4
        %v557 = vshrl.u32 %v300, 16
        %v559 = vrot.slane %v557, 7
        %v560 = vshll.u32 %v300, 16
        %v562 = vor.u32 %v559, %v560
        %v563 = vrot.slane %v559, 4
        %v565 = vshrl.u32 %v301, 16
        %v567 = vrot.slane %v565, 7
        %v568 = vshll.u32 %v301, 16
        %v570 = vor.u32 %v567, %v568
        %v571 = vsel %vm368, %v563, %v570
        %v572 = vrot.slane %v567, 4
        %v574 = vshrl.u32 %v302, 16
        %v576 = vrot.slane %v574, 7
        %v577 = vshll.u32 %v302, 16
        %v579 = vor.u32 %v576, %v577
        %v580 = vrot.slane %v576, 4
        %v582 = vshrl.u32 %v303, 16
        %v584 = vrot.slane %v582, 7
        %v585 = vshll.u32 %v303, 16
        %v587 = vor.u32 %v584, %v585
        %v588 = vsel %vm368, %v580, %v587
        %v589 = vrot.slane %v584, 4
        %v591 = vshrl.u32 %v304, 16
        %v593 = vrot.slane %v591, 7
        %v594 = vshll.u32 %v304, 16
        %v596 = vor.u32 %v593, %v594
        %v597 = vrot.slane %v593, 4
        %v599 = vshrl.u32 %v305, 16
        %v601 = vrot.slane %v599, 7
        %v602 = vshll.u32 %v305, 16
        %v604 = vor.u32 %v601, %v602
        %v605 = vsel %vm368, %v597, %v604
        %v606 = vrot.slane %v601, 4
        %v608 = vshrl.u32 %v306, 16
        %v610 = vrot.slane %v608, 7
        %v611 = vshll.u32 %v306, 16
        %v613 = vor.u32 %v610, %v611
        %v614 = vrot.slane %v610, 4
        %v616 = vshrl.u32 %v307, 16
        %v618 = vrot.slane %v616, 7
        %v619 = vshll.u32 %v307, 16
        %v621 = vor.u32 %v618, %v619
        %v622 = vsel %vm368, %v614, %v621
        %v623 = vrot.slane %v618, 4
        %v625 = vshrl.u32 %v308, 16
        %v627 = vrot.slane %v625, 7
        %v628 = vshll.u32 %v308, 16
        %v630 = vor.u32 %v627, %v628
        %v631 = vrot.slane %v627, 4
        %v633 = vshrl.u32 %v309, 16
        %v635 = vrot.slane %v633, 7
        %v636 = vshll.u32 %v309, 16
        %v638 = vor.u32 %v635, %v636
        %v639 = vsel %vm368, %v631, %v638
        %v640 = vrot.slane %v635, 4
        %s689 = scalar_lea.vmem [#allocation2], 12
        %vm690 = vcmask 27648
        %vm691 = vsmask.f32 7938
        %vm692 = vmand %vm690, %vm691
        %v693 = vld [vmem:[%s689] sm:$0xf]
        %v694 = vsel %vm692, %v375, %v693
        %695 = vst [vmem:[%s689] sm:$0xf] %v694
        %696 = vst.msk [vmem:[%s689 + $0x4] sm:$0xf] %vm310, %v384
        %vm697 = vcmask 24576
        %vm698 = vmand %vm697, %vm366
        %v699 = vld [vmem:[%s689 + $0x8] sm:$0x1]
        %v700 = vsel %vm698, %v385, %v699
        %701 = vst [vmem:[%s689 + $0x8] sm:$0x1] %v700
        %v702 = vld [vmem:[%s689 + $0xc] sm:$0xf]
        %v703 = vsel %vm692, %v392, %v702
        %704 = vst [vmem:[%s689 + $0xc] sm:$0xf] %v703
        %705 = vst.msk [vmem:[%s689 + $0x10] sm:$0xf] %vm310, %v401
        %v706 = vld [vmem:[%s689 + $0x14] sm:$0x1]
        %v707 = vsel %vm698, %v402, %v706
        %708 = vst [vmem:[%s689 + $0x14] sm:$0x1] %v707
        %v709 = vld [vmem:[%s689 + $0x18] sm:$0xf]
        %v710 = vsel %vm692, %v409, %v709
        %711 = vst [vmem:[%s689 + $0x18] sm:$0xf] %v710
        %712 = vst.msk [vmem:[%s689 + $0x1c] sm:$0xf] %vm310, %v418
        %v713 = vld [vmem:[%s689 + $0x20] sm:$0x1]
        %v714 = vsel %vm698, %v419, %v713
        %715 = vst [vmem:[%s689 + $0x20] sm:$0x1] %v714
        %v716 = vld [vmem:[%s689 + $0x24] sm:$0xf]
        %v717 = vsel %vm692, %v426, %v716
        %718 = vst [vmem:[%s689 + $0x24] sm:$0xf] %v717
        %719 = vst.msk [vmem:[%s689 + $0x28] sm:$0xf] %vm310, %v435
        %v720 = vld [vmem:[%s689 + $0x2c] sm:$0x1]
        %v721 = vsel %vm698, %v436, %v720
        %722 = vst [vmem:[%s689 + $0x2c] sm:$0x1] %v721
        %v723 = vld [vmem:[%s689 + $0x30] sm:$0xf]
        %v724 = vsel %vm692, %v443, %v723
        %725 = vst [vmem:[%s689 + $0x30] sm:$0xf] %v724
        %726 = vst.msk [vmem:[%s689 + $0x34] sm:$0xf] %vm310, %v452
        %v727 = vld [vmem:[%s689 + $0x38] sm:$0x1]
        %v728 = vsel %vm698, %v453, %v727
        %729 = vst [vmem:[%s689 + $0x38] sm:$0x1] %v728
        %v730 = vld [vmem:[%s689 + $0x3c] sm:$0xf]
        %v731 = vsel %vm692, %v460, %v730
        %732 = vst [vmem:[%s689 + $0x3c] sm:$0xf] %v731
        %733 = vst.msk [vmem:[%s689 + $0x40] sm:$0xf] %vm310, %v469
        %v734 = vld [vmem:[%s689 + $0x44] sm:$0x1]
        %v735 = vsel %vm698, %v470, %v734
        %736 = vst [vmem:[%s689 + $0x44] sm:$0x1] %v735
        %v737 = vld [vmem:[%s689 + $0x48] sm:$0xf]
        %v738 = vsel %vm692, %v477, %v737
        %739 = vst [vmem:[%s689 + $0x48] sm:$0xf] %v738
        %740 = vst.msk [vmem:[%s689 + $0x4c] sm:$0xf] %vm310, %v486
        %v741 = vld [vmem:[%s689 + $0x50] sm:$0x1]
        %v742 = vsel %vm698, %v487, %v741
        %743 = vst [vmem:[%s689 + $0x50] sm:$0x1] %v742
        %v744 = vld [vmem:[%s689 + $0x54] sm:$0xf]
        %v745 = vsel %vm692, %v494, %v744
        %746 = vst [vmem:[%s689 + $0x54] sm:$0xf] %v745
        %747 = vst.msk [vmem:[%s689 + $0x58] sm:$0xf] %vm310, %v503
        %v748 = vld [vmem:[%s689 + $0x5c] sm:$0x1]
        %v749 = vsel %vm698, %v504, %v748
        %750 = vst [vmem:[%s689 + $0x5c] sm:$0x1] %v749
        %v751 = vld [vmem:[%s689 + $0x60] sm:$0xf]
        %v752 = vsel %vm692, %v511, %v751
        %753 = vst [vmem:[%s689 + $0x60] sm:$0xf] %v752
        %754 = vst.msk [vmem:[%s689 + $0x64] sm:$0xf] %vm310, %v520
        %v755 = vld [vmem:[%s689 + $0x68] sm:$0x1]
        %v756 = vsel %vm698, %v521, %v755
        %757 = vst [vmem:[%s689 + $0x68] sm:$0x1] %v756
        %v758 = vld [vmem:[%s689 + $0x6c] sm:$0xf]
        %v759 = vsel %vm692, %v528, %v758
        %760 = vst [vmem:[%s689 + $0x6c] sm:$0xf] %v759
        %761 = vst.msk [vmem:[%s689 + $0x70] sm:$0xf] %vm310, %v537
        %v762 = vld [vmem:[%s689 + $0x74] sm:$0x1]
        %v763 = vsel %vm698, %v538, %v762
        %764 = vst [vmem:[%s689 + $0x74] sm:$0x1] %v763
        %v765 = vld [vmem:[%s689 + $0x78] sm:$0xf]
        %v766 = vsel %vm692, %v545, %v765
        %767 = vst [vmem:[%s689 + $0x78] sm:$0xf] %v766
        %768 = vst.msk [vmem:[%s689 + $0x7c] sm:$0xf] %vm310, %v554
        %v769 = vld [vmem:[%s689 + $0x80] sm:$0x1]
        %v770 = vsel %vm698, %v555, %v769
        %771 = vst [vmem:[%s689 + $0x80] sm:$0x1] %v770
        %v772 = vld [vmem:[%s689 + $0x84] sm:$0xf]
        %v773 = vsel %vm692, %v562, %v772
        %774 = vst [vmem:[%s689 + $0x84] sm:$0xf] %v773
        %775 = vst.msk [vmem:[%s689 + $0x88] sm:$0xf] %vm310, %v571
        %v776 = vld [vmem:[%s689 + $0x8c] sm:$0x1]
        %v777 = vsel %vm698, %v572, %v776
        %778 = vst [vmem:[%s689 + $0x8c] sm:$0x1] %v777
        %v779 = vld [vmem:[%s689 + $0x90] sm:$0xf]
        %v780 = vsel %vm692, %v579, %v779
        %781 = vst [vmem:[%s689 + $0x90] sm:$0xf] %v780
        %782 = vst.msk [vmem:[%s689 + $0x94] sm:$0xf] %vm310, %v588
        %v783 = vld [vmem:[%s689 + $0x98] sm:$0x1]
        %v784 = vsel %vm698, %v589, %v783
        %785 = vst [vmem:[%s689 + $0x98] sm:$0x1] %v784
        %v786 = vld [vmem:[%s689 + $0x9c] sm:$0xf]
        %v787 = vsel %vm692, %v596, %v786
        %788 = vst [vmem:[%s689 + $0x9c] sm:$0xf] %v787
        %789 = vst.msk [vmem:[%s689 + $0xa0] sm:$0xf] %vm310, %v605
        %v790 = vld [vmem:[%s689 + $0xa4] sm:$0x1]
        %v791 = vsel %vm698, %v606, %v790
        %792 = vst [vmem:[%s689 + $0xa4] sm:$0x1] %v791
        %v793 = vld [vmem:[%s689 + $0xa8] sm:$0xf]
        %v794 = vsel %vm692, %v613, %v793
        %795 = vst [vmem:[%s689 + $0xa8] sm:$0xf] %v794
        %796 = vst.msk [vmem:[%s689 + $0xac] sm:$0xf] %vm310, %v622
        %v797 = vld [vmem:[%s689 + $0xb0] sm:$0x1]
        %v798 = vsel %vm698, %v623, %v797
        %799 = vst [vmem:[%s689 + $0xb0] sm:$0x1] %v798
        %v800 = vld [vmem:[%s689 + $0xb4] sm:$0xf]
        %v801 = vsel %vm692, %v630, %v800
        %802 = vst [vmem:[%s689 + $0xb4] sm:$0xf] %v801
        %803 = vst.msk [vmem:[%s689 + $0xb8] sm:$0xf] %vm310, %v639
        %v804 = vld [vmem:[%s689 + $0xbc] sm:$0x1]
        %v805 = vsel %vm698, %v640, %v804
        %806 = vst [vmem:[%s689 + $0xbc] sm:$0x1] %v805
        %v807 = vld [vmem:[#allocation2] sm:$0xf]
        %v808 = vld [vmem:[#allocation2 + $0x4] sm:$0xf]
        %v809 = vld [vmem:[#allocation2 + $0xc] sm:$0xf]
        %v810 = vld [vmem:[#allocation2 + $0x10] sm:$0xf]
        %v811 = vld [vmem:[#allocation2 + $0x18] sm:$0xf]
        %v812 = vld [vmem:[#allocation2 + $0x1c] sm:$0xf]
        %v813 = vld [vmem:[#allocation2 + $0x24] sm:$0xf]
        %v814 = vld [vmem:[#allocation2 + $0x28] sm:$0xf]
        %v815 = vld [vmem:[#allocation2 + $0x30] sm:$0xf]
        %v816 = vld [vmem:[#allocation2 + $0x34] sm:$0xf]
        %v817 = vld [vmem:[#allocation2 + $0x3c] sm:$0xf]
        %v818 = vld [vmem:[#allocation2 + $0x40] sm:$0xf]
        %v819 = vld [vmem:[#allocation2 + $0x48] sm:$0xf]
        %v820 = vld [vmem:[#allocation2 + $0x4c] sm:$0xf]
        %v821 = vld [vmem:[#allocation2 + $0x54] sm:$0xf]
        %v822 = vld [vmem:[#allocation2 + $0x58] sm:$0xf]
        %v823 = vld [vmem:[#allocation2 + $0x60] sm:$0xf]
        %v824 = vld [vmem:[#allocation2 + $0x64] sm:$0xf]
        %v825 = vld [vmem:[#allocation2 + $0x6c] sm:$0xf]
        %v826 = vld [vmem:[#allocation2 + $0x70] sm:$0xf]
        %v827 = vld [vmem:[#allocation2 + $0x78] sm:$0xf]
        %v828 = vld [vmem:[#allocation2 + $0x7c] sm:$0xf]
        %v829 = vld [vmem:[#allocation2 + $0x84] sm:$0xf]
        %v830 = vld [vmem:[#allocation2 + $0x88] sm:$0xf]
        %v831 = vld [vmem:[#allocation2 + $0x90] sm:$0xf]
        %v832 = vld [vmem:[#allocation2 + $0x94] sm:$0xf]
        %v833 = vld [vmem:[#allocation2 + $0x9c] sm:$0xf]
        %v834 = vld [vmem:[#allocation2 + $0xa0] sm:$0xf]
        %v835 = vld [vmem:[#allocation2 + $0xa8] sm:$0xf]
        %v836 = vld [vmem:[#allocation2 + $0xac] sm:$0xf]
        %v837 = vld [vmem:[#allocation2 + $0xb4] sm:$0xf]
        %v838 = vld [vmem:[#allocation2 + $0xb8] sm:$0xf]
        %v871 = vunpack.c.l.b16 %v807
        %v872 = vunpack.c.l.b16 %v808
        %v873 = vunpack.c.l.b16 %v809
        %v874 = vunpack.c.l.b16 %v810
        %v875 = vunpack.c.l.b16 %v811
        %v876 = vunpack.c.l.b16 %v812
        %v877 = vunpack.c.l.b16 %v813
        %v878 = vunpack.c.l.b16 %v814
        %v879 = vunpack.c.l.b16 %v815
        %v880 = vunpack.c.l.b16 %v816
        %v881 = vunpack.c.l.b16 %v817
        %v882 = vunpack.c.l.b16 %v818
        %v883 = vunpack.c.l.b16 %v819
        %v884 = vunpack.c.l.b16 %v820
        %v885 = vunpack.c.l.b16 %v821
        %v886 = vunpack.c.l.b16 %v822
        %v887 = vunpack.c.l.b16 %v823
        %v888 = vunpack.c.l.b16 %v824
        %v889 = vunpack.c.l.b16 %v825
        %v890 = vunpack.c.l.b16 %v826
        %v891 = vunpack.c.l.b16 %v827
        %v892 = vunpack.c.l.b16 %v828
        %v893 = vunpack.c.l.b16 %v829
        %v894 = vunpack.c.l.b16 %v830
        %v895 = vunpack.c.l.b16 %v831
        %v896 = vunpack.c.l.b16 %v832
        %v897 = vunpack.c.l.b16 %v833
        %v898 = vunpack.c.l.b16 %v834
        %v899 = vunpack.c.l.b16 %v835
        %v900 = vunpack.c.l.b16 %v836
        %v901 = vunpack.c.l.b16 %v837
        %v902 = vunpack.c.l.b16 %v838
        %v903 = vpack.c.b16 %v872, %v871
        %v904 = vpack.c.b16 %v874, %v873
        %v905 = vpack.c.b16 %v876, %v875
        %v906 = vpack.c.b16 %v878, %v877
        %v907 = vpack.c.b16 %v880, %v879
        %v908 = vpack.c.b16 %v882, %v881
        %v909 = vpack.c.b16 %v884, %v883
        %v910 = vpack.c.b16 %v886, %v885
        %v911 = vpack.c.b16 %v888, %v887
        %v912 = vpack.c.b16 %v890, %v889
        %v913 = vpack.c.b16 %v892, %v891
        %v914 = vpack.c.b16 %v894, %v893
        %v915 = vpack.c.b16 %v896, %v895
        %v916 = vpack.c.b16 %v898, %v897
        %v917 = vpack.c.b16 %v900, %v899
        %v918 = vpack.c.b16 %v902, %v901
        %vm935 = vcmask 31744
        %936 = vst.msk [vmem:[#allocation4] sm:$0xff] %vm935, %v903
        %937 = vst.msk [vmem:[#allocation4 + $0x8] sm:$0xff] %vm935, %v904
        %938 = vst.msk [vmem:[#allocation4 + $0x10] sm:$0xff] %vm935, %v905
        %939 = vst.msk [vmem:[#allocation4 + $0x18] sm:$0xff] %vm935, %v906
        %940 = vst.msk [vmem:[#allocation4 + $0x20] sm:$0xff] %vm935, %v907
        %941 = vst.msk [vmem:[#allocation4 + $0x28] sm:$0xff] %vm935, %v908
        %942 = vst.msk [vmem:[#allocation4 + $0x30] sm:$0xff] %vm935, %v909
        %943 = vst.msk [vmem:[#allocation4 + $0x38] sm:$0xff] %vm935, %v910
        %944 = vst.msk [vmem:[#allocation4 + $0x40] sm:$0xff] %vm935, %v911
        %945 = vst.msk [vmem:[#allocation4 + $0x48] sm:$0xff] %vm935, %v912
        %946 = vst.msk [vmem:[#allocation4 + $0x50] sm:$0xff] %vm935, %v913
        %947 = vst.msk [vmem:[#allocation4 + $0x58] sm:$0xff] %vm935, %v914
        %948 = vst.msk [vmem:[#allocation4 + $0x60] sm:$0xff] %vm935, %v915
        %949 = vst.msk [vmem:[#allocation4 + $0x68] sm:$0xff] %vm935, %v916
        %950 = vst.msk [vmem:[#allocation4 + $0x70] sm:$0xff] %vm935, %v917
        %951 = vst.msk [vmem:[#allocation4 + $0x78] sm:$0xff] %vm935, %v918
        %v952 = vld [vmem:[#allocation2] sm:$0xf]
        %v953 = vld [vmem:[#allocation2 + $0x4] sm:$0xf]
        %v954 = vld [vmem:[#allocation2 + $0x8] sm:$0x1]
        %v955 = vld [vmem:[#allocation2 + $0xc] sm:$0xf]
        %v956 = vld [vmem:[#allocation2 + $0x10] sm:$0xf]
        %v957 = vld [vmem:[#allocation2 + $0x14] sm:$0x1]
        %v958 = vld [vmem:[#allocation2 + $0x18] sm:$0xf]
        %v959 = vld [vmem:[#allocation2 + $0x1c] sm:$0xf]
        %v960 = vld [vmem:[#allocation2 + $0x20] sm:$0x1]
        %v961 = vld [vmem:[#allocation2 + $0x24] sm:$0xf]
        %v962 = vld [vmem:[#allocation2 + $0x28] sm:$0xf]
        %v963 = vld [vmem:[#allocation2 + $0x2c] sm:$0x1]
        %v964 = vld [vmem:[#allocation2 + $0x30] sm:$0xf]
        %v965 = vld [vmem:[#allocation2 + $0x34] sm:$0xf]
        %v966 = vld [vmem:[#allocation2 + $0x38] sm:$0x1]
        %v967 = vld [vmem:[#allocation2 + $0x3c] sm:$0xf]
        %v968 = vld [vmem:[#allocation2 + $0x40] sm:$0xf]
        %v969 = vld [vmem:[#allocation2 + $0x44] sm:$0x1]
        %v970 = vld [vmem:[#allocation2 + $0x48] sm:$0xf]
        %v971 = vld [vmem:[#allocation2 + $0x4c] sm:$0xf]
        %v972 = vld [vmem:[#allocation2 + $0x50] sm:$0x1]
        %v973 = vld [vmem:[#allocation2 + $0x54] sm:$0xf]
        %v974 = vld [vmem:[#allocation2 + $0x58] sm:$0xf]
        %v975 = vld [vmem:[#allocation2 + $0x5c] sm:$0x1]
        %v976 = vld [vmem:[#allocation2 + $0x60] sm:$0xf]
        %v977 = vld [vmem:[#allocation2 + $0x64] sm:$0xf]
        %v978 = vld [vmem:[#allocation2 + $0x68] sm:$0x1]
        %v979 = vld [vmem:[#allocation2 + $0x6c] sm:$0xf]
        %v980 = vld [vmem:[#allocation2 + $0x70] sm:$0xf]
        %v981 = vld [vmem:[#allocation2 + $0x74] sm:$0x1]
        %v982 = vld [vmem:[#allocation2 + $0x78] sm:$0xf]
        %v983 = vld [vmem:[#allocation2 + $0x7c] sm:$0xf]
        %v984 = vld [vmem:[#allocation2 + $0x80] sm:$0x1]
        %v985 = vld [vmem:[#allocation2 + $0x84] sm:$0xf]
        %v986 = vld [vmem:[#allocation2 + $0x88] sm:$0xf]
        %v987 = vld [vmem:[#allocation2 + $0x8c] sm:$0x1]
        %v988 = vld [vmem:[#allocation2 + $0x90] sm:$0xf]
        %v989 = vld [vmem:[#allocation2 + $0x94] sm:$0xf]
        %v990 = vld [vmem:[#allocation2 + $0x98] sm:$0x1]
        %v991 = vld [vmem:[#allocation2 + $0x9c] sm:$0xf]
        %v992 = vld [vmem:[#allocation2 + $0xa0] sm:$0xf]
        %v993 = vld [vmem:[#allocation2 + $0xa4] sm:$0x1]
        %v994 = vld [vmem:[#allocation2 + $0xa8] sm:$0xf]
        %v995 = vld [vmem:[#allocation2 + $0xac] sm:$0xf]
        %v996 = vld [vmem:[#allocation2 + $0xb0] sm:$0x1]
        %v997 = vld [vmem:[#allocation2 + $0xb4] sm:$0xf]
        %v998 = vld [vmem:[#allocation2 + $0xb8] sm:$0xf]
        %v999 = vld [vmem:[#allocation2 + $0xbc] sm:$0x1]
        %v1048 = vunpack.c.l.b16 %v952
        %v1049 = vunpack.c.l.b16 %v953
        %v1050 = vunpack.c.l.b16 %v954
        %v1051 = vunpack.c.l.b16 %v955
        %v1052 = vunpack.c.l.b16 %v956
        %v1053 = vunpack.c.l.b16 %v957
        %v1054 = vunpack.c.l.b16 %v958
        %v1055 = vunpack.c.l.b16 %v959
        %v1056 = vunpack.c.l.b16 %v960
        %v1057 = vunpack.c.l.b16 %v961
        %v1058 = vunpack.c.l.b16 %v962
        %v1059 = vunpack.c.l.b16 %v963
        %v1060 = vunpack.c.l.b16 %v964
        %v1061 = vunpack.c.l.b16 %v965
        %v1062 = vunpack.c.l.b16 %v966
        %v1063 = vunpack.c.l.b16 %v967
        %v1064 = vunpack.c.l.b16 %v968
        %v1065 = vunpack.c.l.b16 %v969
        %v1066 = vunpack.c.l.b16 %v970
        %v1067 = vunpack.c.l.b16 %v971
        %v1068 = vunpack.c.l.b16 %v972
        %v1069 = vunpack.c.l.b16 %v973
        %v1070 = vunpack.c.l.b16 %v974
        %v1071 = vunpack.c.l.b16 %v975
        %v1072 = vunpack.c.l.b16 %v976
        %v1073 = vunpack.c.l.b16 %v977
        %v1074 = vunpack.c.l.b16 %v978
        %v1075 = vunpack.c.l.b16 %v979
        %v1076 = vunpack.c.l.b16 %v980
        %v1077 = vunpack.c.l.b16 %v981
        %v1078 = vunpack.c.l.b16 %v982
        %v1079 = vunpack.c.l.b16 %v983
        %v1080 = vunpack.c.l.b16 %v984
        %v1081 = vunpack.c.l.b16 %v985
        %v1082 = vunpack.c.l.b16 %v986
        %v1083 = vunpack.c.l.b16 %v987
        %v1084 = vunpack.c.l.b16 %v988
        %v1085 = vunpack.c.l.b16 %v989
        %v1086 = vunpack.c.l.b16 %v990
        %v1087 = vunpack.c.l.b16 %v991
        %v1088 = vunpack.c.l.b16 %v992
        %v1089 = vunpack.c.l.b16 %v993
        %v1090 = vunpack.c.l.b16 %v994
        %v1091 = vunpack.c.l.b16 %v995
        %v1092 = vunpack.c.l.b16 %v996
        %v1093 = vunpack.c.l.b16 %v997
        %v1094 = vunpack.c.l.b16 %v998
        %v1095 = vunpack.c.l.b16 %v999
        %v1096 = vpack.c.b16 %v1049, %v1048
        %v1097 = vpack.c.b16 %v1050, %v1050
        %v1098 = vpack.c.b16 %v1052, %v1051
        %v1099 = vpack.c.b16 %v1053, %v1053
        %v1100 = vpack.c.b16 %v1055, %v1054
        %v1101 = vpack.c.b16 %v1056, %v1056
        %v1102 = vpack.c.b16 %v1058, %v1057
        %v1103 = vpack.c.b16 %v1059, %v1059
        %v1104 = vpack.c.b16 %v1061, %v1060
        %v1105 = vpack.c.b16 %v1062, %v1062
        %v1106 = vpack.c.b16 %v1064, %v1063
        %v1107 = vpack.c.b16 %v1065, %v1065
        %v1108 = vpack.c.b16 %v1067, %v1066
        %v1109 = vpack.c.b16 %v1068, %v1068
        %v1110 = vpack.c.b16 %v1070, %v1069
        %v1111 = vpack.c.b16 %v1071, %v1071
        %v1112 = vpack.c.b16 %v1073, %v1072
        %v1113 = vpack.c.b16 %v1074, %v1074
        %v1114 = vpack.c.b16 %v1076, %v1075
        %v1115 = vpack.c.b16 %v1077, %v1077
        %v1116 = vpack.c.b16 %v1079, %v1078
        %v1117 = vpack.c.b16 %v1080, %v1080
        %v1118 = vpack.c.b16 %v1082, %v1081
        %v1119 = vpack.c.b16 %v1083, %v1083
        %v1120 = vpack.c.b16 %v1085, %v1084
        %v1121 = vpack.c.b16 %v1086, %v1086
        %v1122 = vpack.c.b16 %v1088, %v1087
        %v1123 = vpack.c.b16 %v1089, %v1089
        %v1124 = vpack.c.b16 %v1091, %v1090
        %v1125 = vpack.c.b16 %v1092, %v1092
        %v1126 = vpack.c.b16 %v1094, %v1093
        %v1127 = vpack.c.b16 %v1095, %v1095
        %vm1128 = vsmask.f32 7424
        %v1130 = vshrl.u32 %v1096, 16
        %v1132 = vshll.u32 %v1096, 16
        %v1134 = vrot.slane %v1132, 1
        %v1135 = vor.u32 %v1130, %v1134
        %v1137 = vshll.u32 %v1097, 16
        %v1139 = vrot.slane %v1137, 1
        %v1140 = vsel %vm1128, %v1135, %v1139
        %v1142 = vshrl.u32 %v1098, 16
        %v1144 = vshll.u32 %v1098, 16
        %v1146 = vrot.slane %v1144, 1
        %v1147 = vor.u32 %v1142, %v1146
        %v1149 = vshll.u32 %v1099, 16
        %v1151 = vrot.slane %v1149, 1
        %v1152 = vsel %vm1128, %v1147, %v1151
        %v1154 = vshrl.u32 %v1100, 16
        %v1156 = vshll.u32 %v1100, 16
        %v1158 = vrot.slane %v1156, 1
        %v1159 = vor.u32 %v1154, %v1158
        %v1161 = vshll.u32 %v1101, 16
        %v1163 = vrot.slane %v1161, 1
        %v1164 = vsel %vm1128, %v1159, %v1163
        %v1166 = vshrl.u32 %v1102, 16
        %v1168 = vshll.u32 %v1102, 16
        %v1170 = vrot.slane %v1168, 1
        %v1171 = vor.u32 %v1166, %v1170
        %v1173 = vshll.u32 %v1103, 16
        %v1175 = vrot.slane %v1173, 1
        %v1176 = vsel %vm1128, %v1171, %v1175
        %v1178 = vshrl.u32 %v1104, 16
        %v1180 = vshll.u32 %v1104, 16
        %v1182 = vrot.slane %v1180, 1
        %v1183 = vor.u32 %v1178, %v1182
        %v1185 = vshll.u32 %v1105, 16
        %v1187 = vrot.slane %v1185, 1
        %v1188 = vsel %vm1128, %v1183, %v1187
        %v1190 = vshrl.u32 %v1106, 16
        %v1192 = vshll.u32 %v1106, 16
        %v1194 = vrot.slane %v1192, 1
        %v1195 = vor.u32 %v1190, %v1194
        %v1197 = vshll.u32 %v1107, 16
        %v1199 = vrot.slane %v1197, 1
        %v1200 = vsel %vm1128, %v1195, %v1199
        %v1202 = vshrl.u32 %v1108, 16
        %v1204 = vshll.u32 %v1108, 16
        %v1206 = vrot.slane %v1204, 1
        %v1207 = vor.u32 %v1202, %v1206
        %v1209 = vshll.u32 %v1109, 16
        %v1211 = vrot.slane %v1209, 1
        %v1212 = vsel %vm1128, %v1207, %v1211
        %v1214 = vshrl.u32 %v1110, 16
        %v1216 = vshll.u32 %v1110, 16
        %v1218 = vrot.slane %v1216, 1
        %v1219 = vor.u32 %v1214, %v1218
        %v1221 = vshll.u32 %v1111, 16
        %v1223 = vrot.slane %v1221, 1
        %v1224 = vsel %vm1128, %v1219, %v1223
        %v1226 = vshrl.u32 %v1112, 16
        %v1228 = vshll.u32 %v1112, 16
        %v1230 = vrot.slane %v1228, 1
        %v1231 = vor.u32 %v1226, %v1230
        %v1233 = vshll.u32 %v1113, 16
        %v1235 = vrot.slane %v1233, 1
        %v1236 = vsel %vm1128, %v1231, %v1235
        %v1238 = vshrl.u32 %v1114, 16
        %v1240 = vshll.u32 %v1114, 16
        %v1242 = vrot.slane %v1240, 1
        %v1243 = vor.u32 %v1238, %v1242
        %v1245 = vshll.u32 %v1115, 16
        %v1247 = vrot.slane %v1245, 1
        %v1248 = vsel %vm1128, %v1243, %v1247
        %v1250 = vshrl.u32 %v1116, 16
        %v1252 = vshll.u32 %v1116, 16
        %v1254 = vrot.slane %v1252, 1
        %v1255 = vor.u32 %v1250, %v1254
        %v1257 = vshll.u32 %v1117, 16
        %v1259 = vrot.slane %v1257, 1
        %v1260 = vsel %vm1128, %v1255, %v1259
        %v1262 = vshrl.u32 %v1118, 16
        %v1264 = vshll.u32 %v1118, 16
        %v1266 = vrot.slane %v1264, 1
        %v1267 = vor.u32 %v1262, %v1266
        %v1269 = vshll.u32 %v1119, 16
        %v1271 = vrot.slane %v1269, 1
        %v1272 = vsel %vm1128, %v1267, %v1271
        %v1274 = vshrl.u32 %v1120, 16
        %v1276 = vshll.u32 %v1120, 16
        %v1278 = vrot.slane %v1276, 1
        %v1279 = vor.u32 %v1274, %v1278
        %v1281 = vshll.u32 %v1121, 16
        %v1283 = vrot.slane %v1281, 1
        %v1284 = vsel %vm1128, %v1279, %v1283
        %v1286 = vshrl.u32 %v1122, 16
        %v1288 = vshll.u32 %v1122, 16
        %v1290 = vrot.slane %v1288, 1
        %v1291 = vor.u32 %v1286, %v1290
        %v1293 = vshll.u32 %v1123, 16
        %v1295 = vrot.slane %v1293, 1
        %v1296 = vsel %vm1128, %v1291, %v1295
        %v1298 = vshrl.u32 %v1124, 16
        %v1300 = vshll.u32 %v1124, 16
        %v1302 = vrot.slane %v1300, 1
        %v1303 = vor.u32 %v1298, %v1302
        %v1305 = vshll.u32 %v1125, 16
        %v1307 = vrot.slane %v1305, 1
        %v1308 = vsel %vm1128, %v1303, %v1307
        %v1310 = vshrl.u32 %v1126, 16
        %v1312 = vshll.u32 %v1126, 16
        %v1314 = vrot.slane %v1312, 1
        %v1315 = vor.u32 %v1310, %v1314
        %v1317 = vshll.u32 %v1127, 16
        %v1319 = vrot.slane %v1317, 1
        %v1320 = vsel %vm1128, %v1315, %v1319
        %1321 = vrot.lane.b32.xlu0 %v1140, 4
        %v1322 = vpop.permute.xlu0 %1321
        %1323 = vrot.lane.b32.xlu0 %v1152, 4
        %v1324 = vpop.permute.xlu0 %1323
        %1325 = vrot.lane.b32.xlu0 %v1164, 4
        %v1326 = vpop.permute.xlu0 %1325
        %1327 = vrot.lane.b32.xlu0 %v1176, 4
        %v1328 = vpop.permute.xlu0 %1327
        %1329 = vrot.lane.b32.xlu0 %v1188, 4
        %v1330 = vpop.permute.xlu0 %1329
        %1331 = vrot.lane.b32.xlu0 %v1200, 4
        %v1332 = vpop.permute.xlu0 %1331
        %1333 = vrot.lane.b32.xlu0 %v1212, 4
        %v1334 = vpop.permute.xlu0 %1333
        %1335 = vrot.lane.b32.xlu0 %v1224, 4
        %v1336 = vpop.permute.xlu0 %1335
        %1337 = vrot.lane.b32.xlu0 %v1236, 4
        %v1338 = vpop.permute.xlu0 %1337
        %1339 = vrot.lane.b32.xlu0 %v1248, 4
        %v1340 = vpop.permute.xlu0 %1339
        %1341 = vrot.lane.b32.xlu0 %v1260, 4
        %v1342 = vpop.permute.xlu0 %1341
        %1343 = vrot.lane.b32.xlu0 %v1272, 4
        %v1344 = vpop.permute.xlu0 %1343
        %1345 = vrot.lane.b32.xlu0 %v1284, 4
        %v1346 = vpop.permute.xlu0 %1345
        %1347 = vrot.lane.b32.xlu0 %v1296, 4
        %v1348 = vpop.permute.xlu0 %1347
        %1349 = vrot.lane.b32.xlu0 %v1308, 4
        %v1350 = vpop.permute.xlu0 %1349
        %1351 = vrot.lane.b32.xlu0 %v1320, 4
        %v1352 = vpop.permute.xlu0 %1351
        %vm1369 = vcmask 64544
        %1370 = vst.msk [vmem:[#allocation4] sm:$0xff] %vm1369, %v1322
        %1371 = vst.msk [vmem:[#allocation4 + $0x8] sm:$0xff] %vm1369, %v1324
        %1372 = vst.msk [vmem:[#allocation4 + $0x10] sm:$0xff] %vm1369, %v1326
        %1373 = vst.msk [vmem:[#allocation4 + $0x18] sm:$0xff] %vm1369, %v1328
        %1374 = vst.msk [vmem:[#allocation4 + $0x20] sm:$0xff] %vm1369, %v1330
        %1375 = vst.msk [vmem:[#allocation4 + $0x28] sm:$0xff] %vm1369, %v1332
        %1376 = vst.msk [vmem:[#allocation4 + $0x30] sm:$0xff] %vm1369, %v1334
        %1377 = vst.msk [vmem:[#allocation4 + $0x38] sm:$0xff] %vm1369, %v1336
        %1378 = vst.msk [vmem:[#allocation4 + $0x40] sm:$0xff] %vm1369, %v1338
        %1379 = vst.msk [vmem:[#allocation4 + $0x48] sm:$0xff] %vm1369, %v1340
        %1380 = vst.msk [vmem:[#allocation4 + $0x50] sm:$0xff] %vm1369, %v1342
        %1381 = vst.msk [vmem:[#allocation4 + $0x58] sm:$0xff] %vm1369, %v1344
        %1382 = vst.msk [vmem:[#allocation4 + $0x60] sm:$0xff] %vm1369, %v1346
        %1383 = vst.msk [vmem:[#allocation4 + $0x68] sm:$0xff] %vm1369, %v1348
        %1384 = vst.msk [vmem:[#allocation4 + $0x70] sm:$0xff] %vm1369, %v1350
        %1385 = vst.msk [vmem:[#allocation4 + $0x78] sm:$0xff] %vm1369, %v1352
        %v1386 = vld [vmem:[#allocation2] sm:$0xe]
        %v1387 = vld [vmem:[#allocation2 + $0x4] sm:$0xf]
        %v1388 = vld [vmem:[#allocation2 + $0x8] sm:$0x1]
        %v1389 = vld [vmem:[#allocation2 + $0xc] sm:$0xe]
        %v1390 = vld [vmem:[#allocation2 + $0x10] sm:$0xf]
        %v1391 = vld [vmem:[#allocation2 + $0x14] sm:$0x1]
        %v1392 = vld [vmem:[#allocation2 + $0x18] sm:$0xe]
        %v1393 = vld [vmem:[#allocation2 + $0x1c] sm:$0xf]
        %v1394 = vld [vmem:[#allocation2 + $0x20] sm:$0x1]
        %v1395 = vld [vmem:[#allocation2 + $0x24] sm:$0xe]
        %v1396 = vld [vmem:[#allocation2 + $0x28] sm:$0xf]
        %v1397 = vld [vmem:[#allocation2 + $0x2c] sm:$0x1]
        %v1398 = vld [vmem:[#allocation2 + $0x30] sm:$0xe]
        %v1399 = vld [vmem:[#allocation2 + $0x34] sm:$0xf]
        %v1400 = vld [vmem:[#allocation2 + $0x38] sm:$0x1]
        %v1401 = vld [vmem:[#allocation2 + $0x3c] sm:$0xe]
        %v1402 = vld [vmem:[#allocation2 + $0x40] sm:$0xf]
        %v1403 = vld [vmem:[#allocation2 + $0x44] sm:$0x1]
        %v1404 = vld [vmem:[#allocation2 + $0x48] sm:$0xe]
        %v1405 = vld [vmem:[#allocation2 + $0x4c] sm:$0xf]
        %v1406 = vld [vmem:[#allocation2 + $0x50] sm:$0x1]
        %v1407 = vld [vmem:[#allocation2 + $0x54] sm:$0xe]
        %v1408 = vld [vmem:[#allocation2 + $0x58] sm:$0xf]
        %v1409 = vld [vmem:[#allocation2 + $0x5c] sm:$0x1]
        %v1410 = vld [vmem:[#allocation2 + $0x60] sm:$0xe]
        %v1411 = vld [vmem:[#allocation2 + $0x64] sm:$0xf]
        %v1412 = vld [vmem:[#allocation2 + $0x68] sm:$0x1]
        %v1413 = vld [vmem:[#allocation2 + $0x6c] sm:$0xe]
        %v1414 = vld [vmem:[#allocation2 + $0x70] sm:$0xf]
        %v1415 = vld [vmem:[#allocation2 + $0x74] sm:$0x1]
        %v1416 = vld [vmem:[#allocation2 + $0x78] sm:$0xe]
        %v1417 = vld [vmem:[#allocation2 + $0x7c] sm:$0xf]
        %v1418 = vld [vmem:[#allocation2 + $0x80] sm:$0x1]
        %v1419 = vld [vmem:[#allocation2 + $0x84] sm:$0xe]
        %v1420 = vld [vmem:[#allocation2 + $0x88] sm:$0xf]
        %v1421 = vld [vmem:[#allocation2 + $0x8c] sm:$0x1]
        %v1422 = vld [vmem:[#allocation2 + $0x90] sm:$0xe]
        %v1423 = vld [vmem:[#allocation2 + $0x94] sm:$0xf]
        %v1424 = vld [vmem:[#allocation2 + $0x98] sm:$0x1]
        %v1425 = vld [vmem:[#allocation2 + $0x9c] sm:$0xe]
        %v1426 = vld [vmem:[#allocation2 + $0xa0] sm:$0xf]
        %v1427 = vld [vmem:[#allocation2 + $0xa4] sm:$0x1]
        %v1428 = vld [vmem:[#allocation2 + $0xa8] sm:$0xe]
        %v1429 = vld [vmem:[#allocation2 + $0xac] sm:$0xf]
        %v1430 = vld [vmem:[#allocation2 + $0xb0] sm:$0x1]
        %v1431 = vld [vmem:[#allocation2 + $0xb4] sm:$0xe]
        %v1432 = vld [vmem:[#allocation2 + $0xb8] sm:$0xf]
        %v1433 = vld [vmem:[#allocation2 + $0xbc] sm:$0x1]
        %v1482 = vunpack.c.l.b16 %v1386
        %v1483 = vunpack.c.l.b16 %v1387
        %v1484 = vunpack.c.l.b16 %v1388
        %v1485 = vunpack.c.l.b16 %v1389
        %v1486 = vunpack.c.l.b16 %v1390
        %v1487 = vunpack.c.l.b16 %v1391
        %v1488 = vunpack.c.l.b16 %v1392
        %v1489 = vunpack.c.l.b16 %v1393
        %v1490 = vunpack.c.l.b16 %v1394
        %v1491 = vunpack.c.l.b16 %v1395
        %v1492 = vunpack.c.l.b16 %v1396
        %v1493 = vunpack.c.l.b16 %v1397
        %v1494 = vunpack.c.l.b16 %v1398
        %v1495 = vunpack.c.l.b16 %v1399
        %v1496 = vunpack.c.l.b16 %v1400
        %v1497 = vunpack.c.l.b16 %v1401
        %v1498 = vunpack.c.l.b16 %v1402
        %v1499 = vunpack.c.l.b16 %v1403
        %v1500 = vunpack.c.l.b16 %v1404
        %v1501 = vunpack.c.l.b16 %v1405
        %v1502 = vunpack.c.l.b16 %v1406
        %v1503 = vunpack.c.l.b16 %v1407
        %v1504 = vunpack.c.l.b16 %v1408
        %v1505 = vunpack.c.l.b16 %v1409
        %v1506 = vunpack.c.l.b16 %v1410
        %v1507 = vunpack.c.l.b16 %v1411
        %v1508 = vunpack.c.l.b16 %v1412
        %v1509 = vunpack.c.l.b16 %v1413
        %v1510 = vunpack.c.l.b16 %v1414
        %v1511 = vunpack.c.l.b16 %v1415
        %v1512 = vunpack.c.l.b16 %v1416
        %v1513 = vunpack.c.l.b16 %v1417
        %v1514 = vunpack.c.l.b16 %v1418
        %v1515 = vunpack.c.l.b16 %v1419
        %v1516 = vunpack.c.l.b16 %v1420
        %v1517 = vunpack.c.l.b16 %v1421
        %v1518 = vunpack.c.l.b16 %v1422
        %v1519 = vunpack.c.l.b16 %v1423
        %v1520 = vunpack.c.l.b16 %v1424
        %v1521 = vunpack.c.l.b16 %v1425
        %v1522 = vunpack.c.l.b16 %v1426
        %v1523 = vunpack.c.l.b16 %v1427
        %v1524 = vunpack.c.l.b16 %v1428
        %v1525 = vunpack.c.l.b16 %v1429
        %v1526 = vunpack.c.l.b16 %v1430
        %v1527 = vunpack.c.l.b16 %v1431
        %v1528 = vunpack.c.l.b16 %v1432
        %v1529 = vunpack.c.l.b16 %v1433
        %v1530 = vpack.c.b16 %v1483, %v1482
        %v1531 = vpack.c.b16 %v1484, %v1484
        %v1532 = vpack.c.b16 %v1486, %v1485
        %v1533 = vpack.c.b16 %v1487, %v1487
        %v1534 = vpack.c.b16 %v1489, %v1488
        %v1535 = vpack.c.b16 %v1490, %v1490
        %v1536 = vpack.c.b16 %v1492, %v1491
        %v1537 = vpack.c.b16 %v1493, %v1493
        %v1538 = vpack.c.b16 %v1495, %v1494
        %v1539 = vpack.c.b16 %v1496, %v1496
        %v1540 = vpack.c.b16 %v1498, %v1497
        %v1541 = vpack.c.b16 %v1499, %v1499
        %v1542 = vpack.c.b16 %v1501, %v1500
        %v1543 = vpack.c.b16 %v1502, %v1502
        %v1544 = vpack.c.b16 %v1504, %v1503
        %v1545 = vpack.c.b16 %v1505, %v1505
        %v1546 = vpack.c.b16 %v1507, %v1506
        %v1547 = vpack.c.b16 %v1508, %v1508
        %v1548 = vpack.c.b16 %v1510, %v1509
        %v1549 = vpack.c.b16 %v1511, %v1511
        %v1550 = vpack.c.b16 %v1513, %v1512
        %v1551 = vpack.c.b16 %v1514, %v1514
        %v1552 = vpack.c.b16 %v1516, %v1515
        %v1553 = vpack.c.b16 %v1517, %v1517
        %v1554 = vpack.c.b16 %v1519, %v1518
        %v1555 = vpack.c.b16 %v1520, %v1520
        %v1556 = vpack.c.b16 %v1522, %v1521
        %v1557 = vpack.c.b16 %v1523, %v1523
        %v1558 = vpack.c.b16 %v1525, %v1524
        %v1559 = vpack.c.b16 %v1526, %v1526
        %v1560 = vpack.c.b16 %v1528, %v1527
        %v1561 = vpack.c.b16 %v1529, %v1529
        %vm1562 = vcmask 1046528
        %v1563 = vrot.slane %v1530, 1
        %v1564 = vrot.slane %v1531, 1
        %v1565 = vsel %vm1562, %v1563, %v1564
        %v1566 = vrot.slane %v1532, 1
        %v1567 = vrot.slane %v1533, 1
        %v1568 = vsel %vm1562, %v1566, %v1567
        %v1569 = vrot.slane %v1534, 1
        %v1570 = vrot.slane %v1535, 1
        %v1571 = vsel %vm1562, %v1569, %v1570
        %v1572 = vrot.slane %v1536, 1
        %v1573 = vrot.slane %v1537, 1
        %v1574 = vsel %vm1562, %v1572, %v1573
        %v1575 = vrot.slane %v1538, 1
        %v1576 = vrot.slane %v1539, 1
        %v1577 = vsel %vm1562, %v1575, %v1576
        %v1578 = vrot.slane %v1540, 1
        %v1579 = vrot.slane %v1541, 1
        %v1580 = vsel %vm1562, %v1578, %v1579
        %v1581 = vrot.slane %v1542, 1
        %v1582 = vrot.slane %v1543, 1
        %v1583 = vsel %vm1562, %v1581, %v1582
        %v1584 = vrot.slane %v1544, 1
        %v1585 = vrot.slane %v1545, 1
        %v1586 = vsel %vm1562, %v1584, %v1585
        %v1587 = vrot.slane %v1546, 1
        %v1588 = vrot.slane %v1547, 1
        %v1589 = vsel %vm1562, %v1587, %v1588
        %v1590 = vrot.slane %v1548, 1
        %v1591 = vrot.slane %v1549, 1
        %v1592 = vsel %vm1562, %v1590, %v1591
        %v1593 = vrot.slane %v1550, 1
        %v1594 = vrot.slane %v1551, 1
        %v1595 = vsel %vm1562, %v1593, %v1594
        %v1596 = vrot.slane %v1552, 1
        %v1597 = vrot.slane %v1553, 1
        %v1598 = vsel %vm1562, %v1596, %v1597
        %v1599 = vrot.slane %v1554, 1
        %v1600 = vrot.slane %v1555, 1
        %v1601 = vsel %vm1562, %v1599, %v1600
        %v1602 = vrot.slane %v1556, 1
        %v1603 = vrot.slane %v1557, 1
        %v1604 = vsel %vm1562, %v1602, %v1603
        %v1605 = vrot.slane %v1558, 1
        %v1606 = vrot.slane %v1559, 1
        %v1607 = vsel %vm1562, %v1605, %v1606
        %v1608 = vrot.slane %v1560, 1
        %v1609 = vrot.slane %v1561, 1
        %v1610 = vsel %vm1562, %v1608, %v1609
        %1611 = vrot.lane.b32.xlu0 %v1565, 8
        %v1612 = vpop.permute.xlu0 %1611
        %1613 = vrot.lane.b32.xlu0 %v1568, 8
        %v1614 = vpop.permute.xlu0 %1613
        %1615 = vrot.lane.b32.xlu0 %v1571, 8
        %v1616 = vpop.permute.xlu0 %1615
        %1617 = vrot.lane.b32.xlu0 %v1574, 8
        %v1618 = vpop.permute.xlu0 %1617
        %1619 = vrot.lane.b32.xlu0 %v1577, 8
        %v1620 = vpop.permute.xlu0 %1619
        %1621 = vrot.lane.b32.xlu0 %v1580, 8
        %v1622 = vpop.permute.xlu0 %1621
        %1623 = vrot.lane.b32.xlu0 %v1583, 8
        %v1624 = vpop.permute.xlu0 %1623
        %1625 = vrot.lane.b32.xlu0 %v1586, 8
        %v1626 = vpop.permute.xlu0 %1625
        %1627 = vrot.lane.b32.xlu0 %v1589, 8
        %v1628 = vpop.permute.xlu0 %1627
        %1629 = vrot.lane.b32.xlu0 %v1592, 8
        %v1630 = vpop.permute.xlu0 %1629
        %1631 = vrot.lane.b32.xlu0 %v1595, 8
        %v1632 = vpop.permute.xlu0 %1631
        %1633 = vrot.lane.b32.xlu0 %v1598, 8
        %v1634 = vpop.permute.xlu0 %1633
        %1635 = vrot.lane.b32.xlu0 %v1601, 8
        %v1636 = vpop.permute.xlu0 %1635
        %1637 = vrot.lane.b32.xlu0 %v1604, 8
        %v1638 = vpop.permute.xlu0 %1637
        %1639 = vrot.lane.b32.xlu0 %v1607, 8
        %v1640 = vpop.permute.xlu0 %1639
        %1641 = vrot.lane.b32.xlu0 %v1610, 8
        %v1642 = vpop.permute.xlu0 %1641
        %vm1659 = vcmask 97344
        %1660 = vst.msk [vmem:[#allocation4] sm:$0xff] %vm1659, %v1612
        %1661 = vst.msk [vmem:[#allocation4 + $0x8] sm:$0xff] %vm1659, %v1614
        %1662 = vst.msk [vmem:[#allocation4 + $0x10] sm:$0xff] %vm1659, %v1616
        %1663 = vst.msk [vmem:[#allocation4 + $0x18] sm:$0xff] %vm1659, %v1618
        %1664 = vst.msk [vmem:[#allocation4 + $0x20] sm:$0xff] %vm1659, %v1620
        %1665 = vst.msk [vmem:[#allocation4 + $0x28] sm:$0xff] %vm1659, %v1622
        %1666 = vst.msk [vmem:[#allocation4 + $0x30] sm:$0xff] %vm1659, %v1624
        %1667 = vst.msk [vmem:[#allocation4 + $0x38] sm:$0xff] %vm1659, %v1626
        %1668 = vst.msk [vmem:[#allocation4 + $0x40] sm:$0xff] %vm1659, %v1628
        %1669 = vst.msk [vmem:[#allocation4 + $0x48] sm:$0xff] %vm1659, %v1630
        %1670 = vst.msk [vmem:[#allocation4 + $0x50] sm:$0xff] %vm1659, %v1632
        %1671 = vst.msk [vmem:[#allocation4 + $0x58] sm:$0xff] %vm1659, %v1634
        %1672 = vst.msk [vmem:[#allocation4 + $0x60] sm:$0xff] %vm1659, %v1636
        %1673 = vst.msk [vmem:[#allocation4 + $0x68] sm:$0xff] %vm1659, %v1638
        %1674 = vst.msk [vmem:[#allocation4 + $0x70] sm:$0xff] %vm1659, %v1640
        %1675 = vst.msk [vmem:[#allocation4 + $0x78] sm:$0xff] %vm1659, %v1642
        %v1676 = vld [vmem:[%s689] sm:$0xf]
        %v1677 = vld [vmem:[%s689 + $0x4] sm:$0xf]
        %v1678 = vld [vmem:[%s689 + $0xc] sm:$0xf]
        %v1679 = vld [vmem:[%s689 + $0x10] sm:$0xf]
        %v1680 = vld [vmem:[%s689 + $0x18] sm:$0xf]
        %v1681 = vld [vmem:[%s689 + $0x1c] sm:$0xf]
        %v1682 = vld [vmem:[%s689 + $0x24] sm:$0xf]
        %v1683 = vld [vmem:[%s689 + $0x28] sm:$0xf]
        %v1684 = vld [vmem:[%s689 + $0x30] sm:$0xf]
        %v1685 = vld [vmem:[%s689 + $0x34] sm:$0xf]
        %v1686 = vld [vmem:[%s689 + $0x3c] sm:$0xf]
        %v1687 = vld [vmem:[%s689 + $0x40] sm:$0xf]
        %v1688 = vld [vmem:[%s689 + $0x48] sm:$0xf]
        %v1689 = vld [vmem:[%s689 + $0x4c] sm:$0xf]
        %v1690 = vld [vmem:[%s689 + $0x54] sm:$0xf]
        %v1691 = vld [vmem:[%s689 + $0x58] sm:$0xf]
        %v1692 = vld [vmem:[%s689 + $0x60] sm:$0xf]
        %v1693 = vld [vmem:[%s689 + $0x64] sm:$0xf]
        %v1694 = vld [vmem:[%s689 + $0x6c] sm:$0xf]
        %v1695 = vld [vmem:[%s689 + $0x70] sm:$0xf]
        %v1696 = vld [vmem:[%s689 + $0x78] sm:$0xf]
        %v1697 = vld [vmem:[%s689 + $0x7c] sm:$0xf]
        %v1698 = vld [vmem:[%s689 + $0x84] sm:$0xf]
        %v1699 = vld [vmem:[%s689 + $0x88] sm:$0xf]
        %v1700 = vld [vmem:[%s689 + $0x90] sm:$0xf]
        %v1701 = vld [vmem:[%s689 + $0x94] sm:$0xf]
        %v1702 = vld [vmem:[%s689 + $0x9c] sm:$0xf]
        %v1703 = vld [vmem:[%s689 + $0xa0] sm:$0xf]
        %v1704 = vld [vmem:[%s689 + $0xa8] sm:$0xf]
        %v1705 = vld [vmem:[%s689 + $0xac] sm:$0xf]
        %v1706 = vld [vmem:[%s689 + $0xb4] sm:$0xf]
        %v1707 = vld [vmem:[%s689 + $0xb8] sm:$0xf]
        %v1740 = vunpack.c.l.b16 %v1676
        %v1741 = vunpack.c.l.b16 %v1677
        %v1742 = vunpack.c.l.b16 %v1678
        %v1743 = vunpack.c.l.b16 %v1679
        %v1744 = vunpack.c.l.b16 %v1680
        %v1745 = vunpack.c.l.b16 %v1681
        %v1746 = vunpack.c.l.b16 %v1682
        %v1747 = vunpack.c.l.b16 %v1683
        %v1748 = vunpack.c.l.b16 %v1684
        %v1749 = vunpack.c.l.b16 %v1685
        %v1750 = vunpack.c.l.b16 %v1686
        %v1751 = vunpack.c.l.b16 %v1687
        %v1752 = vunpack.c.l.b16 %v1688
        %v1753 = vunpack.c.l.b16 %v1689
        %v1754 = vunpack.c.l.b16 %v1690
        %v1755 = vunpack.c.l.b16 %v1691
        %v1756 = vunpack.c.l.b16 %v1692
        %v1757 = vunpack.c.l.b16 %v1693
        %v1758 = vunpack.c.l.b16 %v1694
        %v1759 = vunpack.c.l.b16 %v1695
        %v1760 = vunpack.c.l.b16 %v1696
        %v1761 = vunpack.c.l.b16 %v1697
        %v1762 = vunpack.c.l.b16 %v1698
        %v1763 = vunpack.c.l.b16 %v1699
        %v1764 = vunpack.c.l.b16 %v1700
        %v1765 = vunpack.c.l.b16 %v1701
        %v1766 = vunpack.c.l.b16 %v1702
        %v1767 = vunpack.c.l.b16 %v1703
        %v1768 = vunpack.c.l.b16 %v1704
        %v1769 = vunpack.c.l.b16 %v1705
        %v1770 = vunpack.c.l.b16 %v1706
        %v1771 = vunpack.c.l.b16 %v1707
        %v1772 = vpack.c.b16 %v1741, %v1740
        %v1773 = vpack.c.b16 %v1743, %v1742
        %v1774 = vpack.c.b16 %v1745, %v1744
        %v1775 = vpack.c.b16 %v1747, %v1746
        %v1776 = vpack.c.b16 %v1749, %v1748
        %v1777 = vpack.c.b16 %v1751, %v1750
        %v1778 = vpack.c.b16 %v1753, %v1752
        %v1779 = vpack.c.b16 %v1755, %v1754
        %v1780 = vpack.c.b16 %v1757, %v1756
        %v1781 = vpack.c.b16 %v1759, %v1758
        %v1782 = vpack.c.b16 %v1761, %v1760
        %v1783 = vpack.c.b16 %v1763, %v1762
        %v1784 = vpack.c.b16 %v1765, %v1764
        %v1785 = vpack.c.b16 %v1767, %v1766
        %v1786 = vpack.c.b16 %v1769, %v1768
        %v1787 = vpack.c.b16 %v1771, %v1770
        %1788 = vrot.lane.b32.xlu0 %v1772, 12
        %v1789 = vpop.permute.xlu0 %1788
        %1790 = vrot.lane.b32.xlu0 %v1773, 12
        %v1791 = vpop.permute.xlu0 %1790
        %1792 = vrot.lane.b32.xlu0 %v1774, 12
        %v1793 = vpop.permute.xlu0 %1792
        %1794 = vrot.lane.b32.xlu0 %v1775, 12
        %v1795 = vpop.permute.xlu0 %1794
        %1796 = vrot.lane.b32.xlu0 %v1776, 12
        %v1797 = vpop.permute.xlu0 %1796
        %1798 = vrot.lane.b32.xlu0 %v1777, 12
        %v1799 = vpop.permute.xlu0 %1798
        %1800 = vrot.lane.b32.xlu0 %v1778, 12
        %v1801 = vpop.permute.xlu0 %1800
        %1802 = vrot.lane.b32.xlu0 %v1779, 12
        %v1803 = vpop.permute.xlu0 %1802
        %1804 = vrot.lane.b32.xlu0 %v1780, 12
        %v1805 = vpop.permute.xlu0 %1804
        %1806 = vrot.lane.b32.xlu0 %v1781, 12
        %v1807 = vpop.permute.xlu0 %1806
        %1808 = vrot.lane.b32.xlu0 %v1782, 12
        %v1809 = vpop.permute.xlu0 %1808
        %1810 = vrot.lane.b32.xlu0 %v1783, 12
        %v1811 = vpop.permute.xlu0 %1810
        %1812 = vrot.lane.b32.xlu0 %v1784, 12
        %v1813 = vpop.permute.xlu0 %1812
        %1814 = vrot.lane.b32.xlu0 %v1785, 12
        %v1815 = vpop.permute.xlu0 %1814
        %1816 = vrot.lane.b32.xlu0 %v1786, 12
        %v1817 = vpop.permute.xlu0 %1816
        %1818 = vrot.lane.b32.xlu0 %v1787, 12
        %v1819 = vpop.permute.xlu0 %1818
        %vm1836 = vcmask 130144
        %1837 = vst.msk [vmem:[#allocation4] sm:$0xff] %vm1836, %v1789
        %1838 = vst.msk [vmem:[#allocation4 + $0x8] sm:$0xff] %vm1836, %v1791
        %1839 = vst.msk [vmem:[#allocation4 + $0x10] sm:$0xff] %vm1836, %v1793
        %1840 = vst.msk [vmem:[#allocation4 + $0x18] sm:$0xff] %vm1836, %v1795
        %1841 = vst.msk [vmem:[#allocation4 + $0x20] sm:$0xff] %vm1836, %v1797
        %1842 = vst.msk [vmem:[#allocation4 + $0x28] sm:$0xff] %vm1836, %v1799
        %1843 = vst.msk [vmem:[#allocation4 + $0x30] sm:$0xff] %vm1836, %v1801
        %1844 = vst.msk [vmem:[#allocation4 + $0x38] sm:$0xff] %vm1836, %v1803
        %1845 = vst.msk [vmem:[#allocation4 + $0x40] sm:$0xff] %vm1836, %v1805
        %1846 = vst.msk [vmem:[#allocation4 + $0x48] sm:$0xff] %vm1836, %v1807
        %1847 = vst.msk [vmem:[#allocation4 + $0x50] sm:$0xff] %vm1836, %v1809
        %1848 = vst.msk [vmem:[#allocation4 + $0x58] sm:$0xff] %vm1836, %v1811
        %1849 = vst.msk [vmem:[#allocation4 + $0x60] sm:$0xff] %vm1836, %v1813
        %1850 = vst.msk [vmem:[#allocation4 + $0x68] sm:$0xff] %vm1836, %v1815
        %1851 = vst.msk [vmem:[#allocation4 + $0x70] sm:$0xff] %vm1836, %v1817
        %1852 = vst.msk [vmem:[#allocation4 + $0x78] sm:$0xff] %vm1836, %v1819
        %v1853 = vld [vmem:[%s689] sm:$0xf]
        %v1854 = vld [vmem:[%s689 + $0x4] sm:$0xf]
        %v1855 = vld [vmem:[%s689 + $0x8] sm:$0x1]
        %v1856 = vld [vmem:[%s689 + $0xc] sm:$0xf]
        %v1857 = vld [vmem:[%s689 + $0x10] sm:$0xf]
        %v1858 = vld [vmem:[%s689 + $0x14] sm:$0x1]
        %v1859 = vld [vmem:[%s689 + $0x18] sm:$0xf]
        %v1860 = vld [vmem:[%s689 + $0x1c] sm:$0xf]
        %v1861 = vld [vmem:[%s689 + $0x20] sm:$0x1]
        %v1862 = vld [vmem:[%s689 + $0x24] sm:$0xf]
        %v1863 = vld [vmem:[%s689 + $0x28] sm:$0xf]
        %v1864 = vld [vmem:[%s689 + $0x2c] sm:$0x1]
        %v1865 = vld [vmem:[%s689 + $0x30] sm:$0xf]
        %v1866 = vld [vmem:[%s689 + $0x34] sm:$0xf]
        %v1867 = vld [vmem:[%s689 + $0x38] sm:$0x1]
        %v1868 = vld [vmem:[%s689 + $0x3c] sm:$0xf]
        %v1869 = vld [vmem:[%s689 + $0x40] sm:$0xf]
        %v1870 = vld [vmem:[%s689 + $0x44] sm:$0x1]
        %v1871 = vld [vmem:[%s689 + $0x48] sm:$0xf]
        %v1872 = vld [vmem:[%s689 + $0x4c] sm:$0xf]
        %v1873 = vld [vmem:[%s689 + $0x50] sm:$0x1]
        %v1874 = vld [vmem:[%s689 + $0x54] sm:$0xf]
        %v1875 = vld [vmem:[%s689 + $0x58] sm:$0xf]
        %v1876 = vld [vmem:[%s689 + $0x5c] sm:$0x1]
        %v1877 = vld [vmem:[%s689 + $0x60] sm:$0xf]
        %v1878 = vld [vmem:[%s689 + $0x64] sm:$0xf]
        %v1879 = vld [vmem:[%s689 + $0x68] sm:$0x1]
        %v1880 = vld [vmem:[%s689 + $0x6c] sm:$0xf]
        %v1881 = vld [vmem:[%s689 + $0x70] sm:$0xf]
        %v1882 = vld [vmem:[%s689 + $0x74] sm:$0x1]
        %v1883 = vld [vmem:[%s689 + $0x78] sm:$0xf]
        %v1884 = vld [vmem:[%s689 + $0x7c] sm:$0xf]
        %v1885 = vld [vmem:[%s689 + $0x80] sm:$0x1]
        %v1886 = vld [vmem:[%s689 + $0x84] sm:$0xf]
        %v1887 = vld [vmem:[%s689 + $0x88] sm:$0xf]
        %v1888 = vld [vmem:[%s689 + $0x8c] sm:$0x1]
        %v1889 = vld [vmem:[%s689 + $0x90] sm:$0xf]
        %v1890 = vld [vmem:[%s689 + $0x94] sm:$0xf]
        %v1891 = vld [vmem:[%s689 + $0x98] sm:$0x1]
        %v1892 = vld [vmem:[%s689 + $0x9c] sm:$0xf]
        %v1893 = vld [vmem:[%s689 + $0xa0] sm:$0xf]
        %v1894 = vld [vmem:[%s689 + $0xa4] sm:$0x1]
        %v1895 = vld [vmem:[%s689 + $0xa8] sm:$0xf]
        %v1896 = vld [vmem:[%s689 + $0xac] sm:$0xf]
        %v1897 = vld [vmem:[%s689 + $0xb0] sm:$0x1]
        %v1898 = vld [vmem:[%s689 + $0xb4] sm:$0xf]
        %v1899 = vld [vmem:[%s689 + $0xb8] sm:$0xf]
        %v1900 = vld [vmem:[%s689 + $0xbc] sm:$0x1]
        %v1949 = vunpack.c.l.b16 %v1853
        %v1950 = vunpack.c.l.b16 %v1854
        %v1951 = vunpack.c.l.b16 %v1855
        %v1952 = vunpack.c.l.b16 %v1856
        %v1953 = vunpack.c.l.b16 %v1857
        %v1954 = vunpack.c.l.b16 %v1858
        %v1955 = vunpack.c.l.b16 %v1859
        %v1956 = vunpack.c.l.b16 %v1860
        %v1957 = vunpack.c.l.b16 %v1861
        %v1958 = vunpack.c.l.b16 %v1862
        %v1959 = vunpack.c.l.b16 %v1863
        %v1960 = vunpack.c.l.b16 %v1864
        %v1961 = vunpack.c.l.b16 %v1865
        %v1962 = vunpack.c.l.b16 %v1866
        %v1963 = vunpack.c.l.b16 %v1867
        %v1964 = vunpack.c.l.b16 %v1868
        %v1965 = vunpack.c.l.b16 %v1869
        %v1966 = vunpack.c.l.b16 %v1870
        %v1967 = vunpack.c.l.b16 %v1871
        %v1968 = vunpack.c.l.b16 %v1872
        %v1969 = vunpack.c.l.b16 %v1873
        %v1970 = vunpack.c.l.b16 %v1874
        %v1971 = vunpack.c.l.b16 %v1875
        %v1972 = vunpack.c.l.b16 %v1876
        %v1973 = vunpack.c.l.b16 %v1877
        %v1974 = vunpack.c.l.b16 %v1878
        %v1975 = vunpack.c.l.b16 %v1879
        %v1976 = vunpack.c.l.b16 %v1880
        %v1977 = vunpack.c.l.b16 %v1881
        %v1978 = vunpack.c.l.b16 %v1882
        %v1979 = vunpack.c.l.b16 %v1883
        %v1980 = vunpack.c.l.b16 %v1884
        %v1981 = vunpack.c.l.b16 %v1885
        %v1982 = vunpack.c.l.b16 %v1886
        %v1983 = vunpack.c.l.b16 %v1887
        %v1984 = vunpack.c.l.b16 %v1888
        %v1985 = vunpack.c.l.b16 %v1889
        %v1986 = vunpack.c.l.b16 %v1890
        %v1987 = vunpack.c.l.b16 %v1891
        %v1988 = vunpack.c.l.b16 %v1892
        %v1989 = vunpack.c.l.b16 %v1893
        %v1990 = vunpack.c.l.b16 %v1894
        %v1991 = vunpack.c.l.b16 %v1895
        %v1992 = vunpack.c.l.b16 %v1896
        %v1993 = vunpack.c.l.b16 %v1897
        %v1994 = vunpack.c.l.b16 %v1898
        %v1995 = vunpack.c.l.b16 %v1899
        %v1996 = vunpack.c.l.b16 %v1900
        %v1997 = vpack.c.b16 %v1950, %v1949
        %v1998 = vpack.c.b16 %v1951, %v1951
        %v1999 = vpack.c.b16 %v1953, %v1952
        %v2000 = vpack.c.b16 %v1954, %v1954
        %v2001 = vpack.c.b16 %v1956, %v1955
        %v2002 = vpack.c.b16 %v1957, %v1957
        %v2003 = vpack.c.b16 %v1959, %v1958
        %v2004 = vpack.c.b16 %v1960, %v1960
        %v2005 = vpack.c.b16 %v1962, %v1961
        %v2006 = vpack.c.b16 %v1963, %v1963
        %v2007 = vpack.c.b16 %v1965, %v1964
        %v2008 = vpack.c.b16 %v1966, %v1966
        %v2009 = vpack.c.b16 %v1968, %v1967
        %v2010 = vpack.c.b16 %v1969, %v1969
        %v2011 = vpack.c.b16 %v1971, %v1970
        %v2012 = vpack.c.b16 %v1972, %v1972
        %v2013 = vpack.c.b16 %v1974, %v1973
        %v2014 = vpack.c.b16 %v1975, %v1975
        %v2015 = vpack.c.b16 %v1977, %v1976
        %v2016 = vpack.c.b16 %v1978, %v1978
        %v2017 = vpack.c.b16 %v1980, %v1979
        %v2018 = vpack.c.b16 %v1981, %v1981
        %v2019 = vpack.c.b16 %v1983, %v1982
        %v2020 = vpack.c.b16 %v1984, %v1984
        %v2021 = vpack.c.b16 %v1986, %v1985
        %v2022 = vpack.c.b16 %v1987, %v1987
        %v2023 = vpack.c.b16 %v1989, %v1988
        %v2024 = vpack.c.b16 %v1990, %v1990
        %v2025 = vpack.c.b16 %v1992, %v1991
        %v2026 = vpack.c.b16 %v1993, %v1993
        %v2027 = vpack.c.b16 %v1995, %v1994
        %v2028 = vpack.c.b16 %v1996, %v1996
        %v2030 = vshrl.u32 %v1997, 16
        %v2032 = vshll.u32 %v1997, 16
        %v2034 = vrot.slane %v2032, 1
        %v2035 = vor.u32 %v2030, %v2034
        %v2037 = vshll.u32 %v1998, 16
        %v2039 = vrot.slane %v2037, 1
        %v2040 = vsel %vm1128, %v2035, %v2039
        %v2042 = vshrl.u32 %v1999, 16
        %v2044 = vshll.u32 %v1999, 16
        %v2046 = vrot.slane %v2044, 1
        %v2047 = vor.u32 %v2042, %v2046
        %v2049 = vshll.u32 %v2000, 16
        %v2051 = vrot.slane %v2049, 1
        %v2052 = vsel %vm1128, %v2047, %v2051
        %v2054 = vshrl.u32 %v2001, 16
        %v2056 = vshll.u32 %v2001, 16
        %v2058 = vrot.slane %v2056, 1
        %v2059 = vor.u32 %v2054, %v2058
        %v2061 = vshll.u32 %v2002, 16
        %v2063 = vrot.slane %v2061, 1
        %v2064 = vsel %vm1128, %v2059, %v2063
        %v2066 = vshrl.u32 %v2003, 16
        %v2068 = vshll.u32 %v2003, 16
        %v2070 = vrot.slane %v2068, 1
        %v2071 = vor.u32 %v2066, %v2070
        %v2073 = vshll.u32 %v2004, 16
        %v2075 = vrot.slane %v2073, 1
        %v2076 = vsel %vm1128, %v2071, %v2075
        %v2078 = vshrl.u32 %v2005, 16
        %v2080 = vshll.u32 %v2005, 16
        %v2082 = vrot.slane %v2080, 1
        %v2083 = vor.u32 %v2078, %v2082
        %v2085 = vshll.u32 %v2006, 16
        %v2087 = vrot.slane %v2085, 1
        %v2088 = vsel %vm1128, %v2083, %v2087
        %v2090 = vshrl.u32 %v2007, 16
        %v2092 = vshll.u32 %v2007, 16
        %v2094 = vrot.slane %v2092, 1
        %v2095 = vor.u32 %v2090, %v2094
        %v2097 = vshll.u32 %v2008, 16
        %v2099 = vrot.slane %v2097, 1
        %v2100 = vsel %vm1128, %v2095, %v2099
        %v2102 = vshrl.u32 %v2009, 16
        %v2104 = vshll.u32 %v2009, 16
        %v2106 = vrot.slane %v2104, 1
        %v2107 = vor.u32 %v2102, %v2106
        %v2109 = vshll.u32 %v2010, 16
        %v2111 = vrot.slane %v2109, 1
        %v2112 = vsel %vm1128, %v2107, %v2111
        %v2114 = vshrl.u32 %v2011, 16
        %v2116 = vshll.u32 %v2011, 16
        %v2118 = vrot.slane %v2116, 1
        %v2119 = vor.u32 %v2114, %v2118
        %v2121 = vshll.u32 %v2012, 16
        %v2123 = vrot.slane %v2121, 1
        %v2124 = vsel %vm1128, %v2119, %v2123
        %v2126 = vshrl.u32 %v2013, 16
        %v2128 = vshll.u32 %v2013, 16
        %v2130 = vrot.slane %v2128, 1
        %v2131 = vor.u32 %v2126, %v2130
        %v2133 = vshll.u32 %v2014, 16
        %v2135 = vrot.slane %v2133, 1
        %v2136 = vsel %vm1128, %v2131, %v2135
        %v2138 = vshrl.u32 %v2015, 16
        %v2140 = vshll.u32 %v2015, 16
        %v2142 = vrot.slane %v2140, 1
        %v2143 = vor.u32 %v2138, %v2142
        %v2145 = vshll.u32 %v2016, 16
        %v2147 = vrot.slane %v2145, 1
        %v2148 = vsel %vm1128, %v2143, %v2147
        %v2150 = vshrl.u32 %v2017, 16
        %v2152 = vshll.u32 %v2017, 16
        %v2154 = vrot.slane %v2152, 1
        %v2155 = vor.u32 %v2150, %v2154
        %v2157 = vshll.u32 %v2018, 16
        %v2159 = vrot.slane %v2157, 1
        %v2160 = vsel %vm1128, %v2155, %v2159
        %v2162 = vshrl.u32 %v2019, 16
        %v2164 = vshll.u32 %v2019, 16
        %v2166 = vrot.slane %v2164, 1
        %v2167 = vor.u32 %v2162, %v2166
        %v2169 = vshll.u32 %v2020, 16
        %v2171 = vrot.slane %v2169, 1
        %v2172 = vsel %vm1128, %v2167, %v2171
        %v2174 = vshrl.u32 %v2021, 16
        %v2176 = vshll.u32 %v2021, 16
        %v2178 = vrot.slane %v2176, 1
        %v2179 = vor.u32 %v2174, %v2178
        %v2181 = vshll.u32 %v2022, 16
        %v2183 = vrot.slane %v2181, 1
        %v2184 = vsel %vm1128, %v2179, %v2183
        %v2186 = vshrl.u32 %v2023, 16
        %v2188 = vshll.u32 %v2023, 16
        %v2190 = vrot.slane %v2188, 1
        %v2191 = vor.u32 %v2186, %v2190
        %v2193 = vshll.u32 %v2024, 16
        %v2195 = vrot.slane %v2193, 1
        %v2196 = vsel %vm1128, %v2191, %v2195
        %v2198 = vshrl.u32 %v2025, 16
        %v2200 = vshll.u32 %v2025, 16
        %v2202 = vrot.slane %v2200, 1
        %v2203 = vor.u32 %v2198, %v2202
        %v2205 = vshll.u32 %v2026, 16
        %v2207 = vrot.slane %v2205, 1
        %v2208 = vsel %vm1128, %v2203, %v2207
        %v2210 = vshrl.u32 %v2027, 16
        %v2212 = vshll.u32 %v2027, 16
        %v2214 = vrot.slane %v2212, 1
        %v2215 = vor.u32 %v2210, %v2214
        %v2217 = vshll.u32 %v2028, 16
        %v2219 = vrot.slane %v2217, 1
        %v2220 = vsel %vm1128, %v2215, %v2219
        %2221 = vrot.lane.b32.xlu0 %v2040, 16
        %v2222 = vpop.permute.xlu0 %2221
        %2223 = vrot.lane.b32.xlu0 %v2052, 16
        %v2224 = vpop.permute.xlu0 %2223
        %2225 = vrot.lane.b32.xlu0 %v2064, 16
        %v2226 = vpop.permute.xlu0 %2225
        %2227 = vrot.lane.b32.xlu0 %v2076, 16
        %v2228 = vpop.permute.xlu0 %2227
        %2229 = vrot.lane.b32.xlu0 %v2088, 16
        %v2230 = vpop.permute.xlu0 %2229
        %2231 = vrot.lane.b32.xlu0 %v2100, 16
        %v2232 = vpop.permute.xlu0 %2231
        %2233 = vrot.lane.b32.xlu0 %v2112, 16
        %v2234 = vpop.permute.xlu0 %2233
        %2235 = vrot.lane.b32.xlu0 %v2124, 16
        %v2236 = vpop.permute.xlu0 %2235
        %2237 = vrot.lane.b32.xlu0 %v2136, 16
        %v2238 = vpop.permute.xlu0 %2237
        %2239 = vrot.lane.b32.xlu0 %v2148, 16
        %v2240 = vpop.permute.xlu0 %2239
        %2241 = vrot.lane.b32.xlu0 %v2160, 16
        %v2242 = vpop.permute.xlu0 %2241
        %2243 = vrot.lane.b32.xlu0 %v2172, 16
        %v2244 = vpop.permute.xlu0 %2243
        %2245 = vrot.lane.b32.xlu0 %v2184, 16
        %v2246 = vpop.permute.xlu0 %2245
        %2247 = vrot.lane.b32.xlu0 %v2196, 16
        %v2248 = vpop.permute.xlu0 %2247
        %2249 = vrot.lane.b32.xlu0 %v2208, 16
        %v2250 = vpop.permute.xlu0 %2249
        %2251 = vrot.lane.b32.xlu0 %v2220, 16
        %v2252 = vpop.permute.xlu0 %2251
        %vm2269 = vcmask 162944
        %2270 = vst.msk [vmem:[#allocation4] sm:$0xff] %vm2269, %v2222
        %2271 = vst.msk [vmem:[#allocation4 + $0x8] sm:$0xff] %vm2269, %v2224
        %2272 = vst.msk [vmem:[#allocation4 + $0x10] sm:$0xff] %vm2269, %v2226
        %2273 = vst.msk [vmem:[#allocation4 + $0x18] sm:$0xff] %vm2269, %v2228
        %2274 = vst.msk [vmem:[#allocation4 + $0x20] sm:$0xff] %vm2269, %v2230
        %2275 = vst.msk [vmem:[#allocation4 + $0x28] sm:$0xff] %vm2269, %v2232
        %2276 = vst.msk [vmem:[#allocation4 + $0x30] sm:$0xff] %vm2269, %v2234
        %2277 = vst.msk [vmem:[#allocation4 + $0x38] sm:$0xff] %vm2269, %v2236
        %2278 = vst.msk [vmem:[#allocation4 + $0x40] sm:$0xff] %vm2269, %v2238
        %2279 = vst.msk [vmem:[#allocation4 + $0x48] sm:$0xff] %vm2269, %v2240
        %2280 = vst.msk [vmem:[#allocation4 + $0x50] sm:$0xff] %vm2269, %v2242
        %2281 = vst.msk [vmem:[#allocation4 + $0x58] sm:$0xff] %vm2269, %v2244
        %2282 = vst.msk [vmem:[#allocation4 + $0x60] sm:$0xff] %vm2269, %v2246
        %2283 = vst.msk [vmem:[#allocation4 + $0x68] sm:$0xff] %vm2269, %v2248
        %2284 = vst.msk [vmem:[#allocation4 + $0x70] sm:$0xff] %vm2269, %v2250
        %2285 = vst.msk [vmem:[#allocation4 + $0x78] sm:$0xff] %vm2269, %v2252
        %v2286 = vld [vmem:[%s689] sm:$0xe]
        %v2287 = vld [vmem:[%s689 + $0x4] sm:$0xf]
        %v2288 = vld [vmem:[%s689 + $0x8] sm:$0x1]
        %v2289 = vld [vmem:[%s689 + $0xc] sm:$0xe]
        %v2290 = vld [vmem:[%s689 + $0x10] sm:$0xf]
        %v2291 = vld [vmem:[%s689 + $0x14] sm:$0x1]
        %v2292 = vld [vmem:[%s689 + $0x18] sm:$0xe]
        %v2293 = vld [vmem:[%s689 + $0x1c] sm:$0xf]
        %v2294 = vld [vmem:[%s689 + $0x20] sm:$0x1]
        %v2295 = vld [vmem:[%s689 + $0x24] sm:$0xe]
        %v2296 = vld [vmem:[%s689 + $0x28] sm:$0xf]
        %v2297 = vld [vmem:[%s689 + $0x2c] sm:$0x1]
        %v2298 = vld [vmem:[%s689 + $0x30] sm:$0xe]
        %v2299 = vld [vmem:[%s689 + $0x34] sm:$0xf]
        %v2300 = vld [vmem:[%s689 + $0x38] sm:$0x1]
        %v2301 = vld [vmem:[%s689 + $0x3c] sm:$0xe]
        %v2302 = vld [vmem:[%s689 + $0x40] sm:$0xf]
        %v2303 = vld [vmem:[%s689 + $0x44] sm:$0x1]
        %v2304 = vld [vmem:[%s689 + $0x48] sm:$0xe]
        %v2305 = vld [vmem:[%s689 + $0x4c] sm:$0xf]
        %v2306 = vld [vmem:[%s689 + $0x50] sm:$0x1]
        %v2307 = vld [vmem:[%s689 + $0x54] sm:$0xe]
        %v2308 = vld [vmem:[%s689 + $0x58] sm:$0xf]
        %v2309 = vld [vmem:[%s689 + $0x5c] sm:$0x1]
        %v2310 = vld [vmem:[%s689 + $0x60] sm:$0xe]
        %v2311 = vld [vmem:[%s689 + $0x64] sm:$0xf]
        %v2312 = vld [vmem:[%s689 + $0x68] sm:$0x1]
        %v2313 = vld [vmem:[%s689 + $0x6c] sm:$0xe]
        %v2314 = vld [vmem:[%s689 + $0x70] sm:$0xf]
        %v2315 = vld [vmem:[%s689 + $0x74] sm:$0x1]
        %v2316 = vld [vmem:[%s689 + $0x78] sm:$0xe]
        %v2317 = vld [vmem:[%s689 + $0x7c] sm:$0xf]
        %v2318 = vld [vmem:[%s689 + $0x80] sm:$0x1]
        %v2319 = vld [vmem:[%s689 + $0x84] sm:$0xe]
        %v2320 = vld [vmem:[%s689 + $0x88] sm:$0xf]
        %v2321 = vld [vmem:[%s689 + $0x8c] sm:$0x1]
        %v2322 = vld [vmem:[%s689 + $0x90] sm:$0xe]
        %v2323 = vld [vmem:[%s689 + $0x94] sm:$0xf]
        %v2324 = vld [vmem:[%s689 + $0x98] sm:$0x1]
        %v2325 = vld [vmem:[%s689 + $0x9c] sm:$0xe]
        %v2326 = vld [vmem:[%s689 + $0xa0] sm:$0xf]
        %v2327 = vld [vmem:[%s689 + $0xa4] sm:$0x1]
        %v2328 = vld [vmem:[%s689 + $0xa8] sm:$0xe]
        %v2329 = vld [vmem:[%s689 + $0xac] sm:$0xf]
        %v2330 = vld [vmem:[%s689 + $0xb0] sm:$0x1]
        %v2331 = vld [vmem:[%s689 + $0xb4] sm:$0xe]
        %v2332 = vld [vmem:[%s689 + $0xb8] sm:$0xf]
        %v2333 = vld [vmem:[%s689 + $0xbc] sm:$0x1]
        %v2382 = vunpack.c.l.b16 %v2286
        %v2383 = vunpack.c.l.b16 %v2287
        %v2384 = vunpack.c.l.b16 %v2288
        %v2385 = vunpack.c.l.b16 %v2289
        %v2386 = vunpack.c.l.b16 %v2290
        %v2387 = vunpack.c.l.b16 %v2291
        %v2388 = vunpack.c.l.b16 %v2292
        %v2389 = vunpack.c.l.b16 %v2293
        %v2390 = vunpack.c.l.b16 %v2294
        %v2391 = vunpack.c.l.b16 %v2295
        %v2392 = vunpack.c.l.b16 %v2296
        %v2393 = vunpack.c.l.b16 %v2297
        %v2394 = vunpack.c.l.b16 %v2298
        %v2395 = vunpack.c.l.b16 %v2299
        %v2396 = vunpack.c.l.b16 %v2300
        %v2397 = vunpack.c.l.b16 %v2301
        %v2398 = vunpack.c.l.b16 %v2302
        %v2399 = vunpack.c.l.b16 %v2303
        %v2400 = vunpack.c.l.b16 %v2304
        %v2401 = vunpack.c.l.b16 %v2305
        %v2402 = vunpack.c.l.b16 %v2306
        %v2403 = vunpack.c.l.b16 %v2307
        %v2404 = vunpack.c.l.b16 %v2308
        %v2405 = vunpack.c.l.b16 %v2309
        %v2406 = vunpack.c.l.b16 %v2310
        %v2407 = vunpack.c.l.b16 %v2311
        %v2408 = vunpack.c.l.b16 %v2312
        %v2409 = vunpack.c.l.b16 %v2313
        %v2410 = vunpack.c.l.b16 %v2314
        %v2411 = vunpack.c.l.b16 %v2315
        %v2412 = vunpack.c.l.b16 %v2316
        %v2413 = vunpack.c.l.b16 %v2317
        %v2414 = vunpack.c.l.b16 %v2318
        %v2415 = vunpack.c.l.b16 %v2319
        %v2416 = vunpack.c.l.b16 %v2320
        %v2417 = vunpack.c.l.b16 %v2321
        %v2418 = vunpack.c.l.b16 %v2322
        %v2419 = vunpack.c.l.b16 %v2323
        %v2420 = vunpack.c.l.b16 %v2324
        %v2421 = vunpack.c.l.b16 %v2325
        %v2422 = vunpack.c.l.b16 %v2326
        %v2423 = vunpack.c.l.b16 %v2327
        %v2424 = vunpack.c.l.b16 %v2328
        %v2425 = vunpack.c.l.b16 %v2329
        %v2426 = vunpack.c.l.b16 %v2330
        %v2427 = vunpack.c.l.b16 %v2331
        %v2428 = vunpack.c.l.b16 %v2332
        %v2429 = vunpack.c.l.b16 %v2333
        %v2430 = vpack.c.b16 %v2383, %v2382
        %v2431 = vpack.c.b16 %v2384, %v2384
        %v2432 = vpack.c.b16 %v2386, %v2385
        %v2433 = vpack.c.b16 %v2387, %v2387
        %v2434 = vpack.c.b16 %v2389, %v2388
        %v2435 = vpack.c.b16 %v2390, %v2390
        %v2436 = vpack.c.b16 %v2392, %v2391
        %v2437 = vpack.c.b16 %v2393, %v2393
        %v2438 = vpack.c.b16 %v2395, %v2394
        %v2439 = vpack.c.b16 %v2396, %v2396
        %v2440 = vpack.c.b16 %v2398, %v2397
        %v2441 = vpack.c.b16 %v2399, %v2399
        %v2442 = vpack.c.b16 %v2401, %v2400
        %v2443 = vpack.c.b16 %v2402, %v2402
        %v2444 = vpack.c.b16 %v2404, %v2403
        %v2445 = vpack.c.b16 %v2405, %v2405
        %v2446 = vpack.c.b16 %v2407, %v2406
        %v2447 = vpack.c.b16 %v2408, %v2408
        %v2448 = vpack.c.b16 %v2410, %v2409
        %v2449 = vpack.c.b16 %v2411, %v2411
        %v2450 = vpack.c.b16 %v2413, %v2412
        %v2451 = vpack.c.b16 %v2414, %v2414
        %v2452 = vpack.c.b16 %v2416, %v2415
        %v2453 = vpack.c.b16 %v2417, %v2417
        %v2454 = vpack.c.b16 %v2419, %v2418
        %v2455 = vpack.c.b16 %v2420, %v2420
        %v2456 = vpack.c.b16 %v2422, %v2421
        %v2457 = vpack.c.b16 %v2423, %v2423
        %v2458 = vpack.c.b16 %v2425, %v2424
        %v2459 = vpack.c.b16 %v2426, %v2426
        %v2460 = vpack.c.b16 %v2428, %v2427
        %v2461 = vpack.c.b16 %v2429, %v2429
        %v2462 = vrot.slane %v2430, 1
        %v2463 = vrot.slane %v2431, 1
        %v2464 = vsel %vm1562, %v2462, %v2463
        %v2465 = vrot.slane %v2432, 1
        %v2466 = vrot.slane %v2433, 1
        %v2467 = vsel %vm1562, %v2465, %v2466
        %v2468 = vrot.slane %v2434, 1
        %v2469 = vrot.slane %v2435, 1
        %v2470 = vsel %vm1562, %v2468, %v2469
        %v2471 = vrot.slane %v2436, 1
        %v2472 = vrot.slane %v2437, 1
        %v2473 = vsel %vm1562, %v2471, %v2472
        %v2474 = vrot.slane %v2438, 1
        %v2475 = vrot.slane %v2439, 1
        %v2476 = vsel %vm1562, %v2474, %v2475
        %v2477 = vrot.slane %v2440, 1
        %v2478 = vrot.slane %v2441, 1
        %v2479 = vsel %vm1562, %v2477, %v2478
        %v2480 = vrot.slane %v2442, 1
        %v2481 = vrot.slane %v2443, 1
        %v2482 = vsel %vm1562, %v2480, %v2481
        %v2483 = vrot.slane %v2444, 1
        %v2484 = vrot.slane %v2445, 1
        %v2485 = vsel %vm1562, %v2483, %v2484
        %v2486 = vrot.slane %v2446, 1
        %v2487 = vrot.slane %v2447, 1
        %v2488 = vsel %vm1562, %v2486, %v2487
        %v2489 = vrot.slane %v2448, 1
        %v2490 = vrot.slane %v2449, 1
        %v2491 = vsel %vm1562, %v2489, %v2490
        %v2492 = vrot.slane %v2450, 1
        %v2493 = vrot.slane %v2451, 1
        %v2494 = vsel %vm1562, %v2492, %v2493
        %v2495 = vrot.slane %v2452, 1
        %v2496 = vrot.slane %v2453, 1
        %v2497 = vsel %vm1562, %v2495, %v2496
        %v2498 = vrot.slane %v2454, 1
        %v2499 = vrot.slane %v2455, 1
        %v2500 = vsel %vm1562, %v2498, %v2499
        %v2501 = vrot.slane %v2456, 1
        %v2502 = vrot.slane %v2457, 1
        %v2503 = vsel %vm1562, %v2501, %v2502
        %v2504 = vrot.slane %v2458, 1
        %v2505 = vrot.slane %v2459, 1
        %v2506 = vsel %vm1562, %v2504, %v2505
        %v2507 = vrot.slane %v2460, 1
        %v2508 = vrot.slane %v2461, 1
        %v2509 = vsel %vm1562, %v2507, %v2508
        %2510 = vrot.lane.b32.xlu0 %v2464, 20
        %v2511 = vpop.permute.xlu0 %2510
        %2512 = vrot.lane.b32.xlu0 %v2467, 20
        %v2513 = vpop.permute.xlu0 %2512
        %2514 = vrot.lane.b32.xlu0 %v2470, 20
        %v2515 = vpop.permute.xlu0 %2514
        %2516 = vrot.lane.b32.xlu0 %v2473, 20
        %v2517 = vpop.permute.xlu0 %2516
        %2518 = vrot.lane.b32.xlu0 %v2476, 20
        %v2519 = vpop.permute.xlu0 %2518
        %2520 = vrot.lane.b32.xlu0 %v2479, 20
        %v2521 = vpop.permute.xlu0 %2520
        %2522 = vrot.lane.b32.xlu0 %v2482, 20
        %v2523 = vpop.permute.xlu0 %2522
        %2524 = vrot.lane.b32.xlu0 %v2485, 20
        %v2525 = vpop.permute.xlu0 %2524
        %2526 = vrot.lane.b32.xlu0 %v2488, 20
        %v2527 = vpop.permute.xlu0 %2526
        %2528 = vrot.lane.b32.xlu0 %v2491, 20
        %v2529 = vpop.permute.xlu0 %2528
        %2530 = vrot.lane.b32.xlu0 %v2494, 20
        %v2531 = vpop.permute.xlu0 %2530
        %2532 = vrot.lane.b32.xlu0 %v2497, 20
        %v2533 = vpop.permute.xlu0 %2532
        %2534 = vrot.lane.b32.xlu0 %v2500, 20
        %v2535 = vpop.permute.xlu0 %2534
        %2536 = vrot.lane.b32.xlu0 %v2503, 20
        %v2537 = vpop.permute.xlu0 %2536
        %2538 = vrot.lane.b32.xlu0 %v2506, 20
        %v2539 = vpop.permute.xlu0 %2538
        %2540 = vrot.lane.b32.xlu0 %v2509, 20
        %v2541 = vpop.permute.xlu0 %2540
        %vm2558 = vcmask 195744
        %2559 = vst.msk [vmem:[#allocation4] sm:$0xff] %vm2558, %v2511
        %2560 = vst.msk [vmem:[#allocation4 + $0x8] sm:$0xff] %vm2558, %v2513
        %2561 = vst.msk [vmem:[#allocation4 + $0x10] sm:$0xff] %vm2558, %v2515
        %2562 = vst.msk [vmem:[#allocation4 + $0x18] sm:$0xff] %vm2558, %v2517
        %2563 = vst.msk [vmem:[#allocation4 + $0x20] sm:$0xff] %vm2558, %v2519
        %2564 = vst.msk [vmem:[#allocation4 + $0x28] sm:$0xff] %vm2558, %v2521
        %2565 = vst.msk [vmem:[#allocation4 + $0x30] sm:$0xff] %vm2558, %v2523
        %2566 = vst.msk [vmem:[#allocation4 + $0x38] sm:$0xff] %vm2558, %v2525
        %2567 = vst.msk [vmem:[#allocation4 + $0x40] sm:$0xff] %vm2558, %v2527
        %2568 = vst.msk [vmem:[#allocation4 + $0x48] sm:$0xff] %vm2558, %v2529
        %2569 = vst.msk [vmem:[#allocation4 + $0x50] sm:$0xff] %vm2558, %v2531
        %2570 = vst.msk [vmem:[#allocation4 + $0x58] sm:$0xff] %vm2558, %v2533
        %2571 = vst.msk [vmem:[#allocation4 + $0x60] sm:$0xff] %vm2558, %v2535
        %2572 = vst.msk [vmem:[#allocation4 + $0x68] sm:$0xff] %vm2558, %v2537
        %2573 = vst.msk [vmem:[#allocation4 + $0x70] sm:$0xff] %vm2558, %v2539
        %2574 = vst.msk [vmem:[#allocation4 + $0x78] sm:$0xff] %vm2558, %v2541
        %s2575 = scalar_lea.vmem [#allocation2], 24
        %v2576 = vld [vmem:[%s2575] sm:$0xf]
        %v2577 = vld [vmem:[%s2575 + $0x4] sm:$0xf]
        %v2578 = vld [vmem:[%s2575 + $0xc] sm:$0xf]
        %v2579 = vld [vmem:[%s2575 + $0x10] sm:$0xf]
        %v2580 = vld [vmem:[%s2575 + $0x18] sm:$0xf]
        %v2581 = vld [vmem:[%s2575 + $0x1c] sm:$0xf]
        %v2582 = vld [vmem:[%s2575 + $0x24] sm:$0xf]
        %v2583 = vld [vmem:[%s2575 + $0x28] sm:$0xf]
        %v2584 = vld [vmem:[%s2575 + $0x30] sm:$0xf]
        %v2585 = vld [vmem:[%s2575 + $0x34] sm:$0xf]
        %v2586 = vld [vmem:[%s2575 + $0x3c] sm:$0xf]
        %v2587 = vld [vmem:[%s2575 + $0x40] sm:$0xf]
        %v2588 = vld [vmem:[%s2575 + $0x48] sm:$0xf]
        %v2589 = vld [vmem:[%s2575 + $0x4c] sm:$0xf]
        %v2590 = vld [vmem:[%s2575 + $0x54] sm:$0xf]
        %v2591 = vld [vmem:[%s2575 + $0x58] sm:$0xf]
        %v2592 = vld [vmem:[%s2575 + $0x60] sm:$0xf]
        %v2593 = vld [vmem:[%s2575 + $0x64] sm:$0xf]
        %v2594 = vld [vmem:[%s2575 + $0x6c] sm:$0xf]
        %v2595 = vld [vmem:[%s2575 + $0x70] sm:$0xf]
        %v2596 = vld [vmem:[%s2575 + $0x78] sm:$0xf]
        %v2597 = vld [vmem:[%s2575 + $0x7c] sm:$0xf]
        %v2598 = vld [vmem:[%s2575 + $0x84] sm:$0xf]
        %v2599 = vld [vmem:[%s2575 + $0x88] sm:$0xf]
        %v2600 = vld [vmem:[%s2575 + $0x90] sm:$0xf]
        %v2601 = vld [vmem:[%s2575 + $0x94] sm:$0xf]
        %v2602 = vld [vmem:[%s2575 + $0x9c] sm:$0xf]
        %v2603 = vld [vmem:[%s2575 + $0xa0] sm:$0xf]
        %v2604 = vld [vmem:[%s2575 + $0xa8] sm:$0xf]
        %v2605 = vld [vmem:[%s2575 + $0xac] sm:$0xf]
        %v2606 = vld [vmem:[%s2575 + $0xb4] sm:$0xf]
        %v2607 = vld [vmem:[%s2575 + $0xb8] sm:$0xf]
        %v2640 = vunpack.c.l.b16 %v2576
        %v2641 = vunpack.c.l.b16 %v2577
        %v2642 = vunpack.c.l.b16 %v2578
        %v2643 = vunpack.c.l.b16 %v2579
        %v2644 = vunpack.c.l.b16 %v2580
        %v2645 = vunpack.c.l.b16 %v2581
        %v2646 = vunpack.c.l.b16 %v2582
        %v2647 = vunpack.c.l.b16 %v2583
        %v2648 = vunpack.c.l.b16 %v2584
        %v2649 = vunpack.c.l.b16 %v2585
        %v2650 = vunpack.c.l.b16 %v2586
        %v2651 = vunpack.c.l.b16 %v2587
        %v2652 = vunpack.c.l.b16 %v2588
        %v2653 = vunpack.c.l.b16 %v2589
        %v2654 = vunpack.c.l.b16 %v2590
        %v2655 = vunpack.c.l.b16 %v2591
        %v2656 = vunpack.c.l.b16 %v2592
        %v2657 = vunpack.c.l.b16 %v2593
        %v2658 = vunpack.c.l.b16 %v2594
        %v2659 = vunpack.c.l.b16 %v2595
        %v2660 = vunpack.c.l.b16 %v2596
        %v2661 = vunpack.c.l.b16 %v2597
        %v2662 = vunpack.c.l.b16 %v2598
        %v2663 = vunpack.c.l.b16 %v2599
        %v2664 = vunpack.c.l.b16 %v2600
        %v2665 = vunpack.c.l.b16 %v2601
        %v2666 = vunpack.c.l.b16 %v2602
        %v2667 = vunpack.c.l.b16 %v2603
        %v2668 = vunpack.c.l.b16 %v2604
        %v2669 = vunpack.c.l.b16 %v2605
        %v2670 = vunpack.c.l.b16 %v2606
        %v2671 = vunpack.c.l.b16 %v2607
        %v2672 = vpack.c.b16 %v2641, %v2640
        %v2673 = vpack.c.b16 %v2643, %v2642
        %v2674 = vpack.c.b16 %v2645, %v2644
        %v2675 = vpack.c.b16 %v2647, %v2646
        %v2676 = vpack.c.b16 %v2649, %v2648
        %v2677 = vpack.c.b16 %v2651, %v2650
        %v2678 = vpack.c.b16 %v2653, %v2652
        %v2679 = vpack.c.b16 %v2655, %v2654
        %v2680 = vpack.c.b16 %v2657, %v2656
        %v2681 = vpack.c.b16 %v2659, %v2658
        %v2682 = vpack.c.b16 %v2661, %v2660
        %v2683 = vpack.c.b16 %v2663, %v2662
        %v2684 = vpack.c.b16 %v2665, %v2664
        %v2685 = vpack.c.b16 %v2667, %v2666
        %v2686 = vpack.c.b16 %v2669, %v2668
        %v2687 = vpack.c.b16 %v2671, %v2670
        %2688 = vrot.lane.b32.xlu0 %v2672, 24
        %v2689 = vpop.permute.xlu0 %2688
        %2690 = vrot.lane.b32.xlu0 %v2673, 24
        %v2691 = vpop.permute.xlu0 %2690
        %2692 = vrot.lane.b32.xlu0 %v2674, 24
        %v2693 = vpop.permute.xlu0 %2692
        %2694 = vrot.lane.b32.xlu0 %v2675, 24
        %v2695 = vpop.permute.xlu0 %2694
        %2696 = vrot.lane.b32.xlu0 %v2676, 24
        %v2697 = vpop.permute.xlu0 %2696
        %2698 = vrot.lane.b32.xlu0 %v2677, 24
        %v2699 = vpop.permute.xlu0 %2698
        %2700 = vrot.lane.b32.xlu0 %v2678, 24
        %v2701 = vpop.permute.xlu0 %2700
        %2702 = vrot.lane.b32.xlu0 %v2679, 24
        %v2703 = vpop.permute.xlu0 %2702
        %2704 = vrot.lane.b32.xlu0 %v2680, 24
        %v2705 = vpop.permute.xlu0 %2704
        %2706 = vrot.lane.b32.xlu0 %v2681, 24
        %v2707 = vpop.permute.xlu0 %2706
        %2708 = vrot.lane.b32.xlu0 %v2682, 24
        %v2709 = vpop.permute.xlu0 %2708
        %2710 = vrot.lane.b32.xlu0 %v2683, 24
        %v2711 = vpop.permute.xlu0 %2710
        %2712 = vrot.lane.b32.xlu0 %v2684, 24
        %v2713 = vpop.permute.xlu0 %2712
        %2714 = vrot.lane.b32.xlu0 %v2685, 24
        %v2715 = vpop.permute.xlu0 %2714
        %2716 = vrot.lane.b32.xlu0 %v2686, 24
        %v2717 = vpop.permute.xlu0 %2716
        %2718 = vrot.lane.b32.xlu0 %v2687, 24
        %v2719 = vpop.permute.xlu0 %2718
        %vm2736 = vcmask 228544
        %2737 = vst.msk [vmem:[#allocation4] sm:$0xff] %vm2736, %v2689
        %2738 = vst.msk [vmem:[#allocation4 + $0x8] sm:$0xff] %vm2736, %v2691
        %2739 = vst.msk [vmem:[#allocation4 + $0x10] sm:$0xff] %vm2736, %v2693
        %2740 = vst.msk [vmem:[#allocation4 + $0x18] sm:$0xff] %vm2736, %v2695
        %2741 = vst.msk [vmem:[#allocation4 + $0x20] sm:$0xff] %vm2736, %v2697
        %2742 = vst.msk [vmem:[#allocation4 + $0x28] sm:$0xff] %vm2736, %v2699
        %2743 = vst.msk [vmem:[#allocation4 + $0x30] sm:$0xff] %vm2736, %v2701
        %2744 = vst.msk [vmem:[#allocation4 + $0x38] sm:$0xff] %vm2736, %v2703
        %2745 = vst.msk [vmem:[#allocation4 + $0x40] sm:$0xff] %vm2736, %v2705
        %2746 = vst.msk [vmem:[#allocation4 + $0x48] sm:$0xff] %vm2736, %v2707
        %2747 = vst.msk [vmem:[#allocation4 + $0x50] sm:$0xff] %vm2736, %v2709
        %2748 = vst.msk [vmem:[#allocation4 + $0x58] sm:$0xff] %vm2736, %v2711
        %2749 = vst.msk [vmem:[#allocation4 + $0x60] sm:$0xff] %vm2736, %v2713
        %2750 = vst.msk [vmem:[#allocation4 + $0x68] sm:$0xff] %vm2736, %v2715
        %2751 = vst.msk [vmem:[#allocation4 + $0x70] sm:$0xff] %vm2736, %v2717
        %2752 = vst.msk [vmem:[#allocation4 + $0x78] sm:$0xff] %vm2736, %v2719
        %v2753 = vld [vmem:[%s2575] sm:$0xf]
        %v2754 = vld [vmem:[%s2575 + $0x4] sm:$0xf]
        %v2755 = vld [vmem:[%s2575 + $0x8] sm:$0x1]
        %v2756 = vld [vmem:[%s2575 + $0xc] sm:$0xf]
        %v2757 = vld [vmem:[%s2575 + $0x10] sm:$0xf]
        %v2758 = vld [vmem:[%s2575 + $0x14] sm:$0x1]
        %v2759 = vld [vmem:[%s2575 + $0x18] sm:$0xf]
        %v2760 = vld [vmem:[%s2575 + $0x1c] sm:$0xf]
        %v2761 = vld [vmem:[%s2575 + $0x20] sm:$0x1]
        %v2762 = vld [vmem:[%s2575 + $0x24] sm:$0xf]
        %v2763 = vld [vmem:[%s2575 + $0x28] sm:$0xf]
        %v2764 = vld [vmem:[%s2575 + $0x2c] sm:$0x1]
        %v2765 = vld [vmem:[%s2575 + $0x30] sm:$0xf]
        %v2766 = vld [vmem:[%s2575 + $0x34] sm:$0xf]
        %v2767 = vld [vmem:[%s2575 + $0x38] sm:$0x1]
        %v2768 = vld [vmem:[%s2575 + $0x3c] sm:$0xf]
        %v2769 = vld [vmem:[%s2575 + $0x40] sm:$0xf]
        %v2770 = vld [vmem:[%s2575 + $0x44] sm:$0x1]
        %v2771 = vld [vmem:[%s2575 + $0x48] sm:$0xf]
        %v2772 = vld [vmem:[%s2575 + $0x4c] sm:$0xf]
        %v2773 = vld [vmem:[%s2575 + $0x50] sm:$0x1]
        %v2774 = vld [vmem:[%s2575 + $0x54] sm:$0xf]
        %v2775 = vld [vmem:[%s2575 + $0x58] sm:$0xf]
        %v2776 = vld [vmem:[%s2575 + $0x5c] sm:$0x1]
        %v2777 = vld [vmem:[%s2575 + $0x60] sm:$0xf]
        %v2778 = vld [vmem:[%s2575 + $0x64] sm:$0xf]
        %v2779 = vld [vmem:[%s2575 + $0x68] sm:$0x1]
        %v2780 = vld [vmem:[%s2575 + $0x6c] sm:$0xf]
        %v2781 = vld [vmem:[%s2575 + $0x70] sm:$0xf]
        %v2782 = vld [vmem:[%s2575 + $0x74] sm:$0x1]
        %v2783 = vld [vmem:[%s2575 + $0x78] sm:$0xf]
        %v2784 = vld [vmem:[%s2575 + $0x7c] sm:$0xf]
        %v2785 = vld [vmem:[%s2575 + $0x80] sm:$0x1]
        %v2786 = vld [vmem:[%s2575 + $0x84] sm:$0xf]
        %v2787 = vld [vmem:[%s2575 + $0x88] sm:$0xf]
        %v2788 = vld [vmem:[%s2575 + $0x8c] sm:$0x1]
        %v2789 = vld [vmem:[%s2575 + $0x90] sm:$0xf]
        %v2790 = vld [vmem:[%s2575 + $0x94] sm:$0xf]
        %v2791 = vld [vmem:[%s2575 + $0x98] sm:$0x1]
        %v2792 = vld [vmem:[%s2575 + $0x9c] sm:$0xf]
        %v2793 = vld [vmem:[%s2575 + $0xa0] sm:$0xf]
        %v2794 = vld [vmem:[%s2575 + $0xa4] sm:$0x1]
        %v2795 = vld [vmem:[%s2575 + $0xa8] sm:$0xf]
        %v2796 = vld [vmem:[%s2575 + $0xac] sm:$0xf]
        %v2797 = vld [vmem:[%s2575 + $0xb0] sm:$0x1]
        %v2798 = vld [vmem:[%s2575 + $0xb4] sm:$0xf]
        %v2799 = vld [vmem:[%s2575 + $0xb8] sm:$0xf]
        %v2800 = vld [vmem:[%s2575 + $0xbc] sm:$0x1]
        %v2849 = vunpack.c.l.b16 %v2753
        %v2850 = vunpack.c.l.b16 %v2754
        %v2851 = vunpack.c.l.b16 %v2755
        %v2852 = vunpack.c.l.b16 %v2756
        %v2853 = vunpack.c.l.b16 %v2757
        %v2854 = vunpack.c.l.b16 %v2758
        %v2855 = vunpack.c.l.b16 %v2759
        %v2856 = vunpack.c.l.b16 %v2760
        %v2857 = vunpack.c.l.b16 %v2761
        %v2858 = vunpack.c.l.b16 %v2762
        %v2859 = vunpack.c.l.b16 %v2763
        %v2860 = vunpack.c.l.b16 %v2764
        %v2861 = vunpack.c.l.b16 %v2765
        %v2862 = vunpack.c.l.b16 %v2766
        %v2863 = vunpack.c.l.b16 %v2767
        %v2864 = vunpack.c.l.b16 %v2768
        %v2865 = vunpack.c.l.b16 %v2769
        %v2866 = vunpack.c.l.b16 %v2770
        %v2867 = vunpack.c.l.b16 %v2771
        %v2868 = vunpack.c.l.b16 %v2772
        %v2869 = vunpack.c.l.b16 %v2773
        %v2870 = vunpack.c.l.b16 %v2774
        %v2871 = vunpack.c.l.b16 %v2775
        %v2872 = vunpack.c.l.b16 %v2776
        %v2873 = vunpack.c.l.b16 %v2777
        %v2874 = vunpack.c.l.b16 %v2778
        %v2875 = vunpack.c.l.b16 %v2779
        %v2876 = vunpack.c.l.b16 %v2780
        %v2877 = vunpack.c.l.b16 %v2781
        %v2878 = vunpack.c.l.b16 %v2782
        %v2879 = vunpack.c.l.b16 %v2783
        %v2880 = vunpack.c.l.b16 %v2784
        %v2881 = vunpack.c.l.b16 %v2785
        %v2882 = vunpack.c.l.b16 %v2786
        %v2883 = vunpack.c.l.b16 %v2787
        %v2884 = vunpack.c.l.b16 %v2788
        %v2885 = vunpack.c.l.b16 %v2789
        %v2886 = vunpack.c.l.b16 %v2790
        %v2887 = vunpack.c.l.b16 %v2791
        %v2888 = vunpack.c.l.b16 %v2792
        %v2889 = vunpack.c.l.b16 %v2793
        %v2890 = vunpack.c.l.b16 %v2794
        %v2891 = vunpack.c.l.b16 %v2795
        %v2892 = vunpack.c.l.b16 %v2796
        %v2893 = vunpack.c.l.b16 %v2797
        %v2894 = vunpack.c.l.b16 %v2798
        %v2895 = vunpack.c.l.b16 %v2799
        %v2896 = vunpack.c.l.b16 %v2800
        %v2897 = vpack.c.b16 %v2850, %v2849
        %v2898 = vpack.c.b16 %v2851, %v2851
        %v2899 = vpack.c.b16 %v2853, %v2852
        %v2900 = vpack.c.b16 %v2854, %v2854
        %v2901 = vpack.c.b16 %v2856, %v2855
        %v2902 = vpack.c.b16 %v2857, %v2857
        %v2903 = vpack.c.b16 %v2859, %v2858
        %v2904 = vpack.c.b16 %v2860, %v2860
        %v2905 = vpack.c.b16 %v2862, %v2861
        %v2906 = vpack.c.b16 %v2863, %v2863
        %v2907 = vpack.c.b16 %v2865, %v2864
        %v2908 = vpack.c.b16 %v2866, %v2866
        %v2909 = vpack.c.b16 %v2868, %v2867
        %v2910 = vpack.c.b16 %v2869, %v2869
        %v2911 = vpack.c.b16 %v2871, %v2870
        %v2912 = vpack.c.b16 %v2872, %v2872
        %v2913 = vpack.c.b16 %v2874, %v2873
        %v2914 = vpack.c.b16 %v2875, %v2875
        %v2915 = vpack.c.b16 %v2877, %v2876
        %v2916 = vpack.c.b16 %v2878, %v2878
        %v2917 = vpack.c.b16 %v2880, %v2879
        %v2918 = vpack.c.b16 %v2881, %v2881
        %v2919 = vpack.c.b16 %v2883, %v2882
        %v2920 = vpack.c.b16 %v2884, %v2884
        %v2921 = vpack.c.b16 %v2886, %v2885
        %v2922 = vpack.c.b16 %v2887, %v2887
        %v2923 = vpack.c.b16 %v2889, %v2888
        %v2924 = vpack.c.b16 %v2890, %v2890
        %v2925 = vpack.c.b16 %v2892, %v2891
        %v2926 = vpack.c.b16 %v2893, %v2893
        %v2927 = vpack.c.b16 %v2895, %v2894
        %v2928 = vpack.c.b16 %v2896, %v2896
        %v2930 = vshrl.u32 %v2897, 16
        %v2932 = vshll.u32 %v2897, 16
        %v2934 = vrot.slane %v2932, 1
        %v2935 = vor.u32 %v2930, %v2934
        %v2937 = vshll.u32 %v2898, 16
        %v2939 = vrot.slane %v2937, 1
        %v2940 = vsel %vm1128, %v2935, %v2939
        %v2942 = vshrl.u32 %v2899, 16
        %v2944 = vshll.u32 %v2899, 16
        %v2946 = vrot.slane %v2944, 1
        %v2947 = vor.u32 %v2942, %v2946
        %v2949 = vshll.u32 %v2900, 16
        %v2951 = vrot.slane %v2949, 1
        %v2952 = vsel %vm1128, %v2947, %v2951
        %v2954 = vshrl.u32 %v2901, 16
        %v2956 = vshll.u32 %v2901, 16
        %v2958 = vrot.slane %v2956, 1
        %v2959 = vor.u32 %v2954, %v2958
        %v2961 = vshll.u32 %v2902, 16
        %v2963 = vrot.slane %v2961, 1
        %v2964 = vsel %vm1128, %v2959, %v2963
        %v2966 = vshrl.u32 %v2903, 16
        %v2968 = vshll.u32 %v2903, 16
        %v2970 = vrot.slane %v2968, 1
        %v2971 = vor.u32 %v2966, %v2970
        %v2973 = vshll.u32 %v2904, 16
        %v2975 = vrot.slane %v2973, 1
        %v2976 = vsel %vm1128, %v2971, %v2975
        %v2978 = vshrl.u32 %v2905, 16
        %v2980 = vshll.u32 %v2905, 16
        %v2982 = vrot.slane %v2980, 1
        %v2983 = vor.u32 %v2978, %v2982
        %v2985 = vshll.u32 %v2906, 16
        %v2987 = vrot.slane %v2985, 1
        %v2988 = vsel %vm1128, %v2983, %v2987
        %v2990 = vshrl.u32 %v2907, 16
        %v2992 = vshll.u32 %v2907, 16
        %v2994 = vrot.slane %v2992, 1
        %v2995 = vor.u32 %v2990, %v2994
        %v2997 = vshll.u32 %v2908, 16
        %v2999 = vrot.slane %v2997, 1
        %v3000 = vsel %vm1128, %v2995, %v2999
        %v3002 = vshrl.u32 %v2909, 16
        %v3004 = vshll.u32 %v2909, 16
        %v3006 = vrot.slane %v3004, 1
        %v3007 = vor.u32 %v3002, %v3006
        %v3009 = vshll.u32 %v2910, 16
        %v3011 = vrot.slane %v3009, 1
        %v3012 = vsel %vm1128, %v3007, %v3011
        %v3014 = vshrl.u32 %v2911, 16
        %v3016 = vshll.u32 %v2911, 16
        %v3018 = vrot.slane %v3016, 1
        %v3019 = vor.u32 %v3014, %v3018
        %v3021 = vshll.u32 %v2912, 16
        %v3023 = vrot.slane %v3021, 1
        %v3024 = vsel %vm1128, %v3019, %v3023
        %v3026 = vshrl.u32 %v2913, 16
        %v3028 = vshll.u32 %v2913, 16
        %v3030 = vrot.slane %v3028, 1
        %v3031 = vor.u32 %v3026, %v3030
        %v3033 = vshll.u32 %v2914, 16
        %v3035 = vrot.slane %v3033, 1
        %v3036 = vsel %vm1128, %v3031, %v3035
        %v3038 = vshrl.u32 %v2915, 16
        %v3040 = vshll.u32 %v2915, 16
        %v3042 = vrot.slane %v3040, 1
        %v3043 = vor.u32 %v3038, %v3042
        %v3045 = vshll.u32 %v2916, 16
        %v3047 = vrot.slane %v3045, 1
        %v3048 = vsel %vm1128, %v3043, %v3047
        %v3050 = vshrl.u32 %v2917, 16
        %v3052 = vshll.u32 %v2917, 16
        %v3054 = vrot.slane %v3052, 1
        %v3055 = vor.u32 %v3050, %v3054
        %v3057 = vshll.u32 %v2918, 16
        %v3059 = vrot.slane %v3057, 1
        %v3060 = vsel %vm1128, %v3055, %v3059
        %v3062 = vshrl.u32 %v2919, 16
        %v3064 = vshll.u32 %v2919, 16
        %v3066 = vrot.slane %v3064, 1
        %v3067 = vor.u32 %v3062, %v3066
        %v3069 = vshll.u32 %v2920, 16
        %v3071 = vrot.slane %v3069, 1
        %v3072 = vsel %vm1128, %v3067, %v3071
        %v3074 = vshrl.u32 %v2921, 16
        %v3076 = vshll.u32 %v2921, 16
        %v3078 = vrot.slane %v3076, 1
        %v3079 = vor.u32 %v3074, %v3078
        %v3081 = vshll.u32 %v2922, 16
        %v3083 = vrot.slane %v3081, 1
        %v3084 = vsel %vm1128, %v3079, %v3083
        %v3086 = vshrl.u32 %v2923, 16
        %v3088 = vshll.u32 %v2923, 16
        %v3090 = vrot.slane %v3088, 1
        %v3091 = vor.u32 %v3086, %v3090
        %v3093 = vshll.u32 %v2924, 16
        %v3095 = vrot.slane %v3093, 1
        %v3096 = vsel %vm1128, %v3091, %v3095
        %v3098 = vshrl.u32 %v2925, 16
        %v3100 = vshll.u32 %v2925, 16
        %v3102 = vrot.slane %v3100, 1
        %v3103 = vor.u32 %v3098, %v3102
        %v3105 = vshll.u32 %v2926, 16
        %v3107 = vrot.slane %v3105, 1
        %v3108 = vsel %vm1128, %v3103, %v3107
        %v3110 = vshrl.u32 %v2927, 16
        %v3112 = vshll.u32 %v2927, 16
        %v3114 = vrot.slane %v3112, 1
        %v3115 = vor.u32 %v3110, %v3114
        %v3117 = vshll.u32 %v2928, 16
        %v3119 = vrot.slane %v3117, 1
        %v3120 = vsel %vm1128, %v3115, %v3119
        %3121 = vrot.lane.b32.xlu0 %v2940, 28
        %v3122 = vpop.permute.xlu0 %3121
        %3123 = vrot.lane.b32.xlu0 %v2952, 28
        %v3124 = vpop.permute.xlu0 %3123
        %3125 = vrot.lane.b32.xlu0 %v2964, 28
        %v3126 = vpop.permute.xlu0 %3125
        %3127 = vrot.lane.b32.xlu0 %v2976, 28
        %v3128 = vpop.permute.xlu0 %3127
        %3129 = vrot.lane.b32.xlu0 %v2988, 28
        %v3130 = vpop.permute.xlu0 %3129
        %3131 = vrot.lane.b32.xlu0 %v3000, 28
        %v3132 = vpop.permute.xlu0 %3131
        %3133 = vrot.lane.b32.xlu0 %v3012, 28
        %v3134 = vpop.permute.xlu0 %3133
        %3135 = vrot.lane.b32.xlu0 %v3024, 28
        %v3136 = vpop.permute.xlu0 %3135
        %3137 = vrot.lane.b32.xlu0 %v3036, 28
        %v3138 = vpop.permute.xlu0 %3137
        %3139 = vrot.lane.b32.xlu0 %v3048, 28
        %v3140 = vpop.permute.xlu0 %3139
        %3141 = vrot.lane.b32.xlu0 %v3060, 28
        %v3142 = vpop.permute.xlu0 %3141
        %3143 = vrot.lane.b32.xlu0 %v3072, 28
        %v3144 = vpop.permute.xlu0 %3143
        %3145 = vrot.lane.b32.xlu0 %v3084, 28
        %v3146 = vpop.permute.xlu0 %3145
        %3147 = vrot.lane.b32.xlu0 %v3096, 28
        %v3148 = vpop.permute.xlu0 %3147
        %3149 = vrot.lane.b32.xlu0 %v3108, 28
        %v3150 = vpop.permute.xlu0 %3149
        %3151 = vrot.lane.b32.xlu0 %v3120, 28
        %v3152 = vpop.permute.xlu0 %3151
        %vm3169 = vcmask 261344
        %3170 = vst.msk [vmem:[#allocation4] sm:$0xff] %vm3169, %v3122
        %3171 = vst.msk [vmem:[#allocation4 + $0x8] sm:$0xff] %vm3169, %v3124
        %3172 = vst.msk [vmem:[#allocation4 + $0x10] sm:$0xff] %vm3169, %v3126
        %3173 = vst.msk [vmem:[#allocation4 + $0x18] sm:$0xff] %vm3169, %v3128
        %3174 = vst.msk [vmem:[#allocation4 + $0x20] sm:$0xff] %vm3169, %v3130
        %3175 = vst.msk [vmem:[#allocation4 + $0x28] sm:$0xff] %vm3169, %v3132
        %3176 = vst.msk [vmem:[#allocation4 + $0x30] sm:$0xff] %vm3169, %v3134
        %3177 = vst.msk [vmem:[#allocation4 + $0x38] sm:$0xff] %vm3169, %v3136
        %3178 = vst.msk [vmem:[#allocation4 + $0x40] sm:$0xff] %vm3169, %v3138
        %3179 = vst.msk [vmem:[#allocation4 + $0x48] sm:$0xff] %vm3169, %v3140
        %3180 = vst.msk [vmem:[#allocation4 + $0x50] sm:$0xff] %vm3169, %v3142
        %3181 = vst.msk [vmem:[#allocation4 + $0x58] sm:$0xff] %vm3169, %v3144
        %3182 = vst.msk [vmem:[#allocation4 + $0x60] sm:$0xff] %vm3169, %v3146
        %3183 = vst.msk [vmem:[#allocation4 + $0x68] sm:$0xff] %vm3169, %v3148
        %3184 = vst.msk [vmem:[#allocation4 + $0x70] sm:$0xff] %vm3169, %v3150
        %3185 = vst.msk [vmem:[#allocation4 + $0x78] sm:$0xff] %vm3169, %v3152
        %v3186 = vld [vmem:[%s2575] sm:$0xe]
        %v3187 = vld [vmem:[%s2575 + $0x4] sm:$0xf]
        %v3188 = vld [vmem:[%s2575 + $0x8] sm:$0x1]
        %v3189 = vld [vmem:[%s2575 + $0xc] sm:$0xe]
        %v3190 = vld [vmem:[%s2575 + $0x10] sm:$0xf]
        %v3191 = vld [vmem:[%s2575 + $0x14] sm:$0x1]
        %v3192 = vld [vmem:[%s2575 + $0x18] sm:$0xe]
        %v3193 = vld [vmem:[%s2575 + $0x1c] sm:$0xf]
        %v3194 = vld [vmem:[%s2575 + $0x20] sm:$0x1]
        %v3195 = vld [vmem:[%s2575 + $0x24] sm:$0xe]
        %v3196 = vld [vmem:[%s2575 + $0x28] sm:$0xf]
        %v3197 = vld [vmem:[%s2575 + $0x2c] sm:$0x1]
        %v3198 = vld [vmem:[%s2575 + $0x30] sm:$0xe]
        %v3199 = vld [vmem:[%s2575 + $0x34] sm:$0xf]
        %v3200 = vld [vmem:[%s2575 + $0x38] sm:$0x1]
        %v3201 = vld [vmem:[%s2575 + $0x3c] sm:$0xe]
        %v3202 = vld [vmem:[%s2575 + $0x40] sm:$0xf]
        %v3203 = vld [vmem:[%s2575 + $0x44] sm:$0x1]
        %v3204 = vld [vmem:[%s2575 + $0x48] sm:$0xe]
        %v3205 = vld [vmem:[%s2575 + $0x4c] sm:$0xf]
        %v3206 = vld [vmem:[%s2575 + $0x50] sm:$0x1]
        %v3207 = vld [vmem:[%s2575 + $0x54] sm:$0xe]
        %v3208 = vld [vmem:[%s2575 + $0x58] sm:$0xf]
        %v3209 = vld [vmem:[%s2575 + $0x5c] sm:$0x1]
        %v3210 = vld [vmem:[%s2575 + $0x60] sm:$0xe]
        %v3211 = vld [vmem:[%s2575 + $0x64] sm:$0xf]
        %v3212 = vld [vmem:[%s2575 + $0x68] sm:$0x1]
        %v3213 = vld [vmem:[%s2575 + $0x6c] sm:$0xe]
        %v3214 = vld [vmem:[%s2575 + $0x70] sm:$0xf]
        %v3215 = vld [vmem:[%s2575 + $0x74] sm:$0x1]
        %v3216 = vld [vmem:[%s2575 + $0x78] sm:$0xe]
        %v3217 = vld [vmem:[%s2575 + $0x7c] sm:$0xf]
        %v3218 = vld [vmem:[%s2575 + $0x80] sm:$0x1]
        %v3219 = vld [vmem:[%s2575 + $0x84] sm:$0xe]
        %v3220 = vld [vmem:[%s2575 + $0x88] sm:$0xf]
        %v3221 = vld [vmem:[%s2575 + $0x8c] sm:$0x1]
        %v3222 = vld [vmem:[%s2575 + $0x90] sm:$0xe]
        %v3223 = vld [vmem:[%s2575 + $0x94] sm:$0xf]
        %v3224 = vld [vmem:[%s2575 + $0x98] sm:$0x1]
        %v3225 = vld [vmem:[%s2575 + $0x9c] sm:$0xe]
        %v3226 = vld [vmem:[%s2575 + $0xa0] sm:$0xf]
        %v3227 = vld [vmem:[%s2575 + $0xa4] sm:$0x1]
        %v3228 = vld [vmem:[%s2575 + $0xa8] sm:$0xe]
        %v3229 = vld [vmem:[%s2575 + $0xac] sm:$0xf]
        %v3230 = vld [vmem:[%s2575 + $0xb0] sm:$0x1]
        %v3231 = vld [vmem:[%s2575 + $0xb4] sm:$0xe]
        %v3232 = vld [vmem:[%s2575 + $0xb8] sm:$0xf]
        %v3233 = vld [vmem:[%s2575 + $0xbc] sm:$0x1]
        %v3282 = vunpack.c.l.b16 %v3186
        %v3283 = vunpack.c.l.b16 %v3187
        %v3284 = vunpack.c.l.b16 %v3188
        %v3285 = vunpack.c.l.b16 %v3189
        %v3286 = vunpack.c.l.b16 %v3190
        %v3287 = vunpack.c.l.b16 %v3191
        %v3288 = vunpack.c.l.b16 %v3192
        %v3289 = vunpack.c.l.b16 %v3193
        %v3290 = vunpack.c.l.b16 %v3194
        %v3291 = vunpack.c.l.b16 %v3195
        %v3292 = vunpack.c.l.b16 %v3196
        %v3293 = vunpack.c.l.b16 %v3197
        %v3294 = vunpack.c.l.b16 %v3198
        %v3295 = vunpack.c.l.b16 %v3199
        %v3296 = vunpack.c.l.b16 %v3200
        %v3297 = vunpack.c.l.b16 %v3201
        %v3298 = vunpack.c.l.b16 %v3202
        %v3299 = vunpack.c.l.b16 %v3203
        %v3300 = vunpack.c.l.b16 %v3204
        %v3301 = vunpack.c.l.b16 %v3205
        %v3302 = vunpack.c.l.b16 %v3206
        %v3303 = vunpack.c.l.b16 %v3207
        %v3304 = vunpack.c.l.b16 %v3208
        %v3305 = vunpack.c.l.b16 %v3209
        %v3306 = vunpack.c.l.b16 %v3210
        %v3307 = vunpack.c.l.b16 %v3211
        %v3308 = vunpack.c.l.b16 %v3212
        %v3309 = vunpack.c.l.b16 %v3213
        %v3310 = vunpack.c.l.b16 %v3214
        %v3311 = vunpack.c.l.b16 %v3215
        %v3312 = vunpack.c.l.b16 %v3216
        %v3313 = vunpack.c.l.b16 %v3217
        %v3314 = vunpack.c.l.b16 %v3218
        %v3315 = vunpack.c.l.b16 %v3219
        %v3316 = vunpack.c.l.b16 %v3220
        %v3317 = vunpack.c.l.b16 %v3221
        %v3318 = vunpack.c.l.b16 %v3222
        %v3319 = vunpack.c.l.b16 %v3223
        %v3320 = vunpack.c.l.b16 %v3224
        %v3321 = vunpack.c.l.b16 %v3225
        %v3322 = vunpack.c.l.b16 %v3226
        %v3323 = vunpack.c.l.b16 %v3227
        %v3324 = vunpack.c.l.b16 %v3228
        %v3325 = vunpack.c.l.b16 %v3229
        %v3326 = vunpack.c.l.b16 %v3230
        %v3327 = vunpack.c.l.b16 %v3231
        %v3328 = vunpack.c.l.b16 %v3232
        %v3329 = vunpack.c.l.b16 %v3233
        %v3330 = vpack.c.b16 %v3283, %v3282
        %v3331 = vpack.c.b16 %v3284, %v3284
        %v3332 = vpack.c.b16 %v3286, %v3285
        %v3333 = vpack.c.b16 %v3287, %v3287
        %v3334 = vpack.c.b16 %v3289, %v3288
        %v3335 = vpack.c.b16 %v3290, %v3290
        %v3336 = vpack.c.b16 %v3292, %v3291
        %v3337 = vpack.c.b16 %v3293, %v3293
        %v3338 = vpack.c.b16 %v3295, %v3294
        %v3339 = vpack.c.b16 %v3296, %v3296
        %v3340 = vpack.c.b16 %v3298, %v3297
        %v3341 = vpack.c.b16 %v3299, %v3299
        %v3342 = vpack.c.b16 %v3301, %v3300
        %v3343 = vpack.c.b16 %v3302, %v3302
        %v3344 = vpack.c.b16 %v3304, %v3303
        %v3345 = vpack.c.b16 %v3305, %v3305
        %v3346 = vpack.c.b16 %v3307, %v3306
        %v3347 = vpack.c.b16 %v3308, %v3308
        %v3348 = vpack.c.b16 %v3310, %v3309
        %v3349 = vpack.c.b16 %v3311, %v3311
        %v3350 = vpack.c.b16 %v3313, %v3312
        %v3351 = vpack.c.b16 %v3314, %v3314
        %v3352 = vpack.c.b16 %v3316, %v3315
        %v3353 = vpack.c.b16 %v3317, %v3317
        %v3354 = vpack.c.b16 %v3319, %v3318
        %v3355 = vpack.c.b16 %v3320, %v3320
        %v3356 = vpack.c.b16 %v3322, %v3321
        %v3357 = vpack.c.b16 %v3323, %v3323
        %v3358 = vpack.c.b16 %v3325, %v3324
        %v3359 = vpack.c.b16 %v3326, %v3326
        %v3360 = vpack.c.b16 %v3328, %v3327
        %v3361 = vpack.c.b16 %v3329, %v3329
        %v3362 = vrot.slane %v3330, 1
        %v3363 = vrot.slane %v3331, 1
        %v3364 = vsel %vm1562, %v3362, %v3363
        %v3365 = vrot.slane %v3332, 1
        %v3366 = vrot.slane %v3333, 1
        %v3367 = vsel %vm1562, %v3365, %v3366
        %v3368 = vrot.slane %v3334, 1
        %v3369 = vrot.slane %v3335, 1
        %v3370 = vsel %vm1562, %v3368, %v3369
        %v3371 = vrot.slane %v3336, 1
        %v3372 = vrot.slane %v3337, 1
        %v3373 = vsel %vm1562, %v3371, %v3372
        %v3374 = vrot.slane %v3338, 1
        %v3375 = vrot.slane %v3339, 1
        %v3376 = vsel %vm1562, %v3374, %v3375
        %v3377 = vrot.slane %v3340, 1
        %v3378 = vrot.slane %v3341, 1
        %v3379 = vsel %vm1562, %v3377, %v3378
        %v3380 = vrot.slane %v3342, 1
        %v3381 = vrot.slane %v3343, 1
        %v3382 = vsel %vm1562, %v3380, %v3381
        %v3383 = vrot.slane %v3344, 1
        %v3384 = vrot.slane %v3345, 1
        %v3385 = vsel %vm1562, %v3383, %v3384
        %v3386 = vrot.slane %v3346, 1
        %v3387 = vrot.slane %v3347, 1
        %v3388 = vsel %vm1562, %v3386, %v3387
        %v3389 = vrot.slane %v3348, 1
        %v3390 = vrot.slane %v3349, 1
        %v3391 = vsel %vm1562, %v3389, %v3390
        %v3392 = vrot.slane %v3350, 1
        %v3393 = vrot.slane %v3351, 1
        %v3394 = vsel %vm1562, %v3392, %v3393
        %v3395 = vrot.slane %v3352, 1
        %v3396 = vrot.slane %v3353, 1
        %v3397 = vsel %vm1562, %v3395, %v3396
        %v3398 = vrot.slane %v3354, 1
        %v3399 = vrot.slane %v3355, 1
        %v3400 = vsel %vm1562, %v3398, %v3399
        %v3401 = vrot.slane %v3356, 1
        %v3402 = vrot.slane %v3357, 1
        %v3403 = vsel %vm1562, %v3401, %v3402
        %v3404 = vrot.slane %v3358, 1
        %v3405 = vrot.slane %v3359, 1
        %v3406 = vsel %vm1562, %v3404, %v3405
        %v3407 = vrot.slane %v3360, 1
        %v3408 = vrot.slane %v3361, 1
        %v3409 = vsel %vm1562, %v3407, %v3408
        %3410 = vrot.lane.b32.xlu0 %v3364, 32
        %v3411 = vpop.permute.xlu0 %3410
        %3412 = vrot.lane.b32.xlu0 %v3367, 32
        %v3413 = vpop.permute.xlu0 %3412
        %3414 = vrot.lane.b32.xlu0 %v3370, 32
        %v3415 = vpop.permute.xlu0 %3414
        %3416 = vrot.lane.b32.xlu0 %v3373, 32
        %v3417 = vpop.permute.xlu0 %3416
        %3418 = vrot.lane.b32.xlu0 %v3376, 32
        %v3419 = vpop.permute.xlu0 %3418
        %3420 = vrot.lane.b32.xlu0 %v3379, 32
        %v3421 = vpop.permute.xlu0 %3420
        %3422 = vrot.lane.b32.xlu0 %v3382, 32
        %v3423 = vpop.permute.xlu0 %3422
        %3424 = vrot.lane.b32.xlu0 %v3385, 32
        %v3425 = vpop.permute.xlu0 %3424
        %3426 = vrot.lane.b32.xlu0 %v3388, 32
        %v3427 = vpop.permute.xlu0 %3426
        %3428 = vrot.lane.b32.xlu0 %v3391, 32
        %v3429 = vpop.permute.xlu0 %3428
        %3430 = vrot.lane.b32.xlu0 %v3394, 32
        %v3431 = vpop.permute.xlu0 %3430
        %3432 = vrot.lane.b32.xlu0 %v3397, 32
        %v3433 = vpop.permute.xlu0 %3432
        %3434 = vrot.lane.b32.xlu0 %v3400, 32
        %v3435 = vpop.permute.xlu0 %3434
        %3436 = vrot.lane.b32.xlu0 %v3403, 32
        %v3437 = vpop.permute.xlu0 %3436
        %3438 = vrot.lane.b32.xlu0 %v3406, 32
        %v3439 = vpop.permute.xlu0 %3438
        %3440 = vrot.lane.b32.xlu0 %v3409, 32
        %v3441 = vpop.permute.xlu0 %3440
        %vm3458 = vcmask 294144
        %3459 = vst.msk [vmem:[#allocation4] sm:$0xff] %vm3458, %v3411
        %3460 = vst.msk [vmem:[#allocation4 + $0x8] sm:$0xff] %vm3458, %v3413
        %3461 = vst.msk [vmem:[#allocation4 + $0x10] sm:$0xff] %vm3458, %v3415
        %3462 = vst.msk [vmem:[#allocation4 + $0x18] sm:$0xff] %vm3458, %v3417
        %3463 = vst.msk [vmem:[#allocation4 + $0x20] sm:$0xff] %vm3458, %v3419
        %3464 = vst.msk [vmem:[#allocation4 + $0x28] sm:$0xff] %vm3458, %v3421
        %3465 = vst.msk [vmem:[#allocation4 + $0x30] sm:$0xff] %vm3458, %v3423
        %3466 = vst.msk [vmem:[#allocation4 + $0x38] sm:$0xff] %vm3458, %v3425
        %3467 = vst.msk [vmem:[#allocation4 + $0x40] sm:$0xff] %vm3458, %v3427
        %3468 = vst.msk [vmem:[#allocation4 + $0x48] sm:$0xff] %vm3458, %v3429
        %3469 = vst.msk [vmem:[#allocation4 + $0x50] sm:$0xff] %vm3458, %v3431
        %3470 = vst.msk [vmem:[#allocation4 + $0x58] sm:$0xff] %vm3458, %v3433
        %3471 = vst.msk [vmem:[#allocation4 + $0x60] sm:$0xff] %vm3458, %v3435
        %3472 = vst.msk [vmem:[#allocation4 + $0x68] sm:$0xff] %vm3458, %v3437
        %3473 = vst.msk [vmem:[#allocation4 + $0x70] sm:$0xff] %vm3458, %v3439
        %3474 = vst.msk [vmem:[#allocation4 + $0x78] sm:$0xff] %vm3458, %v3441
        %v3475 = vld [vmem:[#allocation4] sm:$0xff]
        %v3476 = vld [vmem:[#allocation4 + $0x8] sm:$0xff]
        %v3477 = vld [vmem:[#allocation4 + $0x10] sm:$0xff]
        %v3478 = vld [vmem:[#allocation4 + $0x18] sm:$0xff]
        %v3479 = vld [vmem:[#allocation4 + $0x20] sm:$0xff]
        %v3480 = vld [vmem:[#allocation4 + $0x28] sm:$0xff]
        %v3481 = vld [vmem:[#allocation4 + $0x30] sm:$0xff]
        %v3482 = vld [vmem:[#allocation4 + $0x38] sm:$0xff]
        %v3483 = vld [vmem:[#allocation4 + $0x40] sm:$0xff]
        %v3484 = vld [vmem:[#allocation4 + $0x48] sm:$0xff]
        %v3485 = vld [vmem:[#allocation4 + $0x50] sm:$0xff]
        %v3486 = vld [vmem:[#allocation4 + $0x58] sm:$0xff]
        %v3487 = vld [vmem:[#allocation4 + $0x60] sm:$0xff]
        %v3488 = vld [vmem:[#allocation4 + $0x68] sm:$0xff]
        %v3489 = vld [vmem:[#allocation4 + $0x70] sm:$0xff]
        %v3490 = vld [vmem:[#allocation4 + $0x78] sm:$0xff]
        %v3491 = vld [vmem:[%s1] sm:$0xf]
        %v3492 = vld [vmem:[%s1 + $0x4] sm:$0xf]
        %v3493 = vld [vmem:[%s1 + $0x8] sm:$0xf]
        %v3494 = vld [vmem:[%s1 + $0xc] sm:$0xf]
        %v3495 = vld [vmem:[%s1 + $0x10] sm:$0x3]
        %v3501 = vunpack.c.l.b16 %v3491
        %v3502 = vunpack.c.l.b16 %v3492
        %v3503 = vunpack.c.l.b16 %v3493
        %v3504 = vunpack.c.l.b16 %v3494
        %v3505 = vunpack.c.l.b16 %v3495
        %v3506 = vpack.c.b16 %v3502, %v3501
        %v3507 = vpack.c.b16 %v3504, %v3503
        %v3508 = vpack.c.b16 %v3505, %v3505
        %vm3511 = vcmask 293888
        %v3513 = vsel %vm3511, %v3475, 0
        %v3516 = vsel %vm3511, %v3476, 0
        %v3519 = vsel %vm3511, %v3477, 0
        %v3522 = vsel %vm3511, %v3478, 0
        %v3525 = vsel %vm3511, %v3479, 0
        %v3528 = vsel %vm3511, %v3480, 0
        %v3531 = vsel %vm3511, %v3481, 0
        %v3534 = vsel %vm3511, %v3482, 0
        %v3537 = vsel %vm3511, %v3483, 0
        %v3540 = vsel %vm3511, %v3484, 0
        %v3543 = vsel %vm3511, %v3485, 0
        %v3546 = vsel %vm3511, %v3486, 0
        %v3549 = vsel %vm3511, %v3487, 0
        %v3552 = vsel %vm3511, %v3488, 0
        %v3555 = vsel %vm3511, %v3489, 0
        %v3558 = vsel %vm3511, %v3490, 0
        %vm3560 = vcmask 1041408
        %v3562 = vsel %vm3560, %v3508, 0
        %3564 = vmatprep.subr.bf16.mxu0 0
        %3565 = vmatpush1.bf16.msra.mxu0 %v3506
        %3566 = vmatprep.subr.bf16.mxu0 0
        %3567 = vmatpush1.bf16.msra.mxu0 %v3507
        %3568 = vmatprep.subr.bf16.mxu0 0
        %3569 = vmatpush1.bf16.msra.mxu0 %v3562
        %3570 = vmatprep.subr.bf16.mxu0 0
        %3571 = vmatpush1.bf16.msra.mxu0 0
        %3572 = vmatprep.subr.bf16.mxu0 0
        %3573 = vmatpush1.bf16.msra.mxu0 0
        %3574 = vmatprep.subr.bf16.mxu0 0
        %3575 = vmatpush1.bf16.msra.mxu0 0
        %3576 = vmatprep.subr.bf16.mxu0 0
        %3577 = vmatpush1.bf16.msra.mxu0 0
        %3578 = vmatprep.subr.bf16.mxu0 0
        %3579 = vmatpush1.bf16.msra.mxu0 0
        %3580 = vmatprep.subr.bf16.mxu0 0
        %3581 = vmatpush1.bf16.msra.mxu0 0
        %3582 = vmatprep.subr.bf16.mxu0 0
        %3583 = vmatpush1.bf16.msra.mxu0 0
        %3584 = vmatprep.subr.bf16.mxu0 0
        %3585 = vmatpush1.bf16.msra.mxu0 0
        %3586 = vmatprep.subr.bf16.mxu0 0
        %3587 = vmatpush1.bf16.msra.mxu0 0
        %3588 = vmatprep.subr.bf16.mxu0 0
        %3589 = vmatpush1.bf16.msra.mxu0 0
        %3590 = vmatprep.subr.bf16.mxu0 0
        %3591 = vmatpush1.bf16.msra.mxu0 0
        %3592 = vmatprep.subr.bf16.mxu0 0
        %3593 = vmatpush1.bf16.msra.mxu0 0
        %3594 = vmatprep.subr.bf16.mxu0 0
        %3595 = vmatpush1.bf16.msra.mxu0 0
        %3596 = vmatprep.mubr.bf16.mxu0 0
        %3597 = vmatmul.mubr.bf16.gmra.mrb[0].mxu0 %v3513
        %v3598 = vpop.f32.mrb[0].mxu0
        %v3599 = vadd.f32 0.0, %v3598
        %v3600 = vpop.f32.mrb[0].mxu0
        %v3601 = vpop.f32.mrb[0].mxu0
        %v3602 = vadd.f32 0.0, %v3601
        %v3603 = vpop.f32.mrb[0].mxu0
        %3604 = vmatprep.mubr.bf16.mxu0 0
        %3605 = vmatmul.mubr.bf16.gmra.mrb[0].mxu0 %v3516
        %v3606 = vpop.f32.mrb[0].mxu0
        %v3607 = vadd.f32 0.0, %v3606
        %v3608 = vpop.f32.mrb[0].mxu0
        %v3609 = vpop.f32.mrb[0].mxu0
        %v3610 = vadd.f32 0.0, %v3609
        %v3611 = vpop.f32.mrb[0].mxu0
        %3612 = vmatprep.mubr.bf16.mxu0 0
        %3613 = vmatmul.mubr.bf16.gmra.mrb[0].mxu0 %v3519
        %v3614 = vpop.f32.mrb[0].mxu0
        %v3615 = vadd.f32 0.0, %v3614
        %v3616 = vpop.f32.mrb[0].mxu0
        %v3617 = vpop.f32.mrb[0].mxu0
        %v3618 = vadd.f32 0.0, %v3617
        %v3619 = vpop.f32.mrb[0].mxu0
        %3620 = vmatprep.mubr.bf16.mxu0 0
        %3621 = vmatmul.mubr.bf16.gmra.mrb[0].mxu0 %v3522
        %v3622 = vpop.f32.mrb[0].mxu0
        %v3623 = vadd.f32 0.0, %v3622
        %v3624 = vpop.f32.mrb[0].mxu0
        %v3625 = vpop.f32.mrb[0].mxu0
        %v3626 = vadd.f32 0.0, %v3625
        %v3627 = vpop.f32.mrb[0].mxu0
        %3628 = vmatprep.mubr.bf16.mxu0 0
        %3629 = vmatmul.mubr.bf16.gmra.mrb[0].mxu0 %v3525
        %v3630 = vpop.f32.mrb[0].mxu0
        %v3631 = vadd.f32 0.0, %v3630
        %v3632 = vpop.f32.mrb[0].mxu0
        %v3633 = vpop.f32.mrb[0].mxu0
        %v3634 = vadd.f32 0.0, %v3633
        %v3635 = vpop.f32.mrb[0].mxu0
        %3636 = vmatprep.mubr.bf16.mxu0 0
        %3637 = vmatmul.mubr.bf16.gmra.mrb[0].mxu0 %v3528
        %v3638 = vpop.f32.mrb[0].mxu0
        %v3639 = vadd.f32 0.0, %v3638
        %v3640 = vpop.f32.mrb[0].mxu0
        %v3641 = vpop.f32.mrb[0].mxu0
        %v3642 = vadd.f32 0.0, %v3641
        %v3643 = vpop.f32.mrb[0].mxu0
        %3644 = vmatprep.mubr.bf16.mxu0 0
        %3645 = vmatmul.mubr.bf16.gmra.mrb[0].mxu0 %v3531
        %v3646 = vpop.f32.mrb[0].mxu0
        %v3647 = vadd.f32 0.0, %v3646
        %v3648 = vpop.f32.mrb[0].mxu0
        %v3649 = vpop.f32.mrb[0].mxu0
        %v3650 = vadd.f32 0.0, %v3649
        %v3651 = vpop.f32.mrb[0].mxu0
        %3652 = vmatprep.mubr.bf16.mxu0 0
        %3653 = vmatmul.mubr.bf16.gmra.mrb[0].mxu0 %v3534
        %v3654 = vpop.f32.mrb[0].mxu0
        %v3655 = vadd.f32 0.0, %v3654
        %v3656 = vpop.f32.mrb[0].mxu0
        %v3657 = vpop.f32.mrb[0].mxu0
        %v3658 = vadd.f32 0.0, %v3657
        %v3659 = vpop.f32.mrb[0].mxu0
        %3660 = vmatprep.mubr.bf16.mxu0 0
        %3661 = vmatmul.mubr.bf16.gmra.mrb[0].mxu0 %v3537
        %v3662 = vpop.f32.mrb[0].mxu0
        %v3663 = vadd.f32 0.0, %v3662
        %v3664 = vpop.f32.mrb[0].mxu0
        %v3665 = vpop.f32.mrb[0].mxu0
        %v3666 = vadd.f32 0.0, %v3665
        %v3667 = vpop.f32.mrb[0].mxu0
        %3668 = vmatprep.mubr.bf16.mxu0 0
        %3669 = vmatmul.mubr.bf16.gmra.mrb[0].mxu0 %v3540
        %v3670 = vpop.f32.mrb[0].mxu0
        %v3671 = vadd.f32 0.0, %v3670
        %v3672 = vpop.f32.mrb[0].mxu0
        %v3673 = vpop.f32.mrb[0].mxu0
        %v3674 = vadd.f32 0.0, %v3673
        %v3675 = vpop.f32.mrb[0].mxu0
        %3676 = vmatprep.mubr.bf16.mxu0 0
        %3677 = vmatmul.mubr.bf16.gmra.mrb[0].mxu0 %v3543
        %v3678 = vpop.f32.mrb[0].mxu0
        %v3679 = vadd.f32 0.0, %v3678
        %v3680 = vpop.f32.mrb[0].mxu0
        %v3681 = vpop.f32.mrb[0].mxu0
        %v3682 = vadd.f32 0.0, %v3681
        %v3683 = vpop.f32.mrb[0].mxu0
        %3684 = vmatprep.mubr.bf16.mxu0 0
        %3685 = vmatmul.mubr.bf16.gmra.mrb[0].mxu0 %v3546
        %v3686 = vpop.f32.mrb[0].mxu0
        %v3687 = vadd.f32 0.0, %v3686
        %v3688 = vpop.f32.mrb[0].mxu0
        %v3689 = vpop.f32.mrb[0].mxu0
        %v3690 = vadd.f32 0.0, %v3689
        %v3691 = vpop.f32.mrb[0].mxu0
        %3692 = vmatprep.mubr.bf16.mxu0 0
        %3693 = vmatmul.mubr.bf16.gmra.mrb[0].mxu0 %v3549
        %v3694 = vpop.f32.mrb[0].mxu0
        %v3695 = vadd.f32 0.0, %v3694
        %v3696 = vpop.f32.mrb[0].mxu0
        %v3697 = vpop.f32.mrb[0].mxu0
        %v3698 = vadd.f32 0.0, %v3697
        %v3699 = vpop.f32.mrb[0].mxu0
        %3700 = vmatprep.mubr.bf16.mxu0 0
        %3701 = vmatmul.mubr.bf16.gmra.mrb[0].mxu0 %v3552
        %v3702 = vpop.f32.mrb[0].mxu0
        %v3703 = vadd.f32 0.0, %v3702
        %v3704 = vpop.f32.mrb[0].mxu0
        %v3705 = vpop.f32.mrb[0].mxu0
        %v3706 = vadd.f32 0.0, %v3705
        %v3707 = vpop.f32.mrb[0].mxu0
        %3708 = vmatprep.mubr.bf16.mxu0 0
        %3709 = vmatmul.mubr.bf16.gmra.mrb[0].mxu0 %v3555
        %v3710 = vpop.f32.mrb[0].mxu0
        %v3711 = vadd.f32 0.0, %v3710
        %v3712 = vpop.f32.mrb[0].mxu0
        %v3713 = vpop.f32.mrb[0].mxu0
        %v3714 = vadd.f32 0.0, %v3713
        %v3715 = vpop.f32.mrb[0].mxu0
        %3716 = vmatprep.mubr.bf16.mxu0 0
        %3717 = vmatmul.mubr.bf16.gmra.mrb[0].mxu0 %v3558
        %v3718 = vpop.f32.mrb[0].mxu0
        %v3719 = vadd.f32 0.0, %v3718
        %v3720 = vpop.f32.mrb[0].mxu0
        %v3721 = vpop.f32.mrb[0].mxu0
        %v3722 = vadd.f32 0.0, %v3721
        %v3723 = vpop.f32.mrb[0].mxu0
        %3724 = vdwg.mxu0
        %v3725 = vld [vmem:[%s2] sm:$0x1]
        %v3727 = vlaneseq
        %v3728 = vshrl.u32 %v3727, 7
        %v3729 = vsub.s32 0, %v3728
        %v3730 = vrot.slane %v3725, %v3729
        %v3732 = vmul.f32 %v3599, %v3730
        %v3733 = vmul.f32 %v3602, %v3730
        %v3734 = vmul.f32 %v3607, %v3730
        %v3735 = vmul.f32 %v3610, %v3730
        %v3736 = vmul.f32 %v3615, %v3730
        %v3737 = vmul.f32 %v3618, %v3730
        %v3738 = vmul.f32 %v3623, %v3730
        %v3739 = vmul.f32 %v3626, %v3730
        %v3740 = vmul.f32 %v3631, %v3730
        %v3741 = vmul.f32 %v3634, %v3730
        %v3742 = vmul.f32 %v3639, %v3730
        %v3743 = vmul.f32 %v3642, %v3730
        %v3744 = vmul.f32 %v3647, %v3730
        %v3745 = vmul.f32 %v3650, %v3730
        %v3746 = vmul.f32 %v3655, %v3730
        %v3747 = vmul.f32 %v3658, %v3730
        %v3748 = vmul.f32 %v3663, %v3730
        %v3749 = vmul.f32 %v3666, %v3730
        %v3750 = vmul.f32 %v3671, %v3730
        %v3751 = vmul.f32 %v3674, %v3730
        %v3752 = vmul.f32 %v3679, %v3730
        %v3753 = vmul.f32 %v3682, %v3730
        %v3754 = vmul.f32 %v3687, %v3730
        %v3755 = vmul.f32 %v3690, %v3730
        %v3756 = vmul.f32 %v3695, %v3730
        %v3757 = vmul.f32 %v3698, %v3730
        %v3758 = vmul.f32 %v3703, %v3730
        %v3759 = vmul.f32 %v3706, %v3730
        %v3760 = vmul.f32 %v3711, %v3730
        %v3761 = vmul.f32 %v3714, %v3730
        %v3762 = vmul.f32 %v3719, %v3730
        %v3763 = vmul.f32 %v3722, %v3730
        %v3764 = vld [vmem:[%s3] sm:$0x1]
        %v3766 = vlaneseq
        %v3767 = vshrl.u32 %v3766, 7
        %v3768 = vsub.s32 0, %v3767
        %v3769 = vrot.slane %v3764, %v3768
        %v3771 = vadd.f32 %v3732, %v3769
        %v3772 = vadd.f32 %v3733, %v3769
        %v3773 = vadd.f32 %v3734, %v3769
        %v3774 = vadd.f32 %v3735, %v3769
        %v3775 = vadd.f32 %v3736, %v3769
        %v3776 = vadd.f32 %v3737, %v3769
        %v3777 = vadd.f32 %v3738, %v3769
        %v3778 = vadd.f32 %v3739, %v3769
        %v3779 = vadd.f32 %v3740, %v3769
        %v3780 = vadd.f32 %v3741, %v3769
        %v3781 = vadd.f32 %v3742, %v3769
        %v3782 = vadd.f32 %v3743, %v3769
        %v3783 = vadd.f32 %v3744, %v3769
        %v3784 = vadd.f32 %v3745, %v3769
        %v3785 = vadd.f32 %v3746, %v3769
        %v3786 = vadd.f32 %v3747, %v3769
        %v3787 = vadd.f32 %v3748, %v3769
        %v3788 = vadd.f32 %v3749, %v3769
        %v3789 = vadd.f32 %v3750, %v3769
        %v3790 = vadd.f32 %v3751, %v3769
        %v3791 = vadd.f32 %v3752, %v3769
        %v3792 = vadd.f32 %v3753, %v3769
        %v3793 = vadd.f32 %v3754, %v3769
        %v3794 = vadd.f32 %v3755, %v3769
        %v3795 = vadd.f32 %v3756, %v3769
        %v3796 = vadd.f32 %v3757, %v3769
        %v3797 = vadd.f32 %v3758, %v3769
        %v3798 = vadd.f32 %v3759, %v3769
        %v3799 = vadd.f32 %v3760, %v3769
        %v3800 = vadd.f32 %v3761, %v3769
        %v3801 = vadd.f32 %v3762, %v3769
        %v3802 = vadd.f32 %v3763, %v3769
        %v3803 = vmax.f32 %v3771, 0.0
        %v3804 = vmax.f32 %v3772, 0.0
        %v3805 = vmax.f32 %v3773, 0.0
        %v3806 = vmax.f32 %v3774, 0.0
        %v3807 = vmax.f32 %v3775, 0.0
        %v3808 = vmax.f32 %v3776, 0.0
        %v3809 = vmax.f32 %v3777, 0.0
        %v3810 = vmax.f32 %v3778, 0.0
        %v3811 = vmax.f32 %v3779, 0.0
        %v3812 = vmax.f32 %v3780, 0.0
        %v3813 = vmax.f32 %v3781, 0.0
        %v3814 = vmax.f32 %v3782, 0.0
        %v3815 = vmax.f32 %v3783, 0.0
        %v3816 = vmax.f32 %v3784, 0.0
        %v3817 = vmax.f32 %v3785, 0.0
        %v3818 = vmax.f32 %v3786, 0.0
        %v3819 = vmax.f32 %v3787, 0.0
        %v3820 = vmax.f32 %v3788, 0.0
        %v3821 = vmax.f32 %v3789, 0.0
        %v3822 = vmax.f32 %v3790, 0.0
        %v3823 = vmax.f32 %v3791, 0.0
        %v3824 = vmax.f32 %v3792, 0.0
        %v3825 = vmax.f32 %v3793, 0.0
        %v3826 = vmax.f32 %v3794, 0.0
        %v3827 = vmax.f32 %v3795, 0.0
        %v3828 = vmax.f32 %v3796, 0.0
        %v3829 = vmax.f32 %v3797, 0.0
        %v3830 = vmax.f32 %v3798, 0.0
        %v3831 = vmax.f32 %v3799, 0.0
        %v3832 = vmax.f32 %v3800, 0.0
        %v3833 = vmax.f32 %v3801, 0.0
        %v3834 = vmax.f32 %v3802, 0.0
        %v3835 = vpack.c.bf16 %v3804, %v3803
        %v3836 = vpack.c.bf16 %v3806, %v3805
        %v3837 = vpack.c.bf16 %v3808, %v3807
        %v3838 = vpack.c.bf16 %v3810, %v3809
        %v3839 = vpack.c.bf16 %v3812, %v3811
        %v3840 = vpack.c.bf16 %v3814, %v3813
        %v3841 = vpack.c.bf16 %v3816, %v3815
        %v3842 = vpack.c.bf16 %v3818, %v3817
        %v3843 = vpack.c.bf16 %v3820, %v3819
        %v3844 = vpack.c.bf16 %v3822, %v3821
        %v3845 = vpack.c.bf16 %v3824, %v3823
        %v3846 = vpack.c.bf16 %v3826, %v3825
        %v3847 = vpack.c.bf16 %v3828, %v3827
        %v3848 = vpack.c.bf16 %v3830, %v3829
        %v3849 = vpack.c.bf16 %v3832, %v3831
        %v3850 = vpack.c.bf16 %v3834, %v3833
        %vm3851 = vcmask 60416
        %3852 = vst.msk [vmem:[#allocation3] sm:$0xf] %vm3851, 0
        %3853 = vst.msk [vmem:[#allocation3 + $0x4] sm:$0xf] %vm3851, 0
        %vm3854 = vcmask 57344
        %3855 = vst.msk [vmem:[#allocation3 + $0x8] sm:$0x1] %vm3854, 0
        %3856 = vst.msk [vmem:[#allocation3 + $0xc] sm:$0xf] %vm3851, 0
        %3857 = vst.msk [vmem:[#allocation3 + $0x10] sm:$0xf] %vm3851, 0
        %3858 = vst.msk [vmem:[#allocation3 + $0x14] sm:$0x1] %vm3854, 0
        %3859 = vst.msk [vmem:[#allocation3 + $0x18] sm:$0xf] %vm3851, 0
        %3860 = vst.msk [vmem:[#allocation3 + $0x1c] sm:$0xf] %vm3851, 0
        %3861 = vst.msk [vmem:[#allocation3 + $0x20] sm:$0x1] %vm3854, 0
        %3862 = vst.msk [vmem:[#allocation3 + $0x24] sm:$0xf] %vm3851, 0
        %3863 = vst.msk [vmem:[#allocation3 + $0x28] sm:$0xf] %vm3851, 0
        %3864 = vst.msk [vmem:[#allocation3 + $0x2c] sm:$0x1] %vm3854, 0
        %3865 = vst.msk [vmem:[#allocation3 + $0x30] sm:$0xf] %vm3851, 0
        %3866 = vst.msk [vmem:[#allocation3 + $0x34] sm:$0xf] %vm3851, 0
        %3867 = vst.msk [vmem:[#allocation3 + $0x38] sm:$0x1] %vm3854, 0
        %3868 = vst.msk [vmem:[#allocation3 + $0x3c] sm:$0xf] %vm3851, 0
        %3869 = vst.msk [vmem:[#allocation3 + $0x40] sm:$0xf] %vm3851, 0
        %3870 = vst.msk [vmem:[#allocation3 + $0x44] sm:$0x1] %vm3854, 0
        %3871 = vst.msk [vmem:[#allocation3 + $0x48] sm:$0xf] %vm3851, 0
        %3872 = vst.msk [vmem:[#allocation3 + $0x4c] sm:$0xf] %vm3851, 0
        %3873 = vst.msk [vmem:[#allocation3 + $0x50] sm:$0x1] %vm3854, 0
        %3874 = vst.msk [vmem:[#allocation3 + $0x54] sm:$0xf] %vm3851, 0
        %3875 = vst.msk [vmem:[#allocation3 + $0x58] sm:$0xf] %vm3851, 0
        %3876 = vst.msk [vmem:[#allocation3 + $0x5c] sm:$0x1] %vm3854, 0
        %3877 = vst.msk [vmem:[#allocation3 + $0x60] sm:$0xf] %vm3851, 0
        %3878 = vst.msk [vmem:[#allocation3 + $0x64] sm:$0xf] %vm3851, 0
        %3879 = vst.msk [vmem:[#allocation3 + $0x68] sm:$0x1] %vm3854, 0
        %3880 = vst.msk [vmem:[#allocation3 + $0x6c] sm:$0xf] %vm3851, 0
        %3881 = vst.msk [vmem:[#allocation3 + $0x70] sm:$0xf] %vm3851, 0
        %3882 = vst.msk [vmem:[#allocation3 + $0x74] sm:$0x1] %vm3854, 0
        %3883 = vst.msk [vmem:[#allocation3 + $0x78] sm:$0xf] %vm3851, 0
        %3884 = vst.msk [vmem:[#allocation3 + $0x7c] sm:$0xf] %vm3851, 0
        %3885 = vst.msk [vmem:[#allocation3 + $0x80] sm:$0x1] %vm3854, 0
        %3886 = vst.msk [vmem:[#allocation3 + $0x84] sm:$0xf] %vm3851, 0
        %3887 = vst.msk [vmem:[#allocation3 + $0x88] sm:$0xf] %vm3851, 0
        %3888 = vst.msk [vmem:[#allocation3 + $0x8c] sm:$0x1] %vm3854, 0
        %3889 = vst.msk [vmem:[#allocation3 + $0x90] sm:$0xf] %vm3851, 0
        %3890 = vst.msk [vmem:[#allocation3 + $0x94] sm:$0xf] %vm3851, 0
        %3891 = vst.msk [vmem:[#allocation3 + $0x98] sm:$0x1] %vm3854, 0
        %3892 = vst.msk [vmem:[#allocation3 + $0x9c] sm:$0xf] %vm3851, 0
        %3893 = vst.msk [vmem:[#allocation3 + $0xa0] sm:$0xf] %vm3851, 0
        %3894 = vst.msk [vmem:[#allocation3 + $0xa4] sm:$0x1] %vm3854, 0
        %3895 = vst.msk [vmem:[#allocation3 + $0xa8] sm:$0xf] %vm3851, 0
        %3896 = vst.msk [vmem:[#allocation3 + $0xac] sm:$0xf] %vm3851, 0
        %3897 = vst.msk [vmem:[#allocation3 + $0xb0] sm:$0x1] %vm3854, 0
        %3898 = vst.msk [vmem:[#allocation3 + $0xb4] sm:$0xf] %vm3851, 0
        %3899 = vst.msk [vmem:[#allocation3 + $0xb8] sm:$0xf] %vm3851, 0
        %3900 = vst.msk [vmem:[#allocation3 + $0xbc] sm:$0x1] %vm3854, 0
        %3901 = vst.msk [vmem:[#allocation3 + $0xc0] sm:$0xf] %vm3851, 0
        %3902 = vst.msk [vmem:[#allocation3 + $0xc4] sm:$0xf] %vm3851, 0
        %3903 = vst.msk [vmem:[#allocation3 + $0xc8] sm:$0x1] %vm3854, 0
        %3904 = vst.msk [vmem:[#allocation3 + $0xcc] sm:$0xf] %vm3851, 0
        %3905 = vst.msk [vmem:[#allocation3 + $0xd0] sm:$0xf] %vm3851, 0
        %3906 = vst.msk [vmem:[#allocation3 + $0xd4] sm:$0x1] %vm3854, 0
        %v3923 = vunpack.c.l.b16 %v3835
        %v3924 = vunpack.c.h.b16 %v3835
        %v3925 = vunpack.c.l.b16 %v3836
        %v3926 = vunpack.c.h.b16 %v3836
        %v3927 = vunpack.c.l.b16 %v3837
        %v3928 = vunpack.c.h.b16 %v3837
        %v3929 = vunpack.c.l.b16 %v3838
        %v3930 = vunpack.c.h.b16 %v3838
        %v3931 = vunpack.c.l.b16 %v3839
        %v3932 = vunpack.c.h.b16 %v3839
        %v3933 = vunpack.c.l.b16 %v3840
        %v3934 = vunpack.c.h.b16 %v3840
        %v3935 = vunpack.c.l.b16 %v3841
        %v3936 = vunpack.c.h.b16 %v3841
        %v3937 = vunpack.c.l.b16 %v3842
        %v3938 = vunpack.c.h.b16 %v3842
        %v3939 = vunpack.c.l.b16 %v3843
        %v3940 = vunpack.c.h.b16 %v3843
        %v3941 = vunpack.c.l.b16 %v3844
        %v3942 = vunpack.c.h.b16 %v3844
        %v3943 = vunpack.c.l.b16 %v3845
        %v3944 = vunpack.c.h.b16 %v3845
        %v3945 = vunpack.c.l.b16 %v3846
        %v3946 = vunpack.c.h.b16 %v3846
        %v3947 = vunpack.c.l.b16 %v3847
        %v3948 = vunpack.c.h.b16 %v3847
        %v3949 = vunpack.c.l.b16 %v3848
        %v3950 = vunpack.c.h.b16 %v3848
        %v3951 = vunpack.c.l.b16 %v3849
        %v3952 = vunpack.c.h.b16 %v3849
        %v3953 = vunpack.c.l.b16 %v3850
        %v3954 = vunpack.c.h.b16 %v3850
        %v3955 = vpack.c.b16 %v3923, %v3923
        %v3956 = vpack.c.b16 %v3924, %v3924
        %v3957 = vpack.c.b16 %v3925, %v3925
        %v3958 = vpack.c.b16 %v3926, %v3926
        %v3959 = vpack.c.b16 %v3927, %v3927
        %v3960 = vpack.c.b16 %v3928, %v3928
        %v3961 = vpack.c.b16 %v3929, %v3929
        %v3962 = vpack.c.b16 %v3930, %v3930
        %v3963 = vpack.c.b16 %v3931, %v3931
        %v3964 = vpack.c.b16 %v3932, %v3932
        %v3965 = vpack.c.b16 %v3933, %v3933
        %v3966 = vpack.c.b16 %v3934, %v3934
        %v3967 = vpack.c.b16 %v3935, %v3935
        %v3968 = vpack.c.b16 %v3936, %v3936
        %v3969 = vpack.c.b16 %v3937, %v3937
        %v3970 = vpack.c.b16 %v3938, %v3938
        %v3971 = vpack.c.b16 %v3939, %v3939
        %v3972 = vpack.c.b16 %v3940, %v3940
        %v3973 = vpack.c.b16 %v3941, %v3941
        %v3974 = vpack.c.b16 %v3942, %v3942
        %v3975 = vpack.c.b16 %v3943, %v3943
        %v3976 = vpack.c.b16 %v3944, %v3944
        %v3977 = vpack.c.b16 %v3945, %v3945
        %v3978 = vpack.c.b16 %v3946, %v3946
        %v3979 = vpack.c.b16 %v3947, %v3947
        %v3980 = vpack.c.b16 %v3948, %v3948
        %v3981 = vpack.c.b16 %v3949, %v3949
        %v3982 = vpack.c.b16 %v3950, %v3950
        %v3983 = vpack.c.b16 %v3951, %v3951
        %v3984 = vpack.c.b16 %v3952, %v3952
        %v3985 = vpack.c.b16 %v3953, %v3953
        %v3986 = vpack.c.b16 %v3954, %v3954
        %v3988 = vshrl.u32 %v3955, 16
        %v3990 = vrot.slane %v3988, 7
        %v3991 = vshll.u32 %v3955, 16
        %v3993 = vor.u32 %v3990, %v3991
        %v3994 = vrot.slane %v3990, 4
        %v3996 = vshrl.u32 %v3956, 16
        %v3998 = vrot.slane %v3996, 7
        %v3999 = vshll.u32 %v3956, 16
        %v4001 = vor.u32 %v3998, %v3999
        %v4002 = vsel %vm368, %v3994, %v4001
        %v4003 = vrot.slane %v3998, 4
        %v4005 = vshrl.u32 %v3957, 16
        %v4007 = vrot.slane %v4005, 7
        %v4008 = vshll.u32 %v3957, 16
        %v4010 = vor.u32 %v4007, %v4008
        %v4011 = vrot.slane %v4007, 4
        %v4013 = vshrl.u32 %v3958, 16
        %v4015 = vrot.slane %v4013, 7
        %v4016 = vshll.u32 %v3958, 16
        %v4018 = vor.u32 %v4015, %v4016
        %v4019 = vsel %vm368, %v4011, %v4018
        %v4020 = vrot.slane %v4015, 4
        %v4022 = vshrl.u32 %v3959, 16
        %v4024 = vrot.slane %v4022, 7
        %v4025 = vshll.u32 %v3959, 16
        %v4027 = vor.u32 %v4024, %v4025
        %v4028 = vrot.slane %v4024, 4
        %v4030 = vshrl.u32 %v3960, 16
        %v4032 = vrot.slane %v4030, 7
        %v4033 = vshll.u32 %v3960, 16
        %v4035 = vor.u32 %v4032, %v4033
        %v4036 = vsel %vm368, %v4028, %v4035
        %v4037 = vrot.slane %v4032, 4
        %v4039 = vshrl.u32 %v3961, 16
        %v4041 = vrot.slane %v4039, 7
        %v4042 = vshll.u32 %v3961, 16
        %v4044 = vor.u32 %v4041, %v4042
        %v4045 = vrot.slane %v4041, 4
        %v4047 = vshrl.u32 %v3962, 16
        %v4049 = vrot.slane %v4047, 7
        %v4050 = vshll.u32 %v3962, 16
        %v4052 = vor.u32 %v4049, %v4050
        %v4053 = vsel %vm368, %v4045, %v4052
        %v4054 = vrot.slane %v4049, 4
        %v4056 = vshrl.u32 %v3963, 16
        %v4058 = vrot.slane %v4056, 7
        %v4059 = vshll.u32 %v3963, 16
        %v4061 = vor.u32 %v4058, %v4059
        %v4062 = vrot.slane %v4058, 4
        %v4064 = vshrl.u32 %v3964, 16
        %v4066 = vrot.slane %v4064, 7
        %v4067 = vshll.u32 %v3964, 16
        %v4069 = vor.u32 %v4066, %v4067
        %v4070 = vsel %vm368, %v4062, %v4069
        %v4071 = vrot.slane %v4066, 4
        %v4073 = vshrl.u32 %v3965, 16
        %v4075 = vrot.slane %v4073, 7
        %v4076 = vshll.u32 %v3965, 16
        %v4078 = vor.u32 %v4075, %v4076
        %v4079 = vrot.slane %v4075, 4
        %v4081 = vshrl.u32 %v3966, 16
        %v4083 = vrot.slane %v4081, 7
        %v4084 = vshll.u32 %v3966, 16
        %v4086 = vor.u32 %v4083, %v4084
        %v4087 = vsel %vm368, %v4079, %v4086
        %v4088 = vrot.slane %v4083, 4
        %v4090 = vshrl.u32 %v3967, 16
        %v4092 = vrot.slane %v4090, 7
        %v4093 = vshll.u32 %v3967, 16
        %v4095 = vor.u32 %v4092, %v4093
        %v4096 = vrot.slane %v4092, 4
        %v4098 = vshrl.u32 %v3968, 16
        %v4100 = vrot.slane %v4098, 7
        %v4101 = vshll.u32 %v3968, 16
        %v4103 = vor.u32 %v4100, %v4101
        %v4104 = vsel %vm368, %v4096, %v4103
        %v4105 = vrot.slane %v4100, 4
        %v4107 = vshrl.u32 %v3969, 16
        %v4109 = vrot.slane %v4107, 7
        %v4110 = vshll.u32 %v3969, 16
        %v4112 = vor.u32 %v4109, %v4110
        %v4113 = vrot.slane %v4109, 4
        %v4115 = vshrl.u32 %v3970, 16
        %v4117 = vrot.slane %v4115, 7
        %v4118 = vshll.u32 %v3970, 16
        %v4120 = vor.u32 %v4117, %v4118
        %v4121 = vsel %vm368, %v4113, %v4120
        %v4122 = vrot.slane %v4117, 4
        %v4124 = vshrl.u32 %v3971, 16
        %v4126 = vrot.slane %v4124, 7
        %v4127 = vshll.u32 %v3971, 16
        %v4129 = vor.u32 %v4126, %v4127
        %v4130 = vrot.slane %v4126, 4
        %v4132 = vshrl.u32 %v3972, 16
        %v4134 = vrot.slane %v4132, 7
        %v4135 = vshll.u32 %v3972, 16
        %v4137 = vor.u32 %v4134, %v4135
        %v4138 = vsel %vm368, %v4130, %v4137
        %v4139 = vrot.slane %v4134, 4
        %v4141 = vshrl.u32 %v3973, 16
        %v4143 = vrot.slane %v4141, 7
        %v4144 = vshll.u32 %v3973, 16
        %v4146 = vor.u32 %v4143, %v4144
        %v4147 = vrot.slane %v4143, 4
        %v4149 = vshrl.u32 %v3974, 16
        %v4151 = vrot.slane %v4149, 7
        %v4152 = vshll.u32 %v3974, 16
        %v4154 = vor.u32 %v4151, %v4152
        %v4155 = vsel %vm368, %v4147, %v4154
        %v4156 = vrot.slane %v4151, 4
        %v4158 = vshrl.u32 %v3975, 16
        %v4160 = vrot.slane %v4158, 7
        %v4161 = vshll.u32 %v3975, 16
        %v4163 = vor.u32 %v4160, %v4161
        %v4164 = vrot.slane %v4160, 4
        %v4166 = vshrl.u32 %v3976, 16
        %v4168 = vrot.slane %v4166, 7
        %v4169 = vshll.u32 %v3976, 16
        %v4171 = vor.u32 %v4168, %v4169
        %v4172 = vsel %vm368, %v4164, %v4171
        %v4173 = vrot.slane %v4168, 4
        %v4175 = vshrl.u32 %v3977, 16
        %v4177 = vrot.slane %v4175, 7
        %v4178 = vshll.u32 %v3977, 16
        %v4180 = vor.u32 %v4177, %v4178
        %v4181 = vrot.slane %v4177, 4
        %v4183 = vshrl.u32 %v3978, 16
        %v4185 = vrot.slane %v4183, 7
        %v4186 = vshll.u32 %v3978, 16
        %v4188 = vor.u32 %v4185, %v4186
        %v4189 = vsel %vm368, %v4181, %v4188
        %v4190 = vrot.slane %v4185, 4
        %v4192 = vshrl.u32 %v3979, 16
        %v4194 = vrot.slane %v4192, 7
        %v4195 = vshll.u32 %v3979, 16
        %v4197 = vor.u32 %v4194, %v4195
        %v4198 = vrot.slane %v4194, 4
        %v4200 = vshrl.u32 %v3980, 16
        %v4202 = vrot.slane %v4200, 7
        %v4203 = vshll.u32 %v3980, 16
        %v4205 = vor.u32 %v4202, %v4203
        %v4206 = vsel %vm368, %v4198, %v4205
        %v4207 = vrot.slane %v4202, 4
        %v4209 = vshrl.u32 %v3981, 16
        %v4211 = vrot.slane %v4209, 7
        %v4212 = vshll.u32 %v3981, 16
        %v4214 = vor.u32 %v4211, %v4212
        %v4215 = vrot.slane %v4211, 4
        %v4217 = vshrl.u32 %v3982, 16
        %v4219 = vrot.slane %v4217, 7
        %v4220 = vshll.u32 %v3982, 16
        %v4222 = vor.u32 %v4219, %v4220
        %v4223 = vsel %vm368, %v4215, %v4222
        %v4224 = vrot.slane %v4219, 4
        %v4226 = vshrl.u32 %v3983, 16
        %v4228 = vrot.slane %v4226, 7
        %v4229 = vshll.u32 %v3983, 16
        %v4231 = vor.u32 %v4228, %v4229
        %v4232 = vrot.slane %v4228, 4
        %v4234 = vshrl.u32 %v3984, 16
        %v4236 = vrot.slane %v4234, 7
        %v4237 = vshll.u32 %v3984, 16
        %v4239 = vor.u32 %v4236, %v4237
        %v4240 = vsel %vm368, %v4232, %v4239
        %v4241 = vrot.slane %v4236, 4
        %v4243 = vshrl.u32 %v3985, 16
        %v4245 = vrot.slane %v4243, 7
        %v4246 = vshll.u32 %v3985, 16
        %v4248 = vor.u32 %v4245, %v4246
        %v4249 = vrot.slane %v4245, 4
        %v4251 = vshrl.u32 %v3986, 16
        %v4253 = vrot.slane %v4251, 7
        %v4254 = vshll.u32 %v3986, 16
        %v4256 = vor.u32 %v4253, %v4254
        %v4257 = vsel %vm368, %v4249, %v4256
        %v4258 = vrot.slane %v4253, 4
        %s4307 = scalar_lea.vmem [#allocation3], 12
        %vm4308 = vcmask 60416
        %vm4309 = vmand %vm4308, %vm691
        %v4310 = vld [vmem:[%s4307] sm:$0xf]
        %v4311 = vsel %vm4309, %v3993, %v4310
        %4312 = vst [vmem:[%s4307] sm:$0xf] %v4311
        %4313 = vst.msk [vmem:[%s4307 + $0x4] sm:$0xf] %vm3851, %v4002
        %vm4314 = vcmask 57344
        %vm4315 = vmand %vm4314, %vm366
        %v4316 = vld [vmem:[%s4307 + $0x8] sm:$0x1]
        %v4317 = vsel %vm4315, %v4003, %v4316
        %4318 = vst [vmem:[%s4307 + $0x8] sm:$0x1] %v4317
        %v4319 = vld [vmem:[%s4307 + $0xc] sm:$0xf]
        %v4320 = vsel %vm4309, %v4010, %v4319
        %4321 = vst [vmem:[%s4307 + $0xc] sm:$0xf] %v4320
        %4322 = vst.msk [vmem:[%s4307 + $0x10] sm:$0xf] %vm3851, %v4019
        %v4323 = vld [vmem:[%s4307 + $0x14] sm:$0x1]
        %v4324 = vsel %vm4315, %v4020, %v4323
        %4325 = vst [vmem:[%s4307 + $0x14] sm:$0x1] %v4324
        %v4326 = vld [vmem:[%s4307 + $0x18] sm:$0xf]
        %v4327 = vsel %vm4309, %v4027, %v4326
        %4328 = vst [vmem:[%s4307 + $0x18] sm:$0xf] %v4327
        %4329 = vst.msk [vmem:[%s4307 + $0x1c] sm:$0xf] %vm3851, %v4036
        %v4330 = vld [vmem:[%s4307 + $0x20] sm:$0x1]
        %v4331 = vsel %vm4315, %v4037, %v4330
        %4332 = vst [vmem:[%s4307 + $0x20] sm:$0x1] %v4331
        %v4333 = vld [vmem:[%s4307 + $0x24] sm:$0xf]
        %v4334 = vsel %vm4309, %v4044, %v4333
        %4335 = vst [vmem:[%s4307 + $0x24] sm:$0xf] %v4334
        %4336 = vst.msk [vmem:[%s4307 + $0x28] sm:$0xf] %vm3851, %v4053
        %v4337 = vld [vmem:[%s4307 + $0x2c] sm:$0x1]
        %v4338 = vsel %vm4315, %v4054, %v4337
        %4339 = vst [vmem:[%s4307 + $0x2c] sm:$0x1] %v4338
        %v4340 = vld [vmem:[%s4307 + $0x30] sm:$0xf]
        %v4341 = vsel %vm4309, %v4061, %v4340
        %4342 = vst [vmem:[%s4307 + $0x30] sm:$0xf] %v4341
        %4343 = vst.msk [vmem:[%s4307 + $0x34] sm:$0xf] %vm3851, %v4070
        %v4344 = vld [vmem:[%s4307 + $0x38] sm:$0x1]
        %v4345 = vsel %vm4315, %v4071, %v4344
        %4346 = vst [vmem:[%s4307 + $0x38] sm:$0x1] %v4345
        %v4347 = vld [vmem:[%s4307 + $0x3c] sm:$0xf]
        %v4348 = vsel %vm4309, %v4078, %v4347
        %4349 = vst [vmem:[%s4307 + $0x3c] sm:$0xf] %v4348
        %4350 = vst.msk [vmem:[%s4307 + $0x40] sm:$0xf] %vm3851, %v4087
        %v4351 = vld [vmem:[%s4307 + $0x44] sm:$0x1]
        %v4352 = vsel %vm4315, %v4088, %v4351
        %4353 = vst [vmem:[%s4307 + $0x44] sm:$0x1] %v4352
        %v4354 = vld [vmem:[%s4307 + $0x48] sm:$0xf]
        %v4355 = vsel %vm4309, %v4095, %v4354
        %4356 = vst [vmem:[%s4307 + $0x48] sm:$0xf] %v4355
        %4357 = vst.msk [vmem:[%s4307 + $0x4c] sm:$0xf] %vm3851, %v4104
        %v4358 = vld [vmem:[%s4307 + $0x50] sm:$0x1]
        %v4359 = vsel %vm4315, %v4105, %v4358
        %4360 = vst [vmem:[%s4307 + $0x50] sm:$0x1] %v4359
        %v4361 = vld [vmem:[%s4307 + $0x54] sm:$0xf]
        %v4362 = vsel %vm4309, %v4112, %v4361
        %4363 = vst [vmem:[%s4307 + $0x54] sm:$0xf] %v4362
        %4364 = vst.msk [vmem:[%s4307 + $0x58] sm:$0xf] %vm3851, %v4121
        %v4365 = vld [vmem:[%s4307 + $0x5c] sm:$0x1]
        %v4366 = vsel %vm4315, %v4122, %v4365
        %4367 = vst [vmem:[%s4307 + $0x5c] sm:$0x1] %v4366
        %v4368 = vld [vmem:[%s4307 + $0x60] sm:$0xf]
        %v4369 = vsel %vm4309, %v4129, %v4368
        %4370 = vst [vmem:[%s4307 + $0x60] sm:$0xf] %v4369
        %4371 = vst.msk [vmem:[%s4307 + $0x64] sm:$0xf] %vm3851, %v4138
        %v4372 = vld [vmem:[%s4307 + $0x68] sm:$0x1]
        %v4373 = vsel %vm4315, %v4139, %v4372
        %4374 = vst [vmem:[%s4307 + $0x68] sm:$0x1] %v4373
        %v4375 = vld [vmem:[%s4307 + $0x6c] sm:$0xf]
        %v4376 = vsel %vm4309, %v4146, %v4375
        %4377 = vst [vmem:[%s4307 + $0x6c] sm:$0xf] %v4376
        %4378 = vst.msk [vmem:[%s4307 + $0x70] sm:$0xf] %vm3851, %v4155
        %v4379 = vld [vmem:[%s4307 + $0x74] sm:$0x1]
        %v4380 = vsel %vm4315, %v4156, %v4379
        %4381 = vst [vmem:[%s4307 + $0x74] sm:$0x1] %v4380
        %v4382 = vld [vmem:[%s4307 + $0x78] sm:$0xf]
        %v4383 = vsel %vm4309, %v4163, %v4382
        %4384 = vst [vmem:[%s4307 + $0x78] sm:$0xf] %v4383
        %4385 = vst.msk [vmem:[%s4307 + $0x7c] sm:$0xf] %vm3851, %v4172
        %v4386 = vld [vmem:[%s4307 + $0x80] sm:$0x1]
        %v4387 = vsel %vm4315, %v4173, %v4386
        %4388 = vst [vmem:[%s4307 + $0x80] sm:$0x1] %v4387
        %v4389 = vld [vmem:[%s4307 + $0x84] sm:$0xf]
        %v4390 = vsel %vm4309, %v4180, %v4389
        %4391 = vst [vmem:[%s4307 + $0x84] sm:$0xf] %v4390
        %4392 = vst.msk [vmem:[%s4307 + $0x88] sm:$0xf] %vm3851, %v4189
        %v4393 = vld [vmem:[%s4307 + $0x8c] sm:$0x1]
        %v4394 = vsel %vm4315, %v4190, %v4393
        %4395 = vst [vmem:[%s4307 + $0x8c] sm:$0x1] %v4394
        %v4396 = vld [vmem:[%s4307 + $0x90] sm:$0xf]
        %v4397 = vsel %vm4309, %v4197, %v4396
        %4398 = vst [vmem:[%s4307 + $0x90] sm:$0xf] %v4397
        %4399 = vst.msk [vmem:[%s4307 + $0x94] sm:$0xf] %vm3851, %v4206
        %v4400 = vld [vmem:[%s4307 + $0x98] sm:$0x1]
        %v4401 = vsel %vm4315, %v4207, %v4400
        %4402 = vst [vmem:[%s4307 + $0x98] sm:$0x1] %v4401
        %v4403 = vld [vmem:[%s4307 + $0x9c] sm:$0xf]
        %v4404 = vsel %vm4309, %v4214, %v4403
        %4405 = vst [vmem:[%s4307 + $0x9c] sm:$0xf] %v4404
        %4406 = vst.msk [vmem:[%s4307 + $0xa0] sm:$0xf] %vm3851, %v4223
        %v4407 = vld [vmem:[%s4307 + $0xa4] sm:$0x1]
        %v4408 = vsel %vm4315, %v4224, %v4407
        %4409 = vst [vmem:[%s4307 + $0xa4] sm:$0x1] %v4408
        %v4410 = vld [vmem:[%s4307 + $0xa8] sm:$0xf]
        %v4411 = vsel %vm4309, %v4231, %v4410
        %4412 = vst [vmem:[%s4307 + $0xa8] sm:$0xf] %v4411
        %4413 = vst.msk [vmem:[%s4307 + $0xac] sm:$0xf] %vm3851, %v4240
        %v4414 = vld [vmem:[%s4307 + $0xb0] sm:$0x1]
        %v4415 = vsel %vm4315, %v4241, %v4414
        %4416 = vst [vmem:[%s4307 + $0xb0] sm:$0x1] %v4415
        %v4417 = vld [vmem:[%s4307 + $0xb4] sm:$0xf]
        %v4418 = vsel %vm4309, %v4248, %v4417
        %4419 = vst [vmem:[%s4307 + $0xb4] sm:$0xf] %v4418
        %4420 = vst.msk [vmem:[%s4307 + $0xb8] sm:$0xf] %vm3851, %v4257
        %v4421 = vld [vmem:[%s4307 + $0xbc] sm:$0x1]
        %v4422 = vsel %vm4315, %v4258, %v4421
        %4423 = vst [vmem:[%s4307 + $0xbc] sm:$0x1] %v4422
        %v4424 = vld [vmem:[#allocation3] sm:$0xf]
        %v4425 = vld [vmem:[#allocation3 + $0x4] sm:$0xf]
        %v4426 = vld [vmem:[#allocation3 + $0xc] sm:$0xf]
        %v4427 = vld [vmem:[#allocation3 + $0x10] sm:$0xf]
        %v4428 = vld [vmem:[#allocation3 + $0x18] sm:$0xf]
        %v4429 = vld [vmem:[#allocation3 + $0x1c] sm:$0xf]
        %v4430 = vld [vmem:[#allocation3 + $0x24] sm:$0xf]
        %v4431 = vld [vmem:[#allocation3 + $0x28] sm:$0xf]
        %v4432 = vld [vmem:[#allocation3 + $0x30] sm:$0xf]
        %v4433 = vld [vmem:[#allocation3 + $0x34] sm:$0xf]
        %v4434 = vld [vmem:[#allocation3 + $0x3c] sm:$0xf]
        %v4435 = vld [vmem:[#allocation3 + $0x40] sm:$0xf]
        %v4436 = vld [vmem:[#allocation3 + $0x48] sm:$0xf]
        %v4437 = vld [vmem:[#allocation3 + $0x4c] sm:$0xf]
        %v4438 = vld [vmem:[#allocation3 + $0x54] sm:$0xf]
        %v4439 = vld [vmem:[#allocation3 + $0x58] sm:$0xf]
        %v4440 = vld [vmem:[#allocation3 + $0x60] sm:$0xf]
        %v4441 = vld [vmem:[#allocation3 + $0x64] sm:$0xf]
        %v4442 = vld [vmem:[#allocation3 + $0x6c] sm:$0xf]
        %v4443 = vld [vmem:[#allocation3 + $0x70] sm:$0xf]
        %v4444 = vld [vmem:[#allocation3 + $0x78] sm:$0xf]
        %v4445 = vld [vmem:[#allocation3 + $0x7c] sm:$0xf]
        %v4446 = vld [vmem:[#allocation3 + $0x84] sm:$0xf]
        %v4447 = vld [vmem:[#allocation3 + $0x88] sm:$0xf]
        %v4448 = vld [vmem:[#allocation3 + $0x90] sm:$0xf]
        %v4449 = vld [vmem:[#allocation3 + $0x94] sm:$0xf]
        %v4450 = vld [vmem:[#allocation3 + $0x9c] sm:$0xf]
        %v4451 = vld [vmem:[#allocation3 + $0xa0] sm:$0xf]
        %v4452 = vld [vmem:[#allocation3 + $0xa8] sm:$0xf]
        %v4453 = vld [vmem:[#allocation3 + $0xac] sm:$0xf]
        %v4454 = vld [vmem:[#allocation3 + $0xb4] sm:$0xf]
        %v4455 = vld [vmem:[#allocation3 + $0xb8] sm:$0xf]
        %v4488 = vunpack.c.l.b16 %v4424
        %v4489 = vunpack.c.l.b16 %v4425
        %v4490 = vunpack.c.l.b16 %v4426
        %v4491 = vunpack.c.l.b16 %v4427
        %v4492 = vunpack.c.l.b16 %v4428
        %v4493 = vunpack.c.l.b16 %v4429
        %v4494 = vunpack.c.l.b16 %v4430
        %v4495 = vunpack.c.l.b16 %v4431
        %v4496 = vunpack.c.l.b16 %v4432
        %v4497 = vunpack.c.l.b16 %v4433
        %v4498 = vunpack.c.l.b16 %v4434
        %v4499 = vunpack.c.l.b16 %v4435
        %v4500 = vunpack.c.l.b16 %v4436
        %v4501 = vunpack.c.l.b16 %v4437
        %v4502 = vunpack.c.l.b16 %v4438
        %v4503 = vunpack.c.l.b16 %v4439
        %v4504 = vunpack.c.l.b16 %v4440
        %v4505 = vunpack.c.l.b16 %v4441
        %v4506 = vunpack.c.l.b16 %v4442
        %v4507 = vunpack.c.l.b16 %v4443
        %v4508 = vunpack.c.l.b16 %v4444
        %v4509 = vunpack.c.l.b16 %v4445
        %v4510 = vunpack.c.l.b16 %v4446
        %v4511 = vunpack.c.l.b16 %v4447
        %v4512 = vunpack.c.l.b16 %v4448
        %v4513 = vunpack.c.l.b16 %v4449
        %v4514 = vunpack.c.l.b16 %v4450
        %v4515 = vunpack.c.l.b16 %v4451
        %v4516 = vunpack.c.l.b16 %v4452
        %v4517 = vunpack.c.l.b16 %v4453
        %v4518 = vunpack.c.l.b16 %v4454
        %v4519 = vunpack.c.l.b16 %v4455
        %v4520 = vpack.c.b16 %v4489, %v4488
        %v4521 = vpack.c.b16 %v4491, %v4490
        %v4522 = vpack.c.b16 %v4493, %v4492
        %v4523 = vpack.c.b16 %v4495, %v4494
        %v4524 = vpack.c.b16 %v4497, %v4496
        %v4525 = vpack.c.b16 %v4499, %v4498
        %v4526 = vpack.c.b16 %v4501, %v4500
        %v4527 = vpack.c.b16 %v4503, %v4502
        %v4528 = vpack.c.b16 %v4505, %v4504
        %v4529 = vpack.c.b16 %v4507, %v4506
        %v4530 = vpack.c.b16 %v4509, %v4508
        %v4531 = vpack.c.b16 %v4511, %v4510
        %v4532 = vpack.c.b16 %v4513, %v4512
        %v4533 = vpack.c.b16 %v4515, %v4514
        %v4534 = vpack.c.b16 %v4517, %v4516
        %v4535 = vpack.c.b16 %v4519, %v4518
        %vm4552 = vcmask 64512
        %4553 = vst.msk [vmem:[#allocation5] sm:$0xff] %vm4552, %v4520
        %4554 = vst.msk [vmem:[#allocation5 + $0x8] sm:$0xff] %vm4552, %v4521
        %4555 = vst.msk [vmem:[#allocation5 + $0x10] sm:$0xff] %vm4552, %v4522
        %4556 = vst.msk [vmem:[#allocation5 + $0x18] sm:$0xff] %vm4552, %v4523
        %4557 = vst.msk [vmem:[#allocation5 + $0x20] sm:$0xff] %vm4552, %v4524
        %4558 = vst.msk [vmem:[#allocation5 + $0x28] sm:$0xff] %vm4552, %v4525
        %4559 = vst.msk [vmem:[#allocation5 + $0x30] sm:$0xff] %vm4552, %v4526
        %4560 = vst.msk [vmem:[#allocation5 + $0x38] sm:$0xff] %vm4552, %v4527
        %4561 = vst.msk [vmem:[#allocation5 + $0x40] sm:$0xff] %vm4552, %v4528
        %4562 = vst.msk [vmem:[#allocation5 + $0x48] sm:$0xff] %vm4552, %v4529
        %4563 = vst.msk [vmem:[#allocation5 + $0x50] sm:$0xff] %vm4552, %v4530
        %4564 = vst.msk [vmem:[#allocation5 + $0x58] sm:$0xff] %vm4552, %v4531
        %4565 = vst.msk [vmem:[#allocation5 + $0x60] sm:$0xff] %vm4552, %v4532
        %4566 = vst.msk [vmem:[#allocation5 + $0x68] sm:$0xff] %vm4552, %v4533
        %4567 = vst.msk [vmem:[#allocation5 + $0x70] sm:$0xff] %vm4552, %v4534
        %4568 = vst.msk [vmem:[#allocation5 + $0x78] sm:$0xff] %vm4552, %v4535
        %v4569 = vld [vmem:[#allocation3] sm:$0xf]
        %v4570 = vld [vmem:[#allocation3 + $0x4] sm:$0xf]
        %v4571 = vld [vmem:[#allocation3 + $0x8] sm:$0x1]
        %v4572 = vld [vmem:[#allocation3 + $0xc] sm:$0xf]
        %v4573 = vld [vmem:[#allocation3 + $0x10] sm:$0xf]
        %v4574 = vld [vmem:[#allocation3 + $0x14] sm:$0x1]
        %v4575 = vld [vmem:[#allocation3 + $0x18] sm:$0xf]
        %v4576 = vld [vmem:[#allocation3 + $0x1c] sm:$0xf]
        %v4577 = vld [vmem:[#allocation3 + $0x20] sm:$0x1]
        %v4578 = vld [vmem:[#allocation3 + $0x24] sm:$0xf]
        %v4579 = vld [vmem:[#allocation3 + $0x28] sm:$0xf]
        %v4580 = vld [vmem:[#allocation3 + $0x2c] sm:$0x1]
        %v4581 = vld [vmem:[#allocation3 + $0x30] sm:$0xf]
        %v4582 = vld [vmem:[#allocation3 + $0x34] sm:$0xf]
        %v4583 = vld [vmem:[#allocation3 + $0x38] sm:$0x1]
        %v4584 = vld [vmem:[#allocation3 + $0x3c] sm:$0xf]
        %v4585 = vld [vmem:[#allocation3 + $0x40] sm:$0xf]
        %v4586 = vld [vmem:[#allocation3 + $0x44] sm:$0x1]
        %v4587 = vld [vmem:[#allocation3 + $0x48] sm:$0xf]
        %v4588 = vld [vmem:[#allocation3 + $0x4c] sm:$0xf]
        %v4589 = vld [vmem:[#allocation3 + $0x50] sm:$0x1]
        %v4590 = vld [vmem:[#allocation3 + $0x54] sm:$0xf]
        %v4591 = vld [vmem:[#allocation3 + $0x58] sm:$0xf]
        %v4592 = vld [vmem:[#allocation3 + $0x5c] sm:$0x1]
        %v4593 = vld [vmem:[#allocation3 + $0x60] sm:$0xf]
        %v4594 = vld [vmem:[#allocation3 + $0x64] sm:$0xf]
        %v4595 = vld [vmem:[#allocation3 + $0x68] sm:$0x1]
        %v4596 = vld [vmem:[#allocation3 + $0x6c] sm:$0xf]
        %v4597 = vld [vmem:[#allocation3 + $0x70] sm:$0xf]
        %v4598 = vld [vmem:[#allocation3 + $0x74] sm:$0x1]
        %v4599 = vld [vmem:[#allocation3 + $0x78] sm:$0xf]
        %v4600 = vld [vmem:[#allocation3 + $0x7c] sm:$0xf]
        %v4601 = vld [vmem:[#allocation3 + $0x80] sm:$0x1]
        %v4602 = vld [vmem:[#allocation3 + $0x84] sm:$0xf]
        %v4603 = vld [vmem:[#allocation3 + $0x88] sm:$0xf]
        %v4604 = vld [vmem:[#allocation3 + $0x8c] sm:$0x1]
        %v4605 = vld [vmem:[#allocation3 + $0x90] sm:$0xf]
        %v4606 = vld [vmem:[#allocation3 + $0x94] sm:$0xf]
        %v4607 = vld [vmem:[#allocation3 + $0x98] sm:$0x1]
        %v4608 = vld [vmem:[#allocation3 + $0x9c] sm:$0xf]
        %v4609 = vld [vmem:[#allocation3 + $0xa0] sm:$0xf]
        %v4610 = vld [vmem:[#allocation3 + $0xa4] sm:$0x1]
        %v4611 = vld [vmem:[#allocation3 + $0xa8] sm:$0xf]
        %v4612 = vld [vmem:[#allocation3 + $0xac] sm:$0xf]
        %v4613 = vld [vmem:[#allocation3 + $0xb0] sm:$0x1]
        %v4614 = vld [vmem:[#allocation3 + $0xb4] sm:$0xf]
        %v4615 = vld [vmem:[#allocation3 + $0xb8] sm:$0xf]
        %v4616 = vld [vmem:[#allocation3 + $0xbc] sm:$0x1]
        %v4665 = vunpack.c.l.b16 %v4569
        %v4666 = vunpack.c.l.b16 %v4570
        %v4667 = vunpack.c.l.b16 %v4571
        %v4668 = vunpack.c.l.b16 %v4572
        %v4669 = vunpack.c.l.b16 %v4573
        %v4670 = vunpack.c.l.b16 %v4574
        %v4671 = vunpack.c.l.b16 %v4575
        %v4672 = vunpack.c.l.b16 %v4576
        %v4673 = vunpack.c.l.b16 %v4577
        %v4674 = vunpack.c.l.b16 %v4578
        %v4675 = vunpack.c.l.b16 %v4579
        %v4676 = vunpack.c.l.b16 %v4580
        %v4677 = vunpack.c.l.b16 %v4581
        %v4678 = vunpack.c.l.b16 %v4582
        %v4679 = vunpack.c.l.b16 %v4583
        %v4680 = vunpack.c.l.b16 %v4584
        %v4681 = vunpack.c.l.b16 %v4585
        %v4682 = vunpack.c.l.b16 %v4586
        %v4683 = vunpack.c.l.b16 %v4587
        %v4684 = vunpack.c.l.b16 %v4588
        %v4685 = vunpack.c.l.b16 %v4589
        %v4686 = vunpack.c.l.b16 %v4590
        %v4687 = vunpack.c.l.b16 %v4591
        %v4688 = vunpack.c.l.b16 %v4592
        %v4689 = vunpack.c.l.b16 %v4593
        %v4690 = vunpack.c.l.b16 %v4594
        %v4691 = vunpack.c.l.b16 %v4595
        %v4692 = vunpack.c.l.b16 %v4596
        %v4693 = vunpack.c.l.b16 %v4597
        %v4694 = vunpack.c.l.b16 %v4598
        %v4695 = vunpack.c.l.b16 %v4599
        %v4696 = vunpack.c.l.b16 %v4600
        %v4697 = vunpack.c.l.b16 %v4601
        %v4698 = vunpack.c.l.b16 %v4602
        %v4699 = vunpack.c.l.b16 %v4603
        %v4700 = vunpack.c.l.b16 %v4604
        %v4701 = vunpack.c.l.b16 %v4605
        %v4702 = vunpack.c.l.b16 %v4606
        %v4703 = vunpack.c.l.b16 %v4607
        %v4704 = vunpack.c.l.b16 %v4608
        %v4705 = vunpack.c.l.b16 %v4609
        %v4706 = vunpack.c.l.b16 %v4610
        %v4707 = vunpack.c.l.b16 %v4611
        %v4708 = vunpack.c.l.b16 %v4612
        %v4709 = vunpack.c.l.b16 %v4613
        %v4710 = vunpack.c.l.b16 %v4614
        %v4711 = vunpack.c.l.b16 %v4615
        %v4712 = vunpack.c.l.b16 %v4616
        %v4713 = vpack.c.b16 %v4666, %v4665
        %v4714 = vpack.c.b16 %v4667, %v4667
        %v4715 = vpack.c.b16 %v4669, %v4668
        %v4716 = vpack.c.b16 %v4670, %v4670
        %v4717 = vpack.c.b16 %v4672, %v4671
        %v4718 = vpack.c.b16 %v4673, %v4673
        %v4719 = vpack.c.b16 %v4675, %v4674
        %v4720 = vpack.c.b16 %v4676, %v4676
        %v4721 = vpack.c.b16 %v4678, %v4677
        %v4722 = vpack.c.b16 %v4679, %v4679
        %v4723 = vpack.c.b16 %v4681, %v4680
        %v4724 = vpack.c.b16 %v4682, %v4682
        %v4725 = vpack.c.b16 %v4684, %v4683
        %v4726 = vpack.c.b16 %v4685, %v4685
        %v4727 = vpack.c.b16 %v4687, %v4686
        %v4728 = vpack.c.b16 %v4688, %v4688
        %v4729 = vpack.c.b16 %v4690, %v4689
        %v4730 = vpack.c.b16 %v4691, %v4691
        %v4731 = vpack.c.b16 %v4693, %v4692
        %v4732 = vpack.c.b16 %v4694, %v4694
        %v4733 = vpack.c.b16 %v4696, %v4695
        %v4734 = vpack.c.b16 %v4697, %v4697
        %v4735 = vpack.c.b16 %v4699, %v4698
        %v4736 = vpack.c.b16 %v4700, %v4700
        %v4737 = vpack.c.b16 %v4702, %v4701
        %v4738 = vpack.c.b16 %v4703, %v4703
        %v4739 = vpack.c.b16 %v4705, %v4704
        %v4740 = vpack.c.b16 %v4706, %v4706
        %v4741 = vpack.c.b16 %v4708, %v4707
        %v4742 = vpack.c.b16 %v4709, %v4709
        %v4743 = vpack.c.b16 %v4711, %v4710
        %v4744 = vpack.c.b16 %v4712, %v4712
        %v4746 = vshrl.u32 %v4713, 16
        %v4748 = vshll.u32 %v4713, 16
        %v4750 = vrot.slane %v4748, 1
        %v4751 = vor.u32 %v4746, %v4750
        %v4753 = vshll.u32 %v4714, 16
        %v4755 = vrot.slane %v4753, 1
        %v4756 = vsel %vm1128, %v4751, %v4755
        %v4758 = vshrl.u32 %v4715, 16
        %v4760 = vshll.u32 %v4715, 16
        %v4762 = vrot.slane %v4760, 1
        %v4763 = vor.u32 %v4758, %v4762
        %v4765 = vshll.u32 %v4716, 16
        %v4767 = vrot.slane %v4765, 1
        %v4768 = vsel %vm1128, %v4763, %v4767
        %v4770 = vshrl.u32 %v4717, 16
        %v4772 = vshll.u32 %v4717, 16
        %v4774 = vrot.slane %v4772, 1
        %v4775 = vor.u32 %v4770, %v4774
        %v4777 = vshll.u32 %v4718, 16
        %v4779 = vrot.slane %v4777, 1
        %v4780 = vsel %vm1128, %v4775, %v4779
        %v4782 = vshrl.u32 %v4719, 16
        %v4784 = vshll.u32 %v4719, 16
        %v4786 = vrot.slane %v4784, 1
        %v4787 = vor.u32 %v4782, %v4786
        %v4789 = vshll.u32 %v4720, 16
        %v4791 = vrot.slane %v4789, 1
        %v4792 = vsel %vm1128, %v4787, %v4791
        %v4794 = vshrl.u32 %v4721, 16
        %v4796 = vshll.u32 %v4721, 16
        %v4798 = vrot.slane %v4796, 1
        %v4799 = vor.u32 %v4794, %v4798
        %v4801 = vshll.u32 %v4722, 16
        %v4803 = vrot.slane %v4801, 1
        %v4804 = vsel %vm1128, %v4799, %v4803
        %v4806 = vshrl.u32 %v4723, 16
        %v4808 = vshll.u32 %v4723, 16
        %v4810 = vrot.slane %v4808, 1
        %v4811 = vor.u32 %v4806, %v4810
        %v4813 = vshll.u32 %v4724, 16
        %v4815 = vrot.slane %v4813, 1
        %v4816 = vsel %vm1128, %v4811, %v4815
        %v4818 = vshrl.u32 %v4725, 16
        %v4820 = vshll.u32 %v4725, 16
        %v4822 = vrot.slane %v4820, 1
        %v4823 = vor.u32 %v4818, %v4822
        %v4825 = vshll.u32 %v4726, 16
        %v4827 = vrot.slane %v4825, 1
        %v4828 = vsel %vm1128, %v4823, %v4827
        %v4830 = vshrl.u32 %v4727, 16
        %v4832 = vshll.u32 %v4727, 16
        %v4834 = vrot.slane %v4832, 1
        %v4835 = vor.u32 %v4830, %v4834
        %v4837 = vshll.u32 %v4728, 16
        %v4839 = vrot.slane %v4837, 1
        %v4840 = vsel %vm1128, %v4835, %v4839
        %v4842 = vshrl.u32 %v4729, 16
        %v4844 = vshll.u32 %v4729, 16
        %v4846 = vrot.slane %v4844, 1
        %v4847 = vor.u32 %v4842, %v4846
        %v4849 = vshll.u32 %v4730, 16
        %v4851 = vrot.slane %v4849, 1
        %v4852 = vsel %vm1128, %v4847, %v4851
        %v4854 = vshrl.u32 %v4731, 16
        %v4856 = vshll.u32 %v4731, 16
        %v4858 = vrot.slane %v4856, 1
        %v4859 = vor.u32 %v4854, %v4858
        %v4861 = vshll.u32 %v4732, 16
        %v4863 = vrot.slane %v4861, 1
        %v4864 = vsel %vm1128, %v4859, %v4863
        %v4866 = vshrl.u32 %v4733, 16
        %v4868 = vshll.u32 %v4733, 16
        %v4870 = vrot.slane %v4868, 1
        %v4871 = vor.u32 %v4866, %v4870
        %v4873 = vshll.u32 %v4734, 16
        %v4875 = vrot.slane %v4873, 1
        %v4876 = vsel %vm1128, %v4871, %v4875
        %v4878 = vshrl.u32 %v4735, 16
        %v4880 = vshll.u32 %v4735, 16
        %v4882 = vrot.slane %v4880, 1
        %v4883 = vor.u32 %v4878, %v4882
        %v4885 = vshll.u32 %v4736, 16
        %v4887 = vrot.slane %v4885, 1
        %v4888 = vsel %vm1128, %v4883, %v4887
        %v4890 = vshrl.u32 %v4737, 16
        %v4892 = vshll.u32 %v4737, 16
        %v4894 = vrot.slane %v4892, 1
        %v4895 = vor.u32 %v4890, %v4894
        %v4897 = vshll.u32 %v4738, 16
        %v4899 = vrot.slane %v4897, 1
        %v4900 = vsel %vm1128, %v4895, %v4899
        %v4902 = vshrl.u32 %v4739, 16
        %v4904 = vshll.u32 %v4739, 16
        %v4906 = vrot.slane %v4904, 1
        %v4907 = vor.u32 %v4902, %v4906
        %v4909 = vshll.u32 %v4740, 16
        %v4911 = vrot.slane %v4909, 1
        %v4912 = vsel %vm1128, %v4907, %v4911
        %v4914 = vshrl.u32 %v4741, 16
        %v4916 = vshll.u32 %v4741, 16
        %v4918 = vrot.slane %v4916, 1
        %v4919 = vor.u32 %v4914, %v4918
        %v4921 = vshll.u32 %v4742, 16
        %v4923 = vrot.slane %v4921, 1
        %v4924 = vsel %vm1128, %v4919, %v4923
        %v4926 = vshrl.u32 %v4743, 16
        %v4928 = vshll.u32 %v4743, 16
        %v4930 = vrot.slane %v4928, 1
        %v4931 = vor.u32 %v4926, %v4930
        %v4933 = vshll.u32 %v4744, 16
        %v4935 = vrot.slane %v4933, 1
        %v4936 = vsel %vm1128, %v4931, %v4935
        %4937 = vrot.lane.b32.xlu0 %v4756, 8
        %v4938 = vpop.permute.xlu0 %4937
        %4939 = vrot.lane.b32.xlu0 %v4768, 8
        %v4940 = vpop.permute.xlu0 %4939
        %4941 = vrot.lane.b32.xlu0 %v4780, 8
        %v4942 = vpop.permute.xlu0 %4941
        %4943 = vrot.lane.b32.xlu0 %v4792, 8
        %v4944 = vpop.permute.xlu0 %4943
        %4945 = vrot.lane.b32.xlu0 %v4804, 8
        %v4946 = vpop.permute.xlu0 %4945
        %4947 = vrot.lane.b32.xlu0 %v4816, 8
        %v4948 = vpop.permute.xlu0 %4947
        %4949 = vrot.lane.b32.xlu0 %v4828, 8
        %v4950 = vpop.permute.xlu0 %4949
        %4951 = vrot.lane.b32.xlu0 %v4840, 8
        %v4952 = vpop.permute.xlu0 %4951
        %4953 = vrot.lane.b32.xlu0 %v4852, 8
        %v4954 = vpop.permute.xlu0 %4953
        %4955 = vrot.lane.b32.xlu0 %v4864, 8
        %v4956 = vpop.permute.xlu0 %4955
        %4957 = vrot.lane.b32.xlu0 %v4876, 8
        %v4958 = vpop.permute.xlu0 %4957
        %4959 = vrot.lane.b32.xlu0 %v4888, 8
        %v4960 = vpop.permute.xlu0 %4959
        %4961 = vrot.lane.b32.xlu0 %v4900, 8
        %v4962 = vpop.permute.xlu0 %4961
        %4963 = vrot.lane.b32.xlu0 %v4912, 8
        %v4964 = vpop.permute.xlu0 %4963
        %4965 = vrot.lane.b32.xlu0 %v4924, 8
        %v4966 = vpop.permute.xlu0 %4965
        %4967 = vrot.lane.b32.xlu0 %v4936, 8
        %v4968 = vpop.permute.xlu0 %4967
        %vm4985 = vcmask 130112
        %4986 = vst.msk [vmem:[#allocation5] sm:$0xff] %vm4985, %v4938
        %4987 = vst.msk [vmem:[#allocation5 + $0x8] sm:$0xff] %vm4985, %v4940
        %4988 = vst.msk [vmem:[#allocation5 + $0x10] sm:$0xff] %vm4985, %v4942
        %4989 = vst.msk [vmem:[#allocation5 + $0x18] sm:$0xff] %vm4985, %v4944
        %4990 = vst.msk [vmem:[#allocation5 + $0x20] sm:$0xff] %vm4985, %v4946
        %4991 = vst.msk [vmem:[#allocation5 + $0x28] sm:$0xff] %vm4985, %v4948
        %4992 = vst.msk [vmem:[#allocation5 + $0x30] sm:$0xff] %vm4985, %v4950
        %4993 = vst.msk [vmem:[#allocation5 + $0x38] sm:$0xff] %vm4985, %v4952
        %4994 = vst.msk [vmem:[#allocation5 + $0x40] sm:$0xff] %vm4985, %v4954
        %4995 = vst.msk [vmem:[#allocation5 + $0x48] sm:$0xff] %vm4985, %v4956
        %4996 = vst.msk [vmem:[#allocation5 + $0x50] sm:$0xff] %vm4985, %v4958
        %4997 = vst.msk [vmem:[#allocation5 + $0x58] sm:$0xff] %vm4985, %v4960
        %4998 = vst.msk [vmem:[#allocation5 + $0x60] sm:$0xff] %vm4985, %v4962
        %4999 = vst.msk [vmem:[#allocation5 + $0x68] sm:$0xff] %vm4985, %v4964
        %5000 = vst.msk [vmem:[#allocation5 + $0x70] sm:$0xff] %vm4985, %v4966
        %5001 = vst.msk [vmem:[#allocation5 + $0x78] sm:$0xff] %vm4985, %v4968
        %v5002 = vld [vmem:[#allocation3] sm:$0xe]
        %v5003 = vld [vmem:[#allocation3 + $0x4] sm:$0xf]
        %v5004 = vld [vmem:[#allocation3 + $0x8] sm:$0x1]
        %v5005 = vld [vmem:[#allocation3 + $0xc] sm:$0xe]
        %v5006 = vld [vmem:[#allocation3 + $0x10] sm:$0xf]
        %v5007 = vld [vmem:[#allocation3 + $0x14] sm:$0x1]
        %v5008 = vld [vmem:[#allocation3 + $0x18] sm:$0xe]
        %v5009 = vld [vmem:[#allocation3 + $0x1c] sm:$0xf]
        %v5010 = vld [vmem:[#allocation3 + $0x20] sm:$0x1]
        %v5011 = vld [vmem:[#allocation3 + $0x24] sm:$0xe]
        %v5012 = vld [vmem:[#allocation3 + $0x28] sm:$0xf]
        %v5013 = vld [vmem:[#allocation3 + $0x2c] sm:$0x1]
        %v5014 = vld [vmem:[#allocation3 + $0x30] sm:$0xe]
        %v5015 = vld [vmem:[#allocation3 + $0x34] sm:$0xf]
        %v5016 = vld [vmem:[#allocation3 + $0x38] sm:$0x1]
        %v5017 = vld [vmem:[#allocation3 + $0x3c] sm:$0xe]
        %v5018 = vld [vmem:[#allocation3 + $0x40] sm:$0xf]
        %v5019 = vld [vmem:[#allocation3 + $0x44] sm:$0x1]
        %v5020 = vld [vmem:[#allocation3 + $0x48] sm:$0xe]
        %v5021 = vld [vmem:[#allocation3 + $0x4c] sm:$0xf]
        %v5022 = vld [vmem:[#allocation3 + $0x50] sm:$0x1]
        %v5023 = vld [vmem:[#allocation3 + $0x54] sm:$0xe]
        %v5024 = vld [vmem:[#allocation3 + $0x58] sm:$0xf]
        %v5025 = vld [vmem:[#allocation3 + $0x5c] sm:$0x1]
        %v5026 = vld [vmem:[#allocation3 + $0x60] sm:$0xe]
        %v5027 = vld [vmem:[#allocation3 + $0x64] sm:$0xf]
        %v5028 = vld [vmem:[#allocation3 + $0x68] sm:$0x1]
        %v5029 = vld [vmem:[#allocation3 + $0x6c] sm:$0xe]
        %v5030 = vld [vmem:[#allocation3 + $0x70] sm:$0xf]
        %v5031 = vld [vmem:[#allocation3 + $0x74] sm:$0x1]
        %v5032 = vld [vmem:[#allocation3 + $0x78] sm:$0xe]
        %v5033 = vld [vmem:[#allocation3 + $0x7c] sm:$0xf]
        %v5034 = vld [vmem:[#allocation3 + $0x80] sm:$0x1]
        %v5035 = vld [vmem:[#allocation3 + $0x84] sm:$0xe]
        %v5036 = vld [vmem:[#allocation3 + $0x88] sm:$0xf]
        %v5037 = vld [vmem:[#allocation3 + $0x8c] sm:$0x1]
        %v5038 = vld [vmem:[#allocation3 + $0x90] sm:$0xe]
        %v5039 = vld [vmem:[#allocation3 + $0x94] sm:$0xf]
        %v5040 = vld [vmem:[#allocation3 + $0x98] sm:$0x1]
        %v5041 = vld [vmem:[#allocation3 + $0x9c] sm:$0xe]
        %v5042 = vld [vmem:[#allocation3 + $0xa0] sm:$0xf]
        %v5043 = vld [vmem:[#allocation3 + $0xa4] sm:$0x1]
        %v5044 = vld [vmem:[#allocation3 + $0xa8] sm:$0xe]
        %v5045 = vld [vmem:[#allocation3 + $0xac] sm:$0xf]
        %v5046 = vld [vmem:[#allocation3 + $0xb0] sm:$0x1]
        %v5047 = vld [vmem:[#allocation3 + $0xb4] sm:$0xe]
        %v5048 = vld [vmem:[#allocation3 + $0xb8] sm:$0xf]
        %v5049 = vld [vmem:[#allocation3 + $0xbc] sm:$0x1]
        %v5098 = vunpack.c.l.b16 %v5002
        %v5099 = vunpack.c.l.b16 %v5003
        %v5100 = vunpack.c.l.b16 %v5004
        %v5101 = vunpack.c.l.b16 %v5005
        %v5102 = vunpack.c.l.b16 %v5006
        %v5103 = vunpack.c.l.b16 %v5007
        %v5104 = vunpack.c.l.b16 %v5008
        %v5105 = vunpack.c.l.b16 %v5009
        %v5106 = vunpack.c.l.b16 %v5010
        %v5107 = vunpack.c.l.b16 %v5011
        %v5108 = vunpack.c.l.b16 %v5012
        %v5109 = vunpack.c.l.b16 %v5013
        %v5110 = vunpack.c.l.b16 %v5014
        %v5111 = vunpack.c.l.b16 %v5015
        %v5112 = vunpack.c.l.b16 %v5016
        %v5113 = vunpack.c.l.b16 %v5017
        %v5114 = vunpack.c.l.b16 %v5018
        %v5115 = vunpack.c.l.b16 %v5019
        %v5116 = vunpack.c.l.b16 %v5020
        %v5117 = vunpack.c.l.b16 %v5021
        %v5118 = vunpack.c.l.b16 %v5022
        %v5119 = vunpack.c.l.b16 %v5023
        %v5120 = vunpack.c.l.b16 %v5024
        %v5121 = vunpack.c.l.b16 %v5025
        %v5122 = vunpack.c.l.b16 %v5026
        %v5123 = vunpack.c.l.b16 %v5027
        %v5124 = vunpack.c.l.b16 %v5028
        %v5125 = vunpack.c.l.b16 %v5029
        %v5126 = vunpack.c.l.b16 %v5030
        %v5127 = vunpack.c.l.b16 %v5031
        %v5128 = vunpack.c.l.b16 %v5032
        %v5129 = vunpack.c.l.b16 %v5033
        %v5130 = vunpack.c.l.b16 %v5034
        %v5131 = vunpack.c.l.b16 %v5035
        %v5132 = vunpack.c.l.b16 %v5036
        %v5133 = vunpack.c.l.b16 %v5037
        %v5134 = vunpack.c.l.b16 %v5038
        %v5135 = vunpack.c.l.b16 %v5039
        %v5136 = vunpack.c.l.b16 %v5040
        %v5137 = vunpack.c.l.b16 %v5041
        %v5138 = vunpack.c.l.b16 %v5042
        %v5139 = vunpack.c.l.b16 %v5043
        %v5140 = vunpack.c.l.b16 %v5044
        %v5141 = vunpack.c.l.b16 %v5045
        %v5142 = vunpack.c.l.b16 %v5046
        %v5143 = vunpack.c.l.b16 %v5047
        %v5144 = vunpack.c.l.b16 %v5048
        %v5145 = vunpack.c.l.b16 %v5049
        %v5146 = vpack.c.b16 %v5099, %v5098
        %v5147 = vpack.c.b16 %v5100, %v5100
        %v5148 = vpack.c.b16 %v5102, %v5101
        %v5149 = vpack.c.b16 %v5103, %v5103
        %v5150 = vpack.c.b16 %v5105, %v5104
        %v5151 = vpack.c.b16 %v5106, %v5106
        %v5152 = vpack.c.b16 %v5108, %v5107
        %v5153 = vpack.c.b16 %v5109, %v5109
        %v5154 = vpack.c.b16 %v5111, %v5110
        %v5155 = vpack.c.b16 %v5112, %v5112
        %v5156 = vpack.c.b16 %v5114, %v5113
        %v5157 = vpack.c.b16 %v5115, %v5115
        %v5158 = vpack.c.b16 %v5117, %v5116
        %v5159 = vpack.c.b16 %v5118, %v5118
        %v5160 = vpack.c.b16 %v5120, %v5119
        %v5161 = vpack.c.b16 %v5121, %v5121
        %v5162 = vpack.c.b16 %v5123, %v5122
        %v5163 = vpack.c.b16 %v5124, %v5124
        %v5164 = vpack.c.b16 %v5126, %v5125
        %v5165 = vpack.c.b16 %v5127, %v5127
        %v5166 = vpack.c.b16 %v5129, %v5128
        %v5167 = vpack.c.b16 %v5130, %v5130
        %v5168 = vpack.c.b16 %v5132, %v5131
        %v5169 = vpack.c.b16 %v5133, %v5133
        %v5170 = vpack.c.b16 %v5135, %v5134
        %v5171 = vpack.c.b16 %v5136, %v5136
        %v5172 = vpack.c.b16 %v5138, %v5137
        %v5173 = vpack.c.b16 %v5139, %v5139
        %v5174 = vpack.c.b16 %v5141, %v5140
        %v5175 = vpack.c.b16 %v5142, %v5142
        %v5176 = vpack.c.b16 %v5144, %v5143
        %v5177 = vpack.c.b16 %v5145, %v5145
        %v5178 = vrot.slane %v5146, 1
        %v5179 = vrot.slane %v5147, 1
        %v5180 = vsel %vm1562, %v5178, %v5179
        %v5181 = vrot.slane %v5148, 1
        %v5182 = vrot.slane %v5149, 1
        %v5183 = vsel %vm1562, %v5181, %v5182
        %v5184 = vrot.slane %v5150, 1
        %v5185 = vrot.slane %v5151, 1
        %v5186 = vsel %vm1562, %v5184, %v5185
        %v5187 = vrot.slane %v5152, 1
        %v5188 = vrot.slane %v5153, 1
        %v5189 = vsel %vm1562, %v5187, %v5188
        %v5190 = vrot.slane %v5154, 1
        %v5191 = vrot.slane %v5155, 1
        %v5192 = vsel %vm1562, %v5190, %v5191
        %v5193 = vrot.slane %v5156, 1
        %v5194 = vrot.slane %v5157, 1
        %v5195 = vsel %vm1562, %v5193, %v5194
        %v5196 = vrot.slane %v5158, 1
        %v5197 = vrot.slane %v5159, 1
        %v5198 = vsel %vm1562, %v5196, %v5197
        %v5199 = vrot.slane %v5160, 1
        %v5200 = vrot.slane %v5161, 1
        %v5201 = vsel %vm1562, %v5199, %v5200
        %v5202 = vrot.slane %v5162, 1
        %v5203 = vrot.slane %v5163, 1
        %v5204 = vsel %vm1562, %v5202, %v5203
        %v5205 = vrot.slane %v5164, 1
        %v5206 = vrot.slane %v5165, 1
        %v5207 = vsel %vm1562, %v5205, %v5206
        %v5208 = vrot.slane %v5166, 1
        %v5209 = vrot.slane %v5167, 1
        %v5210 = vsel %vm1562, %v5208, %v5209
        %v5211 = vrot.slane %v5168, 1
        %v5212 = vrot.slane %v5169, 1
        %v5213 = vsel %vm1562, %v5211, %v5212
        %v5214 = vrot.slane %v5170, 1
        %v5215 = vrot.slane %v5171, 1
        %v5216 = vsel %vm1562, %v5214, %v5215
        %v5217 = vrot.slane %v5172, 1
        %v5218 = vrot.slane %v5173, 1
        %v5219 = vsel %vm1562, %v5217, %v5218
        %v5220 = vrot.slane %v5174, 1
        %v5221 = vrot.slane %v5175, 1
        %v5222 = vsel %vm1562, %v5220, %v5221
        %v5223 = vrot.slane %v5176, 1
        %v5224 = vrot.slane %v5177, 1
        %v5225 = vsel %vm1562, %v5223, %v5224
        %5226 = vrot.lane.b32.xlu0 %v5180, 16
        %v5227 = vpop.permute.xlu0 %5226
        %5228 = vrot.lane.b32.xlu0 %v5183, 16
        %v5229 = vpop.permute.xlu0 %5228
        %5230 = vrot.lane.b32.xlu0 %v5186, 16
        %v5231 = vpop.permute.xlu0 %5230
        %5232 = vrot.lane.b32.xlu0 %v5189, 16
        %v5233 = vpop.permute.xlu0 %5232
        %5234 = vrot.lane.b32.xlu0 %v5192, 16
        %v5235 = vpop.permute.xlu0 %5234
        %5236 = vrot.lane.b32.xlu0 %v5195, 16
        %v5237 = vpop.permute.xlu0 %5236
        %5238 = vrot.lane.b32.xlu0 %v5198, 16
        %v5239 = vpop.permute.xlu0 %5238
        %5240 = vrot.lane.b32.xlu0 %v5201, 16
        %v5241 = vpop.permute.xlu0 %5240
        %5242 = vrot.lane.b32.xlu0 %v5204, 16
        %v5243 = vpop.permute.xlu0 %5242
        %5244 = vrot.lane.b32.xlu0 %v5207, 16
        %v5245 = vpop.permute.xlu0 %5244
        %5246 = vrot.lane.b32.xlu0 %v5210, 16
        %v5247 = vpop.permute.xlu0 %5246
        %5248 = vrot.lane.b32.xlu0 %v5213, 16
        %v5249 = vpop.permute.xlu0 %5248
        %5250 = vrot.lane.b32.xlu0 %v5216, 16
        %v5251 = vpop.permute.xlu0 %5250
        %5252 = vrot.lane.b32.xlu0 %v5219, 16
        %v5253 = vpop.permute.xlu0 %5252
        %5254 = vrot.lane.b32.xlu0 %v5222, 16
        %v5255 = vpop.permute.xlu0 %5254
        %5256 = vrot.lane.b32.xlu0 %v5225, 16
        %v5257 = vpop.permute.xlu0 %5256
        %vm5274 = vcmask 195712
        %5275 = vst.msk [vmem:[#allocation5] sm:$0xff] %vm5274, %v5227
        %5276 = vst.msk [vmem:[#allocation5 + $0x8] sm:$0xff] %vm5274, %v5229
        %5277 = vst.msk [vmem:[#allocation5 + $0x10] sm:$0xff] %vm5274, %v5231
        %5278 = vst.msk [vmem:[#allocation5 + $0x18] sm:$0xff] %vm5274, %v5233
        %5279 = vst.msk [vmem:[#allocation5 + $0x20] sm:$0xff] %vm5274, %v5235
        %5280 = vst.msk [vmem:[#allocation5 + $0x28] sm:$0xff] %vm5274, %v5237
        %5281 = vst.msk [vmem:[#allocation5 + $0x30] sm:$0xff] %vm5274, %v5239
        %5282 = vst.msk [vmem:[#allocation5 + $0x38] sm:$0xff] %vm5274, %v5241
        %5283 = vst.msk [vmem:[#allocation5 + $0x40] sm:$0xff] %vm5274, %v5243
        %5284 = vst.msk [vmem:[#allocation5 + $0x48] sm:$0xff] %vm5274, %v5245
        %5285 = vst.msk [vmem:[#allocation5 + $0x50] sm:$0xff] %vm5274, %v5247
        %5286 = vst.msk [vmem:[#allocation5 + $0x58] sm:$0xff] %vm5274, %v5249
        %5287 = vst.msk [vmem:[#allocation5 + $0x60] sm:$0xff] %vm5274, %v5251
        %5288 = vst.msk [vmem:[#allocation5 + $0x68] sm:$0xff] %vm5274, %v5253
        %5289 = vst.msk [vmem:[#allocation5 + $0x70] sm:$0xff] %vm5274, %v5255
        %5290 = vst.msk [vmem:[#allocation5 + $0x78] sm:$0xff] %vm5274, %v5257
        %v5291 = vld [vmem:[%s4307] sm:$0xf]
        %v5292 = vld [vmem:[%s4307 + $0x4] sm:$0xf]
        %v5293 = vld [vmem:[%s4307 + $0xc] sm:$0xf]
        %v5294 = vld [vmem:[%s4307 + $0x10] sm:$0xf]
        %v5295 = vld [vmem:[%s4307 + $0x18] sm:$0xf]
        %v5296 = vld [vmem:[%s4307 + $0x1c] sm:$0xf]
        %v5297 = vld [vmem:[%s4307 + $0x24] sm:$0xf]
        %v5298 = vld [vmem:[%s4307 + $0x28] sm:$0xf]
        %v5299 = vld [vmem:[%s4307 + $0x30] sm:$0xf]
        %v5300 = vld [vmem:[%s4307 + $0x34] sm:$0xf]
        %v5301 = vld [vmem:[%s4307 + $0x3c] sm:$0xf]
        %v5302 = vld [vmem:[%s4307 + $0x40] sm:$0xf]
        %v5303 = vld [vmem:[%s4307 + $0x48] sm:$0xf]
        %v5304 = vld [vmem:[%s4307 + $0x4c] sm:$0xf]
        %v5305 = vld [vmem:[%s4307 + $0x54] sm:$0xf]
        %v5306 = vld [vmem:[%s4307 + $0x58] sm:$0xf]
        %v5307 = vld [vmem:[%s4307 + $0x60] sm:$0xf]
        %v5308 = vld [vmem:[%s4307 + $0x64] sm:$0xf]
        %v5309 = vld [vmem:[%s4307 + $0x6c] sm:$0xf]
        %v5310 = vld [vmem:[%s4307 + $0x70] sm:$0xf]
        %v5311 = vld [vmem:[%s4307 + $0x78] sm:$0xf]
        %v5312 = vld [vmem:[%s4307 + $0x7c] sm:$0xf]
        %v5313 = vld [vmem:[%s4307 + $0x84] sm:$0xf]
        %v5314 = vld [vmem:[%s4307 + $0x88] sm:$0xf]
        %v5315 = vld [vmem:[%s4307 + $0x90] sm:$0xf]
        %v5316 = vld [vmem:[%s4307 + $0x94] sm:$0xf]
        %v5317 = vld [vmem:[%s4307 + $0x9c] sm:$0xf]
        %v5318 = vld [vmem:[%s4307 + $0xa0] sm:$0xf]
        %v5319 = vld [vmem:[%s4307 + $0xa8] sm:$0xf]
        %v5320 = vld [vmem:[%s4307 + $0xac] sm:$0xf]
        %v5321 = vld [vmem:[%s4307 + $0xb4] sm:$0xf]
        %v5322 = vld [vmem:[%s4307 + $0xb8] sm:$0xf]
        %v5355 = vunpack.c.l.b16 %v5291
        %v5356 = vunpack.c.l.b16 %v5292
        %v5357 = vunpack.c.l.b16 %v5293
        %v5358 = vunpack.c.l.b16 %v5294
        %v5359 = vunpack.c.l.b16 %v5295
        %v5360 = vunpack.c.l.b16 %v5296
        %v5361 = vunpack.c.l.b16 %v5297
        %v5362 = vunpack.c.l.b16 %v5298
        %v5363 = vunpack.c.l.b16 %v5299
        %v5364 = vunpack.c.l.b16 %v5300
        %v5365 = vunpack.c.l.b16 %v5301
        %v5366 = vunpack.c.l.b16 %v5302
        %v5367 = vunpack.c.l.b16 %v5303
        %v5368 = vunpack.c.l.b16 %v5304
        %v5369 = vunpack.c.l.b16 %v5305
        %v5370 = vunpack.c.l.b16 %v5306
        %v5371 = vunpack.c.l.b16 %v5307
        %v5372 = vunpack.c.l.b16 %v5308
        %v5373 = vunpack.c.l.b16 %v5309
        %v5374 = vunpack.c.l.b16 %v5310
        %v5375 = vunpack.c.l.b16 %v5311
        %v5376 = vunpack.c.l.b16 %v5312
        %v5377 = vunpack.c.l.b16 %v5313
        %v5378 = vunpack.c.l.b16 %v5314
        %v5379 = vunpack.c.l.b16 %v5315
        %v5380 = vunpack.c.l.b16 %v5316
        %v5381 = vunpack.c.l.b16 %v5317
        %v5382 = vunpack.c.l.b16 %v5318
        %v5383 = vunpack.c.l.b16 %v5319
        %v5384 = vunpack.c.l.b16 %v5320
        %v5385 = vunpack.c.l.b16 %v5321
        %v5386 = vunpack.c.l.b16 %v5322
        %v5387 = vpack.c.b16 %v5356, %v5355
        %v5388 = vpack.c.b16 %v5358, %v5357
        %v5389 = vpack.c.b16 %v5360, %v5359
        %v5390 = vpack.c.b16 %v5362, %v5361
        %v5391 = vpack.c.b16 %v5364, %v5363
        %v5392 = vpack.c.b16 %v5366, %v5365
        %v5393 = vpack.c.b16 %v5368, %v5367
        %v5394 = vpack.c.b16 %v5370, %v5369
        %v5395 = vpack.c.b16 %v5372, %v5371
        %v5396 = vpack.c.b16 %v5374, %v5373
        %v5397 = vpack.c.b16 %v5376, %v5375
        %v5398 = vpack.c.b16 %v5378, %v5377
        %v5399 = vpack.c.b16 %v5380, %v5379
        %v5400 = vpack.c.b16 %v5382, %v5381
        %v5401 = vpack.c.b16 %v5384, %v5383
        %v5402 = vpack.c.b16 %v5386, %v5385
        %5403 = vrot.lane.b32.xlu0 %v5387, 24
        %v5404 = vpop.permute.xlu0 %5403
        %5405 = vrot.lane.b32.xlu0 %v5388, 24
        %v5406 = vpop.permute.xlu0 %5405
        %5407 = vrot.lane.b32.xlu0 %v5389, 24
        %v5408 = vpop.permute.xlu0 %5407
        %5409 = vrot.lane.b32.xlu0 %v5390, 24
        %v5410 = vpop.permute.xlu0 %5409
        %5411 = vrot.lane.b32.xlu0 %v5391, 24
        %v5412 = vpop.permute.xlu0 %5411
        %5413 = vrot.lane.b32.xlu0 %v5392, 24
        %v5414 = vpop.permute.xlu0 %5413
        %5415 = vrot.lane.b32.xlu0 %v5393, 24
        %v5416 = vpop.permute.xlu0 %5415
        %5417 = vrot.lane.b32.xlu0 %v5394, 24
        %v5418 = vpop.permute.xlu0 %5417
        %5419 = vrot.lane.b32.xlu0 %v5395, 24
        %v5420 = vpop.permute.xlu0 %5419
        %5421 = vrot.lane.b32.xlu0 %v5396, 24
        %v5422 = vpop.permute.xlu0 %5421
        %5423 = vrot.lane.b32.xlu0 %v5397, 24
        %v5424 = vpop.permute.xlu0 %5423
        %5425 = vrot.lane.b32.xlu0 %v5398, 24
        %v5426 = vpop.permute.xlu0 %5425
        %5427 = vrot.lane.b32.xlu0 %v5399, 24
        %v5428 = vpop.permute.xlu0 %5427
        %5429 = vrot.lane.b32.xlu0 %v5400, 24
        %v5430 = vpop.permute.xlu0 %5429
        %5431 = vrot.lane.b32.xlu0 %v5401, 24
        %v5432 = vpop.permute.xlu0 %5431
        %5433 = vrot.lane.b32.xlu0 %v5402, 24
        %v5434 = vpop.permute.xlu0 %5433
        %vm5451 = vcmask 261312
        %5452 = vst.msk [vmem:[#allocation5] sm:$0xff] %vm5451, %v5404
        %5453 = vst.msk [vmem:[#allocation5 + $0x8] sm:$0xff] %vm5451, %v5406
        %5454 = vst.msk [vmem:[#allocation5 + $0x10] sm:$0xff] %vm5451, %v5408
        %5455 = vst.msk [vmem:[#allocation5 + $0x18] sm:$0xff] %vm5451, %v5410
        %5456 = vst.msk [vmem:[#allocation5 + $0x20] sm:$0xff] %vm5451, %v5412
        %5457 = vst.msk [vmem:[#allocation5 + $0x28] sm:$0xff] %vm5451, %v5414
        %5458 = vst.msk [vmem:[#allocation5 + $0x30] sm:$0xff] %vm5451, %v5416
        %5459 = vst.msk [vmem:[#allocation5 + $0x38] sm:$0xff] %vm5451, %v5418
        %5460 = vst.msk [vmem:[#allocation5 + $0x40] sm:$0xff] %vm5451, %v5420
        %5461 = vst.msk [vmem:[#allocation5 + $0x48] sm:$0xff] %vm5451, %v5422
        %5462 = vst.msk [vmem:[#allocation5 + $0x50] sm:$0xff] %vm5451, %v5424
        %5463 = vst.msk [vmem:[#allocation5 + $0x58] sm:$0xff] %vm5451, %v5426
        %5464 = vst.msk [vmem:[#allocation5 + $0x60] sm:$0xff] %vm5451, %v5428
        %5465 = vst.msk [vmem:[#allocation5 + $0x68] sm:$0xff] %vm5451, %v5430
        %5466 = vst.msk [vmem:[#allocation5 + $0x70] sm:$0xff] %vm5451, %v5432
        %5467 = vst.msk [vmem:[#allocation5 + $0x78] sm:$0xff] %vm5451, %v5434
        %v5468 = vld [vmem:[%s4307] sm:$0xf]
        %v5469 = vld [vmem:[%s4307 + $0x4] sm:$0xf]
        %v5470 = vld [vmem:[%s4307 + $0x8] sm:$0x1]
        %v5471 = vld [vmem:[%s4307 + $0xc] sm:$0xf]
        %v5472 = vld [vmem:[%s4307 + $0x10] sm:$0xf]
        %v5473 = vld [vmem:[%s4307 + $0x14] sm:$0x1]
        %v5474 = vld [vmem:[%s4307 + $0x18] sm:$0xf]
        %v5475 = vld [vmem:[%s4307 + $0x1c] sm:$0xf]
        %v5476 = vld [vmem:[%s4307 + $0x20] sm:$0x1]
        %v5477 = vld [vmem:[%s4307 + $0x24] sm:$0xf]
        %v5478 = vld [vmem:[%s4307 + $0x28] sm:$0xf]
        %v5479 = vld [vmem:[%s4307 + $0x2c] sm:$0x1]
        %v5480 = vld [vmem:[%s4307 + $0x30] sm:$0xf]
        %v5481 = vld [vmem:[%s4307 + $0x34] sm:$0xf]
        %v5482 = vld [vmem:[%s4307 + $0x38] sm:$0x1]
        %v5483 = vld [vmem:[%s4307 + $0x3c] sm:$0xf]
        %v5484 = vld [vmem:[%s4307 + $0x40] sm:$0xf]
        %v5485 = vld [vmem:[%s4307 + $0x44] sm:$0x1]
        %v5486 = vld [vmem:[%s4307 + $0x48] sm:$0xf]
        %v5487 = vld [vmem:[%s4307 + $0x4c] sm:$0xf]
        %v5488 = vld [vmem:[%s4307 + $0x50] sm:$0x1]
        %v5489 = vld [vmem:[%s4307 + $0x54] sm:$0xf]
        %v5490 = vld [vmem:[%s4307 + $0x58] sm:$0xf]
        %v5491 = vld [vmem:[%s4307 + $0x5c] sm:$0x1]
        %v5492 = vld [vmem:[%s4307 + $0x60] sm:$0xf]
        %v5493 = vld [vmem:[%s4307 + $0x64] sm:$0xf]
        %v5494 = vld [vmem:[%s4307 + $0x68] sm:$0x1]
        %v5495 = vld [vmem:[%s4307 + $0x6c] sm:$0xf]
        %v5496 = vld [vmem:[%s4307 + $0x70] sm:$0xf]
        %v5497 = vld [vmem:[%s4307 + $0x74] sm:$0x1]
        %v5498 = vld [vmem:[%s4307 + $0x78] sm:$0xf]
        %v5499 = vld [vmem:[%s4307 + $0x7c] sm:$0xf]
        %v5500 = vld [vmem:[%s4307 + $0x80] sm:$0x1]
        %v5501 = vld [vmem:[%s4307 + $0x84] sm:$0xf]
        %v5502 = vld [vmem:[%s4307 + $0x88] sm:$0xf]
        %v5503 = vld [vmem:[%s4307 + $0x8c] sm:$0x1]
        %v5504 = vld [vmem:[%s4307 + $0x90] sm:$0xf]
        %v5505 = vld [vmem:[%s4307 + $0x94] sm:$0xf]
        %v5506 = vld [vmem:[%s4307 + $0x98] sm:$0x1]
        %v5507 = vld [vmem:[%s4307 + $0x9c] sm:$0xf]
        %v5508 = vld [vmem:[%s4307 + $0xa0] sm:$0xf]
        %v5509 = vld [vmem:[%s4307 + $0xa4] sm:$0x1]
        %v5510 = vld [vmem:[%s4307 + $0xa8] sm:$0xf]
        %v5511 = vld [vmem:[%s4307 + $0xac] sm:$0xf]
        %v5512 = vld [vmem:[%s4307 + $0xb0] sm:$0x1]
        %v5513 = vld [vmem:[%s4307 + $0xb4] sm:$0xf]
        %v5514 = vld [vmem:[%s4307 + $0xb8] sm:$0xf]
        %v5515 = vld [vmem:[%s4307 + $0xbc] sm:$0x1]
        %v5564 = vunpack.c.l.b16 %v5468
        %v5565 = vunpack.c.l.b16 %v5469
        %v5566 = vunpack.c.l.b16 %v5470
        %v5567 = vunpack.c.l.b16 %v5471
        %v5568 = vunpack.c.l.b16 %v5472
        %v5569 = vunpack.c.l.b16 %v5473
        %v5570 = vunpack.c.l.b16 %v5474
        %v5571 = vunpack.c.l.b16 %v5475
        %v5572 = vunpack.c.l.b16 %v5476
        %v5573 = vunpack.c.l.b16 %v5477
        %v5574 = vunpack.c.l.b16 %v5478
        %v5575 = vunpack.c.l.b16 %v5479
        %v5576 = vunpack.c.l.b16 %v5480
        %v5577 = vunpack.c.l.b16 %v5481
        %v5578 = vunpack.c.l.b16 %v5482
        %v5579 = vunpack.c.l.b16 %v5483
        %v5580 = vunpack.c.l.b16 %v5484
        %v5581 = vunpack.c.l.b16 %v5485
        %v5582 = vunpack.c.l.b16 %v5486
        %v5583 = vunpack.c.l.b16 %v5487
        %v5584 = vunpack.c.l.b16 %v5488
        %v5585 = vunpack.c.l.b16 %v5489
        %v5586 = vunpack.c.l.b16 %v5490
        %v5587 = vunpack.c.l.b16 %v5491
        %v5588 = vunpack.c.l.b16 %v5492
        %v5589 = vunpack.c.l.b16 %v5493
        %v5590 = vunpack.c.l.b16 %v5494
        %v5591 = vunpack.c.l.b16 %v5495
        %v5592 = vunpack.c.l.b16 %v5496
        %v5593 = vunpack.c.l.b16 %v5497
        %v5594 = vunpack.c.l.b16 %v5498
        %v5595 = vunpack.c.l.b16 %v5499
        %v5596 = vunpack.c.l.b16 %v5500
        %v5597 = vunpack.c.l.b16 %v5501
        %v5598 = vunpack.c.l.b16 %v5502
        %v5599 = vunpack.c.l.b16 %v5503
        %v5600 = vunpack.c.l.b16 %v5504
        %v5601 = vunpack.c.l.b16 %v5505
        %v5602 = vunpack.c.l.b16 %v5506
        %v5603 = vunpack.c.l.b16 %v5507
        %v5604 = vunpack.c.l.b16 %v5508
        %v5605 = vunpack.c.l.b16 %v5509
        %v5606 = vunpack.c.l.b16 %v5510
        %v5607 = vunpack.c.l.b16 %v5511
        %v5608 = vunpack.c.l.b16 %v5512
        %v5609 = vunpack.c.l.b16 %v5513
        %v5610 = vunpack.c.l.b16 %v5514
        %v5611 = vunpack.c.l.b16 %v5515
        %v5612 = vpack.c.b16 %v5565, %v5564
        %v5613 = vpack.c.b16 %v5566, %v5566
        %v5614 = vpack.c.b16 %v5568, %v5567
        %v5615 = vpack.c.b16 %v5569, %v5569
        %v5616 = vpack.c.b16 %v5571, %v5570
        %v5617 = vpack.c.b16 %v5572, %v5572
        %v5618 = vpack.c.b16 %v5574, %v5573
        %v5619 = vpack.c.b16 %v5575, %v5575
        %v5620 = vpack.c.b16 %v5577, %v5576
        %v5621 = vpack.c.b16 %v5578, %v5578
        %v5622 = vpack.c.b16 %v5580, %v5579
        %v5623 = vpack.c.b16 %v5581, %v5581
        %v5624 = vpack.c.b16 %v5583, %v5582
        %v5625 = vpack.c.b16 %v5584, %v5584
        %v5626 = vpack.c.b16 %v5586, %v5585
        %v5627 = vpack.c.b16 %v5587, %v5587
        %v5628 = vpack.c.b16 %v5589, %v5588
        %v5629 = vpack.c.b16 %v5590, %v5590
        %v5630 = vpack.c.b16 %v5592, %v5591
        %v5631 = vpack.c.b16 %v5593, %v5593
        %v5632 = vpack.c.b16 %v5595, %v5594
        %v5633 = vpack.c.b16 %v5596, %v5596
        %v5634 = vpack.c.b16 %v5598, %v5597
        %v5635 = vpack.c.b16 %v5599, %v5599
        %v5636 = vpack.c.b16 %v5601, %v5600
        %v5637 = vpack.c.b16 %v5602, %v5602
        %v5638 = vpack.c.b16 %v5604, %v5603
        %v5639 = vpack.c.b16 %v5605, %v5605
        %v5640 = vpack.c.b16 %v5607, %v5606
        %v5641 = vpack.c.b16 %v5608, %v5608
        %v5642 = vpack.c.b16 %v5610, %v5609
        %v5643 = vpack.c.b16 %v5611, %v5611
        %v5645 = vshrl.u32 %v5612, 16
        %v5647 = vshll.u32 %v5612, 16
        %v5649 = vrot.slane %v5647, 1
        %v5650 = vor.u32 %v5645, %v5649
        %v5652 = vshll.u32 %v5613, 16
        %v5654 = vrot.slane %v5652, 1
        %v5655 = vsel %vm1128, %v5650, %v5654
        %v5657 = vshrl.u32 %v5614, 16
        %v5659 = vshll.u32 %v5614, 16
        %v5661 = vrot.slane %v5659, 1
        %v5662 = vor.u32 %v5657, %v5661
        %v5664 = vshll.u32 %v5615, 16
        %v5666 = vrot.slane %v5664, 1
        %v5667 = vsel %vm1128, %v5662, %v5666
        %v5669 = vshrl.u32 %v5616, 16
        %v5671 = vshll.u32 %v5616, 16
        %v5673 = vrot.slane %v5671, 1
        %v5674 = vor.u32 %v5669, %v5673
        %v5676 = vshll.u32 %v5617, 16
        %v5678 = vrot.slane %v5676, 1
        %v5679 = vsel %vm1128, %v5674, %v5678
        %v5681 = vshrl.u32 %v5618, 16
        %v5683 = vshll.u32 %v5618, 16
        %v5685 = vrot.slane %v5683, 1
        %v5686 = vor.u32 %v5681, %v5685
        %v5688 = vshll.u32 %v5619, 16
        %v5690 = vrot.slane %v5688, 1
        %v5691 = vsel %vm1128, %v5686, %v5690
        %v5693 = vshrl.u32 %v5620, 16
        %v5695 = vshll.u32 %v5620, 16
        %v5697 = vrot.slane %v5695, 1
        %v5698 = vor.u32 %v5693, %v5697
        %v5700 = vshll.u32 %v5621, 16
        %v5702 = vrot.slane %v5700, 1
        %v5703 = vsel %vm1128, %v5698, %v5702
        %v5705 = vshrl.u32 %v5622, 16
        %v5707 = vshll.u32 %v5622, 16
        %v5709 = vrot.slane %v5707, 1
        %v5710 = vor.u32 %v5705, %v5709
        %v5712 = vshll.u32 %v5623, 16
        %v5714 = vrot.slane %v5712, 1
        %v5715 = vsel %vm1128, %v5710, %v5714
        %v5717 = vshrl.u32 %v5624, 16
        %v5719 = vshll.u32 %v5624, 16
        %v5721 = vrot.slane %v5719, 1
        %v5722 = vor.u32 %v5717, %v5721
        %v5724 = vshll.u32 %v5625, 16
        %v5726 = vrot.slane %v5724, 1
        %v5727 = vsel %vm1128, %v5722, %v5726
        %v5729 = vshrl.u32 %v5626, 16
        %v5731 = vshll.u32 %v5626, 16
        %v5733 = vrot.slane %v5731, 1
        %v5734 = vor.u32 %v5729, %v5733
        %v5736 = vshll.u32 %v5627, 16
        %v5738 = vrot.slane %v5736, 1
        %v5739 = vsel %vm1128, %v5734, %v5738
        %v5741 = vshrl.u32 %v5628, 16
        %v5743 = vshll.u32 %v5628, 16
        %v5745 = vrot.slane %v5743, 1
        %v5746 = vor.u32 %v5741, %v5745
        %v5748 = vshll.u32 %v5629, 16
        %v5750 = vrot.slane %v5748, 1
        %v5751 = vsel %vm1128, %v5746, %v5750
        %v5753 = vshrl.u32 %v5630, 16
        %v5755 = vshll.u32 %v5630, 16
        %v5757 = vrot.slane %v5755, 1
        %v5758 = vor.u32 %v5753, %v5757
        %v5760 = vshll.u32 %v5631, 16
        %v5762 = vrot.slane %v5760, 1
        %v5763 = vsel %vm1128, %v5758, %v5762
        %v5765 = vshrl.u32 %v5632, 16
        %v5767 = vshll.u32 %v5632, 16
        %v5769 = vrot.slane %v5767, 1
        %v5770 = vor.u32 %v5765, %v5769
        %v5772 = vshll.u32 %v5633, 16
        %v5774 = vrot.slane %v5772, 1
        %v5775 = vsel %vm1128, %v5770, %v5774
        %v5777 = vshrl.u32 %v5634, 16
        %v5779 = vshll.u32 %v5634, 16
        %v5781 = vrot.slane %v5779, 1
        %v5782 = vor.u32 %v5777, %v5781
        %v5784 = vshll.u32 %v5635, 16
        %v5786 = vrot.slane %v5784, 1
        %v5787 = vsel %vm1128, %v5782, %v5786
        %v5789 = vshrl.u32 %v5636, 16
        %v5791 = vshll.u32 %v5636, 16
        %v5793 = vrot.slane %v5791, 1
        %v5794 = vor.u32 %v5789, %v5793
        %v5796 = vshll.u32 %v5637, 16
        %v5798 = vrot.slane %v5796, 1
        %v5799 = vsel %vm1128, %v5794, %v5798
        %v5801 = vshrl.u32 %v5638, 16
        %v5803 = vshll.u32 %v5638, 16
        %v5805 = vrot.slane %v5803, 1
        %v5806 = vor.u32 %v5801, %v5805
        %v5808 = vshll.u32 %v5639, 16
        %v5810 = vrot.slane %v5808, 1
        %v5811 = vsel %vm1128, %v5806, %v5810
        %v5813 = vshrl.u32 %v5640, 16
        %v5815 = vshll.u32 %v5640, 16
        %v5817 = vrot.slane %v5815, 1
        %v5818 = vor.u32 %v5813, %v5817
        %v5820 = vshll.u32 %v5641, 16
        %v5822 = vrot.slane %v5820, 1
        %v5823 = vsel %vm1128, %v5818, %v5822
        %v5825 = vshrl.u32 %v5642, 16
        %v5827 = vshll.u32 %v5642, 16
        %v5829 = vrot.slane %v5827, 1
        %v5830 = vor.u32 %v5825, %v5829
        %v5832 = vshll.u32 %v5643, 16
        %v5834 = vrot.slane %v5832, 1
        %v5835 = vsel %vm1128, %v5830, %v5834
        %5836 = vrot.lane.b32.xlu0 %v5655, 32
        %v5837 = vpop.permute.xlu0 %5836
        %5838 = vrot.lane.b32.xlu0 %v5667, 32
        %v5839 = vpop.permute.xlu0 %5838
        %5840 = vrot.lane.b32.xlu0 %v5679, 32
        %v5841 = vpop.permute.xlu0 %5840
        %5842 = vrot.lane.b32.xlu0 %v5691, 32
        %v5843 = vpop.permute.xlu0 %5842
        %5844 = vrot.lane.b32.xlu0 %v5703, 32
        %v5845 = vpop.permute.xlu0 %5844
        %5846 = vrot.lane.b32.xlu0 %v5715, 32
        %v5847 = vpop.permute.xlu0 %5846
        %5848 = vrot.lane.b32.xlu0 %v5727, 32
        %v5849 = vpop.permute.xlu0 %5848
        %5850 = vrot.lane.b32.xlu0 %v5739, 32
        %v5851 = vpop.permute.xlu0 %5850
        %5852 = vrot.lane.b32.xlu0 %v5751, 32
        %v5853 = vpop.permute.xlu0 %5852
        %5854 = vrot.lane.b32.xlu0 %v5763, 32
        %v5855 = vpop.permute.xlu0 %5854
        %5856 = vrot.lane.b32.xlu0 %v5775, 32
        %v5857 = vpop.permute.xlu0 %5856
        %5858 = vrot.lane.b32.xlu0 %v5787, 32
        %v5859 = vpop.permute.xlu0 %5858
        %5860 = vrot.lane.b32.xlu0 %v5799, 32
        %v5861 = vpop.permute.xlu0 %5860
        %5862 = vrot.lane.b32.xlu0 %v5811, 32
        %v5863 = vpop.permute.xlu0 %5862
        %5864 = vrot.lane.b32.xlu0 %v5823, 32
        %v5865 = vpop.permute.xlu0 %5864
        %5866 = vrot.lane.b32.xlu0 %v5835, 32
        %v5867 = vpop.permute.xlu0 %5866
        %vm5884 = vcmask 326912
        %5885 = vst.msk [vmem:[#allocation5] sm:$0xff] %vm5884, %v5837
        %5886 = vst.msk [vmem:[#allocation5 + $0x8] sm:$0xff] %vm5884, %v5839
        %5887 = vst.msk [vmem:[#allocation5 + $0x10] sm:$0xff] %vm5884, %v5841
        %5888 = vst.msk [vmem:[#allocation5 + $0x18] sm:$0xff] %vm5884, %v5843
        %5889 = vst.msk [vmem:[#allocation5 + $0x20] sm:$0xff] %vm5884, %v5845
        %5890 = vst.msk [vmem:[#allocation5 + $0x28] sm:$0xff] %vm5884, %v5847
        %5891 = vst.msk [vmem:[#allocation5 + $0x30] sm:$0xff] %vm5884, %v5849
        %5892 = vst.msk [vmem:[#allocation5 + $0x38] sm:$0xff] %vm5884, %v5851
        %5893 = vst.msk [vmem:[#allocation5 + $0x40] sm:$0xff] %vm5884, %v5853
        %5894 = vst.msk [vmem:[#allocation5 + $0x48] sm:$0xff] %vm5884, %v5855
        %5895 = vst.msk [vmem:[#allocation5 + $0x50] sm:$0xff] %vm5884, %v5857
        %5896 = vst.msk [vmem:[#allocation5 + $0x58] sm:$0xff] %vm5884, %v5859
        %5897 = vst.msk [vmem:[#allocation5 + $0x60] sm:$0xff] %vm5884, %v5861
        %5898 = vst.msk [vmem:[#allocation5 + $0x68] sm:$0xff] %vm5884, %v5863
        %5899 = vst.msk [vmem:[#allocation5 + $0x70] sm:$0xff] %vm5884, %v5865
        %5900 = vst.msk [vmem:[#allocation5 + $0x78] sm:$0xff] %vm5884, %v5867
        %v5901 = vld [vmem:[%s4307] sm:$0xe]
        %v5902 = vld [vmem:[%s4307 + $0x4] sm:$0xf]
        %v5903 = vld [vmem:[%s4307 + $0x8] sm:$0x1]
        %v5904 = vld [vmem:[%s4307 + $0xc] sm:$0xe]
        %v5905 = vld [vmem:[%s4307 + $0x10] sm:$0xf]
        %v5906 = vld [vmem:[%s4307 + $0x14] sm:$0x1]
        %v5907 = vld [vmem:[%s4307 + $0x18] sm:$0xe]
        %v5908 = vld [vmem:[%s4307 + $0x1c] sm:$0xf]
        %v5909 = vld [vmem:[%s4307 + $0x20] sm:$0x1]
        %v5910 = vld [vmem:[%s4307 + $0x24] sm:$0xe]
        %v5911 = vld [vmem:[%s4307 + $0x28] sm:$0xf]
        %v5912 = vld [vmem:[%s4307 + $0x2c] sm:$0x1]
        %v5913 = vld [vmem:[%s4307 + $0x30] sm:$0xe]
        %v5914 = vld [vmem:[%s4307 + $0x34] sm:$0xf]
        %v5915 = vld [vmem:[%s4307 + $0x38] sm:$0x1]
        %v5916 = vld [vmem:[%s4307 + $0x3c] sm:$0xe]
        %v5917 = vld [vmem:[%s4307 + $0x40] sm:$0xf]
        %v5918 = vld [vmem:[%s4307 + $0x44] sm:$0x1]
        %v5919 = vld [vmem:[%s4307 + $0x48] sm:$0xe]
        %v5920 = vld [vmem:[%s4307 + $0x4c] sm:$0xf]
        %v5921 = vld [vmem:[%s4307 + $0x50] sm:$0x1]
        %v5922 = vld [vmem:[%s4307 + $0x54] sm:$0xe]
        %v5923 = vld [vmem:[%s4307 + $0x58] sm:$0xf]
        %v5924 = vld [vmem:[%s4307 + $0x5c] sm:$0x1]
        %v5925 = vld [vmem:[%s4307 + $0x60] sm:$0xe]
        %v5926 = vld [vmem:[%s4307 + $0x64] sm:$0xf]
        %v5927 = vld [vmem:[%s4307 + $0x68] sm:$0x1]
        %v5928 = vld [vmem:[%s4307 + $0x6c] sm:$0xe]
        %v5929 = vld [vmem:[%s4307 + $0x70] sm:$0xf]
        %v5930 = vld [vmem:[%s4307 + $0x74] sm:$0x1]
        %v5931 = vld [vmem:[%s4307 + $0x78] sm:$0xe]
        %v5932 = vld [vmem:[%s4307 + $0x7c] sm:$0xf]
        %v5933 = vld [vmem:[%s4307 + $0x80] sm:$0x1]
        %v5934 = vld [vmem:[%s4307 + $0x84] sm:$0xe]
        %v5935 = vld [vmem:[%s4307 + $0x88] sm:$0xf]
        %v5936 = vld [vmem:[%s4307 + $0x8c] sm:$0x1]
        %v5937 = vld [vmem:[%s4307 + $0x90] sm:$0xe]
        %v5938 = vld [vmem:[%s4307 + $0x94] sm:$0xf]
        %v5939 = vld [vmem:[%s4307 + $0x98] sm:$0x1]
        %v5940 = vld [vmem:[%s4307 + $0x9c] sm:$0xe]
        %v5941 = vld [vmem:[%s4307 + $0xa0] sm:$0xf]
        %v5942 = vld [vmem:[%s4307 + $0xa4] sm:$0x1]
        %v5943 = vld [vmem:[%s4307 + $0xa8] sm:$0xe]
        %v5944 = vld [vmem:[%s4307 + $0xac] sm:$0xf]
        %v5945 = vld [vmem:[%s4307 + $0xb0] sm:$0x1]
        %v5946 = vld [vmem:[%s4307 + $0xb4] sm:$0xe]
        %v5947 = vld [vmem:[%s4307 + $0xb8] sm:$0xf]
        %v5948 = vld [vmem:[%s4307 + $0xbc] sm:$0x1]
        %v5997 = vunpack.c.l.b16 %v5901
        %v5998 = vunpack.c.l.b16 %v5902
        %v5999 = vunpack.c.l.b16 %v5903
        %v6000 = vunpack.c.l.b16 %v5904
        %v6001 = vunpack.c.l.b16 %v5905
        %v6002 = vunpack.c.l.b16 %v5906
        %v6003 = vunpack.c.l.b16 %v5907
        %v6004 = vunpack.c.l.b16 %v5908
        %v6005 = vunpack.c.l.b16 %v5909
        %v6006 = vunpack.c.l.b16 %v5910
        %v6007 = vunpack.c.l.b16 %v5911
        %v6008 = vunpack.c.l.b16 %v5912
        %v6009 = vunpack.c.l.b16 %v5913
        %v6010 = vunpack.c.l.b16 %v5914
        %v6011 = vunpack.c.l.b16 %v5915
        %v6012 = vunpack.c.l.b16 %v5916
        %v6013 = vunpack.c.l.b16 %v5917
        %v6014 = vunpack.c.l.b16 %v5918
        %v6015 = vunpack.c.l.b16 %v5919
        %v6016 = vunpack.c.l.b16 %v5920
        %v6017 = vunpack.c.l.b16 %v5921
        %v6018 = vunpack.c.l.b16 %v5922
        %v6019 = vunpack.c.l.b16 %v5923
        %v6020 = vunpack.c.l.b16 %v5924
        %v6021 = vunpack.c.l.b16 %v5925
        %v6022 = vunpack.c.l.b16 %v5926
        %v6023 = vunpack.c.l.b16 %v5927
        %v6024 = vunpack.c.l.b16 %v5928
        %v6025 = vunpack.c.l.b16 %v5929
        %v6026 = vunpack.c.l.b16 %v5930
        %v6027 = vunpack.c.l.b16 %v5931
        %v6028 = vunpack.c.l.b16 %v5932
        %v6029 = vunpack.c.l.b16 %v5933
        %v6030 = vunpack.c.l.b16 %v5934
        %v6031 = vunpack.c.l.b16 %v5935
        %v6032 = vunpack.c.l.b16 %v5936
        %v6033 = vunpack.c.l.b16 %v5937
        %v6034 = vunpack.c.l.b16 %v5938
        %v6035 = vunpack.c.l.b16 %v5939
        %v6036 = vunpack.c.l.b16 %v5940
        %v6037 = vunpack.c.l.b16 %v5941
        %v6038 = vunpack.c.l.b16 %v5942
        %v6039 = vunpack.c.l.b16 %v5943
        %v6040 = vunpack.c.l.b16 %v5944
        %v6041 = vunpack.c.l.b16 %v5945
        %v6042 = vunpack.c.l.b16 %v5946
        %v6043 = vunpack.c.l.b16 %v5947
        %v6044 = vunpack.c.l.b16 %v5948
        %v6045 = vpack.c.b16 %v5998, %v5997
        %v6046 = vpack.c.b16 %v5999, %v5999
        %v6047 = vpack.c.b16 %v6001, %v6000
        %v6048 = vpack.c.b16 %v6002, %v6002
        %v6049 = vpack.c.b16 %v6004, %v6003
        %v6050 = vpack.c.b16 %v6005, %v6005
        %v6051 = vpack.c.b16 %v6007, %v6006
        %v6052 = vpack.c.b16 %v6008, %v6008
        %v6053 = vpack.c.b16 %v6010, %v6009
        %v6054 = vpack.c.b16 %v6011, %v6011
        %v6055 = vpack.c.b16 %v6013, %v6012
        %v6056 = vpack.c.b16 %v6014, %v6014
        %v6057 = vpack.c.b16 %v6016, %v6015
        %v6058 = vpack.c.b16 %v6017, %v6017
        %v6059 = vpack.c.b16 %v6019, %v6018
        %v6060 = vpack.c.b16 %v6020, %v6020
        %v6061 = vpack.c.b16 %v6022, %v6021
        %v6062 = vpack.c.b16 %v6023, %v6023
        %v6063 = vpack.c.b16 %v6025, %v6024
        %v6064 = vpack.c.b16 %v6026, %v6026
        %v6065 = vpack.c.b16 %v6028, %v6027
        %v6066 = vpack.c.b16 %v6029, %v6029
        %v6067 = vpack.c.b16 %v6031, %v6030
        %v6068 = vpack.c.b16 %v6032, %v6032
        %v6069 = vpack.c.b16 %v6034, %v6033
        %v6070 = vpack.c.b16 %v6035, %v6035
        %v6071 = vpack.c.b16 %v6037, %v6036
        %v6072 = vpack.c.b16 %v6038, %v6038
        %v6073 = vpack.c.b16 %v6040, %v6039
        %v6074 = vpack.c.b16 %v6041, %v6041
        %v6075 = vpack.c.b16 %v6043, %v6042
        %v6076 = vpack.c.b16 %v6044, %v6044
        %v6077 = vrot.slane %v6045, 1
        %v6078 = vrot.slane %v6046, 1
        %v6079 = vsel %vm1562, %v6077, %v6078
        %v6080 = vrot.slane %v6047, 1
        %v6081 = vrot.slane %v6048, 1
        %v6082 = vsel %vm1562, %v6080, %v6081
        %v6083 = vrot.slane %v6049, 1
        %v6084 = vrot.slane %v6050, 1
        %v6085 = vsel %vm1562, %v6083, %v6084
        %v6086 = vrot.slane %v6051, 1
        %v6087 = vrot.slane %v6052, 1
        %v6088 = vsel %vm1562, %v6086, %v6087
        %v6089 = vrot.slane %v6053, 1
        %v6090 = vrot.slane %v6054, 1
        %v6091 = vsel %vm1562, %v6089, %v6090
        %v6092 = vrot.slane %v6055, 1
        %v6093 = vrot.slane %v6056, 1
        %v6094 = vsel %vm1562, %v6092, %v6093
        %v6095 = vrot.slane %v6057, 1
        %v6096 = vrot.slane %v6058, 1
        %v6097 = vsel %vm1562, %v6095, %v6096
        %v6098 = vrot.slane %v6059, 1
        %v6099 = vrot.slane %v6060, 1
        %v6100 = vsel %vm1562, %v6098, %v6099
        %v6101 = vrot.slane %v6061, 1
        %v6102 = vrot.slane %v6062, 1
        %v6103 = vsel %vm1562, %v6101, %v6102
        %v6104 = vrot.slane %v6063, 1
        %v6105 = vrot.slane %v6064, 1
        %v6106 = vsel %vm1562, %v6104, %v6105
        %v6107 = vrot.slane %v6065, 1
        %v6108 = vrot.slane %v6066, 1
        %v6109 = vsel %vm1562, %v6107, %v6108
        %v6110 = vrot.slane %v6067, 1
        %v6111 = vrot.slane %v6068, 1
        %v6112 = vsel %vm1562, %v6110, %v6111
        %v6113 = vrot.slane %v6069, 1
        %v6114 = vrot.slane %v6070, 1
        %v6115 = vsel %vm1562, %v6113, %v6114
        %v6116 = vrot.slane %v6071, 1
        %v6117 = vrot.slane %v6072, 1
        %v6118 = vsel %vm1562, %v6116, %v6117
        %v6119 = vrot.slane %v6073, 1
        %v6120 = vrot.slane %v6074, 1
        %v6121 = vsel %vm1562, %v6119, %v6120
        %v6122 = vrot.slane %v6075, 1
        %v6123 = vrot.slane %v6076, 1
        %v6124 = vsel %vm1562, %v6122, %v6123
        %6125 = vrot.lane.b32.xlu0 %v6079, 40
        %v6126 = vpop.permute.xlu0 %6125
        %6127 = vrot.lane.b32.xlu0 %v6082, 40
        %v6128 = vpop.permute.xlu0 %6127
        %6129 = vrot.lane.b32.xlu0 %v6085, 40
        %v6130 = vpop.permute.xlu0 %6129
        %6131 = vrot.lane.b32.xlu0 %v6088, 40
        %v6132 = vpop.permute.xlu0 %6131
        %6133 = vrot.lane.b32.xlu0 %v6091, 40
        %v6134 = vpop.permute.xlu0 %6133
        %6135 = vrot.lane.b32.xlu0 %v6094, 40
        %v6136 = vpop.permute.xlu0 %6135
        %6137 = vrot.lane.b32.xlu0 %v6097, 40
        %v6138 = vpop.permute.xlu0 %6137
        %6139 = vrot.lane.b32.xlu0 %v6100, 40
        %v6140 = vpop.permute.xlu0 %6139
        %6141 = vrot.lane.b32.xlu0 %v6103, 40
        %v6142 = vpop.permute.xlu0 %6141
        %6143 = vrot.lane.b32.xlu0 %v6106, 40
        %v6144 = vpop.permute.xlu0 %6143
        %6145 = vrot.lane.b32.xlu0 %v6109, 40
        %v6146 = vpop.permute.xlu0 %6145
        %6147 = vrot.lane.b32.xlu0 %v6112, 40
        %v6148 = vpop.permute.xlu0 %6147
        %6149 = vrot.lane.b32.xlu0 %v6115, 40
        %v6150 = vpop.permute.xlu0 %6149
        %6151 = vrot.lane.b32.xlu0 %v6118, 40
        %v6152 = vpop.permute.xlu0 %6151
        %6153 = vrot.lane.b32.xlu0 %v6121, 40
        %v6154 = vpop.permute.xlu0 %6153
        %6155 = vrot.lane.b32.xlu0 %v6124, 40
        %v6156 = vpop.permute.xlu0 %6155
        %vm6173 = vcmask 392512
        %6174 = vst.msk [vmem:[#allocation5] sm:$0xff] %vm6173, %v6126
        %6175 = vst.msk [vmem:[#allocation5 + $0x8] sm:$0xff] %vm6173, %v6128
        %6176 = vst.msk [vmem:[#allocation5 + $0x10] sm:$0xff] %vm6173, %v6130
        %6177 = vst.msk [vmem:[#allocation5 + $0x18] sm:$0xff] %vm6173, %v6132
        %6178 = vst.msk [vmem:[#allocation5 + $0x20] sm:$0xff] %vm6173, %v6134
        %6179 = vst.msk [vmem:[#allocation5 + $0x28] sm:$0xff] %vm6173, %v6136
        %6180 = vst.msk [vmem:[#allocation5 + $0x30] sm:$0xff] %vm6173, %v6138
        %6181 = vst.msk [vmem:[#allocation5 + $0x38] sm:$0xff] %vm6173, %v6140
        %6182 = vst.msk [vmem:[#allocation5 + $0x40] sm:$0xff] %vm6173, %v6142
        %6183 = vst.msk [vmem:[#allocation5 + $0x48] sm:$0xff] %vm6173, %v6144
        %6184 = vst.msk [vmem:[#allocation5 + $0x50] sm:$0xff] %vm6173, %v6146
        %6185 = vst.msk [vmem:[#allocation5 + $0x58] sm:$0xff] %vm6173, %v6148
        %6186 = vst.msk [vmem:[#allocation5 + $0x60] sm:$0xff] %vm6173, %v6150
        %6187 = vst.msk [vmem:[#allocation5 + $0x68] sm:$0xff] %vm6173, %v6152
        %6188 = vst.msk [vmem:[#allocation5 + $0x70] sm:$0xff] %vm6173, %v6154
        %6189 = vst.msk [vmem:[#allocation5 + $0x78] sm:$0xff] %vm6173, %v6156
        %s6190 = scalar_lea.vmem [#allocation3], 24
        %v6191 = vld [vmem:[%s6190] sm:$0xf]
        %v6192 = vld [vmem:[%s6190 + $0x4] sm:$0xf]
        %v6193 = vld [vmem:[%s6190 + $0xc] sm:$0xf]
        %v6194 = vld [vmem:[%s6190 + $0x10] sm:$0xf]
        %v6195 = vld [vmem:[%s6190 + $0x18] sm:$0xf]
        %v6196 = vld [vmem:[%s6190 + $0x1c] sm:$0xf]
        %v6197 = vld [vmem:[%s6190 + $0x24] sm:$0xf]
        %v6198 = vld [vmem:[%s6190 + $0x28] sm:$0xf]
        %v6199 = vld [vmem:[%s6190 + $0x30] sm:$0xf]
        %v6200 = vld [vmem:[%s6190 + $0x34] sm:$0xf]
        %v6201 = vld [vmem:[%s6190 + $0x3c] sm:$0xf]
        %v6202 = vld [vmem:[%s6190 + $0x40] sm:$0xf]
        %v6203 = vld [vmem:[%s6190 + $0x48] sm:$0xf]
        %v6204 = vld [vmem:[%s6190 + $0x4c] sm:$0xf]
        %v6205 = vld [vmem:[%s6190 + $0x54] sm:$0xf]
        %v6206 = vld [vmem:[%s6190 + $0x58] sm:$0xf]
        %v6207 = vld [vmem:[%s6190 + $0x60] sm:$0xf]
        %v6208 = vld [vmem:[%s6190 + $0x64] sm:$0xf]
        %v6209 = vld [vmem:[%s6190 + $0x6c] sm:$0xf]
        %v6210 = vld [vmem:[%s6190 + $0x70] sm:$0xf]
        %v6211 = vld [vmem:[%s6190 + $0x78] sm:$0xf]
        %v6212 = vld [vmem:[%s6190 + $0x7c] sm:$0xf]
        %v6213 = vld [vmem:[%s6190 + $0x84] sm:$0xf]
        %v6214 = vld [vmem:[%s6190 + $0x88] sm:$0xf]
        %v6215 = vld [vmem:[%s6190 + $0x90] sm:$0xf]
        %v6216 = vld [vmem:[%s6190 + $0x94] sm:$0xf]
        %v6217 = vld [vmem:[%s6190 + $0x9c] sm:$0xf]
        %v6218 = vld [vmem:[%s6190 + $0xa0] sm:$0xf]
        %v6219 = vld [vmem:[%s6190 + $0xa8] sm:$0xf]
        %v6220 = vld [vmem:[%s6190 + $0xac] sm:$0xf]
        %v6221 = vld [vmem:[%s6190 + $0xb4] sm:$0xf]
        %v6222 = vld [vmem:[%s6190 + $0xb8] sm:$0xf]
        %v6255 = vunpack.c.l.b16 %v6191
        %v6256 = vunpack.c.l.b16 %v6192
        %v6257 = vunpack.c.l.b16 %v6193
        %v6258 = vunpack.c.l.b16 %v6194
        %v6259 = vunpack.c.l.b16 %v6195
        %v6260 = vunpack.c.l.b16 %v6196
        %v6261 = vunpack.c.l.b16 %v6197
        %v6262 = vunpack.c.l.b16 %v6198
        %v6263 = vunpack.c.l.b16 %v6199
        %v6264 = vunpack.c.l.b16 %v6200
        %v6265 = vunpack.c.l.b16 %v6201
        %v6266 = vunpack.c.l.b16 %v6202
        %v6267 = vunpack.c.l.b16 %v6203
        %v6268 = vunpack.c.l.b16 %v6204
        %v6269 = vunpack.c.l.b16 %v6205
        %v6270 = vunpack.c.l.b16 %v6206
        %v6271 = vunpack.c.l.b16 %v6207
        %v6272 = vunpack.c.l.b16 %v6208
        %v6273 = vunpack.c.l.b16 %v6209
        %v6274 = vunpack.c.l.b16 %v6210
        %v6275 = vunpack.c.l.b16 %v6211
        %v6276 = vunpack.c.l.b16 %v6212
        %v6277 = vunpack.c.l.b16 %v6213
        %v6278 = vunpack.c.l.b16 %v6214
        %v6279 = vunpack.c.l.b16 %v6215
        %v6280 = vunpack.c.l.b16 %v6216
        %v6281 = vunpack.c.l.b16 %v6217
        %v6282 = vunpack.c.l.b16 %v6218
        %v6283 = vunpack.c.l.b16 %v6219
        %v6284 = vunpack.c.l.b16 %v6220
        %v6285 = vunpack.c.l.b16 %v6221
        %v6286 = vunpack.c.l.b16 %v6222
        %v6287 = vpack.c.b16 %v6256, %v6255
        %v6288 = vpack.c.b16 %v6258, %v6257
        %v6289 = vpack.c.b16 %v6260, %v6259
        %v6290 = vpack.c.b16 %v6262, %v6261
        %v6291 = vpack.c.b16 %v6264, %v6263
        %v6292 = vpack.c.b16 %v6266, %v6265
        %v6293 = vpack.c.b16 %v6268, %v6267
        %v6294 = vpack.c.b16 %v6270, %v6269
        %v6295 = vpack.c.b16 %v6272, %v6271
        %v6296 = vpack.c.b16 %v6274, %v6273
        %v6297 = vpack.c.b16 %v6276, %v6275
        %v6298 = vpack.c.b16 %v6278, %v6277
        %v6299 = vpack.c.b16 %v6280, %v6279
        %v6300 = vpack.c.b16 %v6282, %v6281
        %v6301 = vpack.c.b16 %v6284, %v6283
        %v6302 = vpack.c.b16 %v6286, %v6285
        %6303 = vrot.lane.b32.xlu0 %v6287, 48
        %v6304 = vpop.permute.xlu0 %6303
        %6305 = vrot.lane.b32.xlu0 %v6288, 48
        %v6306 = vpop.permute.xlu0 %6305
        %6307 = vrot.lane.b32.xlu0 %v6289, 48
        %v6308 = vpop.permute.xlu0 %6307
        %6309 = vrot.lane.b32.xlu0 %v6290, 48
        %v6310 = vpop.permute.xlu0 %6309
        %6311 = vrot.lane.b32.xlu0 %v6291, 48
        %v6312 = vpop.permute.xlu0 %6311
        %6313 = vrot.lane.b32.xlu0 %v6292, 48
        %v6314 = vpop.permute.xlu0 %6313
        %6315 = vrot.lane.b32.xlu0 %v6293, 48
        %v6316 = vpop.permute.xlu0 %6315
        %6317 = vrot.lane.b32.xlu0 %v6294, 48
        %v6318 = vpop.permute.xlu0 %6317
        %6319 = vrot.lane.b32.xlu0 %v6295, 48
        %v6320 = vpop.permute.xlu0 %6319
        %6321 = vrot.lane.b32.xlu0 %v6296, 48
        %v6322 = vpop.permute.xlu0 %6321
        %6323 = vrot.lane.b32.xlu0 %v6297, 48
        %v6324 = vpop.permute.xlu0 %6323
        %6325 = vrot.lane.b32.xlu0 %v6298, 48
        %v6326 = vpop.permute.xlu0 %6325
        %6327 = vrot.lane.b32.xlu0 %v6299, 48
        %v6328 = vpop.permute.xlu0 %6327
        %6329 = vrot.lane.b32.xlu0 %v6300, 48
        %v6330 = vpop.permute.xlu0 %6329
        %6331 = vrot.lane.b32.xlu0 %v6301, 48
        %v6332 = vpop.permute.xlu0 %6331
        %6333 = vrot.lane.b32.xlu0 %v6302, 48
        %v6334 = vpop.permute.xlu0 %6333
        %vm6351 = vcmask 458112
        %6352 = vst.msk [vmem:[#allocation5] sm:$0xff] %vm6351, %v6304
        %6353 = vst.msk [vmem:[#allocation5 + $0x8] sm:$0xff] %vm6351, %v6306
        %6354 = vst.msk [vmem:[#allocation5 + $0x10] sm:$0xff] %vm6351, %v6308
        %6355 = vst.msk [vmem:[#allocation5 + $0x18] sm:$0xff] %vm6351, %v6310
        %6356 = vst.msk [vmem:[#allocation5 + $0x20] sm:$0xff] %vm6351, %v6312
        %6357 = vst.msk [vmem:[#allocation5 + $0x28] sm:$0xff] %vm6351, %v6314
        %6358 = vst.msk [vmem:[#allocation5 + $0x30] sm:$0xff] %vm6351, %v6316
        %6359 = vst.msk [vmem:[#allocation5 + $0x38] sm:$0xff] %vm6351, %v6318
        %6360 = vst.msk [vmem:[#allocation5 + $0x40] sm:$0xff] %vm6351, %v6320
        %6361 = vst.msk [vmem:[#allocation5 + $0x48] sm:$0xff] %vm6351, %v6322
        %6362 = vst.msk [vmem:[#allocation5 + $0x50] sm:$0xff] %vm6351, %v6324
        %6363 = vst.msk [vmem:[#allocation5 + $0x58] sm:$0xff] %vm6351, %v6326
        %6364 = vst.msk [vmem:[#allocation5 + $0x60] sm:$0xff] %vm6351, %v6328
        %6365 = vst.msk [vmem:[#allocation5 + $0x68] sm:$0xff] %vm6351, %v6330
        %6366 = vst.msk [vmem:[#allocation5 + $0x70] sm:$0xff] %vm6351, %v6332
        %6367 = vst.msk [vmem:[#allocation5 + $0x78] sm:$0xff] %vm6351, %v6334
        %v6368 = vld [vmem:[%s6190] sm:$0xf]
        %v6369 = vld [vmem:[%s6190 + $0x4] sm:$0xf]
        %v6370 = vld [vmem:[%s6190 + $0x8] sm:$0x1]
        %v6371 = vld [vmem:[%s6190 + $0xc] sm:$0xf]
        %v6372 = vld [vmem:[%s6190 + $0x10] sm:$0xf]
        %v6373 = vld [vmem:[%s6190 + $0x14] sm:$0x1]
        %v6374 = vld [vmem:[%s6190 + $0x18] sm:$0xf]
        %v6375 = vld [vmem:[%s6190 + $0x1c] sm:$0xf]
        %v6376 = vld [vmem:[%s6190 + $0x20] sm:$0x1]
        %v6377 = vld [vmem:[%s6190 + $0x24] sm:$0xf]
        %v6378 = vld [vmem:[%s6190 + $0x28] sm:$0xf]
        %v6379 = vld [vmem:[%s6190 + $0x2c] sm:$0x1]
        %v6380 = vld [vmem:[%s6190 + $0x30] sm:$0xf]
        %v6381 = vld [vmem:[%s6190 + $0x34] sm:$0xf]
        %v6382 = vld [vmem:[%s6190 + $0x38] sm:$0x1]
        %v6383 = vld [vmem:[%s6190 + $0x3c] sm:$0xf]
        %v6384 = vld [vmem:[%s6190 + $0x40] sm:$0xf]
        %v6385 = vld [vmem:[%s6190 + $0x44] sm:$0x1]
        %v6386 = vld [vmem:[%s6190 + $0x48] sm:$0xf]
        %v6387 = vld [vmem:[%s6190 + $0x4c] sm:$0xf]
        %v6388 = vld [vmem:[%s6190 + $0x50] sm:$0x1]
        %v6389 = vld [vmem:[%s6190 + $0x54] sm:$0xf]
        %v6390 = vld [vmem:[%s6190 + $0x58] sm:$0xf]
        %v6391 = vld [vmem:[%s6190 + $0x5c] sm:$0x1]
        %v6392 = vld [vmem:[%s6190 + $0x60] sm:$0xf]
        %v6393 = vld [vmem:[%s6190 + $0x64] sm:$0xf]
        %v6394 = vld [vmem:[%s6190 + $0x68] sm:$0x1]
        %v6395 = vld [vmem:[%s6190 + $0x6c] sm:$0xf]
        %v6396 = vld [vmem:[%s6190 + $0x70] sm:$0xf]
        %v6397 = vld [vmem:[%s6190 + $0x74] sm:$0x1]
        %v6398 = vld [vmem:[%s6190 + $0x78] sm:$0xf]
        %v6399 = vld [vmem:[%s6190 + $0x7c] sm:$0xf]
        %v6400 = vld [vmem:[%s6190 + $0x80] sm:$0x1]
        %v6401 = vld [vmem:[%s6190 + $0x84] sm:$0xf]
        %v6402 = vld [vmem:[%s6190 + $0x88] sm:$0xf]
        %v6403 = vld [vmem:[%s6190 + $0x8c] sm:$0x1]
        %v6404 = vld [vmem:[%s6190 + $0x90] sm:$0xf]
        %v6405 = vld [vmem:[%s6190 + $0x94] sm:$0xf]
        %v6406 = vld [vmem:[%s6190 + $0x98] sm:$0x1]
        %v6407 = vld [vmem:[%s6190 + $0x9c] sm:$0xf]
        %v6408 = vld [vmem:[%s6190 + $0xa0] sm:$0xf]
        %v6409 = vld [vmem:[%s6190 + $0xa4] sm:$0x1]
        %v6410 = vld [vmem:[%s6190 + $0xa8] sm:$0xf]
        %v6411 = vld [vmem:[%s6190 + $0xac] sm:$0xf]
        %v6412 = vld [vmem:[%s6190 + $0xb0] sm:$0x1]
        %v6413 = vld [vmem:[%s6190 + $0xb4] sm:$0xf]
        %v6414 = vld [vmem:[%s6190 + $0xb8] sm:$0xf]
        %v6415 = vld [vmem:[%s6190 + $0xbc] sm:$0x1]
        %v6464 = vunpack.c.l.b16 %v6368
        %v6465 = vunpack.c.l.b16 %v6369
        %v6466 = vunpack.c.l.b16 %v6370
        %v6467 = vunpack.c.l.b16 %v6371
        %v6468 = vunpack.c.l.b16 %v6372
        %v6469 = vunpack.c.l.b16 %v6373
        %v6470 = vunpack.c.l.b16 %v6374
        %v6471 = vunpack.c.l.b16 %v6375
        %v6472 = vunpack.c.l.b16 %v6376
        %v6473 = vunpack.c.l.b16 %v6377
        %v6474 = vunpack.c.l.b16 %v6378
        %v6475 = vunpack.c.l.b16 %v6379
        %v6476 = vunpack.c.l.b16 %v6380
        %v6477 = vunpack.c.l.b16 %v6381
        %v6478 = vunpack.c.l.b16 %v6382
        %v6479 = vunpack.c.l.b16 %v6383
        %v6480 = vunpack.c.l.b16 %v6384
        %v6481 = vunpack.c.l.b16 %v6385
        %v6482 = vunpack.c.l.b16 %v6386
        %v6483 = vunpack.c.l.b16 %v6387
        %v6484 = vunpack.c.l.b16 %v6388
        %v6485 = vunpack.c.l.b16 %v6389
        %v6486 = vunpack.c.l.b16 %v6390
        %v6487 = vunpack.c.l.b16 %v6391
        %v6488 = vunpack.c.l.b16 %v6392
        %v6489 = vunpack.c.l.b16 %v6393
        %v6490 = vunpack.c.l.b16 %v6394
        %v6491 = vunpack.c.l.b16 %v6395
        %v6492 = vunpack.c.l.b16 %v6396
        %v6493 = vunpack.c.l.b16 %v6397
        %v6494 = vunpack.c.l.b16 %v6398
        %v6495 = vunpack.c.l.b16 %v6399
        %v6496 = vunpack.c.l.b16 %v6400
        %v6497 = vunpack.c.l.b16 %v6401
        %v6498 = vunpack.c.l.b16 %v6402
        %v6499 = vunpack.c.l.b16 %v6403
        %v6500 = vunpack.c.l.b16 %v6404
        %v6501 = vunpack.c.l.b16 %v6405
        %v6502 = vunpack.c.l.b16 %v6406
        %v6503 = vunpack.c.l.b16 %v6407
        %v6504 = vunpack.c.l.b16 %v6408
        %v6505 = vunpack.c.l.b16 %v6409
        %v6506 = vunpack.c.l.b16 %v6410
        %v6507 = vunpack.c.l.b16 %v6411
        %v6508 = vunpack.c.l.b16 %v6412
        %v6509 = vunpack.c.l.b16 %v6413
        %v6510 = vunpack.c.l.b16 %v6414
        %v6511 = vunpack.c.l.b16 %v6415
        %v6512 = vpack.c.b16 %v6465, %v6464
        %v6513 = vpack.c.b16 %v6466, %v6466
        %v6514 = vpack.c.b16 %v6468, %v6467
        %v6515 = vpack.c.b16 %v6469, %v6469
        %v6516 = vpack.c.b16 %v6471, %v6470
        %v6517 = vpack.c.b16 %v6472, %v6472
        %v6518 = vpack.c.b16 %v6474, %v6473
        %v6519 = vpack.c.b16 %v6475, %v6475
        %v6520 = vpack.c.b16 %v6477, %v6476
        %v6521 = vpack.c.b16 %v6478, %v6478
        %v6522 = vpack.c.b16 %v6480, %v6479
        %v6523 = vpack.c.b16 %v6481, %v6481
        %v6524 = vpack.c.b16 %v6483, %v6482
        %v6525 = vpack.c.b16 %v6484, %v6484
        %v6526 = vpack.c.b16 %v6486, %v6485
        %v6527 = vpack.c.b16 %v6487, %v6487
        %v6528 = vpack.c.b16 %v6489, %v6488
        %v6529 = vpack.c.b16 %v6490, %v6490
        %v6530 = vpack.c.b16 %v6492, %v6491
        %v6531 = vpack.c.b16 %v6493, %v6493
        %v6532 = vpack.c.b16 %v6495, %v6494
        %v6533 = vpack.c.b16 %v6496, %v6496
        %v6534 = vpack.c.b16 %v6498, %v6497
        %v6535 = vpack.c.b16 %v6499, %v6499
        %v6536 = vpack.c.b16 %v6501, %v6500
        %v6537 = vpack.c.b16 %v6502, %v6502
        %v6538 = vpack.c.b16 %v6504, %v6503
        %v6539 = vpack.c.b16 %v6505, %v6505
        %v6540 = vpack.c.b16 %v6507, %v6506
        %v6541 = vpack.c.b16 %v6508, %v6508
        %v6542 = vpack.c.b16 %v6510, %v6509
        %v6543 = vpack.c.b16 %v6511, %v6511
        %v6545 = vshrl.u32 %v6512, 16
        %v6547 = vshll.u32 %v6512, 16
        %v6549 = vrot.slane %v6547, 1
        %v6550 = vor.u32 %v6545, %v6549
        %v6552 = vshll.u32 %v6513, 16
        %v6554 = vrot.slane %v6552, 1
        %v6555 = vsel %vm1128, %v6550, %v6554
        %v6557 = vshrl.u32 %v6514, 16
        %v6559 = vshll.u32 %v6514, 16
        %v6561 = vrot.slane %v6559, 1
        %v6562 = vor.u32 %v6557, %v6561
        %v6564 = vshll.u32 %v6515, 16
        %v6566 = vrot.slane %v6564, 1
        %v6567 = vsel %vm1128, %v6562, %v6566
        %v6569 = vshrl.u32 %v6516, 16
        %v6571 = vshll.u32 %v6516, 16
        %v6573 = vrot.slane %v6571, 1
        %v6574 = vor.u32 %v6569, %v6573
        %v6576 = vshll.u32 %v6517, 16
        %v6578 = vrot.slane %v6576, 1
        %v6579 = vsel %vm1128, %v6574, %v6578
        %v6581 = vshrl.u32 %v6518, 16
        %v6583 = vshll.u32 %v6518, 16
        %v6585 = vrot.slane %v6583, 1
        %v6586 = vor.u32 %v6581, %v6585
        %v6588 = vshll.u32 %v6519, 16
        %v6590 = vrot.slane %v6588, 1
        %v6591 = vsel %vm1128, %v6586, %v6590
        %v6593 = vshrl.u32 %v6520, 16
        %v6595 = vshll.u32 %v6520, 16
        %v6597 = vrot.slane %v6595, 1
        %v6598 = vor.u32 %v6593, %v6597
        %v6600 = vshll.u32 %v6521, 16
        %v6602 = vrot.slane %v6600, 1
        %v6603 = vsel %vm1128, %v6598, %v6602
        %v6605 = vshrl.u32 %v6522, 16
        %v6607 = vshll.u32 %v6522, 16
        %v6609 = vrot.slane %v6607, 1
        %v6610 = vor.u32 %v6605, %v6609
        %v6612 = vshll.u32 %v6523, 16
        %v6614 = vrot.slane %v6612, 1
        %v6615 = vsel %vm1128, %v6610, %v6614
        %v6617 = vshrl.u32 %v6524, 16
        %v6619 = vshll.u32 %v6524, 16
        %v6621 = vrot.slane %v6619, 1
        %v6622 = vor.u32 %v6617, %v6621
        %v6624 = vshll.u32 %v6525, 16
        %v6626 = vrot.slane %v6624, 1
        %v6627 = vsel %vm1128, %v6622, %v6626
        %v6629 = vshrl.u32 %v6526, 16
        %v6631 = vshll.u32 %v6526, 16
        %v6633 = vrot.slane %v6631, 1
        %v6634 = vor.u32 %v6629, %v6633
        %v6636 = vshll.u32 %v6527, 16
        %v6638 = vrot.slane %v6636, 1
        %v6639 = vsel %vm1128, %v6634, %v6638
        %v6641 = vshrl.u32 %v6528, 16
        %v6643 = vshll.u32 %v6528, 16
        %v6645 = vrot.slane %v6643, 1
        %v6646 = vor.u32 %v6641, %v6645
        %v6648 = vshll.u32 %v6529, 16
        %v6650 = vrot.slane %v6648, 1
        %v6651 = vsel %vm1128, %v6646, %v6650
        %v6653 = vshrl.u32 %v6530, 16
        %v6655 = vshll.u32 %v6530, 16
        %v6657 = vrot.slane %v6655, 1
        %v6658 = vor.u32 %v6653, %v6657
        %v6660 = vshll.u32 %v6531, 16
        %v6662 = vrot.slane %v6660, 1
        %v6663 = vsel %vm1128, %v6658, %v6662
        %v6665 = vshrl.u32 %v6532, 16
        %v6667 = vshll.u32 %v6532, 16
        %v6669 = vrot.slane %v6667, 1
        %v6670 = vor.u32 %v6665, %v6669
        %v6672 = vshll.u32 %v6533, 16
        %v6674 = vrot.slane %v6672, 1
        %v6675 = vsel %vm1128, %v6670, %v6674
        %v6677 = vshrl.u32 %v6534, 16
        %v6679 = vshll.u32 %v6534, 16
        %v6681 = vrot.slane %v6679, 1
        %v6682 = vor.u32 %v6677, %v6681
        %v6684 = vshll.u32 %v6535, 16
        %v6686 = vrot.slane %v6684, 1
        %v6687 = vsel %vm1128, %v6682, %v6686
        %v6689 = vshrl.u32 %v6536, 16
        %v6691 = vshll.u32 %v6536, 16
        %v6693 = vrot.slane %v6691, 1
        %v6694 = vor.u32 %v6689, %v6693
        %v6696 = vshll.u32 %v6537, 16
        %v6698 = vrot.slane %v6696, 1
        %v6699 = vsel %vm1128, %v6694, %v6698
        %v6701 = vshrl.u32 %v6538, 16
        %v6703 = vshll.u32 %v6538, 16
        %v6705 = vrot.slane %v6703, 1
        %v6706 = vor.u32 %v6701, %v6705
        %v6708 = vshll.u32 %v6539, 16
        %v6710 = vrot.slane %v6708, 1
        %v6711 = vsel %vm1128, %v6706, %v6710
        %v6713 = vshrl.u32 %v6540, 16
        %v6715 = vshll.u32 %v6540, 16
        %v6717 = vrot.slane %v6715, 1
        %v6718 = vor.u32 %v6713, %v6717
        %v6720 = vshll.u32 %v6541, 16
        %v6722 = vrot.slane %v6720, 1
        %v6723 = vsel %vm1128, %v6718, %v6722
        %v6725 = vshrl.u32 %v6542, 16
        %v6727 = vshll.u32 %v6542, 16
        %v6729 = vrot.slane %v6727, 1
        %v6730 = vor.u32 %v6725, %v6729
        %v6732 = vshll.u32 %v6543, 16
        %v6734 = vrot.slane %v6732, 1
        %v6735 = vsel %vm1128, %v6730, %v6734
        %6736 = vrot.lane.b32.xlu0 %v6555, 56
        %v6737 = vpop.permute.xlu0 %6736
        %6738 = vrot.lane.b32.xlu0 %v6567, 56
        %v6739 = vpop.permute.xlu0 %6738
        %6740 = vrot.lane.b32.xlu0 %v6579, 56
        %v6741 = vpop.permute.xlu0 %6740
        %6742 = vrot.lane.b32.xlu0 %v6591, 56
        %v6743 = vpop.permute.xlu0 %6742
        %6744 = vrot.lane.b32.xlu0 %v6603, 56
        %v6745 = vpop.permute.xlu0 %6744
        %6746 = vrot.lane.b32.xlu0 %v6615, 56
        %v6747 = vpop.permute.xlu0 %6746
        %6748 = vrot.lane.b32.xlu0 %v6627, 56
        %v6749 = vpop.permute.xlu0 %6748
        %6750 = vrot.lane.b32.xlu0 %v6639, 56
        %v6751 = vpop.permute.xlu0 %6750
        %6752 = vrot.lane.b32.xlu0 %v6651, 56
        %v6753 = vpop.permute.xlu0 %6752
        %6754 = vrot.lane.b32.xlu0 %v6663, 56
        %v6755 = vpop.permute.xlu0 %6754
        %6756 = vrot.lane.b32.xlu0 %v6675, 56
        %v6757 = vpop.permute.xlu0 %6756
        %6758 = vrot.lane.b32.xlu0 %v6687, 56
        %v6759 = vpop.permute.xlu0 %6758
        %6760 = vrot.lane.b32.xlu0 %v6699, 56
        %v6761 = vpop.permute.xlu0 %6760
        %6762 = vrot.lane.b32.xlu0 %v6711, 56
        %v6763 = vpop.permute.xlu0 %6762
        %6764 = vrot.lane.b32.xlu0 %v6723, 56
        %v6765 = vpop.permute.xlu0 %6764
        %6766 = vrot.lane.b32.xlu0 %v6735, 56
        %v6767 = vpop.permute.xlu0 %6766
        %vm6784 = vcmask 523712
        %6785 = vst.msk [vmem:[#allocation5] sm:$0xff] %vm6784, %v6737
        %6786 = vst.msk [vmem:[#allocation5 + $0x8] sm:$0xff] %vm6784, %v6739
        %6787 = vst.msk [vmem:[#allocation5 + $0x10] sm:$0xff] %vm6784, %v6741
        %6788 = vst.msk [vmem:[#allocation5 + $0x18] sm:$0xff] %vm6784, %v6743
        %6789 = vst.msk [vmem:[#allocation5 + $0x20] sm:$0xff] %vm6784, %v6745
        %6790 = vst.msk [vmem:[#allocation5 + $0x28] sm:$0xff] %vm6784, %v6747
        %6791 = vst.msk [vmem:[#allocation5 + $0x30] sm:$0xff] %vm6784, %v6749
        %6792 = vst.msk [vmem:[#allocation5 + $0x38] sm:$0xff] %vm6784, %v6751
        %6793 = vst.msk [vmem:[#allocation5 + $0x40] sm:$0xff] %vm6784, %v6753
        %6794 = vst.msk [vmem:[#allocation5 + $0x48] sm:$0xff] %vm6784, %v6755
        %6795 = vst.msk [vmem:[#allocation5 + $0x50] sm:$0xff] %vm6784, %v6757
        %6796 = vst.msk [vmem:[#allocation5 + $0x58] sm:$0xff] %vm6784, %v6759
        %6797 = vst.msk [vmem:[#allocation5 + $0x60] sm:$0xff] %vm6784, %v6761
        %6798 = vst.msk [vmem:[#allocation5 + $0x68] sm:$0xff] %vm6784, %v6763
        %6799 = vst.msk [vmem:[#allocation5 + $0x70] sm:$0xff] %vm6784, %v6765
        %6800 = vst.msk [vmem:[#allocation5 + $0x78] sm:$0xff] %vm6784, %v6767
        %v6801 = vld [vmem:[%s6190] sm:$0xe]
        %v6802 = vld [vmem:[%s6190 + $0x4] sm:$0xf]
        %v6803 = vld [vmem:[%s6190 + $0x8] sm:$0x1]
        %v6804 = vld [vmem:[%s6190 + $0xc] sm:$0xe]
        %v6805 = vld [vmem:[%s6190 + $0x10] sm:$0xf]
        %v6806 = vld [vmem:[%s6190 + $0x14] sm:$0x1]
        %v6807 = vld [vmem:[%s6190 + $0x18] sm:$0xe]
        %v6808 = vld [vmem:[%s6190 + $0x1c] sm:$0xf]
        %v6809 = vld [vmem:[%s6190 + $0x20] sm:$0x1]
        %v6810 = vld [vmem:[%s6190 + $0x24] sm:$0xe]
        %v6811 = vld [vmem:[%s6190 + $0x28] sm:$0xf]
        %v6812 = vld [vmem:[%s6190 + $0x2c] sm:$0x1]
        %v6813 = vld [vmem:[%s6190 + $0x30] sm:$0xe]
        %v6814 = vld [vmem:[%s6190 + $0x34] sm:$0xf]
        %v6815 = vld [vmem:[%s6190 + $0x38] sm:$0x1]
        %v6816 = vld [vmem:[%s6190 + $0x3c] sm:$0xe]
        %v6817 = vld [vmem:[%s6190 + $0x40] sm:$0xf]
        %v6818 = vld [vmem:[%s6190 + $0x44] sm:$0x1]
        %v6819 = vld [vmem:[%s6190 + $0x48] sm:$0xe]
        %v6820 = vld [vmem:[%s6190 + $0x4c] sm:$0xf]
        %v6821 = vld [vmem:[%s6190 + $0x50] sm:$0x1]
        %v6822 = vld [vmem:[%s6190 + $0x54] sm:$0xe]
        %v6823 = vld [vmem:[%s6190 + $0x58] sm:$0xf]
        %v6824 = vld [vmem:[%s6190 + $0x5c] sm:$0x1]
        %v6825 = vld [vmem:[%s6190 + $0x60] sm:$0xe]
        %v6826 = vld [vmem:[%s6190 + $0x64] sm:$0xf]
        %v6827 = vld [vmem:[%s6190 + $0x68] sm:$0x1]
        %v6828 = vld [vmem:[%s6190 + $0x6c] sm:$0xe]
        %v6829 = vld [vmem:[%s6190 + $0x70] sm:$0xf]
        %v6830 = vld [vmem:[%s6190 + $0x74] sm:$0x1]
        %v6831 = vld [vmem:[%s6190 + $0x78] sm:$0xe]
        %v6832 = vld [vmem:[%s6190 + $0x7c] sm:$0xf]
        %v6833 = vld [vmem:[%s6190 + $0x80] sm:$0x1]
        %v6834 = vld [vmem:[%s6190 + $0x84] sm:$0xe]
        %v6835 = vld [vmem:[%s6190 + $0x88] sm:$0xf]
        %v6836 = vld [vmem:[%s6190 + $0x8c] sm:$0x1]
        %v6837 = vld [vmem:[%s6190 + $0x90] sm:$0xe]
        %v6838 = vld [vmem:[%s6190 + $0x94] sm:$0xf]
        %v6839 = vld [vmem:[%s6190 + $0x98] sm:$0x1]
        %v6840 = vld [vmem:[%s6190 + $0x9c] sm:$0xe]
        %v6841 = vld [vmem:[%s6190 + $0xa0] sm:$0xf]
        %v6842 = vld [vmem:[%s6190 + $0xa4] sm:$0x1]
        %v6843 = vld [vmem:[%s6190 + $0xa8] sm:$0xe]
        %v6844 = vld [vmem:[%s6190 + $0xac] sm:$0xf]
        %v6845 = vld [vmem:[%s6190 + $0xb0] sm:$0x1]
        %v6846 = vld [vmem:[%s6190 + $0xb4] sm:$0xe]
        %v6847 = vld [vmem:[%s6190 + $0xb8] sm:$0xf]
        %v6848 = vld [vmem:[%s6190 + $0xbc] sm:$0x1]
        %v6897 = vunpack.c.l.b16 %v6801
        %v6898 = vunpack.c.l.b16 %v6802
        %v6899 = vunpack.c.l.b16 %v6803
        %v6900 = vunpack.c.l.b16 %v6804
        %v6901 = vunpack.c.l.b16 %v6805
        %v6902 = vunpack.c.l.b16 %v6806
        %v6903 = vunpack.c.l.b16 %v6807
        %v6904 = vunpack.c.l.b16 %v6808
        %v6905 = vunpack.c.l.b16 %v6809
        %v6906 = vunpack.c.l.b16 %v6810
        %v6907 = vunpack.c.l.b16 %v6811
        %v6908 = vunpack.c.l.b16 %v6812
        %v6909 = vunpack.c.l.b16 %v6813
        %v6910 = vunpack.c.l.b16 %v6814
        %v6911 = vunpack.c.l.b16 %v6815
        %v6912 = vunpack.c.l.b16 %v6816
        %v6913 = vunpack.c.l.b16 %v6817
        %v6914 = vunpack.c.l.b16 %v6818
        %v6915 = vunpack.c.l.b16 %v6819
        %v6916 = vunpack.c.l.b16 %v6820
        %v6917 = vunpack.c.l.b16 %v6821
        %v6918 = vunpack.c.l.b16 %v6822
        %v6919 = vunpack.c.l.b16 %v6823
        %v6920 = vunpack.c.l.b16 %v6824
        %v6921 = vunpack.c.l.b16 %v6825
        %v6922 = vunpack.c.l.b16 %v6826
        %v6923 = vunpack.c.l.b16 %v6827
        %v6924 = vunpack.c.l.b16 %v6828
        %v6925 = vunpack.c.l.b16 %v6829
        %v6926 = vunpack.c.l.b16 %v6830
        %v6927 = vunpack.c.l.b16 %v6831
        %v6928 = vunpack.c.l.b16 %v6832
        %v6929 = vunpack.c.l.b16 %v6833
        %v6930 = vunpack.c.l.b16 %v6834
        %v6931 = vunpack.c.l.b16 %v6835
        %v6932 = vunpack.c.l.b16 %v6836
        %v6933 = vunpack.c.l.b16 %v6837
        %v6934 = vunpack.c.l.b16 %v6838
        %v6935 = vunpack.c.l.b16 %v6839
        %v6936 = vunpack.c.l.b16 %v6840
        %v6937 = vunpack.c.l.b16 %v6841
        %v6938 = vunpack.c.l.b16 %v6842
        %v6939 = vunpack.c.l.b16 %v6843
        %v6940 = vunpack.c.l.b16 %v6844
        %v6941 = vunpack.c.l.b16 %v6845
        %v6942 = vunpack.c.l.b16 %v6846
        %v6943 = vunpack.c.l.b16 %v6847
        %v6944 = vunpack.c.l.b16 %v6848
        %v6945 = vpack.c.b16 %v6898, %v6897
        %v6946 = vpack.c.b16 %v6899, %v6899
        %v6947 = vpack.c.b16 %v6901, %v6900
        %v6948 = vpack.c.b16 %v6902, %v6902
        %v6949 = vpack.c.b16 %v6904, %v6903
        %v6950 = vpack.c.b16 %v6905, %v6905
        %v6951 = vpack.c.b16 %v6907, %v6906
        %v6952 = vpack.c.b16 %v6908, %v6908
        %v6953 = vpack.c.b16 %v6910, %v6909
        %v6954 = vpack.c.b16 %v6911, %v6911
        %v6955 = vpack.c.b16 %v6913, %v6912
        %v6956 = vpack.c.b16 %v6914, %v6914
        %v6957 = vpack.c.b16 %v6916, %v6915
        %v6958 = vpack.c.b16 %v6917, %v6917
        %v6959 = vpack.c.b16 %v6919, %v6918
        %v6960 = vpack.c.b16 %v6920, %v6920
        %v6961 = vpack.c.b16 %v6922, %v6921
        %v6962 = vpack.c.b16 %v6923, %v6923
        %v6963 = vpack.c.b16 %v6925, %v6924
        %v6964 = vpack.c.b16 %v6926, %v6926
        %v6965 = vpack.c.b16 %v6928, %v6927
        %v6966 = vpack.c.b16 %v6929, %v6929
        %v6967 = vpack.c.b16 %v6931, %v6930
        %v6968 = vpack.c.b16 %v6932, %v6932
        %v6969 = vpack.c.b16 %v6934, %v6933
        %v6970 = vpack.c.b16 %v6935, %v6935
        %v6971 = vpack.c.b16 %v6937, %v6936
        %v6972 = vpack.c.b16 %v6938, %v6938
        %v6973 = vpack.c.b16 %v6940, %v6939
        %v6974 = vpack.c.b16 %v6941, %v6941
        %v6975 = vpack.c.b16 %v6943, %v6942
        %v6976 = vpack.c.b16 %v6944, %v6944
        %v6977 = vrot.slane %v6945, 1
        %v6978 = vrot.slane %v6946, 1
        %v6979 = vsel %vm1562, %v6977, %v6978
        %v6980 = vrot.slane %v6947, 1
        %v6981 = vrot.slane %v6948, 1
        %v6982 = vsel %vm1562, %v6980, %v6981
        %v6983 = vrot.slane %v6949, 1
        %v6984 = vrot.slane %v6950, 1
        %v6985 = vsel %vm1562, %v6983, %v6984
        %v6986 = vrot.slane %v6951, 1
        %v6987 = vrot.slane %v6952, 1
        %v6988 = vsel %vm1562, %v6986, %v6987
        %v6989 = vrot.slane %v6953, 1
        %v6990 = vrot.slane %v6954, 1
        %v6991 = vsel %vm1562, %v6989, %v6990
        %v6992 = vrot.slane %v6955, 1
        %v6993 = vrot.slane %v6956, 1
        %v6994 = vsel %vm1562, %v6992, %v6993
        %v6995 = vrot.slane %v6957, 1
        %v6996 = vrot.slane %v6958, 1
        %v6997 = vsel %vm1562, %v6995, %v6996
        %v6998 = vrot.slane %v6959, 1
        %v6999 = vrot.slane %v6960, 1
        %v7000 = vsel %vm1562, %v6998, %v6999
        %v7001 = vrot.slane %v6961, 1
        %v7002 = vrot.slane %v6962, 1
        %v7003 = vsel %vm1562, %v7001, %v7002
        %v7004 = vrot.slane %v6963, 1
        %v7005 = vrot.slane %v6964, 1
        %v7006 = vsel %vm1562, %v7004, %v7005
        %v7007 = vrot.slane %v6965, 1
        %v7008 = vrot.slane %v6966, 1
        %v7009 = vsel %vm1562, %v7007, %v7008
        %v7010 = vrot.slane %v6967, 1
        %v7011 = vrot.slane %v6968, 1
        %v7012 = vsel %vm1562, %v7010, %v7011
        %v7013 = vrot.slane %v6969, 1
        %v7014 = vrot.slane %v6970, 1
        %v7015 = vsel %vm1562, %v7013, %v7014
        %v7016 = vrot.slane %v6971, 1
        %v7017 = vrot.slane %v6972, 1
        %v7018 = vsel %vm1562, %v7016, %v7017
        %v7019 = vrot.slane %v6973, 1
        %v7020 = vrot.slane %v6974, 1
        %v7021 = vsel %vm1562, %v7019, %v7020
        %v7022 = vrot.slane %v6975, 1
        %v7023 = vrot.slane %v6976, 1
        %v7024 = vsel %vm1562, %v7022, %v7023
        %7025 = vrot.lane.b32.xlu0 %v6979, 64
        %v7026 = vpop.permute.xlu0 %7025
        %7027 = vrot.lane.b32.xlu0 %v6982, 64
        %v7028 = vpop.permute.xlu0 %7027
        %7029 = vrot.lane.b32.xlu0 %v6985, 64
        %v7030 = vpop.permute.xlu0 %7029
        %7031 = vrot.lane.b32.xlu0 %v6988, 64
        %v7032 = vpop.permute.xlu0 %7031
        %7033 = vrot.lane.b32.xlu0 %v6991, 64
        %v7034 = vpop.permute.xlu0 %7033
        %7035 = vrot.lane.b32.xlu0 %v6994, 64
        %v7036 = vpop.permute.xlu0 %7035
        %7037 = vrot.lane.b32.xlu0 %v6997, 64
        %v7038 = vpop.permute.xlu0 %7037
        %7039 = vrot.lane.b32.xlu0 %v7000, 64
        %v7040 = vpop.permute.xlu0 %7039
        %7041 = vrot.lane.b32.xlu0 %v7003, 64
        %v7042 = vpop.permute.xlu0 %7041
        %7043 = vrot.lane.b32.xlu0 %v7006, 64
        %v7044 = vpop.permute.xlu0 %7043
        %7045 = vrot.lane.b32.xlu0 %v7009, 64
        %v7046 = vpop.permute.xlu0 %7045
        %7047 = vrot.lane.b32.xlu0 %v7012, 64
        %v7048 = vpop.permute.xlu0 %7047
        %7049 = vrot.lane.b32.xlu0 %v7015, 64
        %v7050 = vpop.permute.xlu0 %7049
        %7051 = vrot.lane.b32.xlu0 %v7018, 64
        %v7052 = vpop.permute.xlu0 %7051
        %7053 = vrot.lane.b32.xlu0 %v7021, 64
        %v7054 = vpop.permute.xlu0 %7053
        %7055 = vrot.lane.b32.xlu0 %v7024, 64
        %v7056 = vpop.permute.xlu0 %7055
        %vm7073 = vcmask 589312
        %7074 = vst.msk [vmem:[#allocation5] sm:$0xff] %vm7073, %v7026
        %7075 = vst.msk [vmem:[#allocation5 + $0x8] sm:$0xff] %vm7073, %v7028
        %7076 = vst.msk [vmem:[#allocation5 + $0x10] sm:$0xff] %vm7073, %v7030
        %7077 = vst.msk [vmem:[#allocation5 + $0x18] sm:$0xff] %vm7073, %v7032
        %7078 = vst.msk [vmem:[#allocation5 + $0x20] sm:$0xff] %vm7073, %v7034
        %7079 = vst.msk [vmem:[#allocation5 + $0x28] sm:$0xff] %vm7073, %v7036
        %7080 = vst.msk [vmem:[#allocation5 + $0x30] sm:$0xff] %vm7073, %v7038
        %7081 = vst.msk [vmem:[#allocation5 + $0x38] sm:$0xff] %vm7073, %v7040
        %7082 = vst.msk [vmem:[#allocation5 + $0x40] sm:$0xff] %vm7073, %v7042
        %7083 = vst.msk [vmem:[#allocation5 + $0x48] sm:$0xff] %vm7073, %v7044
        %7084 = vst.msk [vmem:[#allocation5 + $0x50] sm:$0xff] %vm7073, %v7046
        %7085 = vst.msk [vmem:[#allocation5 + $0x58] sm:$0xff] %vm7073, %v7048
        %7086 = vst.msk [vmem:[#allocation5 + $0x60] sm:$0xff] %vm7073, %v7050
        %7087 = vst.msk [vmem:[#allocation5 + $0x68] sm:$0xff] %vm7073, %v7052
        %7088 = vst.msk [vmem:[#allocation5 + $0x70] sm:$0xff] %vm7073, %v7054
        %7089 = vst.msk [vmem:[#allocation5 + $0x78] sm:$0xff] %vm7073, %v7056
        %v7090 = vld [vmem:[#allocation5] sm:$0xff]
        %v7091 = vld [vmem:[#allocation5 + $0x8] sm:$0xff]
        %v7092 = vld [vmem:[#allocation5 + $0x10] sm:$0xff]
        %v7093 = vld [vmem:[#allocation5 + $0x18] sm:$0xff]
        %v7094 = vld [vmem:[#allocation5 + $0x20] sm:$0xff]
        %v7095 = vld [vmem:[#allocation5 + $0x28] sm:$0xff]
        %v7096 = vld [vmem:[#allocation5 + $0x30] sm:$0xff]
        %v7097 = vld [vmem:[#allocation5 + $0x38] sm:$0xff]
        %v7098 = vld [vmem:[#allocation5 + $0x40] sm:$0xff]
        %v7099 = vld [vmem:[#allocation5 + $0x48] sm:$0xff]
        %v7100 = vld [vmem:[#allocation5 + $0x50] sm:$0xff]
        %v7101 = vld [vmem:[#allocation5 + $0x58] sm:$0xff]
        %v7102 = vld [vmem:[#allocation5 + $0x60] sm:$0xff]
        %v7103 = vld [vmem:[#allocation5 + $0x68] sm:$0xff]
        %v7104 = vld [vmem:[#allocation5 + $0x70] sm:$0xff]
        %v7105 = vld [vmem:[#allocation5 + $0x78] sm:$0xff]
        %v7106 = vld [vmem:[%s4] sm:$0xf]
        %v7107 = vld [vmem:[%s4 + $0x4] sm:$0xf]
        %v7108 = vld [vmem:[%s4 + $0x8] sm:$0xf]
        %v7109 = vld [vmem:[%s4 + $0xc] sm:$0xf]
        %v7110 = vld [vmem:[%s4 + $0x10] sm:$0xf]
        %v7111 = vld [vmem:[%s4 + $0x14] sm:$0xf]
        %v7112 = vld [vmem:[%s4 + $0x18] sm:$0xf]
        %v7113 = vld [vmem:[%s4 + $0x1c] sm:$0xf]
        %v7114 = vld [vmem:[%s4 + $0x20] sm:$0xf]
        %v7124 = vunpack.c.l.b16 %v7106
        %v7125 = vunpack.c.l.b16 %v7107
        %v7126 = vunpack.c.l.b16 %v7108
        %v7127 = vunpack.c.l.b16 %v7109
        %v7128 = vunpack.c.l.b16 %v7110
        %v7129 = vunpack.c.l.b16 %v7111
        %v7130 = vunpack.c.l.b16 %v7112
        %v7131 = vunpack.c.l.b16 %v7113
        %v7132 = vunpack.c.l.b16 %v7114
        %v7133 = vpack.c.b16 %v7125, %v7124
        %v7134 = vpack.c.b16 %v7127, %v7126
        %v7135 = vpack.c.b16 %v7129, %v7128
        %v7136 = vpack.c.b16 %v7131, %v7130
        %v7137 = vpack.c.b16 %v7132, %v7132
        %vm7142 = vcmask 588800
        %v7144 = vsel %vm7142, %v7090, 0
        %v7147 = vsel %vm7142, %v7091, 0
        %v7150 = vsel %vm7142, %v7092, 0
        %v7153 = vsel %vm7142, %v7093, 0
        %v7156 = vsel %vm7142, %v7094, 0
        %v7159 = vsel %vm7142, %v7095, 0
        %v7162 = vsel %vm7142, %v7096, 0
        %v7165 = vsel %vm7142, %v7097, 0
        %v7168 = vsel %vm7142, %v7098, 0
        %v7171 = vsel %vm7142, %v7099, 0
        %v7174 = vsel %vm7142, %v7100, 0
        %v7177 = vsel %vm7142, %v7101, 0
        %v7180 = vsel %vm7142, %v7102, 0
        %v7183 = vsel %vm7142, %v7103, 0
        %v7186 = vsel %vm7142, %v7104, 0
        %v7189 = vsel %vm7142, %v7105, 0
        %vm7191 = vcmask 1043456
        %v7193 = vsel %vm7191, %v7137, 0
        %7195 = vmatprep.subr.bf16.mxu0 0
        %7196 = vmatpush1.bf16.msra.mxu0 %v7133
        %7197 = vmatprep.subr.bf16.mxu0 0
        %7198 = vmatpush1.bf16.msra.mxu0 %v7134
        %7199 = vmatprep.subr.bf16.mxu0 0
        %7200 = vmatpush1.bf16.msra.mxu0 %v7135
        %7201 = vmatprep.subr.bf16.mxu0 0
        %7202 = vmatpush1.bf16.msra.mxu0 %v7136
        %7203 = vmatprep.subr.bf16.mxu0 0
        %7204 = vmatpush1.bf16.msra.mxu0 %v7193
        %7205 = vmatprep.subr.bf16.mxu0 0
        %7206 = vmatpush1.bf16.msra.mxu0 0
        %7207 = vmatprep.subr.bf16.mxu0 0
        %7208 = vmatpush1.bf16.msra.mxu0 0
        %7209 = vmatprep.subr.bf16.mxu0 0
        %7210 = vmatpush1.bf16.msra.mxu0 0
        %7211 = vmatprep.subr.bf16.mxu0 0
        %7212 = vmatpush1.bf16.msra.mxu0 0
        %7213 = vmatprep.subr.bf16.mxu0 0
        %7214 = vmatpush1.bf16.msra.mxu0 0
        %7215 = vmatprep.subr.bf16.mxu0 0
        %7216 = vmatpush1.bf16.msra.mxu0 0
        %7217 = vmatprep.subr.bf16.mxu0 0
        %7218 = vmatpush1.bf16.msra.mxu0 0
        %7219 = vmatprep.subr.bf16.mxu0 0
        %7220 = vmatpush1.bf16.msra.mxu0 0
        %7221 = vmatprep.subr.bf16.mxu0 0
        %7222 = vmatpush1.bf16.msra.mxu0 0
        %7223 = vmatprep.subr.bf16.mxu0 0
        %7224 = vmatpush1.bf16.msra.mxu0 0
        %7225 = vmatprep.subr.bf16.mxu0 0
        %7226 = vmatpush1.bf16.msra.mxu0 0
        %7227 = vmatprep.mubr.bf16.mxu0 0
        %7228 = vmatmul.mubr.bf16.gmra.mrb[0].mxu0 %v7144
        %v7229 = vpop.f32.mrb[0].mxu0
        %v7230 = vadd.f32 0.0, %v7229
        %v7231 = vpop.f32.mrb[0].mxu0
        %v7232 = vpop.f32.mrb[0].mxu0
        %v7233 = vadd.f32 0.0, %v7232
        %v7234 = vpop.f32.mrb[0].mxu0
        %7235 = vmatprep.mubr.bf16.mxu0 0
        %7236 = vmatmul.mubr.bf16.gmra.mrb[0].mxu0 %v7147
        %v7237 = vpop.f32.mrb[0].mxu0
        %v7238 = vadd.f32 0.0, %v7237
        %v7239 = vpop.f32.mrb[0].mxu0
        %v7240 = vpop.f32.mrb[0].mxu0
        %v7241 = vadd.f32 0.0, %v7240
        %v7242 = vpop.f32.mrb[0].mxu0
        %7243 = vmatprep.mubr.bf16.mxu0 0
        %7244 = vmatmul.mubr.bf16.gmra.mrb[0].mxu0 %v7150
        %v7245 = vpop.f32.mrb[0].mxu0
        %v7246 = vadd.f32 0.0, %v7245
        %v7247 = vpop.f32.mrb[0].mxu0
        %v7248 = vpop.f32.mrb[0].mxu0
        %v7249 = vadd.f32 0.0, %v7248
        %v7250 = vpop.f32.mrb[0].mxu0
        %7251 = vmatprep.mubr.bf16.mxu0 0
        %7252 = vmatmul.mubr.bf16.gmra.mrb[0].mxu0 %v7153
        %v7253 = vpop.f32.mrb[0].mxu0
        %v7254 = vadd.f32 0.0, %v7253
        %v7255 = vpop.f32.mrb[0].mxu0
        %v7256 = vpop.f32.mrb[0].mxu0
        %v7257 = vadd.f32 0.0, %v7256
        %v7258 = vpop.f32.mrb[0].mxu0
        %7259 = vmatprep.mubr.bf16.mxu0 0
        %7260 = vmatmul.mubr.bf16.gmra.mrb[0].mxu0 %v7156
        %v7261 = vpop.f32.mrb[0].mxu0
        %v7262 = vadd.f32 0.0, %v7261
        %v7263 = vpop.f32.mrb[0].mxu0
        %v7264 = vpop.f32.mrb[0].mxu0
        %v7265 = vadd.f32 0.0, %v7264
        %v7266 = vpop.f32.mrb[0].mxu0
        %7267 = vmatprep.mubr.bf16.mxu0 0
        %7268 = vmatmul.mubr.bf16.gmra.mrb[0].mxu0 %v7159
        %v7269 = vpop.f32.mrb[0].mxu0
        %v7270 = vadd.f32 0.0, %v7269
        %v7271 = vpop.f32.mrb[0].mxu0
        %v7272 = vpop.f32.mrb[0].mxu0
        %v7273 = vadd.f32 0.0, %v7272
        %v7274 = vpop.f32.mrb[0].mxu0
        %7275 = vmatprep.mubr.bf16.mxu0 0
        %7276 = vmatmul.mubr.bf16.gmra.mrb[0].mxu0 %v7162
        %v7277 = vpop.f32.mrb[0].mxu0
        %v7278 = vadd.f32 0.0, %v7277
        %v7279 = vpop.f32.mrb[0].mxu0
        %v7280 = vpop.f32.mrb[0].mxu0
        %v7281 = vadd.f32 0.0, %v7280
        %v7282 = vpop.f32.mrb[0].mxu0
        %7283 = vmatprep.mubr.bf16.mxu0 0
        %7284 = vmatmul.mubr.bf16.gmra.mrb[0].mxu0 %v7165
        %v7285 = vpop.f32.mrb[0].mxu0
        %v7286 = vadd.f32 0.0, %v7285
        %v7287 = vpop.f32.mrb[0].mxu0
        %v7288 = vpop.f32.mrb[0].mxu0
        %v7289 = vadd.f32 0.0, %v7288
        %v7290 = vpop.f32.mrb[0].mxu0
        %7291 = vmatprep.mubr.bf16.mxu0 0
        %7292 = vmatmul.mubr.bf16.gmra.mrb[0].mxu0 %v7168
        %v7293 = vpop.f32.mrb[0].mxu0
        %v7294 = vadd.f32 0.0, %v7293
        %v7295 = vpop.f32.mrb[0].mxu0
        %v7296 = vpop.f32.mrb[0].mxu0
        %v7297 = vadd.f32 0.0, %v7296
        %v7298 = vpop.f32.mrb[0].mxu0
        %7299 = vmatprep.mubr.bf16.mxu0 0
        %7300 = vmatmul.mubr.bf16.gmra.mrb[0].mxu0 %v7171
        %v7301 = vpop.f32.mrb[0].mxu0
        %v7302 = vadd.f32 0.0, %v7301
        %v7303 = vpop.f32.mrb[0].mxu0
        %v7304 = vpop.f32.mrb[0].mxu0
        %v7305 = vadd.f32 0.0, %v7304
        %v7306 = vpop.f32.mrb[0].mxu0
        %7307 = vmatprep.mubr.bf16.mxu0 0
        %7308 = vmatmul.mubr.bf16.gmra.mrb[0].mxu0 %v7174
        %v7309 = vpop.f32.mrb[0].mxu0
        %v7310 = vadd.f32 0.0, %v7309
        %v7311 = vpop.f32.mrb[0].mxu0
        %v7312 = vpop.f32.mrb[0].mxu0
        %v7313 = vadd.f32 0.0, %v7312
        %v7314 = vpop.f32.mrb[0].mxu0
        %7315 = vmatprep.mubr.bf16.mxu0 0
        %7316 = vmatmul.mubr.bf16.gmra.mrb[0].mxu0 %v7177
        %v7317 = vpop.f32.mrb[0].mxu0
        %v7318 = vadd.f32 0.0, %v7317
        %v7319 = vpop.f32.mrb[0].mxu0
        %v7320 = vpop.f32.mrb[0].mxu0
        %v7321 = vadd.f32 0.0, %v7320
        %v7322 = vpop.f32.mrb[0].mxu0
        %7323 = vmatprep.mubr.bf16.mxu0 0
        %7324 = vmatmul.mubr.bf16.gmra.mrb[0].mxu0 %v7180
        %v7325 = vpop.f32.mrb[0].mxu0
        %v7326 = vadd.f32 0.0, %v7325
        %v7327 = vpop.f32.mrb[0].mxu0
        %v7328 = vpop.f32.mrb[0].mxu0
        %v7329 = vadd.f32 0.0, %v7328
        %v7330 = vpop.f32.mrb[0].mxu0
        %7331 = vmatprep.mubr.bf16.mxu0 0
        %7332 = vmatmul.mubr.bf16.gmra.mrb[0].mxu0 %v7183
        %v7333 = vpop.f32.mrb[0].mxu0
        %v7334 = vadd.f32 0.0, %v7333
        %v7335 = vpop.f32.mrb[0].mxu0
        %v7336 = vpop.f32.mrb[0].mxu0
        %v7337 = vadd.f32 0.0, %v7336
        %v7338 = vpop.f32.mrb[0].mxu0
        %7339 = vmatprep.mubr.bf16.mxu0 0
        %7340 = vmatmul.mubr.bf16.gmra.mrb[0].mxu0 %v7186
        %v7341 = vpop.f32.mrb[0].mxu0
        %v7342 = vadd.f32 0.0, %v7341
        %v7343 = vpop.f32.mrb[0].mxu0
        %v7344 = vpop.f32.mrb[0].mxu0
        %v7345 = vadd.f32 0.0, %v7344
        %v7346 = vpop.f32.mrb[0].mxu0
        %7347 = vmatprep.mubr.bf16.mxu0 0
        %7348 = vmatmul.mubr.bf16.gmra.mrb[0].mxu0 %v7189
        %v7349 = vpop.f32.mrb[0].mxu0
        %v7350 = vadd.f32 0.0, %v7349
        %v7351 = vpop.f32.mrb[0].mxu0
        %v7352 = vpop.f32.mrb[0].mxu0
        %v7353 = vadd.f32 0.0, %v7352
        %v7354 = vpop.f32.mrb[0].mxu0
        %7355 = vdwg.mxu0
        %v7356 = vld [vmem:[%s5] sm:$0x1]
        %v7358 = vlaneseq
        %v7359 = vshrl.u32 %v7358, 7
        %v7360 = vsub.s32 0, %v7359
        %v7361 = vrot.slane %v7356, %v7360
        %v7363 = vmul.f32 %v7230, %v7361
        %v7364 = vmul.f32 %v7233, %v7361
        %v7365 = vmul.f32 %v7238, %v7361
        %v7366 = vmul.f32 %v7241, %v7361
        %v7367 = vmul.f32 %v7246, %v7361
        %v7368 = vmul.f32 %v7249, %v7361
        %v7369 = vmul.f32 %v7254, %v7361
        %v7370 = vmul.f32 %v7257, %v7361
        %v7371 = vmul.f32 %v7262, %v7361
        %v7372 = vmul.f32 %v7265, %v7361
        %v7373 = vmul.f32 %v7270, %v7361
        %v7374 = vmul.f32 %v7273, %v7361
        %v7375 = vmul.f32 %v7278, %v7361
        %v7376 = vmul.f32 %v7281, %v7361
        %v7377 = vmul.f32 %v7286, %v7361
        %v7378 = vmul.f32 %v7289, %v7361
        %v7379 = vmul.f32 %v7294, %v7361
        %v7380 = vmul.f32 %v7297, %v7361
        %v7381 = vmul.f32 %v7302, %v7361
        %v7382 = vmul.f32 %v7305, %v7361
        %v7383 = vmul.f32 %v7310, %v7361
        %v7384 = vmul.f32 %v7313, %v7361
        %v7385 = vmul.f32 %v7318, %v7361
        %v7386 = vmul.f32 %v7321, %v7361
        %v7387 = vmul.f32 %v7326, %v7361
        %v7388 = vmul.f32 %v7329, %v7361
        %v7389 = vmul.f32 %v7334, %v7361
        %v7390 = vmul.f32 %v7337, %v7361
        %v7391 = vmul.f32 %v7342, %v7361
        %v7392 = vmul.f32 %v7345, %v7361
        %v7393 = vmul.f32 %v7350, %v7361
        %v7394 = vmul.f32 %v7353, %v7361
        %v7395 = vld [vmem:[%s6] sm:$0x1]
        %v7397 = vlaneseq
        %v7398 = vshrl.u32 %v7397, 7
        %v7399 = vsub.s32 0, %v7398
        %v7400 = vrot.slane %v7395, %v7399
        %v7402 = vadd.f32 %v7363, %v7400
        %v7403 = vadd.f32 %v7364, %v7400
        %v7404 = vadd.f32 %v7365, %v7400
        %v7405 = vadd.f32 %v7366, %v7400
        %v7406 = vadd.f32 %v7367, %v7400
        %v7407 = vadd.f32 %v7368, %v7400
        %v7408 = vadd.f32 %v7369, %v7400
        %v7409 = vadd.f32 %v7370, %v7400
        %v7410 = vadd.f32 %v7371, %v7400
        %v7411 = vadd.f32 %v7372, %v7400
        %v7412 = vadd.f32 %v7373, %v7400
        %v7413 = vadd.f32 %v7374, %v7400
        %v7414 = vadd.f32 %v7375, %v7400
        %v7415 = vadd.f32 %v7376, %v7400
        %v7416 = vadd.f32 %v7377, %v7400
        %v7417 = vadd.f32 %v7378, %v7400
        %v7418 = vadd.f32 %v7379, %v7400
        %v7419 = vadd.f32 %v7380, %v7400
        %v7420 = vadd.f32 %v7381, %v7400
        %v7421 = vadd.f32 %v7382, %v7400
        %v7422 = vadd.f32 %v7383, %v7400
        %v7423 = vadd.f32 %v7384, %v7400
        %v7424 = vadd.f32 %v7385, %v7400
        %v7425 = vadd.f32 %v7386, %v7400
        %v7426 = vadd.f32 %v7387, %v7400
        %v7427 = vadd.f32 %v7388, %v7400
        %v7428 = vadd.f32 %v7389, %v7400
        %v7429 = vadd.f32 %v7390, %v7400
        %v7430 = vadd.f32 %v7391, %v7400
        %v7431 = vadd.f32 %v7392, %v7400
        %v7432 = vadd.f32 %v7393, %v7400
        %v7433 = vadd.f32 %v7394, %v7400
        %v7434 = vmax.f32 %v7402, 0.0
        %v7435 = vmax.f32 %v7403, 0.0
        %v7436 = vmax.f32 %v7404, 0.0
        %v7437 = vmax.f32 %v7405, 0.0
        %v7438 = vmax.f32 %v7406, 0.0
        %v7439 = vmax.f32 %v7407, 0.0
        %v7440 = vmax.f32 %v7408, 0.0
        %v7441 = vmax.f32 %v7409, 0.0
        %v7442 = vmax.f32 %v7410, 0.0
        %v7443 = vmax.f32 %v7411, 0.0
        %v7444 = vmax.f32 %v7412, 0.0
        %v7445 = vmax.f32 %v7413, 0.0
        %v7446 = vmax.f32 %v7414, 0.0
        %v7447 = vmax.f32 %v7415, 0.0
        %v7448 = vmax.f32 %v7416, 0.0
        %v7449 = vmax.f32 %v7417, 0.0
        %v7450 = vmax.f32 %v7418, 0.0
        %v7451 = vmax.f32 %v7419, 0.0
        %v7452 = vmax.f32 %v7420, 0.0
        %v7453 = vmax.f32 %v7421, 0.0
        %v7454 = vmax.f32 %v7422, 0.0
        %v7455 = vmax.f32 %v7423, 0.0
        %v7456 = vmax.f32 %v7424, 0.0
        %v7457 = vmax.f32 %v7425, 0.0
        %v7458 = vmax.f32 %v7426, 0.0
        %v7459 = vmax.f32 %v7427, 0.0
        %v7460 = vmax.f32 %v7428, 0.0
        %v7461 = vmax.f32 %v7429, 0.0
        %v7462 = vmax.f32 %v7430, 0.0
        %v7463 = vmax.f32 %v7431, 0.0
        %v7464 = vmax.f32 %v7432, 0.0
        %v7465 = vmax.f32 %v7433, 0.0
        %7466 = vxpose.xlu0.b32.start [1/16] %v7434, 128
        %7467 = vxpose.xlu0.b32.cont [2/16] %v7435, 128
        %7468 = vxpose.xlu0.b32.cont [3/16] %v7436, 128
        %7469 = vxpose.xlu0.b32.cont [4/16] %v7437, 128
        %7470 = vxpose.xlu0.b32.cont [5/16] %v7438, 128
        %7471 = vxpose.xlu0.b32.cont [6/16] %v7439, 128
        %7472 = vxpose.xlu0.b32.cont [7/16] %v7440, 128
        %7473 = vxpose.xlu0.b32.cont [8/16] %v7441, 128
        %7474 = vxpose.xlu0.b32.cont [9/16] %v7442, 128
        %7475 = vxpose.xlu0.b32.cont [10/16] %v7443, 128
        %7476 = vxpose.xlu0.b32.cont [11/16] %v7444, 128
        %7477 = vxpose.xlu0.b32.cont [12/16] %v7445, 128
        %7478 = vxpose.xlu0.b32.cont [13/16] %v7446, 128
        %7479 = vxpose.xlu0.b32.cont [14/16] %v7447, 128
        %7480 = vxpose.xlu0.b32.cont [15/16] %v7448, 128
        %7481 = vxpose.xlu0.b32.end [16/16] %v7449, 128
        %v7482 = vpop.trf.xlu0
        %v7483 = vpop.trf.xlu0
        %v7484 = vpop.trf.xlu0
        %v7485 = vpop.trf.xlu0
        %v7486 = vpop.trf.xlu0
        %v7487 = vpop.trf.xlu0
        %v7488 = vpop.trf.xlu0
        %v7489 = vpop.trf.xlu0
        %v7490 = vpop.trf.xlu0
        %v7491 = vpop.trf.xlu0
        %v7492 = vpop.trf.xlu0
        %v7493 = vpop.trf.xlu0
        %v7494 = vpop.trf.xlu0
        %v7495 = vpop.trf.xlu0
        %v7496 = vpop.trf.xlu0
        %v7497 = vpop.trf.xlu0
        %7498 = vxpose.xlu0.b32.start [1/16] %v7450, 128
        %7499 = vxpose.xlu0.b32.cont [2/16] %v7451, 128
        %7500 = vxpose.xlu0.b32.cont [3/16] %v7452, 128
        %7501 = vxpose.xlu0.b32.cont [4/16] %v7453, 128
        %7502 = vxpose.xlu0.b32.cont [5/16] %v7454, 128
        %7503 = vxpose.xlu0.b32.cont [6/16] %v7455, 128
        %7504 = vxpose.xlu0.b32.cont [7/16] %v7456, 128
        %7505 = vxpose.xlu0.b32.cont [8/16] %v7457, 128
        %7506 = vxpose.xlu0.b32.cont [9/16] %v7458, 128
        %7507 = vxpose.xlu0.b32.cont [10/16] %v7459, 128
        %7508 = vxpose.xlu0.b32.cont [11/16] %v7460, 128
        %7509 = vxpose.xlu0.b32.cont [12/16] %v7461, 128
        %7510 = vxpose.xlu0.b32.cont [13/16] %v7462, 128
        %7511 = vxpose.xlu0.b32.cont [14/16] %v7463, 128
        %7512 = vxpose.xlu0.b32.cont [15/16] %v7464, 128
        %7513 = vxpose.xlu0.b32.end [16/16] %v7465, 128
        %v7514 = vpop.trf.xlu0
        %v7515 = vpop.trf.xlu0
        %v7516 = vpop.trf.xlu0
        %v7517 = vpop.trf.xlu0
        %v7518 = vpop.trf.xlu0
        %v7519 = vpop.trf.xlu0
        %v7520 = vpop.trf.xlu0
        %v7521 = vpop.trf.xlu0
        %v7522 = vpop.trf.xlu0
        %v7523 = vpop.trf.xlu0
        %v7524 = vpop.trf.xlu0
        %v7525 = vpop.trf.xlu0
        %v7526 = vpop.trf.xlu0
        %v7527 = vpop.trf.xlu0
        %v7528 = vpop.trf.xlu0
        %v7529 = vpop.trf.xlu0
        %7530 = vst [vmem:[%s271] sm:$0xff] %v7482
        %7531 = vst [vmem:[%s271 + $0x8] sm:$0xff] %v7514
        %s7532 = sand.u32 %s181, 1
        %s7533 = scalar_lea.sflag [#allocation7], %s7532
        %s7534 = sand.u32 %s181, 1
        %s7535 = smul.addr %s7534, 16
        %s7536 = scalar_lea.vmem [#allocation6], %s7535
        // Predicated region
        $region49: #{tpu_custom_call.1} parent=47 // pred_check
          %p7537 = pneg %p191
        $region50: #{tpu_custom_call.1} parent=47 // pred_check_branch
          %7539 = sbr.rel (%p7537) target = $region52
        $region51: #{tpu_custom_call.1} parent=47 // pred_region
          %s7541 = ssub.s32 256, 256
          %7542 = vsyncadd %s7533, %s7541
          %s7543 = smul.addr %s21, 2
          %s7544 = smul.addr %s7543, 128
          %s7545 = scalar_lea.hbm %s7, %s7544
          %s7547 = sshll.u32 %s7536, 4
          %s7548 = int_to_ptr.vmem [resolvable:$true] %s7547
          %7550 = dma.vmem_to_hbm [thread:$0]  %s7548, 256, %s7545, %s7533
        $region52: #{tpu_custom_call.1} parent=47 // pred_fallthru
          _
      $region48: #{tpu_custom_call.1} parent=5 // pred_fallthru
        _
      %p7551 = scmp.le.s32.totalorder 2, %s16
      // Predicated region
      $region53: #{tpu_custom_call.1} parent=5 // pred_check
        %p7552 = pneg %p7551
      $region54: #{tpu_custom_call.1} parent=5 // pred_check_branch
        %7554 = sbr.rel (%p7552) target = $region56
      $region55: #{tpu_custom_call.1} parent=5 // pred_region
        %s7555 = ssub.s32 %s16, 2
        // Predicated region
        $region57: #{tpu_custom_call.1} parent=55 // pred_check
          %p7556 = pneg %p197
        $region58: #{tpu_custom_call.1} parent=55 // pred_check_branch
          %7558 = sbr.rel (%p7556) target = $region60
        $region59: #{tpu_custom_call.1} parent=55 // pred_region
          %s7559 = sand.u32 %s182, 1
          %s7560 = scalar_lea.sflag [#allocation7], %s7559
          %s7561 = sand.u32 %s182, 1
          %s7562 = smul.addr %s7561, 16
          %s7563 = scalar_lea.vmem [#allocation6], %s7562
          %7564 = dma.done %s7560, 256
        $region60: #{tpu_custom_call.1} parent=55 // pred_fallthru
          _
      $region56: #{tpu_custom_call.1} parent=5 // pred_fallthru
        _
    $region6: #{tpu_custom_call.1} parent=1 // loop_footer
      %s20 = sadd.s32 1, %s16
    $region7: #{tpu_custom_call.1} parent=1 // loop_footer_branch
      %15 = sbr.rel target = $region3
    $region8: #{tpu_custom_call.1} parent=1 // loop_exit
      _
    %7565 = vsyncpa [#allocation7], 1
    %s7566 = scalar_lea.sflag [#allocation7], 1
    %7567 = vsyncpa %s7566, 1

</llo_original>
